<compile_context>
chip_gen: v6e
topology: v6e:2x2x1
jax: 0.10.0
libtpu: 0.0.40
codegen_flags: <defaults>
</compile_context>

<pallas_src>
import functools

import numpy as np
import jax
import jax.numpy as jnp
from jax import lax
from jax.experimental import pallas as pl
from jax.experimental.pallas import tpu as pltpu


# ----------------------------------------------------------------------------
# Small helpers (shared by wrapper and kernel -- all static Python ints).
# ----------------------------------------------------------------------------
def _pad8(r):
    return -(-r // 8) * 8


def _pad128(r):
    return -(-r // 128) * 128


def _slab_rows(d, s, m, p_rows):
    """Row offsets of each packed weight block inside the parameter slab."""
    r1 = 0
    r2 = r1 + _pad8(d)
    r3 = r2 + _pad8(s)
    r4 = r3 + m * _pad8(s)
    rd = r4 + _pad8(d)
    tot = rd + _pad8(p_rows)
    return r1, r2, r3, r4, rd, tot


def _pick_bsub(n):
    # Stack several images along the lane axis per grid step (amortizes the
    # M=8..16 matmuls and the ~0.35us fixed per-step overhead) while keeping
    # >= 2 grid steps so "parallel" still has work to shard across TCs on v7x.
    for b in (4, 2):
        if n % b == 0 and n // b >= 2:
            return b
    return 1


# ----------------------------------------------------------------------------
# Fused FSRCNN kernel (one grid step = b_sub images stacked along lanes).
# ----------------------------------------------------------------------------
def _fsrcnn_kernel(x_ref, mask_ref, w_ref, alpha_ref, o_ref, act_ref, col_ref,
                   *, m, cc, d, s, wp, guard, Ls, p_rows):
    f32 = jnp.float32
    r1, r2, r3, r4, rd, _ = _slab_rows(d, s, m, p_rows)
    cmax = act_ref.shape[0]
    lo = guard                      # start of the live lane window inside act_ref

    def prelu(v, a):
        return jnp.where(v >= 0, v, a * v)

    # Zero act_ref's guards once per step: border taps that read them produce junk
    # that is later masked away, but the memory must hold finite (non-NaN) values.
    act_ref[:, 0:guard] = jnp.zeros((cmax, guard), f32)
    act_ref[:, guard + Ls:guard + Ls + guard] = jnp.zeros((cmax, guard), f32)

    # ---- conv1: 5x5, cc -> d  (im2col into col_ref, one MXU matmul) ----------
    xw = x_ref[0]                                     # (cc, 2*guard + Ls)
    k1 = 25 * cc
    k1p = _pad8(k1)
    t = 0
    for dy in range(-2, 3):
        for dx in range(-2, 3):
            off = dy * wp + dx
            col_ref[t * cc:(t + 1) * cc, :] = xw[:, guard + off:guard + off + Ls]
            t += 1
    if k1p > k1:
        # keep the K-padding rows finite/zero; the matching slab columns hold the
        # bias / zeros, so their dot contribution is exactly zero.
        col_ref[k1:k1p, :] = jnp.zeros((k1p - k1, Ls), f32)
    w1 = w_ref[r1:r1 + d, 0:k1p]
    b1 = w_ref[r1:r1 + d, k1:k1 + 1]
    act = prelu(jnp.dot(w1, col_ref[0:k1p, :], preferred_element_type=f32) + b1,
                alpha_ref[0])                         # (d, Ls); no mask: conv2 is 1x1

    # ---- conv2: 1x1, d -> s ----------------------------------------------------
    w2 = w_ref[r2:r2 + s, 0:d]
    b2 = w_ref[r2:r2 + s, d:d + 1]
    act = prelu(jnp.dot(w2, act, preferred_element_type=f32) + b2, alpha_ref[1])
    # mask + park in act_ref so the next 3x3 conv reads a zeroed border
    act_ref[0:s, lo:lo + Ls] = act * mask_ref[0:s, :]

    # ---- m x conv3: 3x3, s -> s  (im2col K = 9*s, one matmul per layer) --------
    for li in range(m):
        t = 0
        for dy in (-1, 0, 1):
            for dx in (-1, 0, 1):
                off = dy * wp + dx
                col_ref[t * s:(t + 1) * s, :] = act_ref[0:s, lo + off:lo + off + Ls]
                t += 1
        rl = r3 + li * _pad8(s)
        w3 = w_ref[rl:rl + s, 0:9 * s]
        b3 = w_ref[rl:rl + s, 9 * s:9 * s + 1]
        act = prelu(jnp.dot(w3, col_ref[0:9 * s, :], preferred_element_type=f32) + b3,
                    alpha_ref[2 + li])
        if li + 1 < m:              # last conv3 feeds a 1x1 -> no mask/park needed
            act_ref[0:s, lo:lo + Ls] = act * mask_ref[0:s, :]

    # ---- conv4: 1x1, s -> d ----------------------------------------------------
    w4 = w_ref[r4:r4 + d, 0:s]
    b4 = w_ref[r4:r4 + d, s:s + 1]
    act = prelu(jnp.dot(w4, act, preferred_element_type=f32) + b4, alpha_ref[2 + m])
    act_ref[0:d, lo:lo + Ls] = act * mask_ref[0:d, :]

    # ---- deconv (k=9, stride=2): 4 polyphase filters, K = 25*d chunked to 128 ---
    t = 0
    for u in range(5):
        for v in range(5):
            off = (4 - u) * wp + (4 - v)
            col_ref[t * d:(t + 1) * d, :] = act_ref[0:d, lo + off:lo + off + Ls]
            t += 1
    kd = 25 * d
    acc = jnp.zeros((p_rows, Ls), f32)
    for c0 in range(0, kd, 128):
        ck = min(128, kd - c0)
        acc = acc + jnp.dot(w_ref[rd:rd + p_rows, c0:c0 + ck],
                            col_ref[c0:c0 + ck, :], preferred_element_type=f32)
    o_ref[0] = acc + w_ref[rd:rd + p_rows, kd:kd + 1]   # (p_rows, Ls) lane-dense


# ----------------------------------------------------------------------------
# Wrapper: layout prep, single pallas_call, tiny pixel-shuffle epilogue.
# ----------------------------------------------------------------------------
def fsrcnn_forward(x_nchw, kp, b_sub=None):
    n, cc, h, w = x_nchw.shape
    d = kp["w1"].shape[0]
    s = kp["w2"].shape[0]
    m = kp["w3"].shape[0]
    p_rows = kp["wd"].shape[0]
    cmax = max(d, s)

    hp, wp = h + 8, w + 8                  # 4-pixel zero border on each side
    simg = hp * wp
    spad = _pad128(simg)                   # lane-dense spatial width per image
    guard = _pad128(4 * wp + 4)            # covers every conv/deconv tap offset

    if b_sub is None:
        b_sub = _pick_bsub(n)
    assert n % b_sub == 0
    g = n // b_sub
    Ls = b_sub * spad
    lin = 2 * guard + Ls

    # Input: zero border, flatten, pad lanes, stack b_sub images, add lane guards.
    xi = jnp.pad(x_nchw, ((0, 0), (0, 0), (4, 4), (4, 4))).reshape(n, cc, simg)
    xi = jnp.pad(xi, ((0, 0), (0, 0), (0, spad - simg)))
    xi = xi.reshape(g, b_sub, cc, spad).transpose(0, 2, 1, 3).reshape(g, cc, Ls)
    xw = jnp.pad(xi, ((0, 0), (0, 0), (guard, guard)))            # (g, cc, lin)

    # Validity mask, pre-broadcast to (cmax, Ls) (no in-kernel broadcasts).
    idx = jnp.arange(spad)
    rr, col = idx // wp, idx % wp
    mrow = ((idx < simg) & (rr >= 4) & (rr < 4 + h)
            & (col >= 4) & (col < 4 + w)).astype(jnp.float32)
    mask = jnp.broadcast_to(jnp.tile(mrow, (b_sub,))[None, :], (cmax, Ls))

    # Pack all weights + biases into ONE lane-padded slab (single DMA per step).
    slab_w = _pad128(max(25 * cc, d, 9 * s, s, 25 * d) + 1)

    def blockify(wmat, bvec, rows):
        wb = jnp.concatenate([wmat, bvec], axis=1)
        return jnp.pad(wb, ((0, rows - wb.shape[0]), (0, slab_w - wb.shape[1])))

    blocks = [blockify(kp["w1"], kp["b1"], _pad8(d)),
              blockify(kp["w2"], kp["b2"], _pad8(s))]
    for li in range(m):
        blocks.append(blockify(kp["w3"][li], kp["b3"][li], _pad8(s)))
    blocks.append(blockify(kp["w4"], kp["b4"], _pad8(d)))
    blocks.append(blockify(kp["wd"], kp["bd"], _pad8(p_rows)))
    wslab = jnp.concatenate(blocks, axis=0)
    tot_rows = wslab.shape[0]

    col_rows = _pad8(max(25 * cc, 9 * s, 25 * d))

    kernel = functools.partial(_fsrcnn_kernel, m=m, cc=cc, d=d, s=s, wp=wp,
                               guard=guard, Ls=Ls, p_rows=p_rows)

    out = pl.pallas_call(
        kernel,
        out_shape=jax.ShapeDtypeStruct((g, p_rows, Ls), jnp.float32),
        grid=(g,),
        in_specs=[
            pl.BlockSpec((1, cc, lin), lambda i: (i, 0, 0)),
            pl.BlockSpec((cmax, Ls), lambda i: (0, 0)),
            pl.BlockSpec((tot_rows, slab_w), lambda i: (0, 0)),
            pl.BlockSpec(memory_space=pltpu.SMEM),
        ],
        out_specs=pl.BlockSpec((1, p_rows, Ls), lambda i: (i, 0, 0)),
        scratch_shapes=[
            pltpu.VMEM((cmax, 2 * guard + Ls), jnp.float32),   # guarded activations
            pltpu.VMEM((col_rows, Ls), jnp.float32),           # im2col scratch
        ],
        compiler_params=pltpu.CompilerParams(
            dimension_semantics=("parallel",)),
    )(xw, mask, wslab, kp["alphas"])

    # Un-stack the lane-batched images, then pixel-shuffle the 4 phase planes into
    # the (2H+7, 2W+7) output (tiny ~12 KB XLA epilogue).
    out = (out.reshape(g, p_rows, b_sub, spad).transpose(0, 2, 1, 3)
              .reshape(n, p_rows, spad))
    ho, wo = 2 * h + 7, 2 * w + 7
    ph = out[:, :4 * cc, :simg].reshape(n, 4, cc, hp, wp)
    hev, hod = (ho + 1) // 2, ho // 2
    wev, wod = (wo + 1) // 2, wo // 2
    y = jnp.zeros((n, cc, ho, wo), jnp.float32)
    y = y.at[:, :, 0::2, 0::2].set(ph[:, 0, :, :hev, :wev])
    y = y.at[:, :, 0::2, 1::2].set(ph[:, 1, :, :hev, :wod])
    y = y.at[:, :, 1::2, 0::2].set(ph[:, 2, :, :hod, :wev])
    y = y.at[:, :, 1::2, 1::2].set(ph[:, 3, :, :hod, :wod])
    return y


# ----------------------------------------------------------------------------
# Parameter init (PyTorch layout) and conversion to the kernel layout.
# ----------------------------------------------------------------------------
def init_torch_params(key, d, s, m, cc):
    keys = jax.random.split(key, 8 + 2 * m)
    p = {}
    p["conv1_w"] = 0.1 * jax.random.normal(keys[0], (d, cc, 5, 5), jnp.float32)
    p["conv1_b"] = 0.01 * jax.random.normal(keys[1], (d,), jnp.float32)
    p["a1"] = jnp.float32(0.25)                       # nn.PReLU() default
    p["conv2_w"] = 0.1 * jax.random.normal(keys[2], (s, d, 1, 1), jnp.float32)
    p["conv2_b"] = 0.01 * jax.random.normal(keys[3], (s,), jnp.float32)
    p["a2"] = jnp.float32(0.25)
    p["conv3"] = []
    for i in range(m):
        wc = 0.1 * jax.random.normal(keys[4 + 2 * i], (s, s, 3, 3), jnp.float32)
        bc = 0.01 * jax.random.normal(keys[5 + 2 * i], (s,), jnp.float32)
        p["conv3"].append((wc, bc, jnp.float32(0.25)))
    p["conv4_w"] = 0.1 * jax.random.normal(keys[4 + 2 * m], (d, s, 1, 1), jnp.float32)
    p["conv4_b"] = 0.01 * jax.random.normal(keys[5 + 2 * m], (d,), jnp.float32)
    p["a4"] = jnp.float32(0.25)
    # ConvTranspose2d weight layout: (Cin=d, Cout=cc, 9, 9)
    p["deconv_w"] = 0.1 * jax.random.normal(keys[6 + 2 * m], (d, cc, 9, 9), jnp.float32)
    p["deconv_b"] = 0.01 * jax.random.normal(keys[7 + 2 * m], (cc,), jnp.float32)
    return p


def prepare_kernel_params(tp):
    d, cc = tp["conv1_w"].shape[0], tp["conv1_w"].shape[1]
    s = tp["conv2_w"].shape[0]
    m = len(tp["conv3"])
    kp = {}
    kp["w1"] = jnp.transpose(tp["conv1_w"], (0, 2, 3, 1)).reshape(d, 25 * cc)
    kp["b1"] = tp["conv1_b"].reshape(d, 1)
    kp["w2"] = tp["conv2_w"].reshape(s, d)
    kp["b2"] = tp["conv2_b"].reshape(s, 1)
    kp["w3"] = jnp.stack([jnp.transpose(wc, (0, 2, 3, 1)).reshape(s, 9 * s)
                          for wc, _, _ in tp["conv3"]])
    kp["b3"] = jnp.stack([bc.reshape(s, 1) for _, bc, _ in tp["conv3"]])
    kp["w4"] = tp["conv4_w"].reshape(d, s)
    kp["b4"] = tp["conv4_b"].reshape(d, 1)

    # Polyphase (sub-pixel) decomposition of the stride-2 transposed conv.
    p_rows = _pad8(4 * cc)
    wt = np.asarray(tp["deconv_w"])                   # (d, cc, 9, 9)
    bt = np.asarray(tp["deconv_b"])
    wd = np.zeros((p_rows, 25 * d), np.float32)
    bd = np.zeros((p_rows, 1), np.float32)
    for ry in range(2):
        for rx in range(2):
            for co in range(cc):
                row = (ry * 2 + rx) * cc + co
                bd[row, 0] = bt[co]
                for u in range(5):
                    ky = 2 * u + ry
                    if ky > 8:
                        continue
                    for v in range(5):
                        kx = 2 * v + rx
                        if kx > 8:
                            continue
                        t = u * 5 + v
                        wd[row, t * d:(t + 1) * d] = wt[:, co, ky, kx]
    kp["wd"] = jnp.asarray(wd)
    kp["bd"] = jnp.asarray(bd)
    kp["alphas"] = jnp.stack([tp["a1"], tp["a2"]]
                             + [a for _, _, a in tp["conv3"]]
                             + [tp["a4"]]).astype(jnp.float32)
    return kp


# ----------------------------------------------------------------------------
# Pure-JAX reference (lax.conv_general_dilated) for a correctness check.
# ----------------------------------------------------------------------------
def _ref_forward(x, tp, up=2):
    dn = ("NCHW", "OIHW", "NCHW")

    def conv(z, wc, bc, a, pad):
        y = lax.conv_general_dilated(z, wc, (1, 1), [(pad, pad), (pad, pad)],
                                     dimension_numbers=dn)
        y = y + bc.reshape(1, -1, 1, 1)
        return jnp.where(y >= 0, y, a * y)

    y = conv(x, tp["conv1_w"], tp["conv1_b"], tp["a1"], 2)
    y = conv(y, tp["conv2_w"], tp["conv2_b"], tp["a2"], 0)
    for wc, bc, a in tp["conv3"]:
        y = conv(y, wc, bc, a, 1)
    y = conv(y, tp["conv4_w"], tp["conv4_b"], tp["a4"], 0)
    # transposed conv == lhs dilation + full padding + flipped, IO-swapped kernel
    wconv = jnp.transpose(jnp.flip(tp["deconv_w"], (2, 3)), (1, 0, 2, 3))
    y = lax.conv_general_dilated(y, wconv, (1, 1), [(8, 8), (8, 8)],
                                 lhs_dilation=(up, up), dimension_numbers=dn)
    return y + tp["deconv_b"].reshape(1, -1, 1, 1)


if __name__ == "__main__":
    d, s, m = 16, 8, 2
    upscaling_factor = 2
    color_channels = 1
    N, H, W = 2, 16, 16

    key = jax.random.PRNGKey(0)
    k_x, k_x2, k_p = jax.random.split(key, 3)
    x = jax.random.normal(k_x, (N, color_channels, H, W), jnp.float32)
    tparams = init_torch_params(k_p, d, s, m, color_channels)
    kparams = prepare_kernel_params(tparams)

    fwd = jax.jit(fsrcnn_forward)
    out = jax.block_until_ready(fwd(x, kparams))

    expected_hw = (H - 1) * upscaling_factor + 9
    assert out.shape == (N, color_channels, expected_hw, expected_hw), out.shape

    ref = _ref_forward(x, tparams, upscaling_factor)
    err = float(jnp.max(jnp.abs(out - ref)))
    assert jnp.allclose(out, ref, atol=1e-3, rtol=1e-3), f"mismatch vs ref: {err}"

    # Second config (batch 4) exercising the lane-axis batch-stacking path.
    x4 = jax.random.normal(k_x2, (4, color_channels, H, W), jnp.float32)
    out4 = jax.block_until_ready(fwd(x4, kparams))
    ref4 = _ref_forward(x4, tparams, upscaling_factor)
    err4 = float(jnp.max(jnp.abs(out4 - ref4)))
    assert out4.shape == (4, color_channels, expected_hw, expected_hw), out4.shape
    assert jnp.allclose(out4, ref4, atol=1e-3, rtol=1e-3), f"mismatch vs ref: {err4}"

    print("KERNEL_OK")
</pallas_src>

<mosaic_0001>
module attributes {stable_mosaic.version = 11 : i64} {
  func.func @_fsrcnn_kernel(%arg0: i32, %arg1: memref<1x1x896xf32, #tpu.memory_space<vmem>>, %arg2: memref<16x640xf32, #tpu.memory_space<vmem>>, %arg3: memref<64x512xf32, #tpu.memory_space<vmem>>, %arg4: memref<5xf32, #tpu.memory_space<smem>>, %arg5: memref<1x8x640xf32, #tpu.memory_space<vmem>>, %arg6: memref<16x896xf32, #tpu.memory_space<vmem>>, %arg7: memref<400x640xf32, #tpu.memory_space<vmem>>) attributes {dimension_semantics = [#tpu.dimension_semantics<parallel>], iteration_bounds = array<i64: 2>, scalar_prefetch = 0 : i64, scratch_operands = 2 : i64, tpu.core_type = #tpu.core_type<tc>, window_params = [{transform_indices = @transform_0, window_bounds = array<i64: 1, 1, 896>}, {pipeline_mode = #tpu.pipeline_mode<synchronous>, transform_indices = @transform_1, window_bounds = array<i64: 16, 640>}, {pipeline_mode = #tpu.pipeline_mode<synchronous>, transform_indices = @transform_2, window_bounds = array<i64: 64, 512>}, {transform_indices = @transform_3, window_bounds = array<i64: 5>}, {transform_indices = @transform_4, window_bounds = array<i64: 1, 8, 640>}]} {
    %cst = arith.constant 0.000000e+00 : f32
    %0 = vector.broadcast %cst : f32 to vector<16x128xf32>
    %c0 = arith.constant 0 : index
    %c0_0 = arith.constant 0 : index
    %1 = vector.load %arg6[%c0, %c0_0] : memref<16x896xf32, #tpu.memory_space<vmem>>, vector<16x128xf32>
    tpu.vector_store %arg6[%c0, %c0_0], %0 {strides = array<i32>} : memref<16x896xf32, #tpu.memory_space<vmem>>, vector<16x128xf32>,
    %cst_1 = arith.constant 0.000000e+00 : f32
    %2 = vector.broadcast %cst_1 : f32 to vector<16x128xf32>
    %c0_2 = arith.constant 0 : index
    %c768 = arith.constant 768 : index
    %3 = vector.load %arg6[%c0_2, %c768] : memref<16x896xf32, #tpu.memory_space<vmem>>, vector<16x128xf32>
    tpu.vector_store %arg6[%c0_2, %c768], %2 {strides = array<i32>} : memref<16x896xf32, #tpu.memory_space<vmem>>, vector<16x128xf32>,
    %c0_3 = arith.constant 0 : index
    %c0_4 = arith.constant 0 : index
    %c0_5 = arith.constant 0 : index
    %4 = vector.load %arg1[%c0_3, %c0_4, %c0_5] : memref<1x1x896xf32, #tpu.memory_space<vmem>>, vector<1x1x896xf32>
    %5 = vector.shape_cast %4 : vector<1x1x896xf32> to vector<1x896xf32>
    %6 = vector.extract_strided_slice %5 {offsets = [0, 78], sizes = [1, 640], strides = [1, 1]} : vector<1x896xf32> to vector<1x640xf32>
    %c0_6 = arith.constant 0 : index
    %c0_7 = arith.constant 0 : index
    %7 = vector.load %arg7[%c0_6, %c0_7] : memref<400x640xf32, #tpu.memory_space<vmem>>, vector<1x640xf32>
    tpu.vector_store %arg7[%c0_6, %c0_7], %6 {strides = array<i32>} : memref<400x640xf32, #tpu.memory_space<vmem>>, vector<1x640xf32>,
    %8 = vector.extract_strided_slice %5 {offsets = [0, 79], sizes = [1, 640], strides = [1, 1]} : vector<1x896xf32> to vector<1x640xf32>
    %c1 = arith.constant 1 : index
    %c0_8 = arith.constant 0 : index
    %9 = vector.load %arg7[%c1, %c0_8] : memref<400x640xf32, #tpu.memory_space<vmem>>, vector<1x640xf32>
    tpu.vector_store %arg7[%c1, %c0_8], %8 {strides = array<i32>} : memref<400x640xf32, #tpu.memory_space<vmem>>, vector<1x640xf32>,
    %10 = vector.extract_strided_slice %5 {offsets = [0, 80], sizes = [1, 640], strides = [1, 1]} : vector<1x896xf32> to vector<1x640xf32>
    %c2 = arith.constant 2 : index
    %c0_9 = arith.constant 0 : index
    %11 = vector.load %arg7[%c2, %c0_9] : memref<400x640xf32, #tpu.memory_space<vmem>>, vector<1x640xf32>
    tpu.vector_store %arg7[%c2, %c0_9], %10 {strides = array<i32>} : memref<400x640xf32, #tpu.memory_space<vmem>>, vector<1x640xf32>,
    %12 = vector.extract_strided_slice %5 {offsets = [0, 81], sizes = [1, 640], strides = [1, 1]} : vector<1x896xf32> to vector<1x640xf32>
    %c3 = arith.constant 3 : index
    %c0_10 = arith.constant 0 : index
    %13 = vector.load %arg7[%c3, %c0_10] : memref<400x640xf32, #tpu.memory_space<vmem>>, vector<1x640xf32>
    tpu.vector_store %arg7[%c3, %c0_10], %12 {strides = array<i32>} : memref<400x640xf32, #tpu.memory_space<vmem>>, vector<1x640xf32>,
    %14 = vector.extract_strided_slice %5 {offsets = [0, 82], sizes = [1, 640], strides = [1, 1]} : vector<1x896xf32> to vector<1x640xf32>
    %c4 = arith.constant 4 : index
    %c0_11 = arith.constant 0 : index
    %15 = vector.load %arg7[%c4, %c0_11] : memref<400x640xf32, #tpu.memory_space<vmem>>, vector<1x640xf32>
    tpu.vector_store %arg7[%c4, %c0_11], %14 {strides = array<i32>} : memref<400x640xf32, #tpu.memory_space<vmem>>, vector<1x640xf32>,
    %16 = vector.extract_strided_slice %5 {offsets = [0, 102], sizes = [1, 640], strides = [1, 1]} : vector<1x896xf32> to vector<1x640xf32>
    %c5 = arith.constant 5 : index
    %c0_12 = arith.constant 0 : index
    %17 = vector.load %arg7[%c5, %c0_12] : memref<400x640xf32, #tpu.memory_space<vmem>>, vector<1x640xf32>
    tpu.vector_store %arg7[%c5, %c0_12], %16 {strides = array<i32>} : memref<400x640xf32, #tpu.memory_space<vmem>>, vector<1x640xf32>,
    %18 = vector.extract_strided_slice %5 {offsets = [0, 103], sizes = [1, 640], strides = [1, 1]} : vector<1x896xf32> to vector<1x640xf32>
    %c6 = arith.constant 6 : index
    %c0_13 = arith.constant 0 : index
    %19 = vector.load %arg7[%c6, %c0_13] : memref<400x640xf32, #tpu.memory_space<vmem>>, vector<1x640xf32>
    tpu.vector_store %arg7[%c6, %c0_13], %18 {strides = array<i32>} : memref<400x640xf32, #tpu.memory_space<vmem>>, vector<1x640xf32>,
    %20 = vector.extract_strided_slice %5 {offsets = [0, 104], sizes = [1, 640], strides = [1, 1]} : vector<1x896xf32> to vector<1x640xf32>
    %c7 = arith.constant 7 : index
    %c0_14 = arith.constant 0 : index
    %21 = vector.load %arg7[%c7, %c0_14] : memref<400x640xf32, #tpu.memory_space<vmem>>, vector<1x640xf32>
    tpu.vector_store %arg7[%c7, %c0_14], %20 {strides = array<i32>} : memref<400x640xf32, #tpu.memory_space<vmem>>, vector<1x640xf32>,
    %22 = vector.extract_strided_slice %5 {offsets = [0, 105], sizes = [1, 640], strides = [1, 1]} : vector<1x896xf32> to vector<1x640xf32>
    %c8 = arith.constant 8 : index
    %c0_15 = arith.constant 0 : index
    %23 = vector.load %arg7[%c8, %c0_15] : memref<400x640xf32, #tpu.memory_space<vmem>>, vector<1x640xf32>
    tpu.vector_store %arg7[%c8, %c0_15], %22 {strides = array<i32>} : memref<400x640xf32, #tpu.memory_space<vmem>>, vector<1x640xf32>,
    %24 = vector.extract_strided_slice %5 {offsets = [0, 106], sizes = [1, 640], strides = [1, 1]} : vector<1x896xf32> to vector<1x640xf32>
    %c9 = arith.constant 9 : index
    %c0_16 = arith.constant 0 : index
    %25 = vector.load %arg7[%c9, %c0_16] : memref<400x640xf32, #tpu.memory_space<vmem>>, vector<1x640xf32>
    tpu.vector_store %arg7[%c9, %c0_16], %24 {strides = array<i32>} : memref<400x640xf32, #tpu.memory_space<vmem>>, vector<1x640xf32>,
    %26 = vector.extract_strided_slice %5 {offsets = [0, 126], sizes = [1, 640], strides = [1, 1]} : vector<1x896xf32> to vector<1x640xf32>
    %c10 = arith.constant 10 : index
    %c0_17 = arith.constant 0 : index
    %27 = vector.load %arg7[%c10, %c0_17] : memref<400x640xf32, #tpu.memory_space<vmem>>, vector<1x640xf32>
    tpu.vector_store %arg7[%c10, %c0_17], %26 {strides = array<i32>} : memref<400x640xf32, #tpu.memory_space<vmem>>, vector<1x640xf32>,
    %28 = vector.extract_strided_slice %5 {offsets = [0, 127], sizes = [1, 640], strides = [1, 1]} : vector<1x896xf32> to vector<1x640xf32>
    %c11 = arith.constant 11 : index
    %c0_18 = arith.constant 0 : index
    %29 = vector.load %arg7[%c11, %c0_18] : memref<400x640xf32, #tpu.memory_space<vmem>>, vector<1x640xf32>
    tpu.vector_store %arg7[%c11, %c0_18], %28 {strides = array<i32>} : memref<400x640xf32, #tpu.memory_space<vmem>>, vector<1x640xf32>,
    %30 = vector.extract_strided_slice %5 {offsets = [0, 128], sizes = [1, 640], strides = [1, 1]} : vector<1x896xf32> to vector<1x640xf32>
    %c12 = arith.constant 12 : index
    %c0_19 = arith.constant 0 : index
    %31 = vector.load %arg7[%c12, %c0_19] : memref<400x640xf32, #tpu.memory_space<vmem>>, vector<1x640xf32>
    tpu.vector_store %arg7[%c12, %c0_19], %30 {strides = array<i32>} : memref<400x640xf32, #tpu.memory_space<vmem>>, vector<1x640xf32>,
    %32 = vector.extract_strided_slice %5 {offsets = [0, 129], sizes = [1, 640], strides = [1, 1]} : vector<1x896xf32> to vector<1x640xf32>
    %c13 = arith.constant 13 : index
    %c0_20 = arith.constant 0 : index
    %33 = vector.load %arg7[%c13, %c0_20] : memref<400x640xf32, #tpu.memory_space<vmem>>, vector<1x640xf32>
    tpu.vector_store %arg7[%c13, %c0_20], %32 {strides = array<i32>} : memref<400x640xf32, #tpu.memory_space<vmem>>, vector<1x640xf32>,
    %34 = vector.extract_strided_slice %5 {offsets = [0, 130], sizes = [1, 640], strides = [1, 1]} : vector<1x896xf32> to vector<1x640xf32>
    %c14 = arith.constant 14 : index
    %c0_21 = arith.constant 0 : index
    %35 = vector.load %arg7[%c14, %c0_21] : memref<400x640xf32, #tpu.memory_space<vmem>>, vector<1x640xf32>
    tpu.vector_store %arg7[%c14, %c0_21], %34 {strides = array<i32>} : memref<400x640xf32, #tpu.memory_space<vmem>>, vector<1x640xf32>,
    %36 = vector.extract_strided_slice %5 {offsets = [0, 150], sizes = [1, 640], strides = [1, 1]} : vector<1x896xf32> to vector<1x640xf32>
    %c15 = arith.constant 15 : index
    %c0_22 = arith.constant 0 : index
    %37 = vector.load %arg7[%c15, %c0_22] : memref<400x640xf32, #tpu.memory_space<vmem>>, vector<1x640xf32>
    tpu.vector_store %arg7[%c15, %c0_22], %36 {strides = array<i32>} : memref<400x640xf32, #tpu.memory_space<vmem>>, vector<1x640xf32>,
    %38 = vector.extract_strided_slice %5 {offsets = [0, 151], sizes = [1, 640], strides = [1, 1]} : vector<1x896xf32> to vector<1x640xf32>
    %c16 = arith.constant 16 : index
    %c0_23 = arith.constant 0 : index
    %39 = vector.load %arg7[%c16, %c0_23] : memref<400x640xf32, #tpu.memory_space<vmem>>, vector<1x640xf32>
    tpu.vector_store %arg7[%c16, %c0_23], %38 {strides = array<i32>} : memref<400x640xf32, #tpu.memory_space<vmem>>, vector<1x640xf32>,
    %40 = vector.extract_strided_slice %5 {offsets = [0, 152], sizes = [1, 640], strides = [1, 1]} : vector<1x896xf32> to vector<1x640xf32>
    %c17 = arith.constant 17 : index
    %c0_24 = arith.constant 0 : index
    %41 = vector.load %arg7[%c17, %c0_24] : memref<400x640xf32, #tpu.memory_space<vmem>>, vector<1x640xf32>
    tpu.vector_store %arg7[%c17, %c0_24], %40 {strides = array<i32>} : memref<400x640xf32, #tpu.memory_space<vmem>>, vector<1x640xf32>,
    %42 = vector.extract_strided_slice %5 {offsets = [0, 153], sizes = [1, 640], strides = [1, 1]} : vector<1x896xf32> to vector<1x640xf32>
    %c18 = arith.constant 18 : index
    %c0_25 = arith.constant 0 : index
    %43 = vector.load %arg7[%c18, %c0_25] : memref<400x640xf32, #tpu.memory_space<vmem>>, vector<1x640xf32>
    tpu.vector_store %arg7[%c18, %c0_25], %42 {strides = array<i32>} : memref<400x640xf32, #tpu.memory_space<vmem>>, vector<1x640xf32>,
    %44 = vector.extract_strided_slice %5 {offsets = [0, 154], sizes = [1, 640], strides = [1, 1]} : vector<1x896xf32> to vector<1x640xf32>
    %c19 = arith.constant 19 : index
    %c0_26 = arith.constant 0 : index
    %45 = vector.load %arg7[%c19, %c0_26] : memref<400x640xf32, #tpu.memory_space<vmem>>, vector<1x640xf32>
    tpu.vector_store %arg7[%c19, %c0_26], %44 {strides = array<i32>} : memref<400x640xf32, #tpu.memory_space<vmem>>, vector<1x640xf32>,
    %46 = vector.extract_strided_slice %5 {offsets = [0, 174], sizes = [1, 640], strides = [1, 1]} : vector<1x896xf32> to vector<1x640xf32>
    %c20 = arith.constant 20 : index
    %c0_27 = arith.constant 0 : index
    %47 = vector.load %arg7[%c20, %c0_27] : memref<400x640xf32, #tpu.memory_space<vmem>>, vector<1x640xf32>
    tpu.vector_store %arg7[%c20, %c0_27], %46 {strides = array<i32>} : memref<400x640xf32, #tpu.memory_space<vmem>>, vector<1x640xf32>,
    %48 = vector.extract_strided_slice %5 {offsets = [0, 175], sizes = [1, 640], strides = [1, 1]} : vector<1x896xf32> to vector<1x640xf32>
    %c21 = arith.constant 21 : index
    %c0_28 = arith.constant 0 : index
    %49 = vector.load %arg7[%c21, %c0_28] : memref<400x640xf32, #tpu.memory_space<vmem>>, vector<1x640xf32>
    tpu.vector_store %arg7[%c21, %c0_28], %48 {strides = array<i32>} : memref<400x640xf32, #tpu.memory_space<vmem>>, vector<1x640xf32>,
    %50 = vector.extract_strided_slice %5 {offsets = [0, 176], sizes = [1, 640], strides = [1, 1]} : vector<1x896xf32> to vector<1x640xf32>
    %c22 = arith.constant 22 : index
    %c0_29 = arith.constant 0 : index
    %51 = vector.load %arg7[%c22, %c0_29] : memref<400x640xf32, #tpu.memory_space<vmem>>, vector<1x640xf32>
    tpu.vector_store %arg7[%c22, %c0_29], %50 {strides = array<i32>} : memref<400x640xf32, #tpu.memory_space<vmem>>, vector<1x640xf32>,
    %52 = vector.extract_strided_slice %5 {offsets = [0, 177], sizes = [1, 640], strides = [1, 1]} : vector<1x896xf32> to vector<1x640xf32>
    %c23 = arith.constant 23 : index
    %c0_30 = arith.constant 0 : index
    %53 = vector.load %arg7[%c23, %c0_30] : memref<400x640xf32, #tpu.memory_space<vmem>>, vector<1x640xf32>
    tpu.vector_store %arg7[%c23, %c0_30], %52 {strides = array<i32>} : memref<400x640xf32, #tpu.memory_space<vmem>>, vector<1x640xf32>,
    %54 = vector.extract_strided_slice %5 {offsets = [0, 178], sizes = [1, 640], strides = [1, 1]} : vector<1x896xf32> to vector<1x640xf32>
    %c24 = arith.constant 24 : index
    %c0_31 = arith.constant 0 : index
    %55 = vector.load %arg7[%c24, %c0_31] : memref<400x640xf32, #tpu.memory_space<vmem>>, vector<1x640xf32>
    tpu.vector_store %arg7[%c24, %c0_31], %54 {strides = array<i32>} : memref<400x640xf32, #tpu.memory_space<vmem>>, vector<1x640xf32>,
    %cst_32 = arith.constant 0.000000e+00 : f32
    %56 = vector.broadcast %cst_32 : f32 to vector<7x640xf32>
    %c25 = arith.constant 25 : index
    %c0_33 = arith.constant 0 : index
    %57 = vector.load %arg7[%c25, %c0_33] : memref<400x640xf32, #tpu.memory_space<vmem>>, vector<7x640xf32>
    tpu.vector_store %arg7[%c25, %c0_33], %56 {strides = array<i32>} : memref<400x640xf32, #tpu.memory_space<vmem>>, vector<7x640xf32>,
    %c0_34 = arith.constant 0 : index
    %c0_35 = arith.constant 0 : index
    %58 = vector.load %arg3[%c0_34, %c0_35] : memref<64x512xf32, #tpu.memory_space<vmem>>, vector<16x32xf32>
    %c0_36 = arith.constant 0 : index
    %c25_37 = arith.constant 25 : index
    %59 = vector.load %arg3[%c0_36, %c25_37] : memref<64x512xf32, #tpu.memory_space<vmem>>, vector<16x1xf32>
    %c0_38 = arith.constant 0 : index
    %c0_39 = arith.constant 0 : index
    %60 = vector.load %arg7[%c0_38, %c0_39] : memref<400x640xf32, #tpu.memory_space<vmem>>, vector<32x640xf32>
    %cst_40 = arith.constant dense<0.000000e+00> : vector<16x640xf32>
    %61 = tpu.matmul %58, %60, %cst_40 {dimension_numbers = #tpu.dot_dimension_numbers<[1], [0], [0], [1], [0, 0, 1, 1], [], []>} : vector<16x32xf32>, vector<32x640xf32>, vector<16x640xf32> -> vector<16x640xf32>
    %62 = vector.broadcast %59 : vector<16x1xf32> to vector<16x640xf32>
    %63 = arith.addf %61, %62 : vector<16x640xf32>
    %c0_41 = arith.constant 0 : index
    %64 = memref.load %arg4[%c0_41] : memref<5xf32, #tpu.memory_space<smem>>
    %cst_42 = arith.constant 0.000000e+00 : f32
    %65 = vector.broadcast %cst_42 : f32 to vector<16x640xf32>
    %66 = arith.cmpf oge, %63, %65 : vector<16x640xf32>
    %67 = vector.broadcast %64 : f32 to vector<16x640xf32>
    %68 = arith.mulf %67, %63 : vector<16x640xf32>
    %69 = arith.select %66, %63, %68 : vector<16x640xi1>, vector<16x640xf32>
    %c16_43 = arith.constant 16 : index
    %c0_44 = arith.constant 0 : index
    %70 = vector.load %arg3[%c16_43, %c0_44] : memref<64x512xf32, #tpu.memory_space<vmem>>, vector<8x16xf32>
    %c16_45 = arith.constant 16 : index
    %c16_46 = arith.constant 16 : index
    %71 = vector.load %arg3[%c16_45, %c16_46] : memref<64x512xf32, #tpu.memory_space<vmem>>, vector<8x1xf32>
    %cst_47 = arith.constant dense<0.000000e+00> : vector<8x640xf32>
    %72 = tpu.matmul %70, %69, %cst_47 {dimension_numbers = #tpu.dot_dimension_numbers<[1], [0], [0], [1], [0, 0, 1, 1], [], []>} : vector<8x16xf32>, vector<16x640xf32>, vector<8x640xf32> -> vector<8x640xf32>
    %73 = vector.broadcast %71 : vector<8x1xf32> to vector<8x640xf32>
    %74 = arith.addf %72, %73 : vector<8x640xf32>
    %c1_48 = arith.constant 1 : index
    %75 = memref.load %arg4[%c1_48] : memref<5xf32, #tpu.memory_space<smem>>
    %cst_49 = arith.constant 0.000000e+00 : f32
    %76 = vector.broadcast %cst_49 : f32 to vector<8x640xf32>
    %77 = arith.cmpf oge, %74, %76 : vector<8x640xf32>
    %78 = vector.broadcast %75 : f32 to vector<8x640xf32>
    %79 = arith.mulf %78, %74 : vector<8x640xf32>
    %80 = arith.select %77, %74, %79 : vector<8x640xi1>, vector<8x640xf32>
    %c0_50 = arith.constant 0 : index
    %c0_51 = arith.constant 0 : index
    %81 = vector.load %arg2[%c0_50, %c0_51] : memref<16x640xf32, #tpu.memory_space<vmem>>, vector<8x640xf32>
    %82 = arith.mulf %80, %81 : vector<8x640xf32>
    %c0_52 = arith.constant 0 : index
    %c128 = arith.constant 128 : index
    %83 = vector.load %arg6[%c0_52, %c128] : memref<16x896xf32, #tpu.memory_space<vmem>>, vector<8x640xf32>
    tpu.vector_store %arg6[%c0_52, %c128], %82 {strides = array<i32>} : memref<16x896xf32, #tpu.memory_space<vmem>>, vector<8x640xf32>,
    %c0_53 = arith.constant 0 : index
    %c103 = arith.constant 103 : index
    %84 = vector.load %arg6[%c0_53, %c103] : memref<16x896xf32, #tpu.memory_space<vmem>>, vector<8x640xf32>
    %c0_54 = arith.constant 0 : index
    %c0_55 = arith.constant 0 : index
    %85 = vector.load %arg7[%c0_54, %c0_55] : memref<400x640xf32, #tpu.memory_space<vmem>>, vector<8x640xf32>
    tpu.vector_store %arg7[%c0_54, %c0_55], %84 {strides = array<i32>} : memref<400x640xf32, #tpu.memory_space<vmem>>, vector<8x640xf32>,
    %c0_56 = arith.constant 0 : index
    %c104 = arith.constant 104 : index
    %86 = vector.load %arg6[%c0_56, %c104] : memref<16x896xf32, #tpu.memory_space<vmem>>, vector<8x640xf32>
    %c8_57 = arith.constant 8 : index
    %c0_58 = arith.constant 0 : index
    %87 = vector.load %arg7[%c8_57, %c0_58] : memref<400x640xf32, #tpu.memory_space<vmem>>, vector<8x640xf32>
    tpu.vector_store %arg7[%c8_57, %c0_58], %86 {strides = array<i32>} : memref<400x640xf32, #tpu.memory_space<vmem>>, vector<8x640xf32>,
    %c0_59 = arith.constant 0 : index
    %c105 = arith.constant 105 : index
    %88 = vector.load %arg6[%c0_59, %c105] : memref<16x896xf32, #tpu.memory_space<vmem>>, vector<8x640xf32>
    %c16_60 = arith.constant 16 : index
    %c0_61 = arith.constant 0 : index
    %89 = vector.load %arg7[%c16_60, %c0_61] : memref<400x640xf32, #tpu.memory_space<vmem>>, vector<8x640xf32>
    tpu.vector_store %arg7[%c16_60, %c0_61], %88 {strides = array<i32>} : memref<400x640xf32, #tpu.memory_space<vmem>>, vector<8x640xf32>,
    %c0_62 = arith.constant 0 : index
    %c127 = arith.constant 127 : index
    %90 = vector.load %arg6[%c0_62, %c127] : memref<16x896xf32, #tpu.memory_space<vmem>>, vector<8x640xf32>
    %c24_63 = arith.constant 24 : index
    %c0_64 = arith.constant 0 : index
    %91 = vector.load %arg7[%c24_63, %c0_64] : memref<400x640xf32, #tpu.memory_space<vmem>>, vector<8x640xf32>
    tpu.vector_store %arg7[%c24_63, %c0_64], %90 {strides = array<i32>} : memref<400x640xf32, #tpu.memory_space<vmem>>, vector<8x640xf32>,
    %c0_65 = arith.constant 0 : index
    %c128_66 = arith.constant 128 : index
    %92 = vector.load %arg6[%c0_65, %c128_66] : memref<16x896xf32, #tpu.memory_space<vmem>>, vector<8x640xf32>
    %c32 = arith.constant 32 : index
    %c0_67 = arith.constant 0 : index
    %93 = vector.load %arg7[%c32, %c0_67] : memref<400x640xf32, #tpu.memory_space<vmem>>, vector<8x640xf32>
    tpu.vector_store %arg7[%c32, %c0_67], %92 {strides = array<i32>} : memref<400x640xf32, #tpu.memory_space<vmem>>, vector<8x640xf32>,
    %c0_68 = arith.constant 0 : index
    %c129 = arith.constant 129 : index
    %94 = vector.load %arg6[%c0_68, %c129] : memref<16x896xf32, #tpu.memory_space<vmem>>, vector<8x640xf32>
    %c40 = arith.constant 40 : index
    %c0_69 = arith.constant 0 : index
    %95 = vector.load %arg7[%c40, %c0_69] : memref<400x640xf32, #tpu.memory_space<vmem>>, vector<8x640xf32>
    tpu.vector_store %arg7[%c40, %c0_69], %94 {strides = array<i32>} : memref<400x640xf32, #tpu.memory_space<vmem>>, vector<8x640xf32>,
    %c0_70 = arith.constant 0 : index
    %c151 = arith.constant 151 : index
    %96 = vector.load %arg6[%c0_70, %c151] : memref<16x896xf32, #tpu.memory_space<vmem>>, vector<8x640xf32>
    %c48 = arith.constant 48 : index
    %c0_71 = arith.constant 0 : index
    %97 = vector.load %arg7[%c48, %c0_71] : memref<400x640xf32, #tpu.memory_space<vmem>>, vector<8x640xf32>
    tpu.vector_store %arg7[%c48, %c0_71], %96 {strides = array<i32>} : memref<400x640xf32, #tpu.memory_space<vmem>>, vector<8x640xf32>,
    %c0_72 = arith.constant 0 : index
    %c152 = arith.constant 152 : index
    %98 = vector.load %arg6[%c0_72, %c152] : memref<16x896xf32, #tpu.memory_space<vmem>>, vector<8x640xf32>
    %c56 = arith.constant 56 : index
    %c0_73 = arith.constant 0 : index
    %99 = vector.load %arg7[%c56, %c0_73] : memref<400x640xf32, #tpu.memory_space<vmem>>, vector<8x640xf32>
    tpu.vector_store %arg7[%c56, %c0_73], %98 {strides = array<i32>} : memref<400x640xf32, #tpu.memory_space<vmem>>, vector<8x640xf32>,
    %c0_74 = arith.constant 0 : index
    %c153 = arith.constant 153 : index
    %100 = vector.load %arg6[%c0_74, %c153] : memref<16x896xf32, #tpu.memory_space<vmem>>, vector<8x640xf32>
    %c64 = arith.constant 64 : index
    %c0_75 = arith.constant 0 : index
    %101 = vector.load %arg7[%c64, %c0_75] : memref<400x640xf32, #tpu.memory_space<vmem>>, vector<8x640xf32>
    tpu.vector_store %arg7[%c64, %c0_75], %100 {strides = array<i32>} : memref<400x640xf32, #tpu.memory_space<vmem>>, vector<8x640xf32>,
    %c24_76 = arith.constant 24 : index
    %c0_77 = arith.constant 0 : index
    %102 = vector.load %arg3[%c24_76, %c0_77] : memref<64x512xf32, #tpu.memory_space<vmem>>, vector<8x72xf32>
    %c24_78 = arith.constant 24 : index
    %c72 = arith.constant 72 : index
    %103 = vector.load %arg3[%c24_78, %c72] : memref<64x512xf32, #tpu.memory_space<vmem>>, vector<8x1xf32>
    %c0_79 = arith.constant 0 : index
    %c0_80 = arith.constant 0 : index
    %104 = vector.load %arg7[%c0_79, %c0_80] : memref<400x640xf32, #tpu.memory_space<vmem>>, vector<72x640xf32>
    %cst_81 = arith.constant dense<0.000000e+00> : vector<8x640xf32>
    %105 = tpu.matmul %102, %104, %cst_81 {dimension_numbers = #tpu.dot_dimension_numbers<[1], [0], [0], [1], [0, 0, 1, 1], [], []>} : vector<8x72xf32>, vector<72x640xf32>, vector<8x640xf32> -> vector<8x640xf32>
    %106 = vector.broadcast %103 : vector<8x1xf32> to vector<8x640xf32>
    %107 = arith.addf %105, %106 : vector<8x640xf32>
    %c2_82 = arith.constant 2 : index
    %108 = memref.load %arg4[%c2_82] : memref<5xf32, #tpu.memory_space<smem>>
    %cst_83 = arith.constant 0.000000e+00 : f32
    %109 = vector.broadcast %cst_83 : f32 to vector<8x640xf32>
    %110 = arith.cmpf oge, %107, %109 : vector<8x640xf32>
    %111 = vector.broadcast %108 : f32 to vector<8x640xf32>
    %112 = arith.mulf %111, %107 : vector<8x640xf32>
    %113 = arith.select %110, %107, %112 : vector<8x640xi1>, vector<8x640xf32>
    %c0_84 = arith.constant 0 : index
    %c0_85 = arith.constant 0 : index
    %114 = vector.load %arg2[%c0_84, %c0_85] : memref<16x640xf32, #tpu.memory_space<vmem>>, vector<8x640xf32>
    %115 = arith.mulf %113, %114 : vector<8x640xf32>
    %c0_86 = arith.constant 0 : index
    %c128_87 = arith.constant 128 : index
    %116 = vector.load %arg6[%c0_86, %c128_87] : memref<16x896xf32, #tpu.memory_space<vmem>>, vector<8x640xf32>
    tpu.vector_store %arg6[%c0_86, %c128_87], %115 {strides = array<i32>} : memref<16x896xf32, #tpu.memory_space<vmem>>, vector<8x640xf32>,
    %c0_88 = arith.constant 0 : index
    %c103_89 = arith.constant 103 : index
    %117 = vector.load %arg6[%c0_88, %c103_89] : memref<16x896xf32, #tpu.memory_space<vmem>>, vector<8x640xf32>
    %c0_90 = arith.constant 0 : index
    %c0_91 = arith.constant 0 : index
    %118 = vector.load %arg7[%c0_90, %c0_91] : memref<400x640xf32, #tpu.memory_space<vmem>>, vector<8x640xf32>
    tpu.vector_store %arg7[%c0_90, %c0_91], %117 {strides = array<i32>} : memref<400x640xf32, #tpu.memory_space<vmem>>, vector<8x640xf32>,
    %c0_92 = arith.constant 0 : index
    %c104_93 = arith.constant 104 : index
    %119 = vector.load %arg6[%c0_92, %c104_93] : memref<16x896xf32, #tpu.memory_space<vmem>>, vector<8x640xf32>
    %c8_94 = arith.constant 8 : index
    %c0_95 = arith.constant 0 : index
    %120 = vector.load %arg7[%c8_94, %c0_95] : memref<400x640xf32, #tpu.memory_space<vmem>>, vector<8x640xf32>
    tpu.vector_store %arg7[%c8_94, %c0_95], %119 {strides = array<i32>} : memref<400x640xf32, #tpu.memory_space<vmem>>, vector<8x640xf32>,
    %c0_96 = arith.constant 0 : index
    %c105_97 = arith.constant 105 : index
    %121 = vector.load %arg6[%c0_96, %c105_97] : memref<16x896xf32, #tpu.memory_space<vmem>>, vector<8x640xf32>
    %c16_98 = arith.constant 16 : index
    %c0_99 = arith.constant 0 : index
    %122 = vector.load %arg7[%c16_98, %c0_99] : memref<400x640xf32, #tpu.memory_space<vmem>>, vector<8x640xf32>
    tpu.vector_store %arg7[%c16_98, %c0_99], %121 {strides = array<i32>} : memref<400x640xf32, #tpu.memory_space<vmem>>, vector<8x640xf32>,
    %c0_100 = arith.constant 0 : index
    %c127_101 = arith.constant 127 : index
    %123 = vector.load %arg6[%c0_100, %c127_101] : memref<16x896xf32, #tpu.memory_space<vmem>>, vector<8x640xf32>
    %c24_102 = arith.constant 24 : index
    %c0_103 = arith.constant 0 : index
    %124 = vector.load %arg7[%c24_102, %c0_103] : memref<400x640xf32, #tpu.memory_space<vmem>>, vector<8x640xf32>
    tpu.vector_store %arg7[%c24_102, %c0_103], %123 {strides = array<i32>} : memref<400x640xf32, #tpu.memory_space<vmem>>, vector<8x640xf32>,
    %c0_104 = arith.constant 0 : index
    %c128_105 = arith.constant 128 : index
    %125 = vector.load %arg6[%c0_104, %c128_105] : memref<16x896xf32, #tpu.memory_space<vmem>>, vector<8x640xf32>
    %c32_106 = arith.constant 32 : index
    %c0_107 = arith.constant 0 : index
    %126 = vector.load %arg7[%c32_106, %c0_107] : memref<400x640xf32, #tpu.memory_space<vmem>>, vector<8x640xf32>
    tpu.vector_store %arg7[%c32_106, %c0_107], %125 {strides = array<i32>} : memref<400x640xf32, #tpu.memory_space<vmem>>, vector<8x640xf32>,
    %c0_108 = arith.constant 0 : index
    %c129_109 = arith.constant 129 : index
    %127 = vector.load %arg6[%c0_108, %c129_109] : memref<16x896xf32, #tpu.memory_space<vmem>>, vector<8x640xf32>
    %c40_110 = arith.constant 40 : index
    %c0_111 = arith.constant 0 : index
    %128 = vector.load %arg7[%c40_110, %c0_111] : memref<400x640xf32, #tpu.memory_space<vmem>>, vector<8x640xf32>
    tpu.vector_store %arg7[%c40_110, %c0_111], %127 {strides = array<i32>} : memref<400x640xf32, #tpu.memory_space<vmem>>, vector<8x640xf32>,
    %c0_112 = arith.constant 0 : index
    %c151_113 = arith.constant 151 : index
    %129 = vector.load %arg6[%c0_112, %c151_113] : memref<16x896xf32, #tpu.memory_space<vmem>>, vector<8x640xf32>
    %c48_114 = arith.constant 48 : index
    %c0_115 = arith.constant 0 : index
    %130 = vector.load %arg7[%c48_114, %c0_115] : memref<400x640xf32, #tpu.memory_space<vmem>>, vector<8x640xf32>
    tpu.vector_store %arg7[%c48_114, %c0_115], %129 {strides = array<i32>} : memref<400x640xf32, #tpu.memory_space<vmem>>, vector<8x640xf32>,
    %c0_116 = arith.constant 0 : index
    %c152_117 = arith.constant 152 : index
    %131 = vector.load %arg6[%c0_116, %c152_117] : memref<16x896xf32, #tpu.memory_space<vmem>>, vector<8x640xf32>
    %c56_118 = arith.constant 56 : index
    %c0_119 = arith.constant 0 : index
    %132 = vector.load %arg7[%c56_118, %c0_119] : memref<400x640xf32, #tpu.memory_space<vmem>>, vector<8x640xf32>
    tpu.vector_store %arg7[%c56_118, %c0_119], %131 {strides = array<i32>} : memref<400x640xf32, #tpu.memory_space<vmem>>, vector<8x640xf32>,
    %c0_120 = arith.constant 0 : index
    %c153_121 = arith.constant 153 : index
    %133 = vector.load %arg6[%c0_120, %c153_121] : memref<16x896xf32, #tpu.memory_space<vmem>>, vector<8x640xf32>
    %c64_122 = arith.constant 64 : index
    %c0_123 = arith.constant 0 : index
    %134 = vector.load %arg7[%c64_122, %c0_123] : memref<400x640xf32, #tpu.memory_space<vmem>>, vector<8x640xf32>
    tpu.vector_store %arg7[%c64_122, %c0_123], %133 {strides = array<i32>} : memref<400x640xf32, #tpu.memory_space<vmem>>, vector<8x640xf32>,
    %c32_124 = arith.constant 32 : index
    %c0_125 = arith.constant 0 : index
    %135 = vector.load %arg3[%c32_124, %c0_125] : memref<64x512xf32, #tpu.memory_space<vmem>>, vector<8x72xf32>
    %c32_126 = arith.constant 32 : index
    %c72_127 = arith.constant 72 : index
    %136 = vector.load %arg3[%c32_126, %c72_127] : memref<64x512xf32, #tpu.memory_space<vmem>>, vector<8x1xf32>
    %c0_128 = arith.constant 0 : index
    %c0_129 = arith.constant 0 : index
    %137 = vector.load %arg7[%c0_128, %c0_129] : memref<400x640xf32, #tpu.memory_space<vmem>>, vector<72x640xf32>
    %cst_130 = arith.constant dense<0.000000e+00> : vector<8x640xf32>
    %138 = tpu.matmul %135, %137, %cst_130 {dimension_numbers = #tpu.dot_dimension_numbers<[1], [0], [0], [1], [0, 0, 1, 1], [], []>} : vector<8x72xf32>, vector<72x640xf32>, vector<8x640xf32> -> vector<8x640xf32>
    %139 = vector.broadcast %136 : vector<8x1xf32> to vector<8x640xf32>
    %140 = arith.addf %138, %139 : vector<8x640xf32>
    %c3_131 = arith.constant 3 : index
    %141 = memref.load %arg4[%c3_131] : memref<5xf32, #tpu.memory_space<smem>>
    %cst_132 = arith.constant 0.000000e+00 : f32
    %142 = vector.broadcast %cst_132 : f32 to vector<8x640xf32>
    %143 = arith.cmpf oge, %140, %142 : vector<8x640xf32>
    %144 = vector.broadcast %141 : f32 to vector<8x640xf32>
    %145 = arith.mulf %144, %140 : vector<8x640xf32>
    %146 = arith.select %143, %140, %145 : vector<8x640xi1>, vector<8x640xf32>
    %c40_133 = arith.constant 40 : index
    %c0_134 = arith.constant 0 : index
    %147 = vector.load %arg3[%c40_133, %c0_134] : memref<64x512xf32, #tpu.memory_space<vmem>>, vector<16x8xf32>
    %c40_135 = arith.constant 40 : index
    %c8_136 = arith.constant 8 : index
    %148 = vector.load %arg3[%c40_135, %c8_136] : memref<64x512xf32, #tpu.memory_space<vmem>>, vector<16x1xf32>
    %cst_137 = arith.constant dense<0.000000e+00> : vector<16x640xf32>
    %149 = tpu.matmul %147, %146, %cst_137 {dimension_numbers = #tpu.dot_dimension_numbers<[1], [0], [0], [1], [0, 0, 1, 1], [], []>} : vector<16x8xf32>, vector<8x640xf32>, vector<16x640xf32> -> vector<16x640xf32>
    %150 = vector.broadcast %148 : vector<16x1xf32> to vector<16x640xf32>
    %151 = arith.addf %149, %150 : vector<16x640xf32>
    %c4_138 = arith.constant 4 : index
    %152 = memref.load %arg4[%c4_138] : memref<5xf32, #tpu.memory_space<smem>>
    %cst_139 = arith.constant 0.000000e+00 : f32
    %153 = vector.broadcast %cst_139 : f32 to vector<16x640xf32>
    %154 = arith.cmpf oge, %151, %153 : vector<16x640xf32>
    %155 = vector.broadcast %152 : f32 to vector<16x640xf32>
    %156 = arith.mulf %155, %151 : vector<16x640xf32>
    %157 = arith.select %154, %151, %156 : vector<16x640xi1>, vector<16x640xf32>
    %c0_140 = arith.constant 0 : index
    %c0_141 = arith.constant 0 : index
    %158 = vector.load %arg2[%c0_140, %c0_141] : memref<16x640xf32, #tpu.memory_space<vmem>>, vector<16x640xf32>
    %159 = arith.mulf %157, %158 : vector<16x640xf32>
    %c0_142 = arith.constant 0 : index
    %c128_143 = arith.constant 128 : index
    %160 = vector.load %arg6[%c0_142, %c128_143] : memref<16x896xf32, #tpu.memory_space<vmem>>, vector<16x640xf32>
    tpu.vector_store %arg6[%c0_142, %c128_143], %159 {strides = array<i32>} : memref<16x896xf32, #tpu.memory_space<vmem>>, vector<16x640xf32>,
    %c0_144 = arith.constant 0 : index
    %c228 = arith.constant 228 : index
    %161 = vector.load %arg6[%c0_144, %c228] : memref<16x896xf32, #tpu.memory_space<vmem>>, vector<16x640xf32>
    %c0_145 = arith.constant 0 : index
    %c0_146 = arith.constant 0 : index
    %162 = vector.load %arg7[%c0_145, %c0_146] : memref<400x640xf32, #tpu.memory_space<vmem>>, vector<16x640xf32>
    tpu.vector_store %arg7[%c0_145, %c0_146], %161 {strides = array<i32>} : memref<400x640xf32, #tpu.memory_space<vmem>>, vector<16x640xf32>,
    %c0_147 = arith.constant 0 : index
    %c227 = arith.constant 227 : index
    %163 = vector.load %arg6[%c0_147, %c227] : memref<16x896xf32, #tpu.memory_space<vmem>>, vector<16x640xf32>
    %c16_148 = arith.constant 16 : index
    %c0_149 = arith.constant 0 : index
    %164 = vector.load %arg7[%c16_148, %c0_149] : memref<400x640xf32, #tpu.memory_space<vmem>>, vector<16x640xf32>
    tpu.vector_store %arg7[%c16_148, %c0_149], %163 {strides = array<i32>} : memref<400x640xf32, #tpu.memory_space<vmem>>, vector<16x640xf32>,
    %c0_150 = arith.constant 0 : index
    %c226 = arith.constant 226 : index
    %165 = vector.load %arg6[%c0_150, %c226] : memref<16x896xf32, #tpu.memory_space<vmem>>, vector<16x640xf32>
    %c32_151 = arith.constant 32 : index
    %c0_152 = arith.constant 0 : index
    %166 = vector.load %arg7[%c32_151, %c0_152] : memref<400x640xf32, #tpu.memory_space<vmem>>, vector<16x640xf32>
    tpu.vector_store %arg7[%c32_151, %c0_152], %165 {strides = array<i32>} : memref<400x640xf32, #tpu.memory_space<vmem>>, vector<16x640xf32>,
    %c0_153 = arith.constant 0 : index
    %c225 = arith.constant 225 : index
    %167 = vector.load %arg6[%c0_153, %c225] : memref<16x896xf32, #tpu.memory_space<vmem>>, vector<16x640xf32>
    %c48_154 = arith.constant 48 : index
    %c0_155 = arith.constant 0 : index
    %168 = vector.load %arg7[%c48_154, %c0_155] : memref<400x640xf32, #tpu.memory_space<vmem>>, vector<16x640xf32>
    tpu.vector_store %arg7[%c48_154, %c0_155], %167 {strides = array<i32>} : memref<400x640xf32, #tpu.memory_space<vmem>>, vector<16x640xf32>,
    %c0_156 = arith.constant 0 : index
    %c224 = arith.constant 224 : index
    %169 = vector.load %arg6[%c0_156, %c224] : memref<16x896xf32, #tpu.memory_space<vmem>>, vector<16x640xf32>
    %c64_157 = arith.constant 64 : index
    %c0_158 = arith.constant 0 : index
    %170 = vector.load %arg7[%c64_157, %c0_158] : memref<400x640xf32, #tpu.memory_space<vmem>>, vector<16x640xf32>
    tpu.vector_store %arg7[%c64_157, %c0_158], %169 {strides = array<i32>} : memref<400x640xf32, #tpu.memory_space<vmem>>, vector<16x640xf32>,
    %c0_159 = arith.constant 0 : index
    %c204 = arith.constant 204 : index
    %171 = vector.load %arg6[%c0_159, %c204] : memref<16x896xf32, #tpu.memory_space<vmem>>, vector<16x640xf32>
    %c80 = arith.constant 80 : index
    %c0_160 = arith.constant 0 : index
    %172 = vector.load %arg7[%c80, %c0_160] : memref<400x640xf32, #tpu.memory_space<vmem>>, vector<16x640xf32>
    tpu.vector_store %arg7[%c80, %c0_160], %171 {strides = array<i32>} : memref<400x640xf32, #tpu.memory_space<vmem>>, vector<16x640xf32>,
    %c0_161 = arith.constant 0 : index
    %c203 = arith.constant 203 : index
    %173 = vector.load %arg6[%c0_161, %c203] : memref<16x896xf32, #tpu.memory_space<vmem>>, vector<16x640xf32>
    %c96 = arith.constant 96 : index
    %c0_162 = arith.constant 0 : index
    %174 = vector.load %arg7[%c96, %c0_162] : memref<400x640xf32, #tpu.memory_space<vmem>>, vector<16x640xf32>
    tpu.vector_store %arg7[%c96, %c0_162], %173 {strides = array<i32>} : memref<400x640xf32, #tpu.memory_space<vmem>>, vector<16x640xf32>,
    %c0_163 = arith.constant 0 : index
    %c202 = arith.constant 202 : index
    %175 = vector.load %arg6[%c0_163, %c202] : memref<16x896xf32, #tpu.memory_space<vmem>>, vector<16x640xf32>
    %c112 = arith.constant 112 : index
    %c0_164 = arith.constant 0 : index
    %176 = vector.load %arg7[%c112, %c0_164] : memref<400x640xf32, #tpu.memory_space<vmem>>, vector<16x640xf32>
    tpu.vector_store %arg7[%c112, %c0_164], %175 {strides = array<i32>} : memref<400x640xf32, #tpu.memory_space<vmem>>, vector<16x640xf32>,
    %c0_165 = arith.constant 0 : index
    %c201 = arith.constant 201 : index
    %177 = vector.load %arg6[%c0_165, %c201] : memref<16x896xf32, #tpu.memory_space<vmem>>, vector<16x640xf32>
    %c128_166 = arith.constant 128 : index
    %c0_167 = arith.constant 0 : index
    %178 = vector.load %arg7[%c128_166, %c0_167] : memref<400x640xf32, #tpu.memory_space<vmem>>, vector<16x640xf32>
    tpu.vector_store %arg7[%c128_166, %c0_167], %177 {strides = array<i32>} : memref<400x640xf32, #tpu.memory_space<vmem>>, vector<16x640xf32>,
    %c0_168 = arith.constant 0 : index
    %c200 = arith.constant 200 : index
    %179 = vector.load %arg6[%c0_168, %c200] : memref<16x896xf32, #tpu.memory_space<vmem>>, vector<16x640xf32>
    %c144 = arith.constant 144 : index
    %c0_169 = arith.constant 0 : index
    %180 = vector.load %arg7[%c144, %c0_169] : memref<400x640xf32, #tpu.memory_space<vmem>>, vector<16x640xf32>
    tpu.vector_store %arg7[%c144, %c0_169], %179 {strides = array<i32>} : memref<400x640xf32, #tpu.memory_space<vmem>>, vector<16x640xf32>,
    %c0_170 = arith.constant 0 : index
    %c180 = arith.constant 180 : index
    %181 = vector.load %arg6[%c0_170, %c180] : memref<16x896xf32, #tpu.memory_space<vmem>>, vector<16x640xf32>
    %c160 = arith.constant 160 : index
    %c0_171 = arith.constant 0 : index
    %182 = vector.load %arg7[%c160, %c0_171] : memref<400x640xf32, #tpu.memory_space<vmem>>, vector<16x640xf32>
    tpu.vector_store %arg7[%c160, %c0_171], %181 {strides = array<i32>} : memref<400x640xf32, #tpu.memory_space<vmem>>, vector<16x640xf32>,
    %c0_172 = arith.constant 0 : index
    %c179 = arith.constant 179 : index
    %183 = vector.load %arg6[%c0_172, %c179] : memref<16x896xf32, #tpu.memory_space<vmem>>, vector<16x640xf32>
    %c176 = arith.constant 176 : index
    %c0_173 = arith.constant 0 : index
    %184 = vector.load %arg7[%c176, %c0_173] : memref<400x640xf32, #tpu.memory_space<vmem>>, vector<16x640xf32>
    tpu.vector_store %arg7[%c176, %c0_173], %183 {strides = array<i32>} : memref<400x640xf32, #tpu.memory_space<vmem>>, vector<16x640xf32>,
    %c0_174 = arith.constant 0 : index
    %c178 = arith.constant 178 : index
    %185 = vector.load %arg6[%c0_174, %c178] : memref<16x896xf32, #tpu.memory_space<vmem>>, vector<16x640xf32>
    %c192 = arith.constant 192 : index
    %c0_175 = arith.constant 0 : index
    %186 = vector.load %arg7[%c192, %c0_175] : memref<400x640xf32, #tpu.memory_space<vmem>>, vector<16x640xf32>
    tpu.vector_store %arg7[%c192, %c0_175], %185 {strides = array<i32>} : memref<400x640xf32, #tpu.memory_space<vmem>>, vector<16x640xf32>,
    %c0_176 = arith.constant 0 : index
    %c177 = arith.constant 177 : index
    %187 = vector.load %arg6[%c0_176, %c177] : memref<16x896xf32, #tpu.memory_space<vmem>>, vector<16x640xf32>
    %c208 = arith.constant 208 : index
    %c0_177 = arith.constant 0 : index
    %188 = vector.load %arg7[%c208, %c0_177] : memref<400x640xf32, #tpu.memory_space<vmem>>, vector<16x640xf32>
    tpu.vector_store %arg7[%c208, %c0_177], %187 {strides = array<i32>} : memref<400x640xf32, #tpu.memory_space<vmem>>, vector<16x640xf32>,
    %c0_178 = arith.constant 0 : index
    %c176_179 = arith.constant 176 : index
    %189 = vector.load %arg6[%c0_178, %c176_179] : memref<16x896xf32, #tpu.memory_space<vmem>>, vector<16x640xf32>
    %c224_180 = arith.constant 224 : index
    %c0_181 = arith.constant 0 : index
    %190 = vector.load %arg7[%c224_180, %c0_181] : memref<400x640xf32, #tpu.memory_space<vmem>>, vector<16x640xf32>
    tpu.vector_store %arg7[%c224_180, %c0_181], %189 {strides = array<i32>} : memref<400x640xf32, #tpu.memory_space<vmem>>, vector<16x640xf32>,
    %c0_182 = arith.constant 0 : index
    %c156 = arith.constant 156 : index
    %191 = vector.load %arg6[%c0_182, %c156] : memref<16x896xf32, #tpu.memory_space<vmem>>, vector<16x640xf32>
    %c240 = arith.constant 240 : index
    %c0_183 = arith.constant 0 : index
    %192 = vector.load %arg7[%c240, %c0_183] : memref<400x640xf32, #tpu.memory_space<vmem>>, vector<16x640xf32>
    tpu.vector_store %arg7[%c240, %c0_183], %191 {strides = array<i32>} : memref<400x640xf32, #tpu.memory_space<vmem>>, vector<16x640xf32>,
    %c0_184 = arith.constant 0 : index
    %c155 = arith.constant 155 : index
    %193 = vector.load %arg6[%c0_184, %c155] : memref<16x896xf32, #tpu.memory_space<vmem>>, vector<16x640xf32>
    %c256 = arith.constant 256 : index
    %c0_185 = arith.constant 0 : index
    %194 = vector.load %arg7[%c256, %c0_185] : memref<400x640xf32, #tpu.memory_space<vmem>>, vector<16x640xf32>
    tpu.vector_store %arg7[%c256, %c0_185], %193 {strides = array<i32>} : memref<400x640xf32, #tpu.memory_space<vmem>>, vector<16x640xf32>,
    %c0_186 = arith.constant 0 : index
    %c154 = arith.constant 154 : index
    %195 = vector.load %arg6[%c0_186, %c154] : memref<16x896xf32, #tpu.memory_space<vmem>>, vector<16x640xf32>
    %c272 = arith.constant 272 : index
    %c0_187 = arith.constant 0 : index
    %196 = vector.load %arg7[%c272, %c0_187] : memref<400x640xf32, #tpu.memory_space<vmem>>, vector<16x640xf32>
    tpu.vector_store %arg7[%c272, %c0_187], %195 {strides = array<i32>} : memref<400x640xf32, #tpu.memory_space<vmem>>, vector<16x640xf32>,
    %c0_188 = arith.constant 0 : index
    %c153_189 = arith.constant 153 : index
    %197 = vector.load %arg6[%c0_188, %c153_189] : memref<16x896xf32, #tpu.memory_space<vmem>>, vector<16x640xf32>
    %c288 = arith.constant 288 : index
    %c0_190 = arith.constant 0 : index
    %198 = vector.load %arg7[%c288, %c0_190] : memref<400x640xf32, #tpu.memory_space<vmem>>, vector<16x640xf32>
    tpu.vector_store %arg7[%c288, %c0_190], %197 {strides = array<i32>} : memref<400x640xf32, #tpu.memory_space<vmem>>, vector<16x640xf32>,
    %c0_191 = arith.constant 0 : index
    %c152_192 = arith.constant 152 : index
    %199 = vector.load %arg6[%c0_191, %c152_192] : memref<16x896xf32, #tpu.memory_space<vmem>>, vector<16x640xf32>
    %c304 = arith.constant 304 : index
    %c0_193 = arith.constant 0 : index
    %200 = vector.load %arg7[%c304, %c0_193] : memref<400x640xf32, #tpu.memory_space<vmem>>, vector<16x640xf32>
    tpu.vector_store %arg7[%c304, %c0_193], %199 {strides = array<i32>} : memref<400x640xf32, #tpu.memory_space<vmem>>, vector<16x640xf32>,
    %c0_194 = arith.constant 0 : index
    %c132 = arith.constant 132 : index
    %201 = vector.load %arg6[%c0_194, %c132] : memref<16x896xf32, #tpu.memory_space<vmem>>, vector<16x640xf32>
    %c320 = arith.constant 320 : index
    %c0_195 = arith.constant 0 : index
    %202 = vector.load %arg7[%c320, %c0_195] : memref<400x640xf32, #tpu.memory_space<vmem>>, vector<16x640xf32>
    tpu.vector_store %arg7[%c320, %c0_195], %201 {strides = array<i32>} : memref<400x640xf32, #tpu.memory_space<vmem>>, vector<16x640xf32>,
    %c0_196 = arith.constant 0 : index
    %c131 = arith.constant 131 : index
    %203 = vector.load %arg6[%c0_196, %c131] : memref<16x896xf32, #tpu.memory_space<vmem>>, vector<16x640xf32>
    %c336 = arith.constant 336 : index
    %c0_197 = arith.constant 0 : index
    %204 = vector.load %arg7[%c336, %c0_197] : memref<400x640xf32, #tpu.memory_space<vmem>>, vector<16x640xf32>
    tpu.vector_store %arg7[%c336, %c0_197], %203 {strides = array<i32>} : memref<400x640xf32, #tpu.memory_space<vmem>>, vector<16x640xf32>,
    %c0_198 = arith.constant 0 : index
    %c130 = arith.constant 130 : index
    %205 = vector.load %arg6[%c0_198, %c130] : memref<16x896xf32, #tpu.memory_space<vmem>>, vector<16x640xf32>
    %c352 = arith.constant 352 : index
    %c0_199 = arith.constant 0 : index
    %206 = vector.load %arg7[%c352, %c0_199] : memref<400x640xf32, #tpu.memory_space<vmem>>, vector<16x640xf32>
    tpu.vector_store %arg7[%c352, %c0_199], %205 {strides = array<i32>} : memref<400x640xf32, #tpu.memory_space<vmem>>, vector<16x640xf32>,
    %c0_200 = arith.constant 0 : index
    %c129_201 = arith.constant 129 : index
    %207 = vector.load %arg6[%c0_200, %c129_201] : memref<16x896xf32, #tpu.memory_space<vmem>>, vector<16x640xf32>
    %c368 = arith.constant 368 : index
    %c0_202 = arith.constant 0 : index
    %208 = vector.load %arg7[%c368, %c0_202] : memref<400x640xf32, #tpu.memory_space<vmem>>, vector<16x640xf32>
    tpu.vector_store %arg7[%c368, %c0_202], %207 {strides = array<i32>} : memref<400x640xf32, #tpu.memory_space<vmem>>, vector<16x640xf32>,
    %c0_203 = arith.constant 0 : index
    %c128_204 = arith.constant 128 : index
    %209 = vector.load %arg6[%c0_203, %c128_204] : memref<16x896xf32, #tpu.memory_space<vmem>>, vector<16x640xf32>
    %c384 = arith.constant 384 : index
    %c0_205 = arith.constant 0 : index
    %210 = vector.load %arg7[%c384, %c0_205] : memref<400x640xf32, #tpu.memory_space<vmem>>, vector<16x640xf32>
    tpu.vector_store %arg7[%c384, %c0_205], %209 {strides = array<i32>} : memref<400x640xf32, #tpu.memory_space<vmem>>, vector<16x640xf32>,
    %cst_206 = arith.constant 0.000000e+00 : f32
    %211 = vector.broadcast %cst_206 : f32 to vector<8x640xf32>
    %c56_207 = arith.constant 56 : index
    %c0_208 = arith.constant 0 : index
    %212 = vector.load %arg3[%c56_207, %c0_208] : memref<64x512xf32, #tpu.memory_space<vmem>>, vector<8x128xf32>
    %c0_209 = arith.constant 0 : index
    %c0_210 = arith.constant 0 : index
    %213 = vector.load %arg7[%c0_209, %c0_210] : memref<400x640xf32, #tpu.memory_space<vmem>>, vector<128x640xf32>
    %cst_211 = arith.constant dense<0.000000e+00> : vector<8x640xf32>
    %214 = tpu.matmul %212, %213, %cst_211 {dimension_numbers = #tpu.dot_dimension_numbers<[1], [0], [0], [1], [0, 0, 1, 1], [], []>} : vector<8x128xf32>, vector<128x640xf32>, vector<8x640xf32> -> vector<8x640xf32>
    %215 = arith.addf %211, %214 : vector<8x640xf32>
    %c56_212 = arith.constant 56 : index
    %c128_213 = arith.constant 128 : index
    %216 = vector.load %arg3[%c56_212, %c128_213] : memref<64x512xf32, #tpu.memory_space<vmem>>, vector<8x128xf32>
    %c128_214 = arith.constant 128 : index
    %c0_215 = arith.constant 0 : index
    %217 = vector.load %arg7[%c128_214, %c0_215] : memref<400x640xf32, #tpu.memory_space<vmem>>, vector<128x640xf32>
    %cst_216 = arith.constant dense<0.000000e+00> : vector<8x640xf32>
    %218 = tpu.matmul %216, %217, %cst_216 {dimension_numbers = #tpu.dot_dimension_numbers<[1], [0], [0], [1], [0, 0, 1, 1], [], []>} : vector<8x128xf32>, vector<128x640xf32>, vector<8x640xf32> -> vector<8x640xf32>
    %219 = arith.addf %215, %218 : vector<8x640xf32>
    %c56_217 = arith.constant 56 : index
    %c256_218 = arith.constant 256 : index
    %220 = vector.load %arg3[%c56_217, %c256_218] : memref<64x512xf32, #tpu.memory_space<vmem>>, vector<8x128xf32>
    %c256_219 = arith.constant 256 : index
    %c0_220 = arith.constant 0 : index
    %221 = vector.load %arg7[%c256_219, %c0_220] : memref<400x640xf32, #tpu.memory_space<vmem>>, vector<128x640xf32>
    %cst_221 = arith.constant dense<0.000000e+00> : vector<8x640xf32>
    %222 = tpu.matmul %220, %221, %cst_221 {dimension_numbers = #tpu.dot_dimension_numbers<[1], [0], [0], [1], [0, 0, 1, 1], [], []>} : vector<8x128xf32>, vector<128x640xf32>, vector<8x640xf32> -> vector<8x640xf32>
    %223 = arith.addf %219, %222 : vector<8x640xf32>
    %c56_222 = arith.constant 56 : index
    %c384_223 = arith.constant 384 : index
    %224 = vector.load %arg3[%c56_222, %c384_223] : memref<64x512xf32, #tpu.memory_space<vmem>>, vector<8x16xf32>
    %c384_224 = arith.constant 384 : index
    %c0_225 = arith.constant 0 : index
    %225 = vector.load %arg7[%c384_224, %c0_225] : memref<400x640xf32, #tpu.memory_space<vmem>>, vector<16x640xf32>
    %cst_226 = arith.constant dense<0.000000e+00> : vector<8x640xf32>
    %226 = tpu.matmul %224, %225, %cst_226 {dimension_numbers = #tpu.dot_dimension_numbers<[1], [0], [0], [1], [0, 0, 1, 1], [], []>} : vector<8x16xf32>, vector<16x640xf32>, vector<8x640xf32> -> vector<8x640xf32>
    %227 = arith.addf %223, %226 : vector<8x640xf32>
    %c56_227 = arith.constant 56 : index
    %c400 = arith.constant 400 : index
    %228 = vector.load %arg3[%c56_227, %c400] : memref<64x512xf32, #tpu.memory_space<vmem>>, vector<8x1xf32>
    %229 = vector.broadcast %228 : vector<8x1xf32> to vector<8x640xf32>
    %230 = arith.addf %227, %229 : vector<8x640xf32>
    %c0_228 = arith.constant 0 : index
    %c0_229 = arith.constant 0 : index
    %c0_230 = arith.constant 0 : index
    %231 = vector.load %arg5[%c0_228, %c0_229, %c0_230] : memref<1x8x640xf32, #tpu.memory_space<vmem>>, vector<1x8x640xf32>
    %232 = vector.shape_cast %231 : vector<1x8x640xf32> to vector<8x640xf32>
    %233 = vector.shape_cast %230 : vector<8x640xf32> to vector<1x8x640xf32>
    tpu.vector_store %arg5[%c0_228, %c0_229, %c0_230], %233 {strides = array<i32>} : memref<1x8x640xf32, #tpu.memory_space<vmem>>, vector<1x8x640xf32>,
    return
  }
  func.func @transform_0(%arg0: i32) -> (i32, i32, i32) {
    %c0_i32 = arith.constant 0 : i32
    %c0_i32_0 = arith.constant 0 : i32
    %c0_i32_1 = arith.constant 0 : i32
    return %arg0, %c0_i32, %c0_i32_0 : i32, i32, i32
  }
  func.func @transform_1(%arg0: i32) -> (i32, i32) {
    %c0_i32 = arith.constant 0 : i32
    %c0_i32_0 = arith.constant 0 : i32
    %c0_i32_1 = arith.constant 0 : i32
    return %c0_i32, %c0_i32_0 : i32, i32
  }
  func.func @transform_2(%arg0: i32) -> (i32, i32) {
    %c0_i32 = arith.constant 0 : i32
    %c0_i32_0 = arith.constant 0 : i32
    %c0_i32_1 = arith.constant 0 : i32
    return %c0_i32, %c0_i32_0 : i32, i32
  }
  func.func @transform_3(%arg0: i32) -> i32 {
    %c0_i32 = arith.constant 0 : i32
    %c0_i32_0 = arith.constant 0 : i32
    return %c0_i32 : i32
  }
  func.func @transform_4(%arg0: i32) -> (i32, i32, i32) {
    %c0_i32 = arith.constant 0 : i32
    %c0_i32_0 = arith.constant 0 : i32
    %c0_i32_1 = arith.constant 0 : i32
    return %arg0, %c0_i32, %c0_i32_0 : i32, i32, i32
  }
}

</mosaic_0001>

<llo_original>
// kernel: fsrcnn_forward.1
$region0: #{fsrcnn_forward.1}
  #allocation0 [shape = 'u32[]', space=smem, size = 0x4, offset = 0x4, fixed_abs, tag = 'smem constant byte address 0x4 - core index']
  #allocation1 [shape = 'u32[144,128]{1,0:T(1,128)}', space=vmem, size = 0x12000, scoped, tag = 'internal scratch']
  #allocation2 [shape = 'f32[16,896]{1,0:T(8,128)}', space=vmem, size = 0xe000, scoped, tag = 'scratch operand']
  #allocation3 [shape = 'f32[400,640]{1,0:T(8,128)}', space=vmem, size = 0xfa000, scoped, tag = 'scratch operand']
  %s0 = inlined_call_operand.vmem [shape: f32[2,1,896], index: 0, kind: input, shape index: {}]
  %s1 = inlined_call_operand.vmem [shape: f32[16,640], index: 1, kind: input, shape index: {}]
  %s2 = inlined_call_operand.vmem [shape: f32[64,512], index: 2, kind: input, shape index: {}]
  %s3 = inlined_call_operand.vmem [shape: f32[5], index: 3, kind: input, shape index: {}]
  %s4 = inlined_call_operand.vmem [shape: f32[2,8,640], index: 4, kind: output, shape index: {}]
  %s5 = sld [smem:[#allocation0]]
  $region53: #{fsrcnn_forward.1} parent=0
    _
  %s7 = ssub.s32 1, %s5
  %s8 = scalar_select 0, %s7, %s5
  $region1: #{fsrcnn_forward.1} parent=0
    #allocation4 [shape = 'u8[512]{0}', space=smem, size = 0x200, scoped, tag = 'input window, operand 3, single buffered']
    #allocation5 [shape = 's32[2]{0}', space=sflag, size = 0x8, scoped, tag = 'scoped memory for fsrcnn_forward.1']
    %9 = vsyncpa [#allocation5], 0
    loop: start=0, step=1, limit=4
    $region2: #{fsrcnn_forward.1} parent=1 // loop_pre_header
      _
    $region3: #{fsrcnn_forward.1} parent=1 // loop_header
      %s11 = sphi 0, %s15
      %p12 = scmp.ge.s32.totalorder %s11, 4
      %s21 = sphi 0, %s23
      %s24 = sphi 0, %s21
      %s25 = sphi 0, %s24
      %s41 = sphi 0, %s25
      %s45 = sphi 0, %s45
      %s47 = sphi 0, %s45
      %s48 = sphi 0, %s47
      %s62 = sphi 0, %s48
      %s66 = sphi 0, %s66
      %s68 = sphi 0, %s66
      %s69 = sphi 0, %s68
      %s83 = sphi 0, %s69
      %s87 = sphi 0, %s87
      %s89 = sphi 0, %s87
      %s90 = sphi 0, %s89
      %s104 = sphi 0, %s90
      %s110 = sphi 0, %s112
      %s113 = sphi 0, %s110
      %s114 = sphi 0, %s113
      %s130 = sphi 0, %s114
    $region4: #{fsrcnn_forward.1} parent=1 // loop_header_branch
      %14 = sbr.rel (%p12) target = $region8
    $region5: #{fsrcnn_forward.1} parent=1 // loop_body
      %s16 = ssub.s32 %s11, 1
      %s17 = ssub.s32 %s11, 2
      %s18 = sadd.s32 %s11, 1
      %s19 = ssub.s32 %s11, %s18
      %p20 = scmp.eq.s32.totalorder %s19, 0
      %s22 = sadd.s32 %s21, 1
      %s23 = scalar_select %p20, %s21, %s22
      %p26 = pneg %p20
      %p27 = scmp.eq.s32.totalorder %s11, 1
      %p28 = por %p26, %p27
      %p29 = scmp.ne.s32.totalorder %s21, %s24
      %p30 = scmp.eq.s32.totalorder %s11, 0
      %p31 = por %p29, %p30
      %p32 = scmp.ne.s32.totalorder %s21, %s24
      %p33 = scmp.eq.s32.totalorder %s16, 1
      %p34 = por %p32, %p33
      %p35 = scmp.ne.s32.totalorder %s24, %s25
      %p36 = scmp.eq.s32.totalorder %s16, 0
      %p37 = por %p35, %p36
      %p38 = scmp.ne.s32.totalorder %s24, %s25
      %p39 = scmp.eq.s32.totalorder %s17, 1
      %p40 = por %p38, %p39
      %p42 = scmp.ne.s32.totalorder %s25, %s41
      %p43 = scmp.eq.s32.totalorder %s17, 0
      %p44 = por %p42, %p43
      %s46 = sadd.s32 %s45, 1
      %p49 = scmp.eq.s32.totalorder %s11, 1
      %p50 = scmp.ne.s32.totalorder %s45, %s47
      %p51 = scmp.eq.s32.totalorder %s11, 0
      %p52 = por %p50, %p51
      %p53 = scmp.ne.s32.totalorder %s45, %s47
      %p54 = scmp.eq.s32.totalorder %s16, 1
      %p55 = por %p53, %p54
      %p56 = scmp.ne.s32.totalorder %s47, %s48
      %p57 = scmp.eq.s32.totalorder %s16, 0
      %p58 = por %p56, %p57
      %p59 = scmp.ne.s32.totalorder %s47, %s48
      %p60 = scmp.eq.s32.totalorder %s17, 1
      %p61 = por %p59, %p60
      %p63 = scmp.ne.s32.totalorder %s48, %s62
      %p64 = scmp.eq.s32.totalorder %s17, 0
      %p65 = por %p63, %p64
      %s67 = sadd.s32 %s66, 1
      %p70 = scmp.eq.s32.totalorder %s11, 1
      %p71 = scmp.ne.s32.totalorder %s66, %s68
      %p72 = scmp.eq.s32.totalorder %s11, 0
      %p73 = por %p71, %p72
      %p74 = scmp.ne.s32.totalorder %s66, %s68
      %p75 = scmp.eq.s32.totalorder %s16, 1
      %p76 = por %p74, %p75
      %p77 = scmp.ne.s32.totalorder %s68, %s69
      %p78 = scmp.eq.s32.totalorder %s16, 0
      %p79 = por %p77, %p78
      %p80 = scmp.ne.s32.totalorder %s68, %s69
      %p81 = scmp.eq.s32.totalorder %s17, 1
      %p82 = por %p80, %p81
      %p84 = scmp.ne.s32.totalorder %s69, %s83
      %p85 = scmp.eq.s32.totalorder %s17, 0
      %p86 = por %p84, %p85
      %s88 = sadd.s32 %s87, 1
      %p91 = scmp.eq.s32.totalorder %s11, 1
      %p92 = scmp.ne.s32.totalorder %s87, %s89
      %p93 = scmp.eq.s32.totalorder %s11, 0
      %p94 = por %p92, %p93
      %p95 = scmp.ne.s32.totalorder %s87, %s89
      %p96 = scmp.eq.s32.totalorder %s16, 1
      %p97 = por %p95, %p96
      %p98 = scmp.ne.s32.totalorder %s89, %s90
      %p99 = scmp.eq.s32.totalorder %s16, 0
      %p100 = por %p98, %p99
      %p101 = scmp.ne.s32.totalorder %s89, %s90
      %p102 = scmp.eq.s32.totalorder %s17, 1
      %p103 = por %p101, %p102
      %p105 = scmp.ne.s32.totalorder %s90, %s104
      %p106 = scmp.eq.s32.totalorder %s17, 0
      %p107 = por %p105, %p106
      %s108 = ssub.s32 %s11, %s18
      %p109 = scmp.eq.s32.totalorder %s108, 0
      %s111 = sadd.s32 %s110, 1
      %s112 = scalar_select %p109, %s110, %s111
      %p115 = pneg %p109
      %p116 = scmp.eq.s32.totalorder %s11, 1
      %p117 = por %p115, %p116
      %p118 = scmp.ne.s32.totalorder %s110, %s113
      %p119 = scmp.eq.s32.totalorder %s11, 0
      %p120 = por %p118, %p119
      %p121 = scmp.ne.s32.totalorder %s110, %s113
      %p122 = scmp.eq.s32.totalorder %s16, 1
      %p123 = por %p121, %p122
      %p124 = scmp.ne.s32.totalorder %s113, %s114
      %p125 = scmp.eq.s32.totalorder %s16, 0
      %p126 = por %p124, %p125
      %p127 = scmp.ne.s32.totalorder %s113, %s114
      %p128 = scmp.eq.s32.totalorder %s17, 1
      %p129 = por %p127, %p128
      %p131 = scmp.ne.s32.totalorder %s114, %s130
      %p132 = scmp.eq.s32.totalorder %s17, 0
      %p133 = por %p131, %p132
      %p134 = scmp.le.s32.totalorder 1, %s11
      %p135 = scmp.lt.s32.totalorder %s11, 3
      %p136 = pnand %p134, %p135
      %p137 = pneg %p136
      // Predicated region
      $region9: #{fsrcnn_forward.1} parent=5 // pred_check
        _
      $region10: #{fsrcnn_forward.1} parent=5 // pred_check_branch
        %139 = sbr.rel (%p136) target = $region12
      $region11: #{fsrcnn_forward.1} parent=5 // pred_region
        %s140 = ssub.s32 %s11, 1
        // Predicated region
        $region13: #{fsrcnn_forward.1} parent=11 // pred_check
          %p141 = pneg %p58
        $region14: #{fsrcnn_forward.1} parent=11 // pred_check_branch
          %143 = sbr.rel (%p141) target = $region16
        $region15: #{fsrcnn_forward.1} parent=11 // pred_region
          _
        $region16: #{fsrcnn_forward.1} parent=11 // pred_fallthru
          _
        // Predicated region
        $region17: #{fsrcnn_forward.1} parent=11 // pred_check
          %p144 = pneg %p79
        $region18: #{fsrcnn_forward.1} parent=11 // pred_check_branch
          %146 = sbr.rel (%p144) target = $region20
        $region19: #{fsrcnn_forward.1} parent=11 // pred_region
          _
        $region20: #{fsrcnn_forward.1} parent=11 // pred_fallthru
          _
        // Predicated region
        $region21: #{fsrcnn_forward.1} parent=11 // pred_check
          %p147 = pneg %p100
        $region22: #{fsrcnn_forward.1} parent=11 // pred_check_branch
          %149 = sbr.rel (%p147) target = $region24
        $region23: #{fsrcnn_forward.1} parent=11 // pred_region
          %s151 = ssub.s32 16, 16
          %152 = vsyncadd [#allocation5], %s151
          %s154 = sshll.u32 %s3, 4
          %s155 = int_to_ptr.vmem [resolvable:$true] %s154
          %157 = dma.vmem_to_smem %s155, 16, [#allocation4], [#allocation5]
        $region24: #{fsrcnn_forward.1} parent=11 // pred_fallthru
          _
      $region12: #{fsrcnn_forward.1} parent=5 // pred_fallthru
        _
      %p158 = scmp.lt.s32.totalorder %s11, 2
      // Predicated region
      $region25: #{fsrcnn_forward.1} parent=5 // pred_check
        %p159 = pneg %p158
      $region26: #{fsrcnn_forward.1} parent=5 // pred_check_branch
        %161 = sbr.rel (%p159) target = $region28
      $region27: #{fsrcnn_forward.1} parent=5 // pred_region
        // Predicated region
        $region29: #{fsrcnn_forward.1} parent=27 // pred_check
          %p162 = pneg %p31
        $region30: #{fsrcnn_forward.1} parent=27 // pred_check_branch
          %164 = sbr.rel (%p162) target = $region32
        $region31: #{fsrcnn_forward.1} parent=27 // pred_region
          %p165 = scmp.lt.s32.totalorder %s11, 1
          %s166 = scalar_select %p165, %s11, 1
          %s167 = smul.addr %s166, 7
          %s168 = scalar_lea.vmem %s0, %s167
        $region32: #{fsrcnn_forward.1} parent=27 // pred_fallthru
          _
      $region28: #{fsrcnn_forward.1} parent=5 // pred_fallthru
        _
      %p169 = scmp.le.s32.totalorder 1, %s11
      %p170 = scmp.lt.s32.totalorder %s11, 3
      %p171 = pnand %p169, %p170
      %p172 = pneg %p171
      // Predicated region
      $region33: #{fsrcnn_forward.1} parent=5 // pred_check
        _
      $region34: #{fsrcnn_forward.1} parent=5 // pred_check_branch
        %174 = sbr.rel (%p171) target = $region36
      $region35: #{fsrcnn_forward.1} parent=5 // pred_region
        %s175 = ssub.s32 %s11, 1
        // Predicated region
        $region37: #{fsrcnn_forward.1} parent=35 // pred_check
          %p176 = pneg %p100
        $region38: #{fsrcnn_forward.1} parent=35 // pred_check_branch
          %178 = sbr.rel (%p176) target = $region40
        $region39: #{fsrcnn_forward.1} parent=35 // pred_region
          %179 = dma.done [#allocation5], 16
        $region40: #{fsrcnn_forward.1} parent=35 // pred_fallthru
          _
        %180 = sfence
        %p181 = scmp.lt.s32.totalorder %s16, 1
        %s182 = scalar_select %p181, %s16, 1
        %s183 = smul.addr %s182, 7
        %s184 = scalar_lea.vmem %s0, %s183
        %p185 = pneg %p37
        %p186 = pneg %p34
        %p187 = pneg %p58
        %p188 = pneg %p55
        %p189 = pneg %p79
        %p190 = pneg %p76
        %p191 = pneg %p100
        %p192 = pneg %p97
        %p193 = pneg %p126
        %p194 = pneg %p123
        %p195 = scmp.lt.s32.totalorder %s16, 1
        %s196 = scalar_select %p195, %s16, 1
        %s197 = smul.addr %s196, 5
        %s198 = smul.addr %s197, 8
        %s199 = scalar_lea.vmem %s4, %s198
        %p200 = scmp.lt.s32.totalorder %s16, 1
        %s201 = scalar_select %p200, %s16, 1
        %s202 = smul.addr %s201, 7
        %s203 = scalar_lea.vmem %s0, %s202
        %p204 = scmp.lt.s32.totalorder %s16, 1
        %s205 = scalar_select %p204, %s16, 1
        %s206 = smul.addr %s205, 5
        %s207 = smul.addr %s206, 8
        %s208 = scalar_lea.vmem %s4, %s207
        %209 = vst [vmem:[#allocation2] sm:$0xff] 0.0
        %210 = vst [vmem:[#allocation2 + $0x38] sm:$0xff] 0.0
        %211 = vst [vmem:[#allocation2 + $0x30] sm:$0xff] 0.0
        %212 = vst [vmem:[#allocation2 + $0x68] sm:$0xff] 0.0
        %v213 = vld [vmem:[%s203] sm:$0xff]
        %215 = vrot.lane.b32.xlu0 %v213, 50
        %v216 = vpop.permute.xlu0 %215
        %v217 = vrot.slane %v216, 1
        %vm218 = vcmask 408576
        %v219 = vsel %vm218, %v216, %v217
        %v221 = vlaneseq
        %vm222 = vcmp.ge.s32.totalorder %v221, 0
        %vm223 = vcmp.lt.s32.totalorder %v221, 640
        %vm224 = vmand %vm222, %vm223
        %225 = vst.msk [vmem:[#allocation3] ss:$8 sm:$0xf] %vm224, %v219
        %226 = vst.msk [vmem:[#allocation3] ss:$8 sm:$0x10] %vm224, %v219
        %227 = vrot.lane.b32.xlu0 %v213, 49
        %v228 = vpop.permute.xlu0 %227
        %v229 = vrot.slane %v228, 1
        %vm230 = vcmask 400384
        %v231 = vsel %vm230, %v228, %v229
        %s233 = scalar_lea.vmem [#allocation3], 1
        %234 = vst.msk [vmem:[%s233] ss:$8 sm:$0xf] %vm224, %v231
        %235 = vst.msk [vmem:[%s233] ss:$8 sm:$0x10] %vm224, %v231
        %236 = vrot.lane.b32.xlu0 %v213, 48
        %v237 = vpop.permute.xlu0 %236
        %v238 = vrot.slane %v237, 1
        %vm239 = vcmask 392192
        %v240 = vsel %vm239, %v237, %v238
        %s242 = scalar_lea.vmem [#allocation3], 2
        %243 = vst.msk [vmem:[%s242] ss:$8 sm:$0xf] %vm224, %v240
        %244 = vst.msk [vmem:[%s242] ss:$8 sm:$0x10] %vm224, %v240
        %245 = vrot.lane.b32.xlu0 %v213, 47
        %v246 = vpop.permute.xlu0 %245
        %v247 = vrot.slane %v246, 1
        %vm248 = vcmask 384000
        %v249 = vsel %vm248, %v246, %v247
        %s251 = scalar_lea.vmem [#allocation3], 3
        %252 = vst.msk [vmem:[%s251] ss:$8 sm:$0xf] %vm224, %v249
        %253 = vst.msk [vmem:[%s251] ss:$8 sm:$0x10] %vm224, %v249
        %254 = vrot.lane.b32.xlu0 %v213, 46
        %v255 = vpop.permute.xlu0 %254
        %v256 = vrot.slane %v255, 1
        %vm257 = vcmask 375808
        %v258 = vsel %vm257, %v255, %v256
        %s260 = scalar_lea.vmem [#allocation3], 4
        %261 = vst.msk [vmem:[%s260] ss:$8 sm:$0xf] %vm224, %v258
        %262 = vst.msk [vmem:[%s260] ss:$8 sm:$0x10] %vm224, %v258
        %263 = vrot.lane.b32.xlu0 %v213, 26
        %v264 = vpop.permute.xlu0 %263
        %v265 = vrot.slane %v264, 1
        %vm266 = vcmask 211968
        %v267 = vsel %vm266, %v264, %v265
        %s269 = scalar_lea.vmem [#allocation3], 5
        %270 = vst.msk [vmem:[%s269] ss:$8 sm:$0xf] %vm224, %v267
        %271 = vst.msk [vmem:[%s269] ss:$8 sm:$0x10] %vm224, %v267
        %272 = vrot.lane.b32.xlu0 %v213, 25
        %v273 = vpop.permute.xlu0 %272
        %v274 = vrot.slane %v273, 1
        %vm275 = vcmask 203776
        %v276 = vsel %vm275, %v273, %v274
        %s278 = scalar_lea.vmem [#allocation3], 6
        %279 = vst.msk [vmem:[%s278] ss:$8 sm:$0xf] %vm224, %v276
        %280 = vst.msk [vmem:[%s278] ss:$8 sm:$0x10] %vm224, %v276
        %281 = vrot.lane.b32.xlu0 %v213, 24
        %v282 = vpop.permute.xlu0 %281
        %v283 = vrot.slane %v282, 1
        %vm284 = vcmask 195584
        %v285 = vsel %vm284, %v282, %v283
        %s287 = scalar_lea.vmem [#allocation3], 7
        %288 = vst.msk [vmem:[%s287] ss:$8 sm:$0xf] %vm224, %v285
        %289 = vst.msk [vmem:[%s287] ss:$8 sm:$0x10] %vm224, %v285
        %290 = vrot.lane.b32.xlu0 %v213, 23
        %v291 = vpop.permute.xlu0 %290
        %v292 = vrot.slane %v291, 1
        %vm293 = vcmask 187392
        %v294 = vsel %vm293, %v291, %v292
        %s296 = scalar_lea.vmem [#allocation3], 40
        %297 = vst.msk [vmem:[%s296] ss:$8 sm:$0xf] %vm224, %v294
        %298 = vst.msk [vmem:[%s296] ss:$8 sm:$0x10] %vm224, %v294
        %299 = vrot.lane.b32.xlu0 %v213, 22
        %v300 = vpop.permute.xlu0 %299
        %v301 = vrot.slane %v300, 1
        %vm302 = vcmask 179200
        %v303 = vsel %vm302, %v300, %v301
        %s305 = scalar_lea.vmem [#allocation3], 41
        %306 = vst.msk [vmem:[%s305] ss:$8 sm:$0xf] %vm224, %v303
        %307 = vst.msk [vmem:[%s305] ss:$8 sm:$0x10] %vm224, %v303
        %308 = vrot.lane.b32.xlu0 %v213, 2
        %v309 = vpop.permute.xlu0 %308
        %v310 = vrot.slane %v309, 1
        %vm311 = vcmask 15360
        %v312 = vsel %vm311, %v309, %v310
        %s314 = scalar_lea.vmem [#allocation3], 42
        %315 = vst.msk [vmem:[%s314] ss:$8 sm:$0xf] %vm224, %v312
        %316 = vst.msk [vmem:[%s314] ss:$8 sm:$0x10] %vm224, %v312
        %317 = vrot.lane.b32.xlu0 %v213, 1
        %v318 = vpop.permute.xlu0 %317
        %v319 = vrot.slane %v318, 1
        %vm320 = vcmask 7168
        %v321 = vsel %vm320, %v318, %v319
        %s323 = scalar_lea.vmem [#allocation3], 43
        %324 = vst.msk [vmem:[%s323] ss:$8 sm:$0xf] %vm224, %v321
        %325 = vst.msk [vmem:[%s323] ss:$8 sm:$0x10] %vm224, %v321
        %v326 = vrot.slane %v213, 1
        %s328 = scalar_lea.vmem [#allocation3], 44
        %329 = vst.msk [vmem:[%s328] ss:$8 sm:$0xf] %vm224, %v326
        %330 = vst.msk [vmem:[%s328] ss:$8 sm:$0x10] %vm224, %v326
        %331 = vrot.lane.b32.xlu0 %v213, 127
        %v332 = vpop.permute.xlu0 %331
        %v333 = vrot.slane %v332, 1
        %v334 = vrot.slane %v332, 2
        %vm335 = vcmask 1039360
        %v336 = vsel %vm335, %v333, %v334
        %s338 = scalar_lea.vmem [#allocation3], 45
        %339 = vst.msk [vmem:[%s338] ss:$8 sm:$0xf] %vm224, %v336
        %340 = vst.msk [vmem:[%s338] ss:$8 sm:$0x10] %vm224, %v336
        %341 = vrot.lane.b32.xlu0 %v213, 126
        %v342 = vpop.permute.xlu0 %341
        %v343 = vrot.slane %v342, 1
        %v344 = vrot.slane %v342, 2
        %vm345 = vcmask 1031168
        %v346 = vsel %vm345, %v343, %v344
        %s348 = scalar_lea.vmem [#allocation3], 46
        %349 = vst.msk [vmem:[%s348] ss:$8 sm:$0xf] %vm224, %v346
        %350 = vst.msk [vmem:[%s348] ss:$8 sm:$0x10] %vm224, %v346
        %351 = vrot.lane.b32.xlu0 %v213, 106
        %v352 = vpop.permute.xlu0 %351
        %v353 = vrot.slane %v352, 1
        %v354 = vrot.slane %v352, 2
        %vm355 = vcmask 867328
        %v356 = vsel %vm355, %v353, %v354
        %s358 = scalar_lea.vmem [#allocation3], 47
        %359 = vst.msk [vmem:[%s358] ss:$8 sm:$0xf] %vm224, %v356
        %360 = vst.msk [vmem:[%s358] ss:$8 sm:$0x10] %vm224, %v356
        %361 = vrot.lane.b32.xlu0 %v213, 105
        %v362 = vpop.permute.xlu0 %361
        %v363 = vrot.slane %v362, 1
        %v364 = vrot.slane %v362, 2
        %vm365 = vcmask 859136
        %v366 = vsel %vm365, %v363, %v364
        %s368 = scalar_lea.vmem [#allocation3], 80
        %369 = vst.msk [vmem:[%s368] ss:$8 sm:$0xf] %vm224, %v366
        %370 = vst.msk [vmem:[%s368] ss:$8 sm:$0x10] %vm224, %v366
        %371 = vrot.lane.b32.xlu0 %v213, 104
        %v372 = vpop.permute.xlu0 %371
        %v373 = vrot.slane %v372, 1
        %v374 = vrot.slane %v372, 2
        %vm375 = vcmask 850944
        %v376 = vsel %vm375, %v373, %v374
        %s378 = scalar_lea.vmem [#allocation3], 81
        %379 = vst.msk [vmem:[%s378] ss:$8 sm:$0xf] %vm224, %v376
        %380 = vst.msk [vmem:[%s378] ss:$8 sm:$0x10] %vm224, %v376
        %381 = vrot.lane.b32.xlu0 %v213, 103
        %v382 = vpop.permute.xlu0 %381
        %v383 = vrot.slane %v382, 1
        %v384 = vrot.slane %v382, 2
        %vm385 = vcmask 842752
        %v386 = vsel %vm385, %v383, %v384
        %s388 = scalar_lea.vmem [#allocation3], 82
        %389 = vst.msk [vmem:[%s388] ss:$8 sm:$0xf] %vm224, %v386
        %390 = vst.msk [vmem:[%s388] ss:$8 sm:$0x10] %vm224, %v386
        %391 = vrot.lane.b32.xlu0 %v213, 102
        %v392 = vpop.permute.xlu0 %391
        %v393 = vrot.slane %v392, 1
        %v394 = vrot.slane %v392, 2
        %vm395 = vcmask 834560
        %v396 = vsel %vm395, %v393, %v394
        %s398 = scalar_lea.vmem [#allocation3], 83
        %399 = vst.msk [vmem:[%s398] ss:$8 sm:$0xf] %vm224, %v396
        %400 = vst.msk [vmem:[%s398] ss:$8 sm:$0x10] %vm224, %v396
        %401 = vrot.lane.b32.xlu0 %v213, 82
        %v402 = vpop.permute.xlu0 %401
        %v403 = vrot.slane %v402, 1
        %v404 = vrot.slane %v402, 2
        %vm405 = vcmask 670720
        %v406 = vsel %vm405, %v403, %v404
        %s408 = scalar_lea.vmem [#allocation3], 84
        %409 = vst.msk [vmem:[%s408] ss:$8 sm:$0xf] %vm224, %v406
        %410 = vst.msk [vmem:[%s408] ss:$8 sm:$0x10] %vm224, %v406
        %411 = vrot.lane.b32.xlu0 %v213, 81
        %v412 = vpop.permute.xlu0 %411
        %v413 = vrot.slane %v412, 1
        %v414 = vrot.slane %v412, 2
        %vm415 = vcmask 662528
        %v416 = vsel %vm415, %v413, %v414
        %s418 = scalar_lea.vmem [#allocation3], 85
        %419 = vst.msk [vmem:[%s418] ss:$8 sm:$0xf] %vm224, %v416
        %420 = vst.msk [vmem:[%s418] ss:$8 sm:$0x10] %vm224, %v416
        %421 = vrot.lane.b32.xlu0 %v213, 80
        %v422 = vpop.permute.xlu0 %421
        %v423 = vrot.slane %v422, 1
        %v424 = vrot.slane %v422, 2
        %vm425 = vcmask 654336
        %v426 = vsel %vm425, %v423, %v424
        %s428 = scalar_lea.vmem [#allocation3], 86
        %429 = vst.msk [vmem:[%s428] ss:$8 sm:$0xf] %vm224, %v426
        %430 = vst.msk [vmem:[%s428] ss:$8 sm:$0x10] %vm224, %v426
        %431 = vrot.lane.b32.xlu0 %v213, 79
        %v432 = vpop.permute.xlu0 %431
        %v433 = vrot.slane %v432, 1
        %v434 = vrot.slane %v432, 2
        %vm435 = vcmask 646144
        %v436 = vsel %vm435, %v433, %v434
        %s438 = scalar_lea.vmem [#allocation3], 87
        %439 = vst.msk [vmem:[%s438] ss:$8 sm:$0xf] %vm224, %v436
        %440 = vst.msk [vmem:[%s438] ss:$8 sm:$0x10] %vm224, %v436
        %441 = vrot.lane.b32.xlu0 %v213, 78
        %v442 = vpop.permute.xlu0 %441
        %v443 = vrot.slane %v442, 1
        %v444 = vrot.slane %v442, 2
        %vm445 = vcmask 637952
        %v446 = vsel %vm445, %v443, %v444
        %s448 = scalar_lea.vmem [#allocation3], 120
        %449 = vst.msk [vmem:[%s448] ss:$8 sm:$0xf] %vm224, %v446
        %450 = vst.msk [vmem:[%s448] ss:$8 sm:$0x10] %vm224, %v446
        %451 = vst [vmem:[#allocation3 + $0x78] sm:$0xfe] 0.0
        %452 = vst [vmem:[#allocation3 + $0x80] sm:$0xfe] 0.0
        %453 = vst [vmem:[#allocation3 + $0x88] sm:$0xfe] 0.0
        %454 = vst [vmem:[#allocation3 + $0x90] sm:$0xfe] 0.0
        %455 = vst [vmem:[#allocation3 + $0x98] sm:$0xfe] 0.0
        %v456 = vld [vmem:[%s2] sm:$0xff]
        %v457 = vld [vmem:[%s2 + $0x20] sm:$0xff]
        %v458 = vld [vmem:[#allocation3] sm:$0xff]
        %v459 = vld [vmem:[#allocation3 + $0x8] sm:$0xff]
        %v460 = vld [vmem:[#allocation3 + $0x10] sm:$0xff]
        %v461 = vld [vmem:[#allocation3 + $0x18] sm:$0xff]
        %v462 = vld [vmem:[#allocation3 + $0x20] sm:$0xff]
        %v463 = vld [vmem:[#allocation3 + $0x28] sm:$0xff]
        %v464 = vld [vmem:[#allocation3 + $0x30] sm:$0xff]
        %v465 = vld [vmem:[#allocation3 + $0x38] sm:$0xff]
        %v466 = vld [vmem:[#allocation3 + $0x40] sm:$0xff]
        %v467 = vld [vmem:[#allocation3 + $0x48] sm:$0xff]
        %v468 = vld [vmem:[#allocation3 + $0x50] sm:$0xff]
        %v469 = vld [vmem:[#allocation3 + $0x58] sm:$0xff]
        %v470 = vld [vmem:[#allocation3 + $0x60] sm:$0xff]
        %v471 = vld [vmem:[#allocation3 + $0x68] sm:$0xff]
        %v472 = vld [vmem:[#allocation3 + $0x70] sm:$0xff]
        %v473 = vld [vmem:[#allocation3 + $0x78] sm:$0xff]
        %v474 = vld [vmem:[#allocation3 + $0x80] sm:$0xff]
        %v475 = vld [vmem:[#allocation3 + $0x88] sm:$0xff]
        %v476 = vld [vmem:[#allocation3 + $0x90] sm:$0xff]
        %v477 = vld [vmem:[#allocation3 + $0x98] sm:$0xff]
        %479 = vset.pattern.permute.xlu0 25
        %480 = vperm.xlu0 %479, %v456
        %v481 = vpop.permute.xlu0 %480
        %484 = vset.pattern.permute.xlu0 25
        %485 = vperm.xlu0 %484, %v457
        %v486 = vpop.permute.xlu0 %485
        %vm488 = vcmask 261120
        %v489 = vsel %vm488, %v456, 0
        %v491 = vsel %vm488, %v457, 0
        %493 = vmatprep.subr.mxu0 0.0
        %494 = vmatpush1.msra.mxu0 0.0
        %495 = vmatprep.subr.mxu0 0.0
        %496 = vmatpush1.msra.mxu0 0.0
        %497 = vmatprep.subr.mxu0 0.0
        %498 = vmatpush1.msra.mxu0 0.0
        %499 = vmatprep.subr.mxu0 0.0
        %500 = vmatpush1.msra.mxu0 0.0
        %501 = vmatprep.subr.mxu0 0.0
        %502 = vmatpush1.msra.mxu0 0.0
        %503 = vmatprep.subr.mxu0 0.0
        %504 = vmatpush1.msra.mxu0 0.0
        %505 = vmatprep.subr.mxu0 0.0
        %506 = vmatpush1.msra.mxu0 0.0
        %507 = vmatprep.subr.mxu0 0.0
        %508 = vmatpush1.msra.mxu0 0.0
        %509 = vmatprep.subr.mxu0 0.0
        %510 = vmatpush1.msra.mxu0 0.0
        %511 = vmatprep.subr.mxu0 0.0
        %512 = vmatpush1.msra.mxu0 0.0
        %513 = vmatprep.subr.mxu0 0.0
        %514 = vmatpush1.msra.mxu0 0.0
        %515 = vmatprep.subr.mxu0 0.0
        %516 = vmatpush1.msra.mxu0 0.0
        %517 = vmatprep.subr.mxu0 %v474
        %518 = vmatpush1.msra.mxu0 %v473
        %519 = vmatprep.subr.mxu0 %v469
        %520 = vmatpush1.msra.mxu0 %v468
        %521 = vmatprep.subr.mxu0 %v464
        %522 = vmatpush1.msra.mxu0 %v463
        %523 = vmatprep.subr.mxu0 %v459
        %524 = vmatpush1.msra.mxu0 %v458
        %525 = vmatprep.subr.mxu0 0.0
        %526 = vmatpush2.msra.mxu0 0.0
        %527 = vmatprep.subr.mxu0 0.0
        %528 = vmatpush2.msra.mxu0 0.0
        %529 = vmatprep.subr.mxu0 0.0
        %530 = vmatpush2.msra.mxu0 0.0
        %531 = vmatprep.subr.mxu0 0.0
        %532 = vmatpush2.msra.mxu0 0.0
        %533 = vmatprep.subr.mxu0 0.0
        %534 = vmatpush2.msra.mxu0 0.0
        %535 = vmatprep.subr.mxu0 0.0
        %536 = vmatpush2.msra.mxu0 0.0
        %537 = vmatprep.subr.mxu0 0.0
        %538 = vmatpush2.msra.mxu0 0.0
        %539 = vmatprep.subr.mxu0 0.0
        %540 = vmatpush2.msra.mxu0 0.0
        %541 = vmatprep.subr.mxu0 0.0
        %542 = vmatpush2.msra.mxu0 0.0
        %543 = vmatprep.subr.mxu0 0.0
        %544 = vmatpush2.msra.mxu0 0.0
        %545 = vmatprep.subr.mxu0 0.0
        %546 = vmatpush2.msra.mxu0 0.0
        %547 = vmatprep.subr.mxu0 0.0
        %548 = vmatpush2.msra.mxu0 0.0
        %549 = vmatprep.subr.mxu0 0.0
        %550 = vmatpush2.msra.mxu0 0.0
        %551 = vmatprep.subr.mxu0 0.0
        %552 = vmatpush2.msra.mxu0 0.0
        %553 = vmatprep.subr.mxu0 0.0
        %554 = vmatpush2.msra.mxu0 0.0
        %555 = vmatprep.subr.mxu0 0.0
        %556 = vmatpush2.msra.mxu0 0.0
        %557 = vmatprep.mubr.f32.mxu0 0.0
        %558 = vmatmul.mubr.f32.gmra.mxu0 %v489
        %v559 = vpop.f32.mrf.mxu0
        %v560 = vadd.f32 %v481, %v559
        %v561 = vpop.f32.mrf.mxu0
        %v562 = vadd.f32 %v481, %v561
        %563 = vmatprep.mubr.f32.mxu0 0.0
        %564 = vmatmul.mubr.f32.gmra.mxu0 %v491
        %v565 = vpop.f32.mrf.mxu0
        %v566 = vadd.f32 %v486, %v565
        %v567 = vpop.f32.mrf.mxu0
        %v568 = vadd.f32 %v486, %v567
        %569 = vdwg.mxu0
        %570 = vmatprep.subr.mxu0 0.0
        %571 = vmatpush1.msra.mxu0 0.0
        %572 = vmatprep.subr.mxu0 0.0
        %573 = vmatpush1.msra.mxu0 0.0
        %574 = vmatprep.subr.mxu0 0.0
        %575 = vmatpush1.msra.mxu0 0.0
        %576 = vmatprep.subr.mxu0 0.0
        %577 = vmatpush1.msra.mxu0 0.0
        %578 = vmatprep.subr.mxu0 0.0
        %579 = vmatpush1.msra.mxu0 0.0
        %580 = vmatprep.subr.mxu0 0.0
        %581 = vmatpush1.msra.mxu0 0.0
        %582 = vmatprep.subr.mxu0 0.0
        %583 = vmatpush1.msra.mxu0 0.0
        %584 = vmatprep.subr.mxu0 0.0
        %585 = vmatpush1.msra.mxu0 0.0
        %586 = vmatprep.subr.mxu0 0.0
        %587 = vmatpush1.msra.mxu0 0.0
        %588 = vmatprep.subr.mxu0 0.0
        %589 = vmatpush1.msra.mxu0 0.0
        %590 = vmatprep.subr.mxu0 0.0
        %591 = vmatpush1.msra.mxu0 0.0
        %592 = vmatprep.subr.mxu0 0.0
        %593 = vmatpush1.msra.mxu0 0.0
        %594 = vmatprep.subr.mxu0 %v476
        %595 = vmatpush1.msra.mxu0 %v475
        %596 = vmatprep.subr.mxu0 %v471
        %597 = vmatpush1.msra.mxu0 %v470
        %598 = vmatprep.subr.mxu0 %v466
        %599 = vmatpush1.msra.mxu0 %v465
        %600 = vmatprep.subr.mxu0 %v461
        %601 = vmatpush1.msra.mxu0 %v460
        %602 = vmatprep.subr.mxu0 0.0
        %603 = vmatpush2.msra.mxu0 0.0
        %604 = vmatprep.subr.mxu0 0.0
        %605 = vmatpush2.msra.mxu0 0.0
        %606 = vmatprep.subr.mxu0 0.0
        %607 = vmatpush2.msra.mxu0 0.0
        %608 = vmatprep.subr.mxu0 0.0
        %609 = vmatpush2.msra.mxu0 0.0
        %610 = vmatprep.subr.mxu0 0.0
        %611 = vmatpush2.msra.mxu0 0.0
        %612 = vmatprep.subr.mxu0 0.0
        %613 = vmatpush2.msra.mxu0 0.0
        %614 = vmatprep.subr.mxu0 0.0
        %615 = vmatpush2.msra.mxu0 0.0
        %616 = vmatprep.subr.mxu0 0.0
        %617 = vmatpush2.msra.mxu0 0.0
        %618 = vmatprep.subr.mxu0 0.0
        %619 = vmatpush2.msra.mxu0 0.0
        %620 = vmatprep.subr.mxu0 0.0
        %621 = vmatpush2.msra.mxu0 0.0
        %622 = vmatprep.subr.mxu0 0.0
        %623 = vmatpush2.msra.mxu0 0.0
        %624 = vmatprep.subr.mxu0 0.0
        %625 = vmatpush2.msra.mxu0 0.0
        %626 = vmatprep.subr.mxu0 0.0
        %627 = vmatpush2.msra.mxu0 0.0
        %628 = vmatprep.subr.mxu0 0.0
        %629 = vmatpush2.msra.mxu0 0.0
        %630 = vmatprep.subr.mxu0 0.0
        %631 = vmatpush2.msra.mxu0 0.0
        %632 = vmatprep.subr.mxu0 0.0
        %633 = vmatpush2.msra.mxu0 0.0
        %634 = vmatprep.mubr.f32.mxu0 0.0
        %635 = vmatmul.mubr.f32.gmra.mxu0 %v489
        %v636 = vpop.f32.mrf.mxu0
        %v637 = vadd.f32 %v481, %v636
        %v638 = vpop.f32.mrf.mxu0
        %v639 = vadd.f32 %v481, %v638
        %640 = vmatprep.mubr.f32.mxu0 0.0
        %641 = vmatmul.mubr.f32.gmra.mxu0 %v491
        %v642 = vpop.f32.mrf.mxu0
        %v643 = vadd.f32 %v486, %v642
        %v644 = vpop.f32.mrf.mxu0
        %v645 = vadd.f32 %v486, %v644
        %646 = vdwg.mxu0
        %647 = vmatprep.subr.mxu0 0.0
        %648 = vmatpush1.msra.mxu0 0.0
        %649 = vmatprep.subr.mxu0 0.0
        %650 = vmatpush1.msra.mxu0 0.0
        %651 = vmatprep.subr.mxu0 0.0
        %652 = vmatpush1.msra.mxu0 0.0
        %653 = vmatprep.subr.mxu0 0.0
        %654 = vmatpush1.msra.mxu0 0.0
        %655 = vmatprep.subr.mxu0 0.0
        %656 = vmatpush1.msra.mxu0 0.0
        %657 = vmatprep.subr.mxu0 0.0
        %658 = vmatpush1.msra.mxu0 0.0
        %659 = vmatprep.subr.mxu0 0.0
        %660 = vmatpush1.msra.mxu0 0.0
        %661 = vmatprep.subr.mxu0 0.0
        %662 = vmatpush1.msra.mxu0 0.0
        %663 = vmatprep.subr.mxu0 0.0
        %664 = vmatpush1.msra.mxu0 0.0
        %665 = vmatprep.subr.mxu0 0.0
        %666 = vmatpush1.msra.mxu0 0.0
        %667 = vmatprep.subr.mxu0 0.0
        %668 = vmatpush1.msra.mxu0 0.0
        %669 = vmatprep.subr.mxu0 0.0
        %670 = vmatpush1.msra.mxu0 0.0
        %671 = vmatprep.subr.mxu0 0.0
        %672 = vmatpush1.msra.mxu0 %v477
        %673 = vmatprep.subr.mxu0 0.0
        %674 = vmatpush1.msra.mxu0 %v472
        %675 = vmatprep.subr.mxu0 0.0
        %676 = vmatpush1.msra.mxu0 %v467
        %677 = vmatprep.subr.mxu0 0.0
        %678 = vmatpush1.msra.mxu0 %v462
        %679 = vmatprep.subr.mxu0 0.0
        %680 = vmatpush2.msra.mxu0 0.0
        %681 = vmatprep.subr.mxu0 0.0
        %682 = vmatpush2.msra.mxu0 0.0
        %683 = vmatprep.subr.mxu0 0.0
        %684 = vmatpush2.msra.mxu0 0.0
        %685 = vmatprep.subr.mxu0 0.0
        %686 = vmatpush2.msra.mxu0 0.0
        %687 = vmatprep.subr.mxu0 0.0
        %688 = vmatpush2.msra.mxu0 0.0
        %689 = vmatprep.subr.mxu0 0.0
        %690 = vmatpush2.msra.mxu0 0.0
        %691 = vmatprep.subr.mxu0 0.0
        %692 = vmatpush2.msra.mxu0 0.0
        %693 = vmatprep.subr.mxu0 0.0
        %694 = vmatpush2.msra.mxu0 0.0
        %695 = vmatprep.subr.mxu0 0.0
        %696 = vmatpush2.msra.mxu0 0.0
        %697 = vmatprep.subr.mxu0 0.0
        %698 = vmatpush2.msra.mxu0 0.0
        %699 = vmatprep.subr.mxu0 0.0
        %700 = vmatpush2.msra.mxu0 0.0
        %701 = vmatprep.subr.mxu0 0.0
        %702 = vmatpush2.msra.mxu0 0.0
        %703 = vmatprep.subr.mxu0 0.0
        %704 = vmatpush2.msra.mxu0 0.0
        %705 = vmatprep.subr.mxu0 0.0
        %706 = vmatpush2.msra.mxu0 0.0
        %707 = vmatprep.subr.mxu0 0.0
        %708 = vmatpush2.msra.mxu0 0.0
        %709 = vmatprep.subr.mxu0 0.0
        %710 = vmatpush2.msra.mxu0 0.0
        %711 = vmatprep.mubr.f32.mxu0 0.0
        %712 = vmatmul.mubr.f32.gmra.mxu0 %v489
        %v713 = vpop.f32.mrf.mxu0
        %v714 = vadd.f32 %v481, %v713
        %v715 = vpop.f32.mrf.mxu0
        %716 = vmatprep.mubr.f32.mxu0 0.0
        %717 = vmatmul.mubr.f32.gmra.mxu0 %v491
        %v718 = vpop.f32.mrf.mxu0
        %v719 = vadd.f32 %v486, %v718
        %v720 = vpop.f32.mrf.mxu0
        %721 = vdwg.mxu0
        %s722 = sld [smem:[#allocation4]]
        %vm723 = vcmp.ge.f32.partialorder %v560, 0.0
        %vm724 = vcmp.ge.f32.partialorder %v562, 0.0
        %vm725 = vcmp.ge.f32.partialorder %v637, 0.0
        %vm726 = vcmp.ge.f32.partialorder %v639, 0.0
        %vm727 = vcmp.ge.f32.partialorder %v714, 0.0
        %vm728 = vcmp.ge.f32.partialorder %v566, 0.0
        %vm729 = vcmp.ge.f32.partialorder %v568, 0.0
        %vm730 = vcmp.ge.f32.partialorder %v643, 0.0
        %vm731 = vcmp.ge.f32.partialorder %v645, 0.0
        %vm732 = vcmp.ge.f32.partialorder %v719, 0.0
        %v733 = vstv %s722
        %v734 = vmul.f32 %v733, %v560
        %v735 = vmul.f32 %v733, %v562
        %v736 = vmul.f32 %v733, %v637
        %v737 = vmul.f32 %v733, %v639
        %v738 = vmul.f32 %v733, %v714
        %v739 = vmul.f32 %v733, %v566
        %v740 = vmul.f32 %v733, %v568
        %v741 = vmul.f32 %v733, %v643
        %v742 = vmul.f32 %v733, %v645
        %v743 = vmul.f32 %v733, %v719
        %v744 = vsel %vm723, %v560, %v734
        %v745 = vsel %vm724, %v562, %v735
        %v746 = vsel %vm725, %v637, %v736
        %v747 = vsel %vm726, %v639, %v737
        %v748 = vsel %vm727, %v714, %v738
        %v749 = vsel %vm728, %v566, %v739
        %v750 = vsel %vm729, %v568, %v740
        %v751 = vsel %vm730, %v643, %v741
        %v752 = vsel %vm731, %v645, %v742
        %v753 = vsel %vm732, %v719, %v743
        %v754 = vld [vmem:[%s2 + $0x40] sm:$0xff]
        %756 = vset.pattern.permute.xlu0 16
        %757 = vperm.xlu0 %756, %v754
        %v758 = vpop.permute.xlu0 %757
        %vm760 = vcmask 130048
        %v761 = vsel %vm760, %v754, 0
        %763 = vmatprep.subr.mxu0 0.0
        %764 = vmatpush1.msra.mxu0 0.0
        %765 = vmatprep.subr.mxu0 0.0
        %766 = vmatpush1.msra.mxu0 0.0
        %767 = vmatprep.subr.mxu0 0.0
        %768 = vmatpush1.msra.mxu0 0.0
        %769 = vmatprep.subr.mxu0 0.0
        %770 = vmatpush1.msra.mxu0 0.0
        %771 = vmatprep.subr.mxu0 0.0
        %772 = vmatpush1.msra.mxu0 0.0
        %773 = vmatprep.subr.mxu0 0.0
        %774 = vmatpush1.msra.mxu0 0.0
        %775 = vmatprep.subr.mxu0 0.0
        %776 = vmatpush1.msra.mxu0 0.0
        %777 = vmatprep.subr.mxu0 0.0
        %778 = vmatpush1.msra.mxu0 0.0
        %779 = vmatprep.subr.mxu0 0.0
        %780 = vmatpush1.msra.mxu0 0.0
        %781 = vmatprep.subr.mxu0 0.0
        %782 = vmatpush1.msra.mxu0 0.0
        %783 = vmatprep.subr.mxu0 0.0
        %784 = vmatpush1.msra.mxu0 0.0
        %785 = vmatprep.subr.mxu0 0.0
        %786 = vmatpush1.msra.mxu0 0.0
        %787 = vmatprep.subr.mxu0 0.0
        %788 = vmatpush1.msra.mxu0 0.0
        %789 = vmatprep.subr.mxu0 0.0
        %790 = vmatpush1.msra.mxu0 0.0
        %791 = vmatprep.subr.mxu0 %v750
        %792 = vmatpush1.msra.mxu0 %v749
        %793 = vmatprep.subr.mxu0 %v745
        %794 = vmatpush1.msra.mxu0 %v744
        %795 = vmatprep.subr.mxu0 0.0
        %796 = vmatpush2.msra.mxu0 0.0
        %797 = vmatprep.subr.mxu0 0.0
        %798 = vmatpush2.msra.mxu0 0.0
        %799 = vmatprep.subr.mxu0 0.0
        %800 = vmatpush2.msra.mxu0 0.0
        %801 = vmatprep.subr.mxu0 0.0
        %802 = vmatpush2.msra.mxu0 0.0
        %803 = vmatprep.subr.mxu0 0.0
        %804 = vmatpush2.msra.mxu0 0.0
        %805 = vmatprep.subr.mxu0 0.0
        %806 = vmatpush2.msra.mxu0 0.0
        %807 = vmatprep.subr.mxu0 0.0
        %808 = vmatpush2.msra.mxu0 0.0
        %809 = vmatprep.subr.mxu0 0.0
        %810 = vmatpush2.msra.mxu0 0.0
        %811 = vmatprep.subr.mxu0 0.0
        %812 = vmatpush2.msra.mxu0 0.0
        %813 = vmatprep.subr.mxu0 0.0
        %814 = vmatpush2.msra.mxu0 0.0
        %815 = vmatprep.subr.mxu0 0.0
        %816 = vmatpush2.msra.mxu0 0.0
        %817 = vmatprep.subr.mxu0 0.0
        %818 = vmatpush2.msra.mxu0 0.0
        %819 = vmatprep.subr.mxu0 0.0
        %820 = vmatpush2.msra.mxu0 0.0
        %821 = vmatprep.subr.mxu0 0.0
        %822 = vmatpush2.msra.mxu0 0.0
        %823 = vmatprep.subr.mxu0 0.0
        %824 = vmatpush2.msra.mxu0 0.0
        %825 = vmatprep.subr.mxu0 0.0
        %826 = vmatpush2.msra.mxu0 0.0
        %827 = vmatprep.mubr.f32.mxu0 0.0
        %828 = vmatmul.mubr.f32.gmra.mxu0 %v761
        %v829 = vpop.f32.mrf.mxu0
        %v830 = vadd.f32 %v758, %v829
        %v831 = vpop.f32.mrf.mxu0
        %v832 = vadd.f32 %v758, %v831
        %833 = vdwg.mxu0
        %834 = vmatprep.subr.mxu0 0.0
        %835 = vmatpush1.msra.mxu0 0.0
        %836 = vmatprep.subr.mxu0 0.0
        %837 = vmatpush1.msra.mxu0 0.0
        %838 = vmatprep.subr.mxu0 0.0
        %839 = vmatpush1.msra.mxu0 0.0
        %840 = vmatprep.subr.mxu0 0.0
        %841 = vmatpush1.msra.mxu0 0.0
        %842 = vmatprep.subr.mxu0 0.0
        %843 = vmatpush1.msra.mxu0 0.0
        %844 = vmatprep.subr.mxu0 0.0
        %845 = vmatpush1.msra.mxu0 0.0
        %846 = vmatprep.subr.mxu0 0.0
        %847 = vmatpush1.msra.mxu0 0.0
        %848 = vmatprep.subr.mxu0 0.0
        %849 = vmatpush1.msra.mxu0 0.0
        %850 = vmatprep.subr.mxu0 0.0
        %851 = vmatpush1.msra.mxu0 0.0
        %852 = vmatprep.subr.mxu0 0.0
        %853 = vmatpush1.msra.mxu0 0.0
        %854 = vmatprep.subr.mxu0 0.0
        %855 = vmatpush1.msra.mxu0 0.0
        %856 = vmatprep.subr.mxu0 0.0
        %857 = vmatpush1.msra.mxu0 0.0
        %858 = vmatprep.subr.mxu0 0.0
        %859 = vmatpush1.msra.mxu0 0.0
        %860 = vmatprep.subr.mxu0 0.0
        %861 = vmatpush1.msra.mxu0 0.0
        %862 = vmatprep.subr.mxu0 %v752
        %863 = vmatpush1.msra.mxu0 %v751
        %864 = vmatprep.subr.mxu0 %v747
        %865 = vmatpush1.msra.mxu0 %v746
        %866 = vmatprep.subr.mxu0 0.0
        %867 = vmatpush2.msra.mxu0 0.0
        %868 = vmatprep.subr.mxu0 0.0
        %869 = vmatpush2.msra.mxu0 0.0
        %870 = vmatprep.subr.mxu0 0.0
        %871 = vmatpush2.msra.mxu0 0.0
        %872 = vmatprep.subr.mxu0 0.0
        %873 = vmatpush2.msra.mxu0 0.0
        %874 = vmatprep.subr.mxu0 0.0
        %875 = vmatpush2.msra.mxu0 0.0
        %876 = vmatprep.subr.mxu0 0.0
        %877 = vmatpush2.msra.mxu0 0.0
        %878 = vmatprep.subr.mxu0 0.0
        %879 = vmatpush2.msra.mxu0 0.0
        %880 = vmatprep.subr.mxu0 0.0
        %881 = vmatpush2.msra.mxu0 0.0
        %882 = vmatprep.subr.mxu0 0.0
        %883 = vmatpush2.msra.mxu0 0.0
        %884 = vmatprep.subr.mxu0 0.0
        %885 = vmatpush2.msra.mxu0 0.0
        %886 = vmatprep.subr.mxu0 0.0
        %887 = vmatpush2.msra.mxu0 0.0
        %888 = vmatprep.subr.mxu0 0.0
        %889 = vmatpush2.msra.mxu0 0.0
        %890 = vmatprep.subr.mxu0 0.0
        %891 = vmatpush2.msra.mxu0 0.0
        %892 = vmatprep.subr.mxu0 0.0
        %893 = vmatpush2.msra.mxu0 0.0
        %894 = vmatprep.subr.mxu0 0.0
        %895 = vmatpush2.msra.mxu0 0.0
        %896 = vmatprep.subr.mxu0 0.0
        %897 = vmatpush2.msra.mxu0 0.0
        %898 = vmatprep.mubr.f32.mxu0 0.0
        %899 = vmatmul.mubr.f32.gmra.mxu0 %v761
        %v900 = vpop.f32.mrf.mxu0
        %v901 = vadd.f32 %v758, %v900
        %v902 = vpop.f32.mrf.mxu0
        %v903 = vadd.f32 %v758, %v902
        %904 = vdwg.mxu0
        %905 = vmatprep.subr.mxu0 0.0
        %906 = vmatpush1.msra.mxu0 0.0
        %907 = vmatprep.subr.mxu0 0.0
        %908 = vmatpush1.msra.mxu0 0.0
        %909 = vmatprep.subr.mxu0 0.0
        %910 = vmatpush1.msra.mxu0 0.0
        %911 = vmatprep.subr.mxu0 0.0
        %912 = vmatpush1.msra.mxu0 0.0
        %913 = vmatprep.subr.mxu0 0.0
        %914 = vmatpush1.msra.mxu0 0.0
        %915 = vmatprep.subr.mxu0 0.0
        %916 = vmatpush1.msra.mxu0 0.0
        %917 = vmatprep.subr.mxu0 0.0
        %918 = vmatpush1.msra.mxu0 0.0
        %919 = vmatprep.subr.mxu0 0.0
        %920 = vmatpush1.msra.mxu0 0.0
        %921 = vmatprep.subr.mxu0 0.0
        %922 = vmatpush1.msra.mxu0 0.0
        %923 = vmatprep.subr.mxu0 0.0
        %924 = vmatpush1.msra.mxu0 0.0
        %925 = vmatprep.subr.mxu0 0.0
        %926 = vmatpush1.msra.mxu0 0.0
        %927 = vmatprep.subr.mxu0 0.0
        %928 = vmatpush1.msra.mxu0 0.0
        %929 = vmatprep.subr.mxu0 0.0
        %930 = vmatpush1.msra.mxu0 0.0
        %931 = vmatprep.subr.mxu0 0.0
        %932 = vmatpush1.msra.mxu0 0.0
        %933 = vmatprep.subr.mxu0 0.0
        %934 = vmatpush1.msra.mxu0 %v753
        %935 = vmatprep.subr.mxu0 0.0
        %936 = vmatpush1.msra.mxu0 %v748
        %937 = vmatprep.subr.mxu0 0.0
        %938 = vmatpush2.msra.mxu0 0.0
        %939 = vmatprep.subr.mxu0 0.0
        %940 = vmatpush2.msra.mxu0 0.0
        %941 = vmatprep.subr.mxu0 0.0
        %942 = vmatpush2.msra.mxu0 0.0
        %943 = vmatprep.subr.mxu0 0.0
        %944 = vmatpush2.msra.mxu0 0.0
        %945 = vmatprep.subr.mxu0 0.0
        %946 = vmatpush2.msra.mxu0 0.0
        %947 = vmatprep.subr.mxu0 0.0
        %948 = vmatpush2.msra.mxu0 0.0
        %949 = vmatprep.subr.mxu0 0.0
        %950 = vmatpush2.msra.mxu0 0.0
        %951 = vmatprep.subr.mxu0 0.0
        %952 = vmatpush2.msra.mxu0 0.0
        %953 = vmatprep.subr.mxu0 0.0
        %954 = vmatpush2.msra.mxu0 0.0
        %955 = vmatprep.subr.mxu0 0.0
        %956 = vmatpush2.msra.mxu0 0.0
        %957 = vmatprep.subr.mxu0 0.0
        %958 = vmatpush2.msra.mxu0 0.0
        %959 = vmatprep.subr.mxu0 0.0
        %960 = vmatpush2.msra.mxu0 0.0
        %961 = vmatprep.subr.mxu0 0.0
        %962 = vmatpush2.msra.mxu0 0.0
        %963 = vmatprep.subr.mxu0 0.0
        %964 = vmatpush2.msra.mxu0 0.0
        %965 = vmatprep.subr.mxu0 0.0
        %966 = vmatpush2.msra.mxu0 0.0
        %967 = vmatprep.subr.mxu0 0.0
        %968 = vmatpush2.msra.mxu0 0.0
        %969 = vmatprep.mubr.f32.mxu0 0.0
        %970 = vmatmul.mubr.f32.gmra.mxu0 %v761
        %v971 = vpop.f32.mrf.mxu0
        %v972 = vadd.f32 %v758, %v971
        %v973 = vpop.f32.mrf.mxu0
        %974 = vdwg.mxu0
        %s975 = sld [smem:[#allocation4 + $0x1]]
        %vm976 = vcmp.ge.f32.partialorder %v830, 0.0
        %vm977 = vcmp.ge.f32.partialorder %v832, 0.0
        %vm978 = vcmp.ge.f32.partialorder %v901, 0.0
        %vm979 = vcmp.ge.f32.partialorder %v903, 0.0
        %vm980 = vcmp.ge.f32.partialorder %v972, 0.0
        %v981 = vstv %s975
        %v982 = vmul.f32 %v981, %v830
        %v983 = vmul.f32 %v981, %v832
        %v984 = vmul.f32 %v981, %v901
        %v985 = vmul.f32 %v981, %v903
        %v986 = vmul.f32 %v981, %v972
        %v987 = vsel %vm976, %v830, %v982
        %v988 = vsel %vm977, %v832, %v983
        %v989 = vsel %vm978, %v901, %v984
        %v990 = vsel %vm979, %v903, %v985
        %v991 = vsel %vm980, %v972, %v986
        %v992 = vld [vmem:[%s1] sm:$0xff]
        %v993 = vld [vmem:[%s1 + $0x8] sm:$0xff]
        %v994 = vld [vmem:[%s1 + $0x10] sm:$0xff]
        %v995 = vld [vmem:[%s1 + $0x18] sm:$0xff]
        %v996 = vld [vmem:[%s1 + $0x20] sm:$0xff]
        %v997 = vmul.f32 %v987, %v992
        %v998 = vmul.f32 %v988, %v993
        %v999 = vmul.f32 %v989, %v994
        %v1000 = vmul.f32 %v990, %v995
        %v1001 = vmul.f32 %v991, %v996
        %1002 = vst [vmem:[#allocation2 + $0x8] sm:$0xff] %v997
        %1003 = vst [vmem:[#allocation2 + $0x10] sm:$0xff] %v998
        %1004 = vst [vmem:[#allocation2 + $0x18] sm:$0xff] %v999
        %1005 = vst [vmem:[#allocation2 + $0x20] sm:$0xff] %v1000
        %1006 = vst [vmem:[#allocation2 + $0x28] sm:$0xff] %v1001
        %v1007 = vld [vmem:[#allocation2] sm:$0xff]
        %v1008 = vld [vmem:[#allocation2 + $0x8] sm:$0xff]
        %v1009 = vld [vmem:[#allocation2 + $0x10] sm:$0xff]
        %v1010 = vld [vmem:[#allocation2 + $0x18] sm:$0xff]
        %v1011 = vld [vmem:[#allocation2 + $0x20] sm:$0xff]
        %v1012 = vld [vmem:[#allocation2 + $0x28] sm:$0xff]
        %1019 = vrot.lane.b32.xlu0 %v1007, 25
        %v1020 = vpop.permute.xlu0 %1019
        %1021 = vrot.lane.b32.xlu0 %v1008, 25
        %v1022 = vpop.permute.xlu0 %1021
        %1023 = vrot.lane.b32.xlu0 %v1009, 25
        %v1024 = vpop.permute.xlu0 %1023
        %1025 = vrot.lane.b32.xlu0 %v1010, 25
        %v1026 = vpop.permute.xlu0 %1025
        %1027 = vrot.lane.b32.xlu0 %v1011, 25
        %v1028 = vpop.permute.xlu0 %1027
        %1029 = vrot.lane.b32.xlu0 %v1012, 25
        %v1030 = vpop.permute.xlu0 %1029
        %v1031 = vsel %vm275, %v1020, %v1022
        %v1032 = vsel %vm275, %v1022, %v1024
        %v1033 = vsel %vm275, %v1024, %v1026
        %v1034 = vsel %vm275, %v1026, %v1028
        %v1035 = vsel %vm275, %v1028, %v1030
        %1041 = vst [vmem:[#allocation3] sm:$0xff] %v1031
        %1042 = vst [vmem:[#allocation3 + $0x8] sm:$0xff] %v1032
        %1043 = vst [vmem:[#allocation3 + $0x10] sm:$0xff] %v1033
        %1044 = vst [vmem:[#allocation3 + $0x18] sm:$0xff] %v1034
        %1045 = vst [vmem:[#allocation3 + $0x20] sm:$0xff] %v1035
        %v1046 = vld [vmem:[#allocation2] sm:$0xff]
        %v1047 = vld [vmem:[#allocation2 + $0x8] sm:$0xff]
        %v1048 = vld [vmem:[#allocation2 + $0x10] sm:$0xff]
        %v1049 = vld [vmem:[#allocation2 + $0x18] sm:$0xff]
        %v1050 = vld [vmem:[#allocation2 + $0x20] sm:$0xff]
        %v1051 = vld [vmem:[#allocation2 + $0x28] sm:$0xff]
        %1058 = vrot.lane.b32.xlu0 %v1046, 24
        %v1059 = vpop.permute.xlu0 %1058
        %1060 = vrot.lane.b32.xlu0 %v1047, 24
        %v1061 = vpop.permute.xlu0 %1060
        %1062 = vrot.lane.b32.xlu0 %v1048, 24
        %v1063 = vpop.permute.xlu0 %1062
        %1064 = vrot.lane.b32.xlu0 %v1049, 24
        %v1065 = vpop.permute.xlu0 %1064
        %1066 = vrot.lane.b32.xlu0 %v1050, 24
        %v1067 = vpop.permute.xlu0 %1066
        %1068 = vrot.lane.b32.xlu0 %v1051, 24
        %v1069 = vpop.permute.xlu0 %1068
        %v1070 = vsel %vm284, %v1059, %v1061
        %v1071 = vsel %vm284, %v1061, %v1063
        %v1072 = vsel %vm284, %v1063, %v1065
        %v1073 = vsel %vm284, %v1065, %v1067
        %v1074 = vsel %vm284, %v1067, %v1069
        %1080 = vst [vmem:[#allocation3 + $0x28] sm:$0xff] %v1070
        %1081 = vst [vmem:[#allocation3 + $0x30] sm:$0xff] %v1071
        %1082 = vst [vmem:[#allocation3 + $0x38] sm:$0xff] %v1072
        %1083 = vst [vmem:[#allocation3 + $0x40] sm:$0xff] %v1073
        %1084 = vst [vmem:[#allocation3 + $0x48] sm:$0xff] %v1074
        %v1085 = vld [vmem:[#allocation2] sm:$0xff]
        %v1086 = vld [vmem:[#allocation2 + $0x8] sm:$0xff]
        %v1087 = vld [vmem:[#allocation2 + $0x10] sm:$0xff]
        %v1088 = vld [vmem:[#allocation2 + $0x18] sm:$0xff]
        %v1089 = vld [vmem:[#allocation2 + $0x20] sm:$0xff]
        %v1090 = vld [vmem:[#allocation2 + $0x28] sm:$0xff]
        %1097 = vrot.lane.b32.xlu0 %v1085, 23
        %v1098 = vpop.permute.xlu0 %1097
        %1099 = vrot.lane.b32.xlu0 %v1086, 23
        %v1100 = vpop.permute.xlu0 %1099
        %1101 = vrot.lane.b32.xlu0 %v1087, 23
        %v1102 = vpop.permute.xlu0 %1101
        %1103 = vrot.lane.b32.xlu0 %v1088, 23
        %v1104 = vpop.permute.xlu0 %1103
        %1105 = vrot.lane.b32.xlu0 %v1089, 23
        %v1106 = vpop.permute.xlu0 %1105
        %1107 = vrot.lane.b32.xlu0 %v1090, 23
        %v1108 = vpop.permute.xlu0 %1107
        %v1109 = vsel %vm293, %v1098, %v1100
        %v1110 = vsel %vm293, %v1100, %v1102
        %v1111 = vsel %vm293, %v1102, %v1104
        %v1112 = vsel %vm293, %v1104, %v1106
        %v1113 = vsel %vm293, %v1106, %v1108
        %1119 = vst [vmem:[#allocation3 + $0x50] sm:$0xff] %v1109
        %1120 = vst [vmem:[#allocation3 + $0x58] sm:$0xff] %v1110
        %1121 = vst [vmem:[#allocation3 + $0x60] sm:$0xff] %v1111
        %1122 = vst [vmem:[#allocation3 + $0x68] sm:$0xff] %v1112
        %1123 = vst [vmem:[#allocation3 + $0x70] sm:$0xff] %v1113
        %v1124 = vld [vmem:[#allocation2] sm:$0xff]
        %v1125 = vld [vmem:[#allocation2 + $0x8] sm:$0xff]
        %v1126 = vld [vmem:[#allocation2 + $0x10] sm:$0xff]
        %v1127 = vld [vmem:[#allocation2 + $0x18] sm:$0xff]
        %v1128 = vld [vmem:[#allocation2 + $0x20] sm:$0xff]
        %v1129 = vld [vmem:[#allocation2 + $0x28] sm:$0xff]
        %1136 = vrot.lane.b32.xlu0 %v1124, 1
        %v1137 = vpop.permute.xlu0 %1136
        %1138 = vrot.lane.b32.xlu0 %v1125, 1
        %v1139 = vpop.permute.xlu0 %1138
        %1140 = vrot.lane.b32.xlu0 %v1126, 1
        %v1141 = vpop.permute.xlu0 %1140
        %1142 = vrot.lane.b32.xlu0 %v1127, 1
        %v1143 = vpop.permute.xlu0 %1142
        %1144 = vrot.lane.b32.xlu0 %v1128, 1
        %v1145 = vpop.permute.xlu0 %1144
        %1146 = vrot.lane.b32.xlu0 %v1129, 1
        %v1147 = vpop.permute.xlu0 %1146
        %v1148 = vsel %vm320, %v1137, %v1139
        %v1149 = vsel %vm320, %v1139, %v1141
        %v1150 = vsel %vm320, %v1141, %v1143
        %v1151 = vsel %vm320, %v1143, %v1145
        %v1152 = vsel %vm320, %v1145, %v1147
        %1158 = vst [vmem:[#allocation3 + $0x78] sm:$0xff] %v1148
        %1159 = vst [vmem:[#allocation3 + $0x80] sm:$0xff] %v1149
        %1160 = vst [vmem:[#allocation3 + $0x88] sm:$0xff] %v1150
        %1161 = vst [vmem:[#allocation3 + $0x90] sm:$0xff] %v1151
        %1162 = vst [vmem:[#allocation3 + $0x98] sm:$0xff] %v1152
        %v1163 = vld [vmem:[#allocation2 + $0x8] sm:$0xff]
        %v1164 = vld [vmem:[#allocation2 + $0x10] sm:$0xff]
        %v1165 = vld [vmem:[#allocation2 + $0x18] sm:$0xff]
        %v1166 = vld [vmem:[#allocation2 + $0x20] sm:$0xff]
        %v1167 = vld [vmem:[#allocation2 + $0x28] sm:$0xff]
        %1168 = vst [vmem:[#allocation3 + $0xa0] sm:$0xff] %v1163
        %1169 = vst [vmem:[#allocation3 + $0xa8] sm:$0xff] %v1164
        %1170 = vst [vmem:[#allocation3 + $0xb0] sm:$0xff] %v1165
        %1171 = vst [vmem:[#allocation3 + $0xb8] sm:$0xff] %v1166
        %1172 = vst [vmem:[#allocation3 + $0xc0] sm:$0xff] %v1167
        %v1173 = vld [vmem:[#allocation2 + $0x8] sm:$0xff]
        %v1174 = vld [vmem:[#allocation2 + $0x10] sm:$0xff]
        %v1175 = vld [vmem:[#allocation2 + $0x18] sm:$0xff]
        %v1176 = vld [vmem:[#allocation2 + $0x20] sm:$0xff]
        %v1177 = vld [vmem:[#allocation2 + $0x28] sm:$0xff]
        %v1178 = vld [vmem:[#allocation2 + $0x30] sm:$0xff]
        %1185 = vrot.lane.b32.xlu0 %v1173, 127
        %v1186 = vpop.permute.xlu0 %1185
        %1187 = vrot.lane.b32.xlu0 %v1174, 127
        %v1188 = vpop.permute.xlu0 %1187
        %1189 = vrot.lane.b32.xlu0 %v1175, 127
        %v1190 = vpop.permute.xlu0 %1189
        %1191 = vrot.lane.b32.xlu0 %v1176, 127
        %v1192 = vpop.permute.xlu0 %1191
        %1193 = vrot.lane.b32.xlu0 %v1177, 127
        %v1194 = vpop.permute.xlu0 %1193
        %1195 = vrot.lane.b32.xlu0 %v1178, 127
        %v1196 = vpop.permute.xlu0 %1195
        %v1197 = vsel %vm335, %v1186, %v1188
        %v1198 = vsel %vm335, %v1188, %v1190
        %v1199 = vsel %vm335, %v1190, %v1192
        %v1200 = vsel %vm335, %v1192, %v1194
        %v1201 = vsel %vm335, %v1194, %v1196
        %1207 = vst [vmem:[#allocation3 + $0xc8] sm:$0xff] %v1197
        %1208 = vst [vmem:[#allocation3 + $0xd0] sm:$0xff] %v1198
        %1209 = vst [vmem:[#allocation3 + $0xd8] sm:$0xff] %v1199
        %1210 = vst [vmem:[#allocation3 + $0xe0] sm:$0xff] %v1200
        %1211 = vst [vmem:[#allocation3 + $0xe8] sm:$0xff] %v1201
        %v1212 = vld [vmem:[#allocation2 + $0x8] sm:$0xff]
        %v1213 = vld [vmem:[#allocation2 + $0x10] sm:$0xff]
        %v1214 = vld [vmem:[#allocation2 + $0x18] sm:$0xff]
        %v1215 = vld [vmem:[#allocation2 + $0x20] sm:$0xff]
        %v1216 = vld [vmem:[#allocation2 + $0x28] sm:$0xff]
        %v1217 = vld [vmem:[#allocation2 + $0x30] sm:$0xff]
        %1224 = vrot.lane.b32.xlu0 %v1212, 105
        %v1225 = vpop.permute.xlu0 %1224
        %1226 = vrot.lane.b32.xlu0 %v1213, 105
        %v1227 = vpop.permute.xlu0 %1226
        %1228 = vrot.lane.b32.xlu0 %v1214, 105
        %v1229 = vpop.permute.xlu0 %1228
        %1230 = vrot.lane.b32.xlu0 %v1215, 105
        %v1231 = vpop.permute.xlu0 %1230
        %1232 = vrot.lane.b32.xlu0 %v1216, 105
        %v1233 = vpop.permute.xlu0 %1232
        %1234 = vrot.lane.b32.xlu0 %v1217, 105
        %v1235 = vpop.permute.xlu0 %1234
        %v1236 = vsel %vm365, %v1225, %v1227
        %v1237 = vsel %vm365, %v1227, %v1229
        %v1238 = vsel %vm365, %v1229, %v1231
        %v1239 = vsel %vm365, %v1231, %v1233
        %v1240 = vsel %vm365, %v1233, %v1235
        %1246 = vst [vmem:[#allocation3 + $0xf0] sm:$0xff] %v1236
        %1247 = vst [vmem:[#allocation3 + $0xf8] sm:$0xff] %v1237
        %1248 = vst [vmem:[#allocation3 + $0x100] sm:$0xff] %v1238
        %1249 = vst [vmem:[#allocation3 + $0x108] sm:$0xff] %v1239
        %1250 = vst [vmem:[#allocation3 + $0x110] sm:$0xff] %v1240
        %v1251 = vld [vmem:[#allocation2 + $0x8] sm:$0xff]
        %v1252 = vld [vmem:[#allocation2 + $0x10] sm:$0xff]
        %v1253 = vld [vmem:[#allocation2 + $0x18] sm:$0xff]
        %v1254 = vld [vmem:[#allocation2 + $0x20] sm:$0xff]
        %v1255 = vld [vmem:[#allocation2 + $0x28] sm:$0xff]
        %v1256 = vld [vmem:[#allocation2 + $0x30] sm:$0xff]
        %1263 = vrot.lane.b32.xlu0 %v1251, 104
        %v1264 = vpop.permute.xlu0 %1263
        %1265 = vrot.lane.b32.xlu0 %v1252, 104
        %v1266 = vpop.permute.xlu0 %1265
        %1267 = vrot.lane.b32.xlu0 %v1253, 104
        %v1268 = vpop.permute.xlu0 %1267
        %1269 = vrot.lane.b32.xlu0 %v1254, 104
        %v1270 = vpop.permute.xlu0 %1269
        %1271 = vrot.lane.b32.xlu0 %v1255, 104
        %v1272 = vpop.permute.xlu0 %1271
        %1273 = vrot.lane.b32.xlu0 %v1256, 104
        %v1274 = vpop.permute.xlu0 %1273
        %v1275 = vsel %vm375, %v1264, %v1266
        %v1276 = vsel %vm375, %v1266, %v1268
        %v1277 = vsel %vm375, %v1268, %v1270
        %v1278 = vsel %vm375, %v1270, %v1272
        %v1279 = vsel %vm375, %v1272, %v1274
        %1285 = vst [vmem:[#allocation3 + $0x118] sm:$0xff] %v1275
        %1286 = vst [vmem:[#allocation3 + $0x120] sm:$0xff] %v1276
        %1287 = vst [vmem:[#allocation3 + $0x128] sm:$0xff] %v1277
        %1288 = vst [vmem:[#allocation3 + $0x130] sm:$0xff] %v1278
        %1289 = vst [vmem:[#allocation3 + $0x138] sm:$0xff] %v1279
        %v1290 = vld [vmem:[#allocation2 + $0x8] sm:$0xff]
        %v1291 = vld [vmem:[#allocation2 + $0x10] sm:$0xff]
        %v1292 = vld [vmem:[#allocation2 + $0x18] sm:$0xff]
        %v1293 = vld [vmem:[#allocation2 + $0x20] sm:$0xff]
        %v1294 = vld [vmem:[#allocation2 + $0x28] sm:$0xff]
        %v1295 = vld [vmem:[#allocation2 + $0x30] sm:$0xff]
        %1302 = vrot.lane.b32.xlu0 %v1290, 103
        %v1303 = vpop.permute.xlu0 %1302
        %1304 = vrot.lane.b32.xlu0 %v1291, 103
        %v1305 = vpop.permute.xlu0 %1304
        %1306 = vrot.lane.b32.xlu0 %v1292, 103
        %v1307 = vpop.permute.xlu0 %1306
        %1308 = vrot.lane.b32.xlu0 %v1293, 103
        %v1309 = vpop.permute.xlu0 %1308
        %1310 = vrot.lane.b32.xlu0 %v1294, 103
        %v1311 = vpop.permute.xlu0 %1310
        %1312 = vrot.lane.b32.xlu0 %v1295, 103
        %v1313 = vpop.permute.xlu0 %1312
        %v1314 = vsel %vm385, %v1303, %v1305
        %v1315 = vsel %vm385, %v1305, %v1307
        %v1316 = vsel %vm385, %v1307, %v1309
        %v1317 = vsel %vm385, %v1309, %v1311
        %v1318 = vsel %vm385, %v1311, %v1313
        %1324 = vst [vmem:[#allocation3 + $0x140] sm:$0xff] %v1314
        %1325 = vst [vmem:[#allocation3 + $0x148] sm:$0xff] %v1315
        %1326 = vst [vmem:[#allocation3 + $0x150] sm:$0xff] %v1316
        %1327 = vst [vmem:[#allocation3 + $0x158] sm:$0xff] %v1317
        %1328 = vst [vmem:[#allocation3 + $0x160] sm:$0xff] %v1318
        %v1329 = vld [vmem:[%s2 + $0x60] sm:$0xff]
        %v1330 = vld [vmem:[#allocation3] sm:$0xff]
        %v1331 = vld [vmem:[#allocation3 + $0x8] sm:$0xff]
        %v1332 = vld [vmem:[#allocation3 + $0x10] sm:$0xff]
        %v1333 = vld [vmem:[#allocation3 + $0x18] sm:$0xff]
        %v1334 = vld [vmem:[#allocation3 + $0x20] sm:$0xff]
        %v1335 = vld [vmem:[#allocation3 + $0x28] sm:$0xff]
        %v1336 = vld [vmem:[#allocation3 + $0x30] sm:$0xff]
        %v1337 = vld [vmem:[#allocation3 + $0x38] sm:$0xff]
        %v1338 = vld [vmem:[#allocation3 + $0x40] sm:$0xff]
        %v1339 = vld [vmem:[#allocation3 + $0x48] sm:$0xff]
        %v1340 = vld [vmem:[#allocation3 + $0x50] sm:$0xff]
        %v1341 = vld [vmem:[#allocation3 + $0x58] sm:$0xff]
        %v1342 = vld [vmem:[#allocation3 + $0x60] sm:$0xff]
        %v1343 = vld [vmem:[#allocation3 + $0x68] sm:$0xff]
        %v1344 = vld [vmem:[#allocation3 + $0x70] sm:$0xff]
        %v1345 = vld [vmem:[#allocation3 + $0x78] sm:$0xff]
        %v1346 = vld [vmem:[#allocation3 + $0x80] sm:$0xff]
        %v1347 = vld [vmem:[#allocation3 + $0x88] sm:$0xff]
        %v1348 = vld [vmem:[#allocation3 + $0x90] sm:$0xff]
        %v1349 = vld [vmem:[#allocation3 + $0x98] sm:$0xff]
        %v1350 = vld [vmem:[#allocation3 + $0xa0] sm:$0xff]
        %v1351 = vld [vmem:[#allocation3 + $0xa8] sm:$0xff]
        %v1352 = vld [vmem:[#allocation3 + $0xb0] sm:$0xff]
        %v1353 = vld [vmem:[#allocation3 + $0xb8] sm:$0xff]
        %v1354 = vld [vmem:[#allocation3 + $0xc0] sm:$0xff]
        %v1355 = vld [vmem:[#allocation3 + $0xc8] sm:$0xff]
        %v1356 = vld [vmem:[#allocation3 + $0xd0] sm:$0xff]
        %v1357 = vld [vmem:[#allocation3 + $0xd8] sm:$0xff]
        %v1358 = vld [vmem:[#allocation3 + $0xe0] sm:$0xff]
        %v1359 = vld [vmem:[#allocation3 + $0xe8] sm:$0xff]
        %v1360 = vld [vmem:[#allocation3 + $0xf0] sm:$0xff]
        %v1361 = vld [vmem:[#allocation3 + $0xf8] sm:$0xff]
        %v1362 = vld [vmem:[#allocation3 + $0x100] sm:$0xff]
        %v1363 = vld [vmem:[#allocation3 + $0x108] sm:$0xff]
        %v1364 = vld [vmem:[#allocation3 + $0x110] sm:$0xff]
        %v1365 = vld [vmem:[#allocation3 + $0x118] sm:$0xff]
        %v1366 = vld [vmem:[#allocation3 + $0x120] sm:$0xff]
        %v1367 = vld [vmem:[#allocation3 + $0x128] sm:$0xff]
        %v1368 = vld [vmem:[#allocation3 + $0x130] sm:$0xff]
        %v1369 = vld [vmem:[#allocation3 + $0x138] sm:$0xff]
        %v1370 = vld [vmem:[#allocation3 + $0x140] sm:$0xff]
        %v1371 = vld [vmem:[#allocation3 + $0x148] sm:$0xff]
        %v1372 = vld [vmem:[#allocation3 + $0x150] sm:$0xff]
        %v1373 = vld [vmem:[#allocation3 + $0x158] sm:$0xff]
        %v1374 = vld [vmem:[#allocation3 + $0x160] sm:$0xff]
        %1376 = vset.pattern.permute.xlu0 72
        %1377 = vperm.xlu0 %1376, %v1329
        %v1378 = vpop.permute.xlu0 %1377
        %vm1380 = vcmask 588800
        %v1381 = vsel %vm1380, %v1329, 0
        %1383 = vmatprep.subr.mxu0 0.0
        %1384 = vmatpush1.msra.mxu0 0.0
        %1385 = vmatprep.subr.mxu0 0.0
        %1386 = vmatpush1.msra.mxu0 0.0
        %1387 = vmatprep.subr.mxu0 0.0
        %1388 = vmatpush1.msra.mxu0 0.0
        %1389 = vmatprep.subr.mxu0 0.0
        %1390 = vmatpush1.msra.mxu0 0.0
        %1391 = vmatprep.subr.mxu0 0.0
        %1392 = vmatpush1.msra.mxu0 0.0
        %1393 = vmatprep.subr.mxu0 0.0
        %1394 = vmatpush1.msra.mxu0 0.0
        %1395 = vmatprep.subr.mxu0 0.0
        %1396 = vmatpush1.msra.mxu0 0.0
        %1397 = vmatprep.subr.mxu0 %v1371
        %1398 = vmatpush1.msra.mxu0 %v1370
        %1399 = vmatprep.subr.mxu0 %v1366
        %1400 = vmatpush1.msra.mxu0 %v1365
        %1401 = vmatprep.subr.mxu0 %v1361
        %1402 = vmatpush1.msra.mxu0 %v1360
        %1403 = vmatprep.subr.mxu0 %v1356
        %1404 = vmatpush1.msra.mxu0 %v1355
        %1405 = vmatprep.subr.mxu0 %v1351
        %1406 = vmatpush1.msra.mxu0 %v1350
        %1407 = vmatprep.subr.mxu0 %v1346
        %1408 = vmatpush1.msra.mxu0 %v1345
        %1409 = vmatprep.subr.mxu0 %v1341
        %1410 = vmatpush1.msra.mxu0 %v1340
        %1411 = vmatprep.subr.mxu0 %v1336
        %1412 = vmatpush1.msra.mxu0 %v1335
        %1413 = vmatprep.subr.mxu0 %v1331
        %1414 = vmatpush1.msra.mxu0 %v1330
        %1415 = vmatprep.subr.mxu0 0.0
        %1416 = vmatpush2.msra.mxu0 0.0
        %1417 = vmatprep.subr.mxu0 0.0
        %1418 = vmatpush2.msra.mxu0 0.0
        %1419 = vmatprep.subr.mxu0 0.0
        %1420 = vmatpush2.msra.mxu0 0.0
        %1421 = vmatprep.subr.mxu0 0.0
        %1422 = vmatpush2.msra.mxu0 0.0
        %1423 = vmatprep.subr.mxu0 0.0
        %1424 = vmatpush2.msra.mxu0 0.0
        %1425 = vmatprep.subr.mxu0 0.0
        %1426 = vmatpush2.msra.mxu0 0.0
        %1427 = vmatprep.subr.mxu0 0.0
        %1428 = vmatpush2.msra.mxu0 0.0
        %1429 = vmatprep.subr.mxu0 0.0
        %1430 = vmatpush2.msra.mxu0 0.0
        %1431 = vmatprep.subr.mxu0 0.0
        %1432 = vmatpush2.msra.mxu0 0.0
        %1433 = vmatprep.subr.mxu0 0.0
        %1434 = vmatpush2.msra.mxu0 0.0
        %1435 = vmatprep.subr.mxu0 0.0
        %1436 = vmatpush2.msra.mxu0 0.0
        %1437 = vmatprep.subr.mxu0 0.0
        %1438 = vmatpush2.msra.mxu0 0.0
        %1439 = vmatprep.subr.mxu0 0.0
        %1440 = vmatpush2.msra.mxu0 0.0
        %1441 = vmatprep.subr.mxu0 0.0
        %1442 = vmatpush2.msra.mxu0 0.0
        %1443 = vmatprep.subr.mxu0 0.0
        %1444 = vmatpush2.msra.mxu0 0.0
        %1445 = vmatprep.subr.mxu0 0.0
        %1446 = vmatpush2.msra.mxu0 0.0
        %1447 = vmatprep.mubr.f32.mxu0 0.0
        %1448 = vmatmul.mubr.f32.gmra.mxu0 %v1381
        %v1449 = vpop.f32.mrf.mxu0
        %v1450 = vadd.f32 %v1378, %v1449
        %v1451 = vpop.f32.mrf.mxu0
        %v1452 = vadd.f32 %v1378, %v1451
        %1453 = vdwg.mxu0
        %1454 = vmatprep.subr.mxu0 0.0
        %1455 = vmatpush1.msra.mxu0 0.0
        %1456 = vmatprep.subr.mxu0 0.0
        %1457 = vmatpush1.msra.mxu0 0.0
        %1458 = vmatprep.subr.mxu0 0.0
        %1459 = vmatpush1.msra.mxu0 0.0
        %1460 = vmatprep.subr.mxu0 0.0
        %1461 = vmatpush1.msra.mxu0 0.0
        %1462 = vmatprep.subr.mxu0 0.0
        %1463 = vmatpush1.msra.mxu0 0.0
        %1464 = vmatprep.subr.mxu0 0.0
        %1465 = vmatpush1.msra.mxu0 0.0
        %1466 = vmatprep.subr.mxu0 0.0
        %1467 = vmatpush1.msra.mxu0 0.0
        %1468 = vmatprep.subr.mxu0 %v1373
        %1469 = vmatpush1.msra.mxu0 %v1372
        %1470 = vmatprep.subr.mxu0 %v1368
        %1471 = vmatpush1.msra.mxu0 %v1367
        %1472 = vmatprep.subr.mxu0 %v1363
        %1473 = vmatpush1.msra.mxu0 %v1362
        %1474 = vmatprep.subr.mxu0 %v1358
        %1475 = vmatpush1.msra.mxu0 %v1357
        %1476 = vmatprep.subr.mxu0 %v1353
        %1477 = vmatpush1.msra.mxu0 %v1352
        %1478 = vmatprep.subr.mxu0 %v1348
        %1479 = vmatpush1.msra.mxu0 %v1347
        %1480 = vmatprep.subr.mxu0 %v1343
        %1481 = vmatpush1.msra.mxu0 %v1342
        %1482 = vmatprep.subr.mxu0 %v1338
        %1483 = vmatpush1.msra.mxu0 %v1337
        %1484 = vmatprep.subr.mxu0 %v1333
        %1485 = vmatpush1.msra.mxu0 %v1332
        %1486 = vmatprep.subr.mxu0 0.0
        %1487 = vmatpush2.msra.mxu0 0.0
        %1488 = vmatprep.subr.mxu0 0.0
        %1489 = vmatpush2.msra.mxu0 0.0
        %1490 = vmatprep.subr.mxu0 0.0
        %1491 = vmatpush2.msra.mxu0 0.0
        %1492 = vmatprep.subr.mxu0 0.0
        %1493 = vmatpush2.msra.mxu0 0.0
        %1494 = vmatprep.subr.mxu0 0.0
        %1495 = vmatpush2.msra.mxu0 0.0
        %1496 = vmatprep.subr.mxu0 0.0
        %1497 = vmatpush2.msra.mxu0 0.0
        %1498 = vmatprep.subr.mxu0 0.0
        %1499 = vmatpush2.msra.mxu0 0.0
        %1500 = vmatprep.subr.mxu0 0.0
        %1501 = vmatpush2.msra.mxu0 0.0
        %1502 = vmatprep.subr.mxu0 0.0
        %1503 = vmatpush2.msra.mxu0 0.0
        %1504 = vmatprep.subr.mxu0 0.0
        %1505 = vmatpush2.msra.mxu0 0.0
        %1506 = vmatprep.subr.mxu0 0.0
        %1507 = vmatpush2.msra.mxu0 0.0
        %1508 = vmatprep.subr.mxu0 0.0
        %1509 = vmatpush2.msra.mxu0 0.0
        %1510 = vmatprep.subr.mxu0 0.0
        %1511 = vmatpush2.msra.mxu0 0.0
        %1512 = vmatprep.subr.mxu0 0.0
        %1513 = vmatpush2.msra.mxu0 0.0
        %1514 = vmatprep.subr.mxu0 0.0
        %1515 = vmatpush2.msra.mxu0 0.0
        %1516 = vmatprep.subr.mxu0 0.0
        %1517 = vmatpush2.msra.mxu0 0.0
        %1518 = vmatprep.mubr.f32.mxu0 0.0
        %1519 = vmatmul.mubr.f32.gmra.mxu0 %v1381
        %v1520 = vpop.f32.mrf.mxu0
        %v1521 = vadd.f32 %v1378, %v1520
        %v1522 = vpop.f32.mrf.mxu0
        %v1523 = vadd.f32 %v1378, %v1522
        %1524 = vdwg.mxu0
        %1525 = vmatprep.subr.mxu0 0.0
        %1526 = vmatpush1.msra.mxu0 0.0
        %1527 = vmatprep.subr.mxu0 0.0
        %1528 = vmatpush1.msra.mxu0 0.0
        %1529 = vmatprep.subr.mxu0 0.0
        %1530 = vmatpush1.msra.mxu0 0.0
        %1531 = vmatprep.subr.mxu0 0.0
        %1532 = vmatpush1.msra.mxu0 0.0
        %1533 = vmatprep.subr.mxu0 0.0
        %1534 = vmatpush1.msra.mxu0 0.0
        %1535 = vmatprep.subr.mxu0 0.0
        %1536 = vmatpush1.msra.mxu0 0.0
        %1537 = vmatprep.subr.mxu0 0.0
        %1538 = vmatpush1.msra.mxu0 0.0
        %1539 = vmatprep.subr.mxu0 0.0
        %1540 = vmatpush1.msra.mxu0 %v1374
        %1541 = vmatprep.subr.mxu0 0.0
        %1542 = vmatpush1.msra.mxu0 %v1369
        %1543 = vmatprep.subr.mxu0 0.0
        %1544 = vmatpush1.msra.mxu0 %v1364
        %1545 = vmatprep.subr.mxu0 0.0
        %1546 = vmatpush1.msra.mxu0 %v1359
        %1547 = vmatprep.subr.mxu0 0.0
        %1548 = vmatpush1.msra.mxu0 %v1354
        %1549 = vmatprep.subr.mxu0 0.0
        %1550 = vmatpush1.msra.mxu0 %v1349
        %1551 = vmatprep.subr.mxu0 0.0
        %1552 = vmatpush1.msra.mxu0 %v1344
        %1553 = vmatprep.subr.mxu0 0.0
        %1554 = vmatpush1.msra.mxu0 %v1339
        %1555 = vmatprep.subr.mxu0 0.0
        %1556 = vmatpush1.msra.mxu0 %v1334
        %1557 = vmatprep.subr.mxu0 0.0
        %1558 = vmatpush2.msra.mxu0 0.0
        %1559 = vmatprep.subr.mxu0 0.0
        %1560 = vmatpush2.msra.mxu0 0.0
        %1561 = vmatprep.subr.mxu0 0.0
        %1562 = vmatpush2.msra.mxu0 0.0
        %1563 = vmatprep.subr.mxu0 0.0
        %1564 = vmatpush2.msra.mxu0 0.0
        %1565 = vmatprep.subr.mxu0 0.0
        %1566 = vmatpush2.msra.mxu0 0.0
        %1567 = vmatprep.subr.mxu0 0.0
        %1568 = vmatpush2.msra.mxu0 0.0
        %1569 = vmatprep.subr.mxu0 0.0
        %1570 = vmatpush2.msra.mxu0 0.0
        %1571 = vmatprep.subr.mxu0 0.0
        %1572 = vmatpush2.msra.mxu0 0.0
        %1573 = vmatprep.subr.mxu0 0.0
        %1574 = vmatpush2.msra.mxu0 0.0
        %1575 = vmatprep.subr.mxu0 0.0
        %1576 = vmatpush2.msra.mxu0 0.0
        %1577 = vmatprep.subr.mxu0 0.0
        %1578 = vmatpush2.msra.mxu0 0.0
        %1579 = vmatprep.subr.mxu0 0.0
        %1580 = vmatpush2.msra.mxu0 0.0
        %1581 = vmatprep.subr.mxu0 0.0
        %1582 = vmatpush2.msra.mxu0 0.0
        %1583 = vmatprep.subr.mxu0 0.0
        %1584 = vmatpush2.msra.mxu0 0.0
        %1585 = vmatprep.subr.mxu0 0.0
        %1586 = vmatpush2.msra.mxu0 0.0
        %1587 = vmatprep.subr.mxu0 0.0
        %1588 = vmatpush2.msra.mxu0 0.0
        %1589 = vmatprep.mubr.f32.mxu0 0.0
        %1590 = vmatmul.mubr.f32.gmra.mxu0 %v1381
        %v1591 = vpop.f32.mrf.mxu0
        %v1592 = vadd.f32 %v1378, %v1591
        %v1593 = vpop.f32.mrf.mxu0
        %1594 = vdwg.mxu0
        %s1595 = sld [smem:[#allocation4 + $0x2]]
        %vm1596 = vcmp.ge.f32.partialorder %v1450, 0.0
        %vm1597 = vcmp.ge.f32.partialorder %v1452, 0.0
        %vm1598 = vcmp.ge.f32.partialorder %v1521, 0.0
        %vm1599 = vcmp.ge.f32.partialorder %v1523, 0.0
        %vm1600 = vcmp.ge.f32.partialorder %v1592, 0.0
        %v1601 = vstv %s1595
        %v1602 = vmul.f32 %v1601, %v1450
        %v1603 = vmul.f32 %v1601, %v1452
        %v1604 = vmul.f32 %v1601, %v1521
        %v1605 = vmul.f32 %v1601, %v1523
        %v1606 = vmul.f32 %v1601, %v1592
        %v1607 = vsel %vm1596, %v1450, %v1602
        %v1608 = vsel %vm1597, %v1452, %v1603
        %v1609 = vsel %vm1598, %v1521, %v1604
        %v1610 = vsel %vm1599, %v1523, %v1605
        %v1611 = vsel %vm1600, %v1592, %v1606
        %v1612 = vld [vmem:[%s1] sm:$0xff]
        %v1613 = vld [vmem:[%s1 + $0x8] sm:$0xff]
        %v1614 = vld [vmem:[%s1 + $0x10] sm:$0xff]
        %v1615 = vld [vmem:[%s1 + $0x18] sm:$0xff]
        %v1616 = vld [vmem:[%s1 + $0x20] sm:$0xff]
        %v1617 = vmul.f32 %v1607, %v1612
        %v1618 = vmul.f32 %v1608, %v1613
        %v1619 = vmul.f32 %v1609, %v1614
        %v1620 = vmul.f32 %v1610, %v1615
        %v1621 = vmul.f32 %v1611, %v1616
        %1622 = vst [vmem:[#allocation2 + $0x8] sm:$0xff] %v1617
        %1623 = vst [vmem:[#allocation2 + $0x10] sm:$0xff] %v1618
        %1624 = vst [vmem:[#allocation2 + $0x18] sm:$0xff] %v1619
        %1625 = vst [vmem:[#allocation2 + $0x20] sm:$0xff] %v1620
        %1626 = vst [vmem:[#allocation2 + $0x28] sm:$0xff] %v1621
        %v1627 = vld [vmem:[#allocation2] sm:$0xff]
        %v1628 = vld [vmem:[#allocation2 + $0x8] sm:$0xff]
        %v1629 = vld [vmem:[#allocation2 + $0x10] sm:$0xff]
        %v1630 = vld [vmem:[#allocation2 + $0x18] sm:$0xff]
        %v1631 = vld [vmem:[#allocation2 + $0x20] sm:$0xff]
        %v1632 = vld [vmem:[#allocation2 + $0x28] sm:$0xff]
        %1639 = vrot.lane.b32.xlu0 %v1627, 25
        %v1640 = vpop.permute.xlu0 %1639
        %1641 = vrot.lane.b32.xlu0 %v1628, 25
        %v1642 = vpop.permute.xlu0 %1641
        %1643 = vrot.lane.b32.xlu0 %v1629, 25
        %v1644 = vpop.permute.xlu0 %1643
        %1645 = vrot.lane.b32.xlu0 %v1630, 25
        %v1646 = vpop.permute.xlu0 %1645
        %1647 = vrot.lane.b32.xlu0 %v1631, 25
        %v1648 = vpop.permute.xlu0 %1647
        %1649 = vrot.lane.b32.xlu0 %v1632, 25
        %v1650 = vpop.permute.xlu0 %1649
        %v1651 = vsel %vm275, %v1640, %v1642
        %v1652 = vsel %vm275, %v1642, %v1644
        %v1653 = vsel %vm275, %v1644, %v1646
        %v1654 = vsel %vm275, %v1646, %v1648
        %v1655 = vsel %vm275, %v1648, %v1650
        %1661 = vst [vmem:[#allocation3] sm:$0xff] %v1651
        %1662 = vst [vmem:[#allocation3 + $0x8] sm:$0xff] %v1652
        %1663 = vst [vmem:[#allocation3 + $0x10] sm:$0xff] %v1653
        %1664 = vst [vmem:[#allocation3 + $0x18] sm:$0xff] %v1654
        %1665 = vst [vmem:[#allocation3 + $0x20] sm:$0xff] %v1655
        %v1666 = vld [vmem:[#allocation2] sm:$0xff]
        %v1667 = vld [vmem:[#allocation2 + $0x8] sm:$0xff]
        %v1668 = vld [vmem:[#allocation2 + $0x10] sm:$0xff]
        %v1669 = vld [vmem:[#allocation2 + $0x18] sm:$0xff]
        %v1670 = vld [vmem:[#allocation2 + $0x20] sm:$0xff]
        %v1671 = vld [vmem:[#allocation2 + $0x28] sm:$0xff]
        %1678 = vrot.lane.b32.xlu0 %v1666, 24
        %v1679 = vpop.permute.xlu0 %1678
        %1680 = vrot.lane.b32.xlu0 %v1667, 24
        %v1681 = vpop.permute.xlu0 %1680
        %1682 = vrot.lane.b32.xlu0 %v1668, 24
        %v1683 = vpop.permute.xlu0 %1682
        %1684 = vrot.lane.b32.xlu0 %v1669, 24
        %v1685 = vpop.permute.xlu0 %1684
        %1686 = vrot.lane.b32.xlu0 %v1670, 24
        %v1687 = vpop.permute.xlu0 %1686
        %1688 = vrot.lane.b32.xlu0 %v1671, 24
        %v1689 = vpop.permute.xlu0 %1688
        %v1690 = vsel %vm284, %v1679, %v1681
        %v1691 = vsel %vm284, %v1681, %v1683
        %v1692 = vsel %vm284, %v1683, %v1685
        %v1693 = vsel %vm284, %v1685, %v1687
        %v1694 = vsel %vm284, %v1687, %v1689
        %1700 = vst [vmem:[#allocation3 + $0x28] sm:$0xff] %v1690
        %1701 = vst [vmem:[#allocation3 + $0x30] sm:$0xff] %v1691
        %1702 = vst [vmem:[#allocation3 + $0x38] sm:$0xff] %v1692
        %1703 = vst [vmem:[#allocation3 + $0x40] sm:$0xff] %v1693
        %1704 = vst [vmem:[#allocation3 + $0x48] sm:$0xff] %v1694
        %v1705 = vld [vmem:[#allocation2] sm:$0xff]
        %v1706 = vld [vmem:[#allocation2 + $0x8] sm:$0xff]
        %v1707 = vld [vmem:[#allocation2 + $0x10] sm:$0xff]
        %v1708 = vld [vmem:[#allocation2 + $0x18] sm:$0xff]
        %v1709 = vld [vmem:[#allocation2 + $0x20] sm:$0xff]
        %v1710 = vld [vmem:[#allocation2 + $0x28] sm:$0xff]
        %1717 = vrot.lane.b32.xlu0 %v1705, 23
        %v1718 = vpop.permute.xlu0 %1717
        %1719 = vrot.lane.b32.xlu0 %v1706, 23
        %v1720 = vpop.permute.xlu0 %1719
        %1721 = vrot.lane.b32.xlu0 %v1707, 23
        %v1722 = vpop.permute.xlu0 %1721
        %1723 = vrot.lane.b32.xlu0 %v1708, 23
        %v1724 = vpop.permute.xlu0 %1723
        %1725 = vrot.lane.b32.xlu0 %v1709, 23
        %v1726 = vpop.permute.xlu0 %1725
        %1727 = vrot.lane.b32.xlu0 %v1710, 23
        %v1728 = vpop.permute.xlu0 %1727
        %v1729 = vsel %vm293, %v1718, %v1720
        %v1730 = vsel %vm293, %v1720, %v1722
        %v1731 = vsel %vm293, %v1722, %v1724
        %v1732 = vsel %vm293, %v1724, %v1726
        %v1733 = vsel %vm293, %v1726, %v1728
        %1739 = vst [vmem:[#allocation3 + $0x50] sm:$0xff] %v1729
        %1740 = vst [vmem:[#allocation3 + $0x58] sm:$0xff] %v1730
        %1741 = vst [vmem:[#allocation3 + $0x60] sm:$0xff] %v1731
        %1742 = vst [vmem:[#allocation3 + $0x68] sm:$0xff] %v1732
        %1743 = vst [vmem:[#allocation3 + $0x70] sm:$0xff] %v1733
        %v1744 = vld [vmem:[#allocation2] sm:$0xff]
        %v1745 = vld [vmem:[#allocation2 + $0x8] sm:$0xff]
        %v1746 = vld [vmem:[#allocation2 + $0x10] sm:$0xff]
        %v1747 = vld [vmem:[#allocation2 + $0x18] sm:$0xff]
        %v1748 = vld [vmem:[#allocation2 + $0x20] sm:$0xff]
        %v1749 = vld [vmem:[#allocation2 + $0x28] sm:$0xff]
        %1756 = vrot.lane.b32.xlu0 %v1744, 1
        %v1757 = vpop.permute.xlu0 %1756
        %1758 = vrot.lane.b32.xlu0 %v1745, 1
        %v1759 = vpop.permute.xlu0 %1758
        %1760 = vrot.lane.b32.xlu0 %v1746, 1
        %v1761 = vpop.permute.xlu0 %1760
        %1762 = vrot.lane.b32.xlu0 %v1747, 1
        %v1763 = vpop.permute.xlu0 %1762
        %1764 = vrot.lane.b32.xlu0 %v1748, 1
        %v1765 = vpop.permute.xlu0 %1764
        %1766 = vrot.lane.b32.xlu0 %v1749, 1
        %v1767 = vpop.permute.xlu0 %1766
        %v1768 = vsel %vm320, %v1757, %v1759
        %v1769 = vsel %vm320, %v1759, %v1761
        %v1770 = vsel %vm320, %v1761, %v1763
        %v1771 = vsel %vm320, %v1763, %v1765
        %v1772 = vsel %vm320, %v1765, %v1767
        %1778 = vst [vmem:[#allocation3 + $0x78] sm:$0xff] %v1768
        %1779 = vst [vmem:[#allocation3 + $0x80] sm:$0xff] %v1769
        %1780 = vst [vmem:[#allocation3 + $0x88] sm:$0xff] %v1770
        %1781 = vst [vmem:[#allocation3 + $0x90] sm:$0xff] %v1771
        %1782 = vst [vmem:[#allocation3 + $0x98] sm:$0xff] %v1772
        %v1783 = vld [vmem:[#allocation2 + $0x8] sm:$0xff]
        %v1784 = vld [vmem:[#allocation2 + $0x10] sm:$0xff]
        %v1785 = vld [vmem:[#allocation2 + $0x18] sm:$0xff]
        %v1786 = vld [vmem:[#allocation2 + $0x20] sm:$0xff]
        %v1787 = vld [vmem:[#allocation2 + $0x28] sm:$0xff]
        %1788 = vst [vmem:[#allocation3 + $0xa0] sm:$0xff] %v1783
        %1789 = vst [vmem:[#allocation3 + $0xa8] sm:$0xff] %v1784
        %1790 = vst [vmem:[#allocation3 + $0xb0] sm:$0xff] %v1785
        %1791 = vst [vmem:[#allocation3 + $0xb8] sm:$0xff] %v1786
        %1792 = vst [vmem:[#allocation3 + $0xc0] sm:$0xff] %v1787
        %v1793 = vld [vmem:[#allocation2 + $0x8] sm:$0xff]
        %v1794 = vld [vmem:[#allocation2 + $0x10] sm:$0xff]
        %v1795 = vld [vmem:[#allocation2 + $0x18] sm:$0xff]
        %v1796 = vld [vmem:[#allocation2 + $0x20] sm:$0xff]
        %v1797 = vld [vmem:[#allocation2 + $0x28] sm:$0xff]
        %v1798 = vld [vmem:[#allocation2 + $0x30] sm:$0xff]
        %1805 = vrot.lane.b32.xlu0 %v1793, 127
        %v1806 = vpop.permute.xlu0 %1805
        %1807 = vrot.lane.b32.xlu0 %v1794, 127
        %v1808 = vpop.permute.xlu0 %1807
        %1809 = vrot.lane.b32.xlu0 %v1795, 127
        %v1810 = vpop.permute.xlu0 %1809
        %1811 = vrot.lane.b32.xlu0 %v1796, 127
        %v1812 = vpop.permute.xlu0 %1811
        %1813 = vrot.lane.b32.xlu0 %v1797, 127
        %v1814 = vpop.permute.xlu0 %1813
        %1815 = vrot.lane.b32.xlu0 %v1798, 127
        %v1816 = vpop.permute.xlu0 %1815
        %v1817 = vsel %vm335, %v1806, %v1808
        %v1818 = vsel %vm335, %v1808, %v1810
        %v1819 = vsel %vm335, %v1810, %v1812
        %v1820 = vsel %vm335, %v1812, %v1814
        %v1821 = vsel %vm335, %v1814, %v1816
        %1827 = vst [vmem:[#allocation3 + $0xc8] sm:$0xff] %v1817
        %1828 = vst [vmem:[#allocation3 + $0xd0] sm:$0xff] %v1818
        %1829 = vst [vmem:[#allocation3 + $0xd8] sm:$0xff] %v1819
        %1830 = vst [vmem:[#allocation3 + $0xe0] sm:$0xff] %v1820
        %1831 = vst [vmem:[#allocation3 + $0xe8] sm:$0xff] %v1821
        %v1832 = vld [vmem:[#allocation2 + $0x8] sm:$0xff]
        %v1833 = vld [vmem:[#allocation2 + $0x10] sm:$0xff]
        %v1834 = vld [vmem:[#allocation2 + $0x18] sm:$0xff]
        %v1835 = vld [vmem:[#allocation2 + $0x20] sm:$0xff]
        %v1836 = vld [vmem:[#allocation2 + $0x28] sm:$0xff]
        %v1837 = vld [vmem:[#allocation2 + $0x30] sm:$0xff]
        %1844 = vrot.lane.b32.xlu0 %v1832, 105
        %v1845 = vpop.permute.xlu0 %1844
        %1846 = vrot.lane.b32.xlu0 %v1833, 105
        %v1847 = vpop.permute.xlu0 %1846
        %1848 = vrot.lane.b32.xlu0 %v1834, 105
        %v1849 = vpop.permute.xlu0 %1848
        %1850 = vrot.lane.b32.xlu0 %v1835, 105
        %v1851 = vpop.permute.xlu0 %1850
        %1852 = vrot.lane.b32.xlu0 %v1836, 105
        %v1853 = vpop.permute.xlu0 %1852
        %1854 = vrot.lane.b32.xlu0 %v1837, 105
        %v1855 = vpop.permute.xlu0 %1854
        %v1856 = vsel %vm365, %v1845, %v1847
        %v1857 = vsel %vm365, %v1847, %v1849
        %v1858 = vsel %vm365, %v1849, %v1851
        %v1859 = vsel %vm365, %v1851, %v1853
        %v1860 = vsel %vm365, %v1853, %v1855
        %1866 = vst [vmem:[#allocation3 + $0xf0] sm:$0xff] %v1856
        %1867 = vst [vmem:[#allocation3 + $0xf8] sm:$0xff] %v1857
        %1868 = vst [vmem:[#allocation3 + $0x100] sm:$0xff] %v1858
        %1869 = vst [vmem:[#allocation3 + $0x108] sm:$0xff] %v1859
        %1870 = vst [vmem:[#allocation3 + $0x110] sm:$0xff] %v1860
        %v1871 = vld [vmem:[#allocation2 + $0x8] sm:$0xff]
        %v1872 = vld [vmem:[#allocation2 + $0x10] sm:$0xff]
        %v1873 = vld [vmem:[#allocation2 + $0x18] sm:$0xff]
        %v1874 = vld [vmem:[#allocation2 + $0x20] sm:$0xff]
        %v1875 = vld [vmem:[#allocation2 + $0x28] sm:$0xff]
        %v1876 = vld [vmem:[#allocation2 + $0x30] sm:$0xff]
        %1883 = vrot.lane.b32.xlu0 %v1871, 104
        %v1884 = vpop.permute.xlu0 %1883
        %1885 = vrot.lane.b32.xlu0 %v1872, 104
        %v1886 = vpop.permute.xlu0 %1885
        %1887 = vrot.lane.b32.xlu0 %v1873, 104
        %v1888 = vpop.permute.xlu0 %1887
        %1889 = vrot.lane.b32.xlu0 %v1874, 104
        %v1890 = vpop.permute.xlu0 %1889
        %1891 = vrot.lane.b32.xlu0 %v1875, 104
        %v1892 = vpop.permute.xlu0 %1891
        %1893 = vrot.lane.b32.xlu0 %v1876, 104
        %v1894 = vpop.permute.xlu0 %1893
        %v1895 = vsel %vm375, %v1884, %v1886
        %v1896 = vsel %vm375, %v1886, %v1888
        %v1897 = vsel %vm375, %v1888, %v1890
        %v1898 = vsel %vm375, %v1890, %v1892
        %v1899 = vsel %vm375, %v1892, %v1894
        %1905 = vst [vmem:[#allocation3 + $0x118] sm:$0xff] %v1895
        %1906 = vst [vmem:[#allocation3 + $0x120] sm:$0xff] %v1896
        %1907 = vst [vmem:[#allocation3 + $0x128] sm:$0xff] %v1897
        %1908 = vst [vmem:[#allocation3 + $0x130] sm:$0xff] %v1898
        %1909 = vst [vmem:[#allocation3 + $0x138] sm:$0xff] %v1899
        %v1910 = vld [vmem:[#allocation2 + $0x8] sm:$0xff]
        %v1911 = vld [vmem:[#allocation2 + $0x10] sm:$0xff]
        %v1912 = vld [vmem:[#allocation2 + $0x18] sm:$0xff]
        %v1913 = vld [vmem:[#allocation2 + $0x20] sm:$0xff]
        %v1914 = vld [vmem:[#allocation2 + $0x28] sm:$0xff]
        %v1915 = vld [vmem:[#allocation2 + $0x30] sm:$0xff]
        %1922 = vrot.lane.b32.xlu0 %v1910, 103
        %v1923 = vpop.permute.xlu0 %1922
        %1924 = vrot.lane.b32.xlu0 %v1911, 103
        %v1925 = vpop.permute.xlu0 %1924
        %1926 = vrot.lane.b32.xlu0 %v1912, 103
        %v1927 = vpop.permute.xlu0 %1926
        %1928 = vrot.lane.b32.xlu0 %v1913, 103
        %v1929 = vpop.permute.xlu0 %1928
        %1930 = vrot.lane.b32.xlu0 %v1914, 103
        %v1931 = vpop.permute.xlu0 %1930
        %1932 = vrot.lane.b32.xlu0 %v1915, 103
        %v1933 = vpop.permute.xlu0 %1932
        %v1934 = vsel %vm385, %v1923, %v1925
        %v1935 = vsel %vm385, %v1925, %v1927
        %v1936 = vsel %vm385, %v1927, %v1929
        %v1937 = vsel %vm385, %v1929, %v1931
        %v1938 = vsel %vm385, %v1931, %v1933
        %1944 = vst [vmem:[#allocation3 + $0x140] sm:$0xff] %v1934
        %1945 = vst [vmem:[#allocation3 + $0x148] sm:$0xff] %v1935
        %1946 = vst [vmem:[#allocation3 + $0x150] sm:$0xff] %v1936
        %1947 = vst [vmem:[#allocation3 + $0x158] sm:$0xff] %v1937
        %1948 = vst [vmem:[#allocation3 + $0x160] sm:$0xff] %v1938
        %v1949 = vld [vmem:[%s2 + $0x80] sm:$0xff]
        %v1950 = vld [vmem:[#allocation3] sm:$0xff]
        %v1951 = vld [vmem:[#allocation3 + $0x8] sm:$0xff]
        %v1952 = vld [vmem:[#allocation3 + $0x10] sm:$0xff]
        %v1953 = vld [vmem:[#allocation3 + $0x18] sm:$0xff]
        %v1954 = vld [vmem:[#allocation3 + $0x20] sm:$0xff]
        %v1955 = vld [vmem:[#allocation3 + $0x28] sm:$0xff]
        %v1956 = vld [vmem:[#allocation3 + $0x30] sm:$0xff]
        %v1957 = vld [vmem:[#allocation3 + $0x38] sm:$0xff]
        %v1958 = vld [vmem:[#allocation3 + $0x40] sm:$0xff]
        %v1959 = vld [vmem:[#allocation3 + $0x48] sm:$0xff]
        %v1960 = vld [vmem:[#allocation3 + $0x50] sm:$0xff]
        %v1961 = vld [vmem:[#allocation3 + $0x58] sm:$0xff]
        %v1962 = vld [vmem:[#allocation3 + $0x60] sm:$0xff]
        %v1963 = vld [vmem:[#allocation3 + $0x68] sm:$0xff]
        %v1964 = vld [vmem:[#allocation3 + $0x70] sm:$0xff]
        %v1965 = vld [vmem:[#allocation3 + $0x78] sm:$0xff]
        %v1966 = vld [vmem:[#allocation3 + $0x80] sm:$0xff]
        %v1967 = vld [vmem:[#allocation3 + $0x88] sm:$0xff]
        %v1968 = vld [vmem:[#allocation3 + $0x90] sm:$0xff]
        %v1969 = vld [vmem:[#allocation3 + $0x98] sm:$0xff]
        %v1970 = vld [vmem:[#allocation3 + $0xa0] sm:$0xff]
        %v1971 = vld [vmem:[#allocation3 + $0xa8] sm:$0xff]
        %v1972 = vld [vmem:[#allocation3 + $0xb0] sm:$0xff]
        %v1973 = vld [vmem:[#allocation3 + $0xb8] sm:$0xff]
        %v1974 = vld [vmem:[#allocation3 + $0xc0] sm:$0xff]
        %v1975 = vld [vmem:[#allocation3 + $0xc8] sm:$0xff]
        %v1976 = vld [vmem:[#allocation3 + $0xd0] sm:$0xff]
        %v1977 = vld [vmem:[#allocation3 + $0xd8] sm:$0xff]
        %v1978 = vld [vmem:[#allocation3 + $0xe0] sm:$0xff]
        %v1979 = vld [vmem:[#allocation3 + $0xe8] sm:$0xff]
        %v1980 = vld [vmem:[#allocation3 + $0xf0] sm:$0xff]
        %v1981 = vld [vmem:[#allocation3 + $0xf8] sm:$0xff]
        %v1982 = vld [vmem:[#allocation3 + $0x100] sm:$0xff]
        %v1983 = vld [vmem:[#allocation3 + $0x108] sm:$0xff]
        %v1984 = vld [vmem:[#allocation3 + $0x110] sm:$0xff]
        %v1985 = vld [vmem:[#allocation3 + $0x118] sm:$0xff]
        %v1986 = vld [vmem:[#allocation3 + $0x120] sm:$0xff]
        %v1987 = vld [vmem:[#allocation3 + $0x128] sm:$0xff]
        %v1988 = vld [vmem:[#allocation3 + $0x130] sm:$0xff]
        %v1989 = vld [vmem:[#allocation3 + $0x138] sm:$0xff]
        %v1990 = vld [vmem:[#allocation3 + $0x140] sm:$0xff]
        %v1991 = vld [vmem:[#allocation3 + $0x148] sm:$0xff]
        %v1992 = vld [vmem:[#allocation3 + $0x150] sm:$0xff]
        %v1993 = vld [vmem:[#allocation3 + $0x158] sm:$0xff]
        %v1994 = vld [vmem:[#allocation3 + $0x160] sm:$0xff]
        %1996 = vset.pattern.permute.xlu0 72
        %1997 = vperm.xlu0 %1996, %v1949
        %v1998 = vpop.permute.xlu0 %1997
        %v2000 = vsel %vm1380, %v1949, 0
        %2002 = vmatprep.subr.mxu0 0.0
        %2003 = vmatpush1.msra.mxu0 0.0
        %2004 = vmatprep.subr.mxu0 0.0
        %2005 = vmatpush1.msra.mxu0 0.0
        %2006 = vmatprep.subr.mxu0 0.0
        %2007 = vmatpush1.msra.mxu0 0.0
        %2008 = vmatprep.subr.mxu0 0.0
        %2009 = vmatpush1.msra.mxu0 0.0
        %2010 = vmatprep.subr.mxu0 0.0
        %2011 = vmatpush1.msra.mxu0 0.0
        %2012 = vmatprep.subr.mxu0 0.0
        %2013 = vmatpush1.msra.mxu0 0.0
        %2014 = vmatprep.subr.mxu0 0.0
        %2015 = vmatpush1.msra.mxu0 0.0
        %2016 = vmatprep.subr.mxu0 %v1991
        %2017 = vmatpush1.msra.mxu0 %v1990
        %2018 = vmatprep.subr.mxu0 %v1986
        %2019 = vmatpush1.msra.mxu0 %v1985
        %2020 = vmatprep.subr.mxu0 %v1981
        %2021 = vmatpush1.msra.mxu0 %v1980
        %2022 = vmatprep.subr.mxu0 %v1976
        %2023 = vmatpush1.msra.mxu0 %v1975
        %2024 = vmatprep.subr.mxu0 %v1971
        %2025 = vmatpush1.msra.mxu0 %v1970
        %2026 = vmatprep.subr.mxu0 %v1966
        %2027 = vmatpush1.msra.mxu0 %v1965
        %2028 = vmatprep.subr.mxu0 %v1961
        %2029 = vmatpush1.msra.mxu0 %v1960
        %2030 = vmatprep.subr.mxu0 %v1956
        %2031 = vmatpush1.msra.mxu0 %v1955
        %2032 = vmatprep.subr.mxu0 %v1951
        %2033 = vmatpush1.msra.mxu0 %v1950
        %2034 = vmatprep.subr.mxu0 0.0
        %2035 = vmatpush2.msra.mxu0 0.0
        %2036 = vmatprep.subr.mxu0 0.0
        %2037 = vmatpush2.msra.mxu0 0.0
        %2038 = vmatprep.subr.mxu0 0.0
        %2039 = vmatpush2.msra.mxu0 0.0
        %2040 = vmatprep.subr.mxu0 0.0
        %2041 = vmatpush2.msra.mxu0 0.0
        %2042 = vmatprep.subr.mxu0 0.0
        %2043 = vmatpush2.msra.mxu0 0.0
        %2044 = vmatprep.subr.mxu0 0.0
        %2045 = vmatpush2.msra.mxu0 0.0
        %2046 = vmatprep.subr.mxu0 0.0
        %2047 = vmatpush2.msra.mxu0 0.0
        %2048 = vmatprep.subr.mxu0 0.0
        %2049 = vmatpush2.msra.mxu0 0.0
        %2050 = vmatprep.subr.mxu0 0.0
        %2051 = vmatpush2.msra.mxu0 0.0
        %2052 = vmatprep.subr.mxu0 0.0
        %2053 = vmatpush2.msra.mxu0 0.0
        %2054 = vmatprep.subr.mxu0 0.0
        %2055 = vmatpush2.msra.mxu0 0.0
        %2056 = vmatprep.subr.mxu0 0.0
        %2057 = vmatpush2.msra.mxu0 0.0
        %2058 = vmatprep.subr.mxu0 0.0
        %2059 = vmatpush2.msra.mxu0 0.0
        %2060 = vmatprep.subr.mxu0 0.0
        %2061 = vmatpush2.msra.mxu0 0.0
        %2062 = vmatprep.subr.mxu0 0.0
        %2063 = vmatpush2.msra.mxu0 0.0
        %2064 = vmatprep.subr.mxu0 0.0
        %2065 = vmatpush2.msra.mxu0 0.0
        %2066 = vmatprep.mubr.f32.mxu0 0.0
        %2067 = vmatmul.mubr.f32.gmra.mxu0 %v2000
        %v2068 = vpop.f32.mrf.mxu0
        %v2069 = vadd.f32 %v1998, %v2068
        %v2070 = vpop.f32.mrf.mxu0
        %v2071 = vadd.f32 %v1998, %v2070
        %2072 = vdwg.mxu0
        %2073 = vmatprep.subr.mxu0 0.0
        %2074 = vmatpush1.msra.mxu0 0.0
        %2075 = vmatprep.subr.mxu0 0.0
        %2076 = vmatpush1.msra.mxu0 0.0
        %2077 = vmatprep.subr.mxu0 0.0
        %2078 = vmatpush1.msra.mxu0 0.0
        %2079 = vmatprep.subr.mxu0 0.0
        %2080 = vmatpush1.msra.mxu0 0.0
        %2081 = vmatprep.subr.mxu0 0.0
        %2082 = vmatpush1.msra.mxu0 0.0
        %2083 = vmatprep.subr.mxu0 0.0
        %2084 = vmatpush1.msra.mxu0 0.0
        %2085 = vmatprep.subr.mxu0 0.0
        %2086 = vmatpush1.msra.mxu0 0.0
        %2087 = vmatprep.subr.mxu0 %v1993
        %2088 = vmatpush1.msra.mxu0 %v1992
        %2089 = vmatprep.subr.mxu0 %v1988
        %2090 = vmatpush1.msra.mxu0 %v1987
        %2091 = vmatprep.subr.mxu0 %v1983
        %2092 = vmatpush1.msra.mxu0 %v1982
        %2093 = vmatprep.subr.mxu0 %v1978
        %2094 = vmatpush1.msra.mxu0 %v1977
        %2095 = vmatprep.subr.mxu0 %v1973
        %2096 = vmatpush1.msra.mxu0 %v1972
        %2097 = vmatprep.subr.mxu0 %v1968
        %2098 = vmatpush1.msra.mxu0 %v1967
        %2099 = vmatprep.subr.mxu0 %v1963
        %2100 = vmatpush1.msra.mxu0 %v1962
        %2101 = vmatprep.subr.mxu0 %v1958
        %2102 = vmatpush1.msra.mxu0 %v1957
        %2103 = vmatprep.subr.mxu0 %v1953
        %2104 = vmatpush1.msra.mxu0 %v1952
        %2105 = vmatprep.subr.mxu0 0.0
        %2106 = vmatpush2.msra.mxu0 0.0
        %2107 = vmatprep.subr.mxu0 0.0
        %2108 = vmatpush2.msra.mxu0 0.0
        %2109 = vmatprep.subr.mxu0 0.0
        %2110 = vmatpush2.msra.mxu0 0.0
        %2111 = vmatprep.subr.mxu0 0.0
        %2112 = vmatpush2.msra.mxu0 0.0
        %2113 = vmatprep.subr.mxu0 0.0
        %2114 = vmatpush2.msra.mxu0 0.0
        %2115 = vmatprep.subr.mxu0 0.0
        %2116 = vmatpush2.msra.mxu0 0.0
        %2117 = vmatprep.subr.mxu0 0.0
        %2118 = vmatpush2.msra.mxu0 0.0
        %2119 = vmatprep.subr.mxu0 0.0
        %2120 = vmatpush2.msra.mxu0 0.0
        %2121 = vmatprep.subr.mxu0 0.0
        %2122 = vmatpush2.msra.mxu0 0.0
        %2123 = vmatprep.subr.mxu0 0.0
        %2124 = vmatpush2.msra.mxu0 0.0
        %2125 = vmatprep.subr.mxu0 0.0
        %2126 = vmatpush2.msra.mxu0 0.0
        %2127 = vmatprep.subr.mxu0 0.0
        %2128 = vmatpush2.msra.mxu0 0.0
        %2129 = vmatprep.subr.mxu0 0.0
        %2130 = vmatpush2.msra.mxu0 0.0
        %2131 = vmatprep.subr.mxu0 0.0
        %2132 = vmatpush2.msra.mxu0 0.0
        %2133 = vmatprep.subr.mxu0 0.0
        %2134 = vmatpush2.msra.mxu0 0.0
        %2135 = vmatprep.subr.mxu0 0.0
        %2136 = vmatpush2.msra.mxu0 0.0
        %2137 = vmatprep.mubr.f32.mxu0 0.0
        %2138 = vmatmul.mubr.f32.gmra.mxu0 %v2000
        %v2139 = vpop.f32.mrf.mxu0
        %v2140 = vadd.f32 %v1998, %v2139
        %v2141 = vpop.f32.mrf.mxu0
        %v2142 = vadd.f32 %v1998, %v2141
        %2143 = vdwg.mxu0
        %2144 = vmatprep.subr.mxu0 0.0
        %2145 = vmatpush1.msra.mxu0 0.0
        %2146 = vmatprep.subr.mxu0 0.0
        %2147 = vmatpush1.msra.mxu0 0.0
        %2148 = vmatprep.subr.mxu0 0.0
        %2149 = vmatpush1.msra.mxu0 0.0
        %2150 = vmatprep.subr.mxu0 0.0
        %2151 = vmatpush1.msra.mxu0 0.0
        %2152 = vmatprep.subr.mxu0 0.0
        %2153 = vmatpush1.msra.mxu0 0.0
        %2154 = vmatprep.subr.mxu0 0.0
        %2155 = vmatpush1.msra.mxu0 0.0
        %2156 = vmatprep.subr.mxu0 0.0
        %2157 = vmatpush1.msra.mxu0 0.0
        %2158 = vmatprep.subr.mxu0 0.0
        %2159 = vmatpush1.msra.mxu0 %v1994
        %2160 = vmatprep.subr.mxu0 0.0
        %2161 = vmatpush1.msra.mxu0 %v1989
        %2162 = vmatprep.subr.mxu0 0.0
        %2163 = vmatpush1.msra.mxu0 %v1984
        %2164 = vmatprep.subr.mxu0 0.0
        %2165 = vmatpush1.msra.mxu0 %v1979
        %2166 = vmatprep.subr.mxu0 0.0
        %2167 = vmatpush1.msra.mxu0 %v1974
        %2168 = vmatprep.subr.mxu0 0.0
        %2169 = vmatpush1.msra.mxu0 %v1969
        %2170 = vmatprep.subr.mxu0 0.0
        %2171 = vmatpush1.msra.mxu0 %v1964
        %2172 = vmatprep.subr.mxu0 0.0
        %2173 = vmatpush1.msra.mxu0 %v1959
        %2174 = vmatprep.subr.mxu0 0.0
        %2175 = vmatpush1.msra.mxu0 %v1954
        %2176 = vmatprep.subr.mxu0 0.0
        %2177 = vmatpush2.msra.mxu0 0.0
        %2178 = vmatprep.subr.mxu0 0.0
        %2179 = vmatpush2.msra.mxu0 0.0
        %2180 = vmatprep.subr.mxu0 0.0
        %2181 = vmatpush2.msra.mxu0 0.0
        %2182 = vmatprep.subr.mxu0 0.0
        %2183 = vmatpush2.msra.mxu0 0.0
        %2184 = vmatprep.subr.mxu0 0.0
        %2185 = vmatpush2.msra.mxu0 0.0
        %2186 = vmatprep.subr.mxu0 0.0
        %2187 = vmatpush2.msra.mxu0 0.0
        %2188 = vmatprep.subr.mxu0 0.0
        %2189 = vmatpush2.msra.mxu0 0.0
        %2190 = vmatprep.subr.mxu0 0.0
        %2191 = vmatpush2.msra.mxu0 0.0
        %2192 = vmatprep.subr.mxu0 0.0
        %2193 = vmatpush2.msra.mxu0 0.0
        %2194 = vmatprep.subr.mxu0 0.0
        %2195 = vmatpush2.msra.mxu0 0.0
        %2196 = vmatprep.subr.mxu0 0.0
        %2197 = vmatpush2.msra.mxu0 0.0
        %2198 = vmatprep.subr.mxu0 0.0
        %2199 = vmatpush2.msra.mxu0 0.0
        %2200 = vmatprep.subr.mxu0 0.0
        %2201 = vmatpush2.msra.mxu0 0.0
        %2202 = vmatprep.subr.mxu0 0.0
        %2203 = vmatpush2.msra.mxu0 0.0
        %2204 = vmatprep.subr.mxu0 0.0
        %2205 = vmatpush2.msra.mxu0 0.0
        %2206 = vmatprep.subr.mxu0 0.0
        %2207 = vmatpush2.msra.mxu0 0.0
        %2208 = vmatprep.mubr.f32.mxu0 0.0
        %2209 = vmatmul.mubr.f32.gmra.mxu0 %v2000
        %v2210 = vpop.f32.mrf.mxu0
        %v2211 = vadd.f32 %v1998, %v2210
        %v2212 = vpop.f32.mrf.mxu0
        %2213 = vdwg.mxu0
        %s2214 = sld [smem:[#allocation4 + $0x3]]
        %vm2215 = vcmp.ge.f32.partialorder %v2069, 0.0
        %vm2216 = vcmp.ge.f32.partialorder %v2071, 0.0
        %vm2217 = vcmp.ge.f32.partialorder %v2140, 0.0
        %vm2218 = vcmp.ge.f32.partialorder %v2142, 0.0
        %vm2219 = vcmp.ge.f32.partialorder %v2211, 0.0
        %v2220 = vstv %s2214
        %v2221 = vmul.f32 %v2220, %v2069
        %v2222 = vmul.f32 %v2220, %v2071
        %v2223 = vmul.f32 %v2220, %v2140
        %v2224 = vmul.f32 %v2220, %v2142
        %v2225 = vmul.f32 %v2220, %v2211
        %v2226 = vsel %vm2215, %v2069, %v2221
        %v2227 = vsel %vm2216, %v2071, %v2222
        %v2228 = vsel %vm2217, %v2140, %v2223
        %v2229 = vsel %vm2218, %v2142, %v2224
        %v2230 = vsel %vm2219, %v2211, %v2225
        %v2231 = vld [vmem:[%s2 + $0xa0] sm:$0xff]
        %v2232 = vld [vmem:[%s2 + $0xc0] sm:$0xff]
        %2234 = vset.pattern.permute.xlu0 8
        %2235 = vperm.xlu0 %2234, %v2231
        %v2236 = vpop.permute.xlu0 %2235
        %2239 = vset.pattern.permute.xlu0 8
        %2240 = vperm.xlu0 %2239, %v2232
        %v2241 = vpop.permute.xlu0 %2240
        %vm2243 = vcmask 64512
        %v2244 = vsel %vm2243, %v2231, 0
        %v2246 = vsel %vm2243, %v2232, 0
        %2248 = vmatprep.subr.mxu0 0.0
        %2249 = vmatpush1.msra.mxu0 0.0
        %2250 = vmatprep.subr.mxu0 0.0
        %2251 = vmatpush1.msra.mxu0 0.0
        %2252 = vmatprep.subr.mxu0 0.0
        %2253 = vmatpush1.msra.mxu0 0.0
        %2254 = vmatprep.subr.mxu0 0.0
        %2255 = vmatpush1.msra.mxu0 0.0
        %2256 = vmatprep.subr.mxu0 0.0
        %2257 = vmatpush1.msra.mxu0 0.0
        %2258 = vmatprep.subr.mxu0 0.0
        %2259 = vmatpush1.msra.mxu0 0.0
        %2260 = vmatprep.subr.mxu0 0.0
        %2261 = vmatpush1.msra.mxu0 0.0
        %2262 = vmatprep.subr.mxu0 0.0
        %2263 = vmatpush1.msra.mxu0 0.0
        %2264 = vmatprep.subr.mxu0 0.0
        %2265 = vmatpush1.msra.mxu0 0.0
        %2266 = vmatprep.subr.mxu0 0.0
        %2267 = vmatpush1.msra.mxu0 0.0
        %2268 = vmatprep.subr.mxu0 0.0
        %2269 = vmatpush1.msra.mxu0 0.0
        %2270 = vmatprep.subr.mxu0 0.0
        %2271 = vmatpush1.msra.mxu0 0.0
        %2272 = vmatprep.subr.mxu0 0.0
        %2273 = vmatpush1.msra.mxu0 0.0
        %2274 = vmatprep.subr.mxu0 0.0
        %2275 = vmatpush1.msra.mxu0 0.0
        %2276 = vmatprep.subr.mxu0 0.0
        %2277 = vmatpush1.msra.mxu0 0.0
        %2278 = vmatprep.subr.mxu0 %v2227
        %2279 = vmatpush1.msra.mxu0 %v2226
        %2280 = vmatprep.subr.mxu0 0.0
        %2281 = vmatpush2.msra.mxu0 0.0
        %2282 = vmatprep.subr.mxu0 0.0
        %2283 = vmatpush2.msra.mxu0 0.0
        %2284 = vmatprep.subr.mxu0 0.0
        %2285 = vmatpush2.msra.mxu0 0.0
        %2286 = vmatprep.subr.mxu0 0.0
        %2287 = vmatpush2.msra.mxu0 0.0
        %2288 = vmatprep.subr.mxu0 0.0
        %2289 = vmatpush2.msra.mxu0 0.0
        %2290 = vmatprep.subr.mxu0 0.0
        %2291 = vmatpush2.msra.mxu0 0.0
        %2292 = vmatprep.subr.mxu0 0.0
        %2293 = vmatpush2.msra.mxu0 0.0
        %2294 = vmatprep.subr.mxu0 0.0
        %2295 = vmatpush2.msra.mxu0 0.0
        %2296 = vmatprep.subr.mxu0 0.0
        %2297 = vmatpush2.msra.mxu0 0.0
        %2298 = vmatprep.subr.mxu0 0.0
        %2299 = vmatpush2.msra.mxu0 0.0
        %2300 = vmatprep.subr.mxu0 0.0
        %2301 = vmatpush2.msra.mxu0 0.0
        %2302 = vmatprep.subr.mxu0 0.0
        %2303 = vmatpush2.msra.mxu0 0.0
        %2304 = vmatprep.subr.mxu0 0.0
        %2305 = vmatpush2.msra.mxu0 0.0
        %2306 = vmatprep.subr.mxu0 0.0
        %2307 = vmatpush2.msra.mxu0 0.0
        %2308 = vmatprep.subr.mxu0 0.0
        %2309 = vmatpush2.msra.mxu0 0.0
        %2310 = vmatprep.subr.mxu0 0.0
        %2311 = vmatpush2.msra.mxu0 0.0
        %2312 = vmatprep.mubr.f32.mxu0 0.0
        %2313 = vmatmul.mubr.f32.gmra.mxu0 %v2244
        %v2314 = vpop.f32.mrf.mxu0
        %v2315 = vadd.f32 %v2236, %v2314
        %v2316 = vpop.f32.mrf.mxu0
        %v2317 = vadd.f32 %v2236, %v2316
        %2318 = vmatprep.mubr.f32.mxu0 0.0
        %2319 = vmatmul.mubr.f32.gmra.mxu0 %v2246
        %v2320 = vpop.f32.mrf.mxu0
        %v2321 = vadd.f32 %v2241, %v2320
        %v2322 = vpop.f32.mrf.mxu0
        %v2323 = vadd.f32 %v2241, %v2322
        %2324 = vdwg.mxu0
        %2325 = vmatprep.subr.mxu0 0.0
        %2326 = vmatpush1.msra.mxu0 0.0
        %2327 = vmatprep.subr.mxu0 0.0
        %2328 = vmatpush1.msra.mxu0 0.0
        %2329 = vmatprep.subr.mxu0 0.0
        %2330 = vmatpush1.msra.mxu0 0.0
        %2331 = vmatprep.subr.mxu0 0.0
        %2332 = vmatpush1.msra.mxu0 0.0
        %2333 = vmatprep.subr.mxu0 0.0
        %2334 = vmatpush1.msra.mxu0 0.0
        %2335 = vmatprep.subr.mxu0 0.0
        %2336 = vmatpush1.msra.mxu0 0.0
        %2337 = vmatprep.subr.mxu0 0.0
        %2338 = vmatpush1.msra.mxu0 0.0
        %2339 = vmatprep.subr.mxu0 0.0
        %2340 = vmatpush1.msra.mxu0 0.0
        %2341 = vmatprep.subr.mxu0 0.0
        %2342 = vmatpush1.msra.mxu0 0.0
        %2343 = vmatprep.subr.mxu0 0.0
        %2344 = vmatpush1.msra.mxu0 0.0
        %2345 = vmatprep.subr.mxu0 0.0
        %2346 = vmatpush1.msra.mxu0 0.0
        %2347 = vmatprep.subr.mxu0 0.0
        %2348 = vmatpush1.msra.mxu0 0.0
        %2349 = vmatprep.subr.mxu0 0.0
        %2350 = vmatpush1.msra.mxu0 0.0
        %2351 = vmatprep.subr.mxu0 0.0
        %2352 = vmatpush1.msra.mxu0 0.0
        %2353 = vmatprep.subr.mxu0 0.0
        %2354 = vmatpush1.msra.mxu0 0.0
        %2355 = vmatprep.subr.mxu0 %v2229
        %2356 = vmatpush1.msra.mxu0 %v2228
        %2357 = vmatprep.subr.mxu0 0.0
        %2358 = vmatpush2.msra.mxu0 0.0
        %2359 = vmatprep.subr.mxu0 0.0
        %2360 = vmatpush2.msra.mxu0 0.0
        %2361 = vmatprep.subr.mxu0 0.0
        %2362 = vmatpush2.msra.mxu0 0.0
        %2363 = vmatprep.subr.mxu0 0.0
        %2364 = vmatpush2.msra.mxu0 0.0
        %2365 = vmatprep.subr.mxu0 0.0
        %2366 = vmatpush2.msra.mxu0 0.0
        %2367 = vmatprep.subr.mxu0 0.0
        %2368 = vmatpush2.msra.mxu0 0.0
        %2369 = vmatprep.subr.mxu0 0.0
        %2370 = vmatpush2.msra.mxu0 0.0
        %2371 = vmatprep.subr.mxu0 0.0
        %2372 = vmatpush2.msra.mxu0 0.0
        %2373 = vmatprep.subr.mxu0 0.0
        %2374 = vmatpush2.msra.mxu0 0.0
        %2375 = vmatprep.subr.mxu0 0.0
        %2376 = vmatpush2.msra.mxu0 0.0
        %2377 = vmatprep.subr.mxu0 0.0
        %2378 = vmatpush2.msra.mxu0 0.0
        %2379 = vmatprep.subr.mxu0 0.0
        %2380 = vmatpush2.msra.mxu0 0.0
        %2381 = vmatprep.subr.mxu0 0.0
        %2382 = vmatpush2.msra.mxu0 0.0
        %2383 = vmatprep.subr.mxu0 0.0
        %2384 = vmatpush2.msra.mxu0 0.0
        %2385 = vmatprep.subr.mxu0 0.0
        %2386 = vmatpush2.msra.mxu0 0.0
        %2387 = vmatprep.subr.mxu0 0.0
        %2388 = vmatpush2.msra.mxu0 0.0
        %2389 = vmatprep.mubr.f32.mxu0 0.0
        %2390 = vmatmul.mubr.f32.gmra.mxu0 %v2244
        %v2391 = vpop.f32.mrf.mxu0
        %v2392 = vadd.f32 %v2236, %v2391
        %v2393 = vpop.f32.mrf.mxu0
        %v2394 = vadd.f32 %v2236, %v2393
        %2395 = vmatprep.mubr.f32.mxu0 0.0
        %2396 = vmatmul.mubr.f32.gmra.mxu0 %v2246
        %v2397 = vpop.f32.mrf.mxu0
        %v2398 = vadd.f32 %v2241, %v2397
        %v2399 = vpop.f32.mrf.mxu0
        %v2400 = vadd.f32 %v2241, %v2399
        %2401 = vdwg.mxu0
        %2402 = vmatprep.subr.mxu0 0.0
        %2403 = vmatpush1.msra.mxu0 0.0
        %2404 = vmatprep.subr.mxu0 0.0
        %2405 = vmatpush1.msra.mxu0 0.0
        %2406 = vmatprep.subr.mxu0 0.0
        %2407 = vmatpush1.msra.mxu0 0.0
        %2408 = vmatprep.subr.mxu0 0.0
        %2409 = vmatpush1.msra.mxu0 0.0
        %2410 = vmatprep.subr.mxu0 0.0
        %2411 = vmatpush1.msra.mxu0 0.0
        %2412 = vmatprep.subr.mxu0 0.0
        %2413 = vmatpush1.msra.mxu0 0.0
        %2414 = vmatprep.subr.mxu0 0.0
        %2415 = vmatpush1.msra.mxu0 0.0
        %2416 = vmatprep.subr.mxu0 0.0
        %2417 = vmatpush1.msra.mxu0 0.0
        %2418 = vmatprep.subr.mxu0 0.0
        %2419 = vmatpush1.msra.mxu0 0.0
        %2420 = vmatprep.subr.mxu0 0.0
        %2421 = vmatpush1.msra.mxu0 0.0
        %2422 = vmatprep.subr.mxu0 0.0
        %2423 = vmatpush1.msra.mxu0 0.0
        %2424 = vmatprep.subr.mxu0 0.0
        %2425 = vmatpush1.msra.mxu0 0.0
        %2426 = vmatprep.subr.mxu0 0.0
        %2427 = vmatpush1.msra.mxu0 0.0
        %2428 = vmatprep.subr.mxu0 0.0
        %2429 = vmatpush1.msra.mxu0 0.0
        %2430 = vmatprep.subr.mxu0 0.0
        %2431 = vmatpush1.msra.mxu0 0.0
        %2432 = vmatprep.subr.mxu0 0.0
        %2433 = vmatpush1.msra.mxu0 %v2230
        %2434 = vmatprep.subr.mxu0 0.0
        %2435 = vmatpush2.msra.mxu0 0.0
        %2436 = vmatprep.subr.mxu0 0.0
        %2437 = vmatpush2.msra.mxu0 0.0
        %2438 = vmatprep.subr.mxu0 0.0
        %2439 = vmatpush2.msra.mxu0 0.0
        %2440 = vmatprep.subr.mxu0 0.0
        %2441 = vmatpush2.msra.mxu0 0.0
        %2442 = vmatprep.subr.mxu0 0.0
        %2443 = vmatpush2.msra.mxu0 0.0
        %2444 = vmatprep.subr.mxu0 0.0
        %2445 = vmatpush2.msra.mxu0 0.0
        %2446 = vmatprep.subr.mxu0 0.0
        %2447 = vmatpush2.msra.mxu0 0.0
        %2448 = vmatprep.subr.mxu0 0.0
        %2449 = vmatpush2.msra.mxu0 0.0
        %2450 = vmatprep.subr.mxu0 0.0
        %2451 = vmatpush2.msra.mxu0 0.0
        %2452 = vmatprep.subr.mxu0 0.0
        %2453 = vmatpush2.msra.mxu0 0.0
        %2454 = vmatprep.subr.mxu0 0.0
        %2455 = vmatpush2.msra.mxu0 0.0
        %2456 = vmatprep.subr.mxu0 0.0
        %2457 = vmatpush2.msra.mxu0 0.0
        %2458 = vmatprep.subr.mxu0 0.0
        %2459 = vmatpush2.msra.mxu0 0.0
        %2460 = vmatprep.subr.mxu0 0.0
        %2461 = vmatpush2.msra.mxu0 0.0
        %2462 = vmatprep.subr.mxu0 0.0
        %2463 = vmatpush2.msra.mxu0 0.0
        %2464 = vmatprep.subr.mxu0 0.0
        %2465 = vmatpush2.msra.mxu0 0.0
        %2466 = vmatprep.mubr.f32.mxu0 0.0
        %2467 = vmatmul.mubr.f32.gmra.mxu0 %v2244
        %v2468 = vpop.f32.mrf.mxu0
        %v2469 = vadd.f32 %v2236, %v2468
        %v2470 = vpop.f32.mrf.mxu0
        %2471 = vmatprep.mubr.f32.mxu0 0.0
        %2472 = vmatmul.mubr.f32.gmra.mxu0 %v2246
        %v2473 = vpop.f32.mrf.mxu0
        %v2474 = vadd.f32 %v2241, %v2473
        %v2475 = vpop.f32.mrf.mxu0
        %2476 = vdwg.mxu0
        %s2477 = sld [smem:[#allocation4 + $0x4]]
        %vm2478 = vcmp.ge.f32.partialorder %v2315, 0.0
        %vm2479 = vcmp.ge.f32.partialorder %v2317, 0.0
        %vm2480 = vcmp.ge.f32.partialorder %v2392, 0.0
        %vm2481 = vcmp.ge.f32.partialorder %v2394, 0.0
        %vm2482 = vcmp.ge.f32.partialorder %v2469, 0.0
        %vm2483 = vcmp.ge.f32.partialorder %v2321, 0.0
        %vm2484 = vcmp.ge.f32.partialorder %v2323, 0.0
        %vm2485 = vcmp.ge.f32.partialorder %v2398, 0.0
        %vm2486 = vcmp.ge.f32.partialorder %v2400, 0.0
        %vm2487 = vcmp.ge.f32.partialorder %v2474, 0.0
        %v2488 = vstv %s2477
        %v2489 = vmul.f32 %v2488, %v2315
        %v2490 = vmul.f32 %v2488, %v2317
        %v2491 = vmul.f32 %v2488, %v2392
        %v2492 = vmul.f32 %v2488, %v2394
        %v2493 = vmul.f32 %v2488, %v2469
        %v2494 = vmul.f32 %v2488, %v2321
        %v2495 = vmul.f32 %v2488, %v2323
        %v2496 = vmul.f32 %v2488, %v2398
        %v2497 = vmul.f32 %v2488, %v2400
        %v2498 = vmul.f32 %v2488, %v2474
        %v2499 = vsel %vm2478, %v2315, %v2489
        %v2500 = vsel %vm2479, %v2317, %v2490
        %v2501 = vsel %vm2480, %v2392, %v2491
        %v2502 = vsel %vm2481, %v2394, %v2492
        %v2503 = vsel %vm2482, %v2469, %v2493
        %v2504 = vsel %vm2483, %v2321, %v2494
        %v2505 = vsel %vm2484, %v2323, %v2495
        %v2506 = vsel %vm2485, %v2398, %v2496
        %v2507 = vsel %vm2486, %v2400, %v2497
        %v2508 = vsel %vm2487, %v2474, %v2498
        %v2509 = vld [vmem:[%s1] sm:$0xff]
        %v2510 = vld [vmem:[%s1 + $0x8] sm:$0xff]
        %v2511 = vld [vmem:[%s1 + $0x10] sm:$0xff]
        %v2512 = vld [vmem:[%s1 + $0x18] sm:$0xff]
        %v2513 = vld [vmem:[%s1 + $0x20] sm:$0xff]
        %v2514 = vld [vmem:[%s1 + $0x28] sm:$0xff]
        %v2515 = vld [vmem:[%s1 + $0x30] sm:$0xff]
        %v2516 = vld [vmem:[%s1 + $0x38] sm:$0xff]
        %v2517 = vld [vmem:[%s1 + $0x40] sm:$0xff]
        %v2518 = vld [vmem:[%s1 + $0x48] sm:$0xff]
        %v2519 = vmul.f32 %v2499, %v2509
        %v2520 = vmul.f32 %v2500, %v2510
        %v2521 = vmul.f32 %v2501, %v2511
        %v2522 = vmul.f32 %v2502, %v2512
        %v2523 = vmul.f32 %v2503, %v2513
        %v2524 = vmul.f32 %v2504, %v2514
        %v2525 = vmul.f32 %v2505, %v2515
        %v2526 = vmul.f32 %v2506, %v2516
        %v2527 = vmul.f32 %v2507, %v2517
        %v2528 = vmul.f32 %v2508, %v2518
        %2529 = vst [vmem:[#allocation2 + $0x8] sm:$0xff] %v2519
        %2530 = vst [vmem:[#allocation2 + $0x10] sm:$0xff] %v2520
        %2531 = vst [vmem:[#allocation2 + $0x18] sm:$0xff] %v2521
        %2532 = vst [vmem:[#allocation2 + $0x20] sm:$0xff] %v2522
        %2533 = vst [vmem:[#allocation2 + $0x28] sm:$0xff] %v2523
        %2534 = vst [vmem:[#allocation2 + $0x40] sm:$0xff] %v2524
        %2535 = vst [vmem:[#allocation2 + $0x48] sm:$0xff] %v2525
        %2536 = vst [vmem:[#allocation2 + $0x50] sm:$0xff] %v2526
        %2537 = vst [vmem:[#allocation2 + $0x58] sm:$0xff] %v2527
        %2538 = vst [vmem:[#allocation2 + $0x60] sm:$0xff] %v2528
        %v2539 = vld [vmem:[#allocation2 + $0x8] sm:$0xff]
        %v2540 = vld [vmem:[#allocation2 + $0x10] sm:$0xff]
        %v2541 = vld [vmem:[#allocation2 + $0x18] sm:$0xff]
        %v2542 = vld [vmem:[#allocation2 + $0x20] sm:$0xff]
        %v2543 = vld [vmem:[#allocation2 + $0x28] sm:$0xff]
        %v2544 = vld [vmem:[#allocation2 + $0x30] sm:$0xff]
        %v2545 = vld [vmem:[#allocation2 + $0x40] sm:$0xff]
        %v2546 = vld [vmem:[#allocation2 + $0x48] sm:$0xff]
        %v2547 = vld [vmem:[#allocation2 + $0x50] sm:$0xff]
        %v2548 = vld [vmem:[#allocation2 + $0x58] sm:$0xff]
        %v2549 = vld [vmem:[#allocation2 + $0x60] sm:$0xff]
        %v2550 = vld [vmem:[#allocation2 + $0x68] sm:$0xff]
        %2563 = vrot.lane.b32.xlu0 %v2539, 28
        %v2564 = vpop.permute.xlu0 %2563
        %2565 = vrot.lane.b32.xlu0 %v2540, 28
        %v2566 = vpop.permute.xlu0 %2565
        %2567 = vrot.lane.b32.xlu0 %v2541, 28
        %v2568 = vpop.permute.xlu0 %2567
        %2569 = vrot.lane.b32.xlu0 %v2542, 28
        %v2570 = vpop.permute.xlu0 %2569
        %2571 = vrot.lane.b32.xlu0 %v2543, 28
        %v2572 = vpop.permute.xlu0 %2571
        %2573 = vrot.lane.b32.xlu0 %v2544, 28
        %v2574 = vpop.permute.xlu0 %2573
        %2575 = vrot.lane.b32.xlu0 %v2545, 28
        %v2576 = vpop.permute.xlu0 %2575
        %2577 = vrot.lane.b32.xlu0 %v2546, 28
        %v2578 = vpop.permute.xlu0 %2577
        %2579 = vrot.lane.b32.xlu0 %v2547, 28
        %v2580 = vpop.permute.xlu0 %2579
        %2581 = vrot.lane.b32.xlu0 %v2548, 28
        %v2582 = vpop.permute.xlu0 %2581
        %2583 = vrot.lane.b32.xlu0 %v2549, 28
        %v2584 = vpop.permute.xlu0 %2583
        %2585 = vrot.lane.b32.xlu0 %v2550, 28
        %v2586 = vpop.permute.xlu0 %2585
        %vm2587 = vcmask 228352
        %v2588 = vsel %vm2587, %v2564, %v2566
        %v2589 = vsel %vm2587, %v2566, %v2568
        %v2590 = vsel %vm2587, %v2568, %v2570
        %v2591 = vsel %vm2587, %v2570, %v2572
        %v2592 = vsel %vm2587, %v2572, %v2574
        %v2593 = vsel %vm2587, %v2576, %v2578
        %v2594 = vsel %vm2587, %v2578, %v2580
        %v2595 = vsel %vm2587, %v2580, %v2582
        %v2596 = vsel %vm2587, %v2582, %v2584
        %v2597 = vsel %vm2587, %v2584, %v2586
        %2608 = vst [vmem:[#allocation3] sm:$0xff] %v2588
        %2609 = vst [vmem:[#allocation3 + $0x8] sm:$0xff] %v2589
        %2610 = vst [vmem:[#allocation3 + $0x10] sm:$0xff] %v2590
        %2611 = vst [vmem:[#allocation3 + $0x18] sm:$0xff] %v2591
        %2612 = vst [vmem:[#allocation3 + $0x20] sm:$0xff] %v2592
        %2613 = vst [vmem:[#allocation3 + $0x28] sm:$0xff] %v2593
        %2614 = vst [vmem:[#allocation3 + $0x30] sm:$0xff] %v2594
        %2615 = vst [vmem:[#allocation3 + $0x38] sm:$0xff] %v2595
        %2616 = vst [vmem:[#allocation3 + $0x40] sm:$0xff] %v2596
        %2617 = vst [vmem:[#allocation3 + $0x48] sm:$0xff] %v2597
        %v2618 = vld [vmem:[#allocation2 + $0x8] sm:$0xff]
        %v2619 = vld [vmem:[#allocation2 + $0x10] sm:$0xff]
        %v2620 = vld [vmem:[#allocation2 + $0x18] sm:$0xff]
        %v2621 = vld [vmem:[#allocation2 + $0x20] sm:$0xff]
        %v2622 = vld [vmem:[#allocation2 + $0x28] sm:$0xff]
        %v2623 = vld [vmem:[#allocation2 + $0x30] sm:$0xff]
        %v2624 = vld [vmem:[#allocation2 + $0x40] sm:$0xff]
        %v2625 = vld [vmem:[#allocation2 + $0x48] sm:$0xff]
        %v2626 = vld [vmem:[#allocation2 + $0x50] sm:$0xff]
        %v2627 = vld [vmem:[#allocation2 + $0x58] sm:$0xff]
        %v2628 = vld [vmem:[#allocation2 + $0x60] sm:$0xff]
        %v2629 = vld [vmem:[#allocation2 + $0x68] sm:$0xff]
        %2642 = vrot.lane.b32.xlu0 %v2618, 29
        %v2643 = vpop.permute.xlu0 %2642
        %2644 = vrot.lane.b32.xlu0 %v2619, 29
        %v2645 = vpop.permute.xlu0 %2644
        %2646 = vrot.lane.b32.xlu0 %v2620, 29
        %v2647 = vpop.permute.xlu0 %2646
        %2648 = vrot.lane.b32.xlu0 %v2621, 29
        %v2649 = vpop.permute.xlu0 %2648
        %2650 = vrot.lane.b32.xlu0 %v2622, 29
        %v2651 = vpop.permute.xlu0 %2650
        %2652 = vrot.lane.b32.xlu0 %v2623, 29
        %v2653 = vpop.permute.xlu0 %2652
        %2654 = vrot.lane.b32.xlu0 %v2624, 29
        %v2655 = vpop.permute.xlu0 %2654
        %2656 = vrot.lane.b32.xlu0 %v2625, 29
        %v2657 = vpop.permute.xlu0 %2656
        %2658 = vrot.lane.b32.xlu0 %v2626, 29
        %v2659 = vpop.permute.xlu0 %2658
        %2660 = vrot.lane.b32.xlu0 %v2627, 29
        %v2661 = vpop.permute.xlu0 %2660
        %2662 = vrot.lane.b32.xlu0 %v2628, 29
        %v2663 = vpop.permute.xlu0 %2662
        %2664 = vrot.lane.b32.xlu0 %v2629, 29
        %v2665 = vpop.permute.xlu0 %2664
        %vm2666 = vcmask 236544
        %v2667 = vsel %vm2666, %v2643, %v2645
        %v2668 = vsel %vm2666, %v2645, %v2647
        %v2669 = vsel %vm2666, %v2647, %v2649
        %v2670 = vsel %vm2666, %v2649, %v2651
        %v2671 = vsel %vm2666, %v2651, %v2653
        %v2672 = vsel %vm2666, %v2655, %v2657
        %v2673 = vsel %vm2666, %v2657, %v2659
        %v2674 = vsel %vm2666, %v2659, %v2661
        %v2675 = vsel %vm2666, %v2661, %v2663
        %v2676 = vsel %vm2666, %v2663, %v2665
        %2687 = vst [vmem:[#allocation3 + $0x50] sm:$0xff] %v2667
        %2688 = vst [vmem:[#allocation3 + $0x58] sm:$0xff] %v2668
        %2689 = vst [vmem:[#allocation3 + $0x60] sm:$0xff] %v2669
        %2690 = vst [vmem:[#allocation3 + $0x68] sm:$0xff] %v2670
        %2691 = vst [vmem:[#allocation3 + $0x70] sm:$0xff] %v2671
        %2692 = vst [vmem:[#allocation3 + $0x78] sm:$0xff] %v2672
        %2693 = vst [vmem:[#allocation3 + $0x80] sm:$0xff] %v2673
        %2694 = vst [vmem:[#allocation3 + $0x88] sm:$0xff] %v2674
        %2695 = vst [vmem:[#allocation3 + $0x90] sm:$0xff] %v2675
        %2696 = vst [vmem:[#allocation3 + $0x98] sm:$0xff] %v2676
        %v2697 = vld [vmem:[#allocation2 + $0x8] sm:$0xff]
        %v2698 = vld [vmem:[#allocation2 + $0x10] sm:$0xff]
        %v2699 = vld [vmem:[#allocation2 + $0x18] sm:$0xff]
        %v2700 = vld [vmem:[#allocation2 + $0x20] sm:$0xff]
        %v2701 = vld [vmem:[#allocation2 + $0x28] sm:$0xff]
        %v2702 = vld [vmem:[#allocation2 + $0x30] sm:$0xff]
        %v2703 = vld [vmem:[#allocation2 + $0x40] sm:$0xff]
        %v2704 = vld [vmem:[#allocation2 + $0x48] sm:$0xff]
        %v2705 = vld [vmem:[#allocation2 + $0x50] sm:$0xff]
        %v2706 = vld [vmem:[#allocation2 + $0x58] sm:$0xff]
        %v2707 = vld [vmem:[#allocation2 + $0x60] sm:$0xff]
        %v2708 = vld [vmem:[#allocation2 + $0x68] sm:$0xff]
        %2721 = vrot.lane.b32.xlu0 %v2697, 30
        %v2722 = vpop.permute.xlu0 %2721
        %2723 = vrot.lane.b32.xlu0 %v2698, 30
        %v2724 = vpop.permute.xlu0 %2723
        %2725 = vrot.lane.b32.xlu0 %v2699, 30
        %v2726 = vpop.permute.xlu0 %2725
        %2727 = vrot.lane.b32.xlu0 %v2700, 30
        %v2728 = vpop.permute.xlu0 %2727
        %2729 = vrot.lane.b32.xlu0 %v2701, 30
        %v2730 = vpop.permute.xlu0 %2729
        %2731 = vrot.lane.b32.xlu0 %v2702, 30
        %v2732 = vpop.permute.xlu0 %2731
        %2733 = vrot.lane.b32.xlu0 %v2703, 30
        %v2734 = vpop.permute.xlu0 %2733
        %2735 = vrot.lane.b32.xlu0 %v2704, 30
        %v2736 = vpop.permute.xlu0 %2735
        %2737 = vrot.lane.b32.xlu0 %v2705, 30
        %v2738 = vpop.permute.xlu0 %2737
        %2739 = vrot.lane.b32.xlu0 %v2706, 30
        %v2740 = vpop.permute.xlu0 %2739
        %2741 = vrot.lane.b32.xlu0 %v2707, 30
        %v2742 = vpop.permute.xlu0 %2741
        %2743 = vrot.lane.b32.xlu0 %v2708, 30
        %v2744 = vpop.permute.xlu0 %2743
        %vm2745 = vcmask 244736
        %v2746 = vsel %vm2745, %v2722, %v2724
        %v2747 = vsel %vm2745, %v2724, %v2726
        %v2748 = vsel %vm2745, %v2726, %v2728
        %v2749 = vsel %vm2745, %v2728, %v2730
        %v2750 = vsel %vm2745, %v2730, %v2732
        %v2751 = vsel %vm2745, %v2734, %v2736
        %v2752 = vsel %vm2745, %v2736, %v2738
        %v2753 = vsel %vm2745, %v2738, %v2740
        %v2754 = vsel %vm2745, %v2740, %v2742
        %v2755 = vsel %vm2745, %v2742, %v2744
        %2766 = vst [vmem:[#allocation3 + $0xa0] sm:$0xff] %v2746
        %2767 = vst [vmem:[#allocation3 + $0xa8] sm:$0xff] %v2747
        %2768 = vst [vmem:[#allocation3 + $0xb0] sm:$0xff] %v2748
        %2769 = vst [vmem:[#allocation3 + $0xb8] sm:$0xff] %v2749
        %2770 = vst [vmem:[#allocation3 + $0xc0] sm:$0xff] %v2750
        %2771 = vst [vmem:[#allocation3 + $0xc8] sm:$0xff] %v2751
        %2772 = vst [vmem:[#allocation3 + $0xd0] sm:$0xff] %v2752
        %2773 = vst [vmem:[#allocation3 + $0xd8] sm:$0xff] %v2753
        %2774 = vst [vmem:[#allocation3 + $0xe0] sm:$0xff] %v2754
        %2775 = vst [vmem:[#allocation3 + $0xe8] sm:$0xff] %v2755
        %v2776 = vld [vmem:[#allocation2 + $0x8] sm:$0xff]
        %v2777 = vld [vmem:[#allocation2 + $0x10] sm:$0xff]
        %v2778 = vld [vmem:[#allocation2 + $0x18] sm:$0xff]
        %v2779 = vld [vmem:[#allocation2 + $0x20] sm:$0xff]
        %v2780 = vld [vmem:[#allocation2 + $0x28] sm:$0xff]
        %v2781 = vld [vmem:[#allocation2 + $0x30] sm:$0xff]
        %v2782 = vld [vmem:[#allocation2 + $0x40] sm:$0xff]
        %v2783 = vld [vmem:[#allocation2 + $0x48] sm:$0xff]
        %v2784 = vld [vmem:[#allocation2 + $0x50] sm:$0xff]
        %v2785 = vld [vmem:[#allocation2 + $0x58] sm:$0xff]
        %v2786 = vld [vmem:[#allocation2 + $0x60] sm:$0xff]
        %v2787 = vld [vmem:[#allocation2 + $0x68] sm:$0xff]
        %2800 = vrot.lane.b32.xlu0 %v2776, 31
        %v2801 = vpop.permute.xlu0 %2800
        %2802 = vrot.lane.b32.xlu0 %v2777, 31
        %v2803 = vpop.permute.xlu0 %2802
        %2804 = vrot.lane.b32.xlu0 %v2778, 31
        %v2805 = vpop.permute.xlu0 %2804
        %2806 = vrot.lane.b32.xlu0 %v2779, 31
        %v2807 = vpop.permute.xlu0 %2806
        %2808 = vrot.lane.b32.xlu0 %v2780, 31
        %v2809 = vpop.permute.xlu0 %2808
        %2810 = vrot.lane.b32.xlu0 %v2781, 31
        %v2811 = vpop.permute.xlu0 %2810
        %2812 = vrot.lane.b32.xlu0 %v2782, 31
        %v2813 = vpop.permute.xlu0 %2812
        %2814 = vrot.lane.b32.xlu0 %v2783, 31
        %v2815 = vpop.permute.xlu0 %2814
        %2816 = vrot.lane.b32.xlu0 %v2784, 31
        %v2817 = vpop.permute.xlu0 %2816
        %2818 = vrot.lane.b32.xlu0 %v2785, 31
        %v2819 = vpop.permute.xlu0 %2818
        %2820 = vrot.lane.b32.xlu0 %v2786, 31
        %v2821 = vpop.permute.xlu0 %2820
        %2822 = vrot.lane.b32.xlu0 %v2787, 31
        %v2823 = vpop.permute.xlu0 %2822
        %vm2824 = vcmask 252928
        %v2825 = vsel %vm2824, %v2801, %v2803
        %v2826 = vsel %vm2824, %v2803, %v2805
        %v2827 = vsel %vm2824, %v2805, %v2807
        %v2828 = vsel %vm2824, %v2807, %v2809
        %v2829 = vsel %vm2824, %v2809, %v2811
        %v2830 = vsel %vm2824, %v2813, %v2815
        %v2831 = vsel %vm2824, %v2815, %v2817
        %v2832 = vsel %vm2824, %v2817, %v2819
        %v2833 = vsel %vm2824, %v2819, %v2821
        %v2834 = vsel %vm2824, %v2821, %v2823
        %2845 = vst [vmem:[#allocation3 + $0xf0] sm:$0xff] %v2825
        %2846 = vst [vmem:[#allocation3 + $0xf8] sm:$0xff] %v2826
        %2847 = vst [vmem:[#allocation3 + $0x100] sm:$0xff] %v2827
        %2848 = vst [vmem:[#allocation3 + $0x108] sm:$0xff] %v2828
        %2849 = vst [vmem:[#allocation3 + $0x110] sm:$0xff] %v2829
        %2850 = vst [vmem:[#allocation3 + $0x118] sm:$0xff] %v2830
        %2851 = vst [vmem:[#allocation3 + $0x120] sm:$0xff] %v2831
        %2852 = vst [vmem:[#allocation3 + $0x128] sm:$0xff] %v2832
        %2853 = vst [vmem:[#allocation3 + $0x130] sm:$0xff] %v2833
        %2854 = vst [vmem:[#allocation3 + $0x138] sm:$0xff] %v2834
        %v2855 = vld [vmem:[#allocation2 + $0x8] sm:$0xff]
        %v2856 = vld [vmem:[#allocation2 + $0x10] sm:$0xff]
        %v2857 = vld [vmem:[#allocation2 + $0x18] sm:$0xff]
        %v2858 = vld [vmem:[#allocation2 + $0x20] sm:$0xff]
        %v2859 = vld [vmem:[#allocation2 + $0x28] sm:$0xff]
        %v2860 = vld [vmem:[#allocation2 + $0x30] sm:$0xff]
        %v2861 = vld [vmem:[#allocation2 + $0x40] sm:$0xff]
        %v2862 = vld [vmem:[#allocation2 + $0x48] sm:$0xff]
        %v2863 = vld [vmem:[#allocation2 + $0x50] sm:$0xff]
        %v2864 = vld [vmem:[#allocation2 + $0x58] sm:$0xff]
        %v2865 = vld [vmem:[#allocation2 + $0x60] sm:$0xff]
        %v2866 = vld [vmem:[#allocation2 + $0x68] sm:$0xff]
        %2879 = vrot.lane.b32.xlu0 %v2855, 32
        %v2880 = vpop.permute.xlu0 %2879
        %2881 = vrot.lane.b32.xlu0 %v2856, 32
        %v2882 = vpop.permute.xlu0 %2881
        %2883 = vrot.lane.b32.xlu0 %v2857, 32
        %v2884 = vpop.permute.xlu0 %2883
        %2885 = vrot.lane.b32.xlu0 %v2858, 32
        %v2886 = vpop.permute.xlu0 %2885
        %2887 = vrot.lane.b32.xlu0 %v2859, 32
        %v2888 = vpop.permute.xlu0 %2887
        %2889 = vrot.lane.b32.xlu0 %v2860, 32
        %v2890 = vpop.permute.xlu0 %2889
        %2891 = vrot.lane.b32.xlu0 %v2861, 32
        %v2892 = vpop.permute.xlu0 %2891
        %2893 = vrot.lane.b32.xlu0 %v2862, 32
        %v2894 = vpop.permute.xlu0 %2893
        %2895 = vrot.lane.b32.xlu0 %v2863, 32
        %v2896 = vpop.permute.xlu0 %2895
        %2897 = vrot.lane.b32.xlu0 %v2864, 32
        %v2898 = vpop.permute.xlu0 %2897
        %2899 = vrot.lane.b32.xlu0 %v2865, 32
        %v2900 = vpop.permute.xlu0 %2899
        %2901 = vrot.lane.b32.xlu0 %v2866, 32
        %v2902 = vpop.permute.xlu0 %2901
        %v2903 = vsel %vm488, %v2880, %v2882
        %v2904 = vsel %vm488, %v2882, %v2884
        %v2905 = vsel %vm488, %v2884, %v2886
        %v2906 = vsel %vm488, %v2886, %v2888
        %v2907 = vsel %vm488, %v2888, %v2890
        %v2908 = vsel %vm488, %v2892, %v2894
        %v2909 = vsel %vm488, %v2894, %v2896
        %v2910 = vsel %vm488, %v2896, %v2898
        %v2911 = vsel %vm488, %v2898, %v2900
        %v2912 = vsel %vm488, %v2900, %v2902
        %2923 = vst [vmem:[#allocation3 + $0x140] sm:$0xff] %v2903
        %2924 = vst [vmem:[#allocation3 + $0x148] sm:$0xff] %v2904
        %2925 = vst [vmem:[#allocation3 + $0x150] sm:$0xff] %v2905
        %2926 = vst [vmem:[#allocation3 + $0x158] sm:$0xff] %v2906
        %2927 = vst [vmem:[#allocation3 + $0x160] sm:$0xff] %v2907
        %2928 = vst [vmem:[#allocation3 + $0x168] sm:$0xff] %v2908
        %2929 = vst [vmem:[#allocation3 + $0x170] sm:$0xff] %v2909
        %2930 = vst [vmem:[#allocation3 + $0x178] sm:$0xff] %v2910
        %2931 = vst [vmem:[#allocation3 + $0x180] sm:$0xff] %v2911
        %2932 = vst [vmem:[#allocation3 + $0x188] sm:$0xff] %v2912
        %v2933 = vld [vmem:[#allocation2 + $0x8] sm:$0xff]
        %v2934 = vld [vmem:[#allocation2 + $0x10] sm:$0xff]
        %v2935 = vld [vmem:[#allocation2 + $0x18] sm:$0xff]
        %v2936 = vld [vmem:[#allocation2 + $0x20] sm:$0xff]
        %v2937 = vld [vmem:[#allocation2 + $0x28] sm:$0xff]
        %v2938 = vld [vmem:[#allocation2 + $0x30] sm:$0xff]
        %v2939 = vld [vmem:[#allocation2 + $0x40] sm:$0xff]
        %v2940 = vld [vmem:[#allocation2 + $0x48] sm:$0xff]
        %v2941 = vld [vmem:[#allocation2 + $0x50] sm:$0xff]
        %v2942 = vld [vmem:[#allocation2 + $0x58] sm:$0xff]
        %v2943 = vld [vmem:[#allocation2 + $0x60] sm:$0xff]
        %v2944 = vld [vmem:[#allocation2 + $0x68] sm:$0xff]
        %2957 = vrot.lane.b32.xlu0 %v2933, 52
        %v2958 = vpop.permute.xlu0 %2957
        %2959 = vrot.lane.b32.xlu0 %v2934, 52
        %v2960 = vpop.permute.xlu0 %2959
        %2961 = vrot.lane.b32.xlu0 %v2935, 52
        %v2962 = vpop.permute.xlu0 %2961
        %2963 = vrot.lane.b32.xlu0 %v2936, 52
        %v2964 = vpop.permute.xlu0 %2963
        %2965 = vrot.lane.b32.xlu0 %v2937, 52
        %v2966 = vpop.permute.xlu0 %2965
        %2967 = vrot.lane.b32.xlu0 %v2938, 52
        %v2968 = vpop.permute.xlu0 %2967
        %2969 = vrot.lane.b32.xlu0 %v2939, 52
        %v2970 = vpop.permute.xlu0 %2969
        %2971 = vrot.lane.b32.xlu0 %v2940, 52
        %v2972 = vpop.permute.xlu0 %2971
        %2973 = vrot.lane.b32.xlu0 %v2941, 52
        %v2974 = vpop.permute.xlu0 %2973
        %2975 = vrot.lane.b32.xlu0 %v2942, 52
        %v2976 = vpop.permute.xlu0 %2975
        %2977 = vrot.lane.b32.xlu0 %v2943, 52
        %v2978 = vpop.permute.xlu0 %2977
        %2979 = vrot.lane.b32.xlu0 %v2944, 52
        %v2980 = vpop.permute.xlu0 %2979
        %vm2981 = vcmask 424960
        %v2982 = vsel %vm2981, %v2958, %v2960
        %v2983 = vsel %vm2981, %v2960, %v2962
        %v2984 = vsel %vm2981, %v2962, %v2964
        %v2985 = vsel %vm2981, %v2964, %v2966
        %v2986 = vsel %vm2981, %v2966, %v2968
        %v2987 = vsel %vm2981, %v2970, %v2972
        %v2988 = vsel %vm2981, %v2972, %v2974
        %v2989 = vsel %vm2981, %v2974, %v2976
        %v2990 = vsel %vm2981, %v2976, %v2978
        %v2991 = vsel %vm2981, %v2978, %v2980
        %3002 = vst [vmem:[#allocation3 + $0x190] sm:$0xff] %v2982
        %3003 = vst [vmem:[#allocation3 + $0x198] sm:$0xff] %v2983
        %3004 = vst [vmem:[#allocation3 + $0x1a0] sm:$0xff] %v2984
        %3005 = vst [vmem:[#allocation3 + $0x1a8] sm:$0xff] %v2985
        %3006 = vst [vmem:[#allocation3 + $0x1b0] sm:$0xff] %v2986
        %3007 = vst [vmem:[#allocation3 + $0x1b8] sm:$0xff] %v2987
        %3008 = vst [vmem:[#allocation3 + $0x1c0] sm:$0xff] %v2988
        %3009 = vst [vmem:[#allocation3 + $0x1c8] sm:$0xff] %v2989
        %3010 = vst [vmem:[#allocation3 + $0x1d0] sm:$0xff] %v2990
        %3011 = vst [vmem:[#allocation3 + $0x1d8] sm:$0xff] %v2991
        %v3012 = vld [vmem:[#allocation2 + $0x8] sm:$0xff]
        %v3013 = vld [vmem:[#allocation2 + $0x10] sm:$0xff]
        %v3014 = vld [vmem:[#allocation2 + $0x18] sm:$0xff]
        %v3015 = vld [vmem:[#allocation2 + $0x20] sm:$0xff]
        %v3016 = vld [vmem:[#allocation2 + $0x28] sm:$0xff]
        %v3017 = vld [vmem:[#allocation2 + $0x30] sm:$0xff]
        %v3018 = vld [vmem:[#allocation2 + $0x40] sm:$0xff]
        %v3019 = vld [vmem:[#allocation2 + $0x48] sm:$0xff]
        %v3020 = vld [vmem:[#allocation2 + $0x50] sm:$0xff]
        %v3021 = vld [vmem:[#allocation2 + $0x58] sm:$0xff]
        %v3022 = vld [vmem:[#allocation2 + $0x60] sm:$0xff]
        %v3023 = vld [vmem:[#allocation2 + $0x68] sm:$0xff]
        %3036 = vrot.lane.b32.xlu0 %v3012, 53
        %v3037 = vpop.permute.xlu0 %3036
        %3038 = vrot.lane.b32.xlu0 %v3013, 53
        %v3039 = vpop.permute.xlu0 %3038
        %3040 = vrot.lane.b32.xlu0 %v3014, 53
        %v3041 = vpop.permute.xlu0 %3040
        %3042 = vrot.lane.b32.xlu0 %v3015, 53
        %v3043 = vpop.permute.xlu0 %3042
        %3044 = vrot.lane.b32.xlu0 %v3016, 53
        %v3045 = vpop.permute.xlu0 %3044
        %3046 = vrot.lane.b32.xlu0 %v3017, 53
        %v3047 = vpop.permute.xlu0 %3046
        %3048 = vrot.lane.b32.xlu0 %v3018, 53
        %v3049 = vpop.permute.xlu0 %3048
        %3050 = vrot.lane.b32.xlu0 %v3019, 53
        %v3051 = vpop.permute.xlu0 %3050
        %3052 = vrot.lane.b32.xlu0 %v3020, 53
        %v3053 = vpop.permute.xlu0 %3052
        %3054 = vrot.lane.b32.xlu0 %v3021, 53
        %v3055 = vpop.permute.xlu0 %3054
        %3056 = vrot.lane.b32.xlu0 %v3022, 53
        %v3057 = vpop.permute.xlu0 %3056
        %3058 = vrot.lane.b32.xlu0 %v3023, 53
        %v3059 = vpop.permute.xlu0 %3058
        %vm3060 = vcmask 433152
        %v3061 = vsel %vm3060, %v3037, %v3039
        %v3062 = vsel %vm3060, %v3039, %v3041
        %v3063 = vsel %vm3060, %v3041, %v3043
        %v3064 = vsel %vm3060, %v3043, %v3045
        %v3065 = vsel %vm3060, %v3045, %v3047
        %v3066 = vsel %vm3060, %v3049, %v3051
        %v3067 = vsel %vm3060, %v3051, %v3053
        %v3068 = vsel %vm3060, %v3053, %v3055
        %v3069 = vsel %vm3060, %v3055, %v3057
        %v3070 = vsel %vm3060, %v3057, %v3059
        %3081 = vst [vmem:[#allocation3 + $0x1e0] sm:$0xff] %v3061
        %3082 = vst [vmem:[#allocation3 + $0x1e8] sm:$0xff] %v3062
        %3083 = vst [vmem:[#allocation3 + $0x1f0] sm:$0xff] %v3063
        %3084 = vst [vmem:[#allocation3 + $0x1f8] sm:$0xff] %v3064
        %3085 = vst [vmem:[#allocation3 + $0x200] sm:$0xff] %v3065
        %3086 = vst [vmem:[#allocation3 + $0x208] sm:$0xff] %v3066
        %3087 = vst [vmem:[#allocation3 + $0x210] sm:$0xff] %v3067
        %3088 = vst [vmem:[#allocation3 + $0x218] sm:$0xff] %v3068
        %3089 = vst [vmem:[#allocation3 + $0x220] sm:$0xff] %v3069
        %3090 = vst [vmem:[#allocation3 + $0x228] sm:$0xff] %v3070
        %v3091 = vld [vmem:[#allocation2 + $0x8] sm:$0xff]
        %v3092 = vld [vmem:[#allocation2 + $0x10] sm:$0xff]
        %v3093 = vld [vmem:[#allocation2 + $0x18] sm:$0xff]
        %v3094 = vld [vmem:[#allocation2 + $0x20] sm:$0xff]
        %v3095 = vld [vmem:[#allocation2 + $0x28] sm:$0xff]
        %v3096 = vld [vmem:[#allocation2 + $0x30] sm:$0xff]
        %v3097 = vld [vmem:[#allocation2 + $0x40] sm:$0xff]
        %v3098 = vld [vmem:[#allocation2 + $0x48] sm:$0xff]
        %v3099 = vld [vmem:[#allocation2 + $0x50] sm:$0xff]
        %v3100 = vld [vmem:[#allocation2 + $0x58] sm:$0xff]
        %v3101 = vld [vmem:[#allocation2 + $0x60] sm:$0xff]
        %v3102 = vld [vmem:[#allocation2 + $0x68] sm:$0xff]
        %3115 = vrot.lane.b32.xlu0 %v3091, 54
        %v3116 = vpop.permute.xlu0 %3115
        %3117 = vrot.lane.b32.xlu0 %v3092, 54
        %v3118 = vpop.permute.xlu0 %3117
        %3119 = vrot.lane.b32.xlu0 %v3093, 54
        %v3120 = vpop.permute.xlu0 %3119
        %3121 = vrot.lane.b32.xlu0 %v3094, 54
        %v3122 = vpop.permute.xlu0 %3121
        %3123 = vrot.lane.b32.xlu0 %v3095, 54
        %v3124 = vpop.permute.xlu0 %3123
        %3125 = vrot.lane.b32.xlu0 %v3096, 54
        %v3126 = vpop.permute.xlu0 %3125
        %3127 = vrot.lane.b32.xlu0 %v3097, 54
        %v3128 = vpop.permute.xlu0 %3127
        %3129 = vrot.lane.b32.xlu0 %v3098, 54
        %v3130 = vpop.permute.xlu0 %3129
        %3131 = vrot.lane.b32.xlu0 %v3099, 54
        %v3132 = vpop.permute.xlu0 %3131
        %3133 = vrot.lane.b32.xlu0 %v3100, 54
        %v3134 = vpop.permute.xlu0 %3133
        %3135 = vrot.lane.b32.xlu0 %v3101, 54
        %v3136 = vpop.permute.xlu0 %3135
        %3137 = vrot.lane.b32.xlu0 %v3102, 54
        %v3138 = vpop.permute.xlu0 %3137
        %vm3139 = vcmask 441344
        %v3140 = vsel %vm3139, %v3116, %v3118
        %v3141 = vsel %vm3139, %v3118, %v3120
        %v3142 = vsel %vm3139, %v3120, %v3122
        %v3143 = vsel %vm3139, %v3122, %v3124
        %v3144 = vsel %vm3139, %v3124, %v3126
        %v3145 = vsel %vm3139, %v3128, %v3130
        %v3146 = vsel %vm3139, %v3130, %v3132
        %v3147 = vsel %vm3139, %v3132, %v3134
        %v3148 = vsel %vm3139, %v3134, %v3136
        %v3149 = vsel %vm3139, %v3136, %v3138
        %3160 = vst [vmem:[#allocation3 + $0x230] sm:$0xff] %v3140
        %3161 = vst [vmem:[#allocation3 + $0x238] sm:$0xff] %v3141
        %3162 = vst [vmem:[#allocation3 + $0x240] sm:$0xff] %v3142
        %3163 = vst [vmem:[#allocation3 + $0x248] sm:$0xff] %v3143
        %3164 = vst [vmem:[#allocation3 + $0x250] sm:$0xff] %v3144
        %3165 = vst [vmem:[#allocation3 + $0x258] sm:$0xff] %v3145
        %3166 = vst [vmem:[#allocation3 + $0x260] sm:$0xff] %v3146
        %3167 = vst [vmem:[#allocation3 + $0x268] sm:$0xff] %v3147
        %3168 = vst [vmem:[#allocation3 + $0x270] sm:$0xff] %v3148
        %3169 = vst [vmem:[#allocation3 + $0x278] sm:$0xff] %v3149
        %v3170 = vld [vmem:[#allocation2 + $0x8] sm:$0xff]
        %v3171 = vld [vmem:[#allocation2 + $0x10] sm:$0xff]
        %v3172 = vld [vmem:[#allocation2 + $0x18] sm:$0xff]
        %v3173 = vld [vmem:[#allocation2 + $0x20] sm:$0xff]
        %v3174 = vld [vmem:[#allocation2 + $0x28] sm:$0xff]
        %v3175 = vld [vmem:[#allocation2 + $0x30] sm:$0xff]
        %v3176 = vld [vmem:[#allocation2 + $0x40] sm:$0xff]
        %v3177 = vld [vmem:[#allocation2 + $0x48] sm:$0xff]
        %v3178 = vld [vmem:[#allocation2 + $0x50] sm:$0xff]
        %v3179 = vld [vmem:[#allocation2 + $0x58] sm:$0xff]
        %v3180 = vld [vmem:[#allocation2 + $0x60] sm:$0xff]
        %v3181 = vld [vmem:[#allocation2 + $0x68] sm:$0xff]
        %3194 = vrot.lane.b32.xlu0 %v3170, 55
        %v3195 = vpop.permute.xlu0 %3194
        %3196 = vrot.lane.b32.xlu0 %v3171, 55
        %v3197 = vpop.permute.xlu0 %3196
        %3198 = vrot.lane.b32.xlu0 %v3172, 55
        %v3199 = vpop.permute.xlu0 %3198
        %3200 = vrot.lane.b32.xlu0 %v3173, 55
        %v3201 = vpop.permute.xlu0 %3200
        %3202 = vrot.lane.b32.xlu0 %v3174, 55
        %v3203 = vpop.permute.xlu0 %3202
        %3204 = vrot.lane.b32.xlu0 %v3175, 55
        %v3205 = vpop.permute.xlu0 %3204
        %3206 = vrot.lane.b32.xlu0 %v3176, 55
        %v3207 = vpop.permute.xlu0 %3206
        %3208 = vrot.lane.b32.xlu0 %v3177, 55
        %v3209 = vpop.permute.xlu0 %3208
        %3210 = vrot.lane.b32.xlu0 %v3178, 55
        %v3211 = vpop.permute.xlu0 %3210
        %3212 = vrot.lane.b32.xlu0 %v3179, 55
        %v3213 = vpop.permute.xlu0 %3212
        %3214 = vrot.lane.b32.xlu0 %v3180, 55
        %v3215 = vpop.permute.xlu0 %3214
        %3216 = vrot.lane.b32.xlu0 %v3181, 55
        %v3217 = vpop.permute.xlu0 %3216
        %vm3218 = vcmask 449536
        %v3219 = vsel %vm3218, %v3195, %v3197
        %v3220 = vsel %vm3218, %v3197, %v3199
        %v3221 = vsel %vm3218, %v3199, %v3201
        %v3222 = vsel %vm3218, %v3201, %v3203
        %v3223 = vsel %vm3218, %v3203, %v3205
        %v3224 = vsel %vm3218, %v3207, %v3209
        %v3225 = vsel %vm3218, %v3209, %v3211
        %v3226 = vsel %vm3218, %v3211, %v3213
        %v3227 = vsel %vm3218, %v3213, %v3215
        %v3228 = vsel %vm3218, %v3215, %v3217
        %3239 = vst [vmem:[#allocation3 + $0x280] sm:$0xff] %v3219
        %3240 = vst [vmem:[#allocation3 + $0x288] sm:$0xff] %v3220
        %3241 = vst [vmem:[#allocation3 + $0x290] sm:$0xff] %v3221
        %3242 = vst [vmem:[#allocation3 + $0x298] sm:$0xff] %v3222
        %3243 = vst [vmem:[#allocation3 + $0x2a0] sm:$0xff] %v3223
        %3244 = vst [vmem:[#allocation3 + $0x2a8] sm:$0xff] %v3224
        %3245 = vst [vmem:[#allocation3 + $0x2b0] sm:$0xff] %v3225
        %3246 = vst [vmem:[#allocation3 + $0x2b8] sm:$0xff] %v3226
        %3247 = vst [vmem:[#allocation3 + $0x2c0] sm:$0xff] %v3227
        %3248 = vst [vmem:[#allocation3 + $0x2c8] sm:$0xff] %v3228
        %v3249 = vld [vmem:[#allocation2 + $0x8] sm:$0xff]
        %v3250 = vld [vmem:[#allocation2 + $0x10] sm:$0xff]
        %v3251 = vld [vmem:[#allocation2 + $0x18] sm:$0xff]
        %v3252 = vld [vmem:[#allocation2 + $0x20] sm:$0xff]
        %v3253 = vld [vmem:[#allocation2 + $0x28] sm:$0xff]
        %v3254 = vld [vmem:[#allocation2 + $0x30] sm:$0xff]
        %v3255 = vld [vmem:[#allocation2 + $0x40] sm:$0xff]
        %v3256 = vld [vmem:[#allocation2 + $0x48] sm:$0xff]
        %v3257 = vld [vmem:[#allocation2 + $0x50] sm:$0xff]
        %v3258 = vld [vmem:[#allocation2 + $0x58] sm:$0xff]
        %v3259 = vld [vmem:[#allocation2 + $0x60] sm:$0xff]
        %v3260 = vld [vmem:[#allocation2 + $0x68] sm:$0xff]
        %3273 = vrot.lane.b32.xlu0 %v3249, 56
        %v3274 = vpop.permute.xlu0 %3273
        %3275 = vrot.lane.b32.xlu0 %v3250, 56
        %v3276 = vpop.permute.xlu0 %3275
        %3277 = vrot.lane.b32.xlu0 %v3251, 56
        %v3278 = vpop.permute.xlu0 %3277
        %3279 = vrot.lane.b32.xlu0 %v3252, 56
        %v3280 = vpop.permute.xlu0 %3279
        %3281 = vrot.lane.b32.xlu0 %v3253, 56
        %v3282 = vpop.permute.xlu0 %3281
        %3283 = vrot.lane.b32.xlu0 %v3254, 56
        %v3284 = vpop.permute.xlu0 %3283
        %3285 = vrot.lane.b32.xlu0 %v3255, 56
        %v3286 = vpop.permute.xlu0 %3285
        %3287 = vrot.lane.b32.xlu0 %v3256, 56
        %v3288 = vpop.permute.xlu0 %3287
        %3289 = vrot.lane.b32.xlu0 %v3257, 56
        %v3290 = vpop.permute.xlu0 %3289
        %3291 = vrot.lane.b32.xlu0 %v3258, 56
        %v3292 = vpop.permute.xlu0 %3291
        %3293 = vrot.lane.b32.xlu0 %v3259, 56
        %v3294 = vpop.permute.xlu0 %3293
        %3295 = vrot.lane.b32.xlu0 %v3260, 56
        %v3296 = vpop.permute.xlu0 %3295
        %vm3297 = vcmask 457728
        %v3298 = vsel %vm3297, %v3274, %v3276
        %v3299 = vsel %vm3297, %v3276, %v3278
        %v3300 = vsel %vm3297, %v3278, %v3280
        %v3301 = vsel %vm3297, %v3280, %v3282
        %v3302 = vsel %vm3297, %v3282, %v3284
        %v3303 = vsel %vm3297, %v3286, %v3288
        %v3304 = vsel %vm3297, %v3288, %v3290
        %v3305 = vsel %vm3297, %v3290, %v3292
        %v3306 = vsel %vm3297, %v3292, %v3294
        %v3307 = vsel %vm3297, %v3294, %v3296
        %3318 = vst [vmem:[#allocation3 + $0x2d0] sm:$0xff] %v3298
        %3319 = vst [vmem:[#allocation3 + $0x2d8] sm:$0xff] %v3299
        %3320 = vst [vmem:[#allocation3 + $0x2e0] sm:$0xff] %v3300
        %3321 = vst [vmem:[#allocation3 + $0x2e8] sm:$0xff] %v3301
        %3322 = vst [vmem:[#allocation3 + $0x2f0] sm:$0xff] %v3302
        %3323 = vst [vmem:[#allocation3 + $0x2f8] sm:$0xff] %v3303
        %3324 = vst [vmem:[#allocation3 + $0x300] sm:$0xff] %v3304
        %3325 = vst [vmem:[#allocation3 + $0x308] sm:$0xff] %v3305
        %3326 = vst [vmem:[#allocation3 + $0x310] sm:$0xff] %v3306
        %3327 = vst [vmem:[#allocation3 + $0x318] sm:$0xff] %v3307
        %v3328 = vld [vmem:[#allocation2 + $0x8] sm:$0xff]
        %v3329 = vld [vmem:[#allocation2 + $0x10] sm:$0xff]
        %v3330 = vld [vmem:[#allocation2 + $0x18] sm:$0xff]
        %v3331 = vld [vmem:[#allocation2 + $0x20] sm:$0xff]
        %v3332 = vld [vmem:[#allocation2 + $0x28] sm:$0xff]
        %v3333 = vld [vmem:[#allocation2 + $0x30] sm:$0xff]
        %v3334 = vld [vmem:[#allocation2 + $0x40] sm:$0xff]
        %v3335 = vld [vmem:[#allocation2 + $0x48] sm:$0xff]
        %v3336 = vld [vmem:[#allocation2 + $0x50] sm:$0xff]
        %v3337 = vld [vmem:[#allocation2 + $0x58] sm:$0xff]
        %v3338 = vld [vmem:[#allocation2 + $0x60] sm:$0xff]
        %v3339 = vld [vmem:[#allocation2 + $0x68] sm:$0xff]
        %3352 = vrot.lane.b32.xlu0 %v3328, 76
        %v3353 = vpop.permute.xlu0 %3352
        %3354 = vrot.lane.b32.xlu0 %v3329, 76
        %v3355 = vpop.permute.xlu0 %3354
        %3356 = vrot.lane.b32.xlu0 %v3330, 76
        %v3357 = vpop.permute.xlu0 %3356
        %3358 = vrot.lane.b32.xlu0 %v3331, 76
        %v3359 = vpop.permute.xlu0 %3358
        %3360 = vrot.lane.b32.xlu0 %v3332, 76
        %v3361 = vpop.permute.xlu0 %3360
        %3362 = vrot.lane.b32.xlu0 %v3333, 76
        %v3363 = vpop.permute.xlu0 %3362
        %3364 = vrot.lane.b32.xlu0 %v3334, 76
        %v3365 = vpop.permute.xlu0 %3364
        %3366 = vrot.lane.b32.xlu0 %v3335, 76
        %v3367 = vpop.permute.xlu0 %3366
        %3368 = vrot.lane.b32.xlu0 %v3336, 76
        %v3369 = vpop.permute.xlu0 %3368
        %3370 = vrot.lane.b32.xlu0 %v3337, 76
        %v3371 = vpop.permute.xlu0 %3370
        %3372 = vrot.lane.b32.xlu0 %v3338, 76
        %v3373 = vpop.permute.xlu0 %3372
        %3374 = vrot.lane.b32.xlu0 %v3339, 76
        %v3375 = vpop.permute.xlu0 %3374
        %vm3376 = vcmask 621568
        %v3377 = vsel %vm3376, %v3353, %v3355
        %v3378 = vsel %vm3376, %v3355, %v3357
        %v3379 = vsel %vm3376, %v3357, %v3359
        %v3380 = vsel %vm3376, %v3359, %v3361
        %v3381 = vsel %vm3376, %v3361, %v3363
        %v3382 = vsel %vm3376, %v3365, %v3367
        %v3383 = vsel %vm3376, %v3367, %v3369
        %v3384 = vsel %vm3376, %v3369, %v3371
        %v3385 = vsel %vm3376, %v3371, %v3373
        %v3386 = vsel %vm3376, %v3373, %v3375
        %3397 = vst [vmem:[#allocation3 + $0x320] sm:$0xff] %v3377
        %3398 = vst [vmem:[#allocation3 + $0x328] sm:$0xff] %v3378
        %3399 = vst [vmem:[#allocation3 + $0x330] sm:$0xff] %v3379
        %3400 = vst [vmem:[#allocation3 + $0x338] sm:$0xff] %v3380
        %3401 = vst [vmem:[#allocation3 + $0x340] sm:$0xff] %v3381
        %3402 = vst [vmem:[#allocation3 + $0x348] sm:$0xff] %v3382
        %3403 = vst [vmem:[#allocation3 + $0x350] sm:$0xff] %v3383
        %3404 = vst [vmem:[#allocation3 + $0x358] sm:$0xff] %v3384
        %3405 = vst [vmem:[#allocation3 + $0x360] sm:$0xff] %v3385
        %3406 = vst [vmem:[#allocation3 + $0x368] sm:$0xff] %v3386
        %v3407 = vld [vmem:[#allocation2 + $0x8] sm:$0xff]
        %v3408 = vld [vmem:[#allocation2 + $0x10] sm:$0xff]
        %v3409 = vld [vmem:[#allocation2 + $0x18] sm:$0xff]
        %v3410 = vld [vmem:[#allocation2 + $0x20] sm:$0xff]
        %v3411 = vld [vmem:[#allocation2 + $0x28] sm:$0xff]
        %v3412 = vld [vmem:[#allocation2 + $0x30] sm:$0xff]
        %v3413 = vld [vmem:[#allocation2 + $0x40] sm:$0xff]
        %v3414 = vld [vmem:[#allocation2 + $0x48] sm:$0xff]
        %v3415 = vld [vmem:[#allocation2 + $0x50] sm:$0xff]
        %v3416 = vld [vmem:[#allocation2 + $0x58] sm:$0xff]
        %v3417 = vld [vmem:[#allocation2 + $0x60] sm:$0xff]
        %v3418 = vld [vmem:[#allocation2 + $0x68] sm:$0xff]
        %3431 = vrot.lane.b32.xlu0 %v3407, 77
        %v3432 = vpop.permute.xlu0 %3431
        %3433 = vrot.lane.b32.xlu0 %v3408, 77
        %v3434 = vpop.permute.xlu0 %3433
        %3435 = vrot.lane.b32.xlu0 %v3409, 77
        %v3436 = vpop.permute.xlu0 %3435
        %3437 = vrot.lane.b32.xlu0 %v3410, 77
        %v3438 = vpop.permute.xlu0 %3437
        %3439 = vrot.lane.b32.xlu0 %v3411, 77
        %v3440 = vpop.permute.xlu0 %3439
        %3441 = vrot.lane.b32.xlu0 %v3412, 77
        %v3442 = vpop.permute.xlu0 %3441
        %3443 = vrot.lane.b32.xlu0 %v3413, 77
        %v3444 = vpop.permute.xlu0 %3443
        %3445 = vrot.lane.b32.xlu0 %v3414, 77
        %v3446 = vpop.permute.xlu0 %3445
        %3447 = vrot.lane.b32.xlu0 %v3415, 77
        %v3448 = vpop.permute.xlu0 %3447
        %3449 = vrot.lane.b32.xlu0 %v3416, 77
        %v3450 = vpop.permute.xlu0 %3449
        %3451 = vrot.lane.b32.xlu0 %v3417, 77
        %v3452 = vpop.permute.xlu0 %3451
        %3453 = vrot.lane.b32.xlu0 %v3418, 77
        %v3454 = vpop.permute.xlu0 %3453
        %vm3455 = vcmask 629760
        %v3456 = vsel %vm3455, %v3432, %v3434
        %v3457 = vsel %vm3455, %v3434, %v3436
        %v3458 = vsel %vm3455, %v3436, %v3438
        %v3459 = vsel %vm3455, %v3438, %v3440
        %v3460 = vsel %vm3455, %v3440, %v3442
        %v3461 = vsel %vm3455, %v3444, %v3446
        %v3462 = vsel %vm3455, %v3446, %v3448
        %v3463 = vsel %vm3455, %v3448, %v3450
        %v3464 = vsel %vm3455, %v3450, %v3452
        %v3465 = vsel %vm3455, %v3452, %v3454
        %3476 = vst [vmem:[#allocation3 + $0x370] sm:$0xff] %v3456
        %3477 = vst [vmem:[#allocation3 + $0x378] sm:$0xff] %v3457
        %3478 = vst [vmem:[#allocation3 + $0x380] sm:$0xff] %v3458
        %3479 = vst [vmem:[#allocation3 + $0x388] sm:$0xff] %v3459
        %3480 = vst [vmem:[#allocation3 + $0x390] sm:$0xff] %v3460
        %3481 = vst [vmem:[#allocation3 + $0x398] sm:$0xff] %v3461
        %3482 = vst [vmem:[#allocation3 + $0x3a0] sm:$0xff] %v3462
        %3483 = vst [vmem:[#allocation3 + $0x3a8] sm:$0xff] %v3463
        %3484 = vst [vmem:[#allocation3 + $0x3b0] sm:$0xff] %v3464
        %3485 = vst [vmem:[#allocation3 + $0x3b8] sm:$0xff] %v3465
        %v3486 = vld [vmem:[#allocation2 + $0x8] sm:$0xff]
        %v3487 = vld [vmem:[#allocation2 + $0x10] sm:$0xff]
        %v3488 = vld [vmem:[#allocation2 + $0x18] sm:$0xff]
        %v3489 = vld [vmem:[#allocation2 + $0x20] sm:$0xff]
        %v3490 = vld [vmem:[#allocation2 + $0x28] sm:$0xff]
        %v3491 = vld [vmem:[#allocation2 + $0x30] sm:$0xff]
        %v3492 = vld [vmem:[#allocation2 + $0x40] sm:$0xff]
        %v3493 = vld [vmem:[#allocation2 + $0x48] sm:$0xff]
        %v3494 = vld [vmem:[#allocation2 + $0x50] sm:$0xff]
        %v3495 = vld [vmem:[#allocation2 + $0x58] sm:$0xff]
        %v3496 = vld [vmem:[#allocation2 + $0x60] sm:$0xff]
        %v3497 = vld [vmem:[#allocation2 + $0x68] sm:$0xff]
        %3510 = vrot.lane.b32.xlu0 %v3486, 78
        %v3511 = vpop.permute.xlu0 %3510
        %3512 = vrot.lane.b32.xlu0 %v3487, 78
        %v3513 = vpop.permute.xlu0 %3512
        %3514 = vrot.lane.b32.xlu0 %v3488, 78
        %v3515 = vpop.permute.xlu0 %3514
        %3516 = vrot.lane.b32.xlu0 %v3489, 78
        %v3517 = vpop.permute.xlu0 %3516
        %3518 = vrot.lane.b32.xlu0 %v3490, 78
        %v3519 = vpop.permute.xlu0 %3518
        %3520 = vrot.lane.b32.xlu0 %v3491, 78
        %v3521 = vpop.permute.xlu0 %3520
        %3522 = vrot.lane.b32.xlu0 %v3492, 78
        %v3523 = vpop.permute.xlu0 %3522
        %3524 = vrot.lane.b32.xlu0 %v3493, 78
        %v3525 = vpop.permute.xlu0 %3524
        %3526 = vrot.lane.b32.xlu0 %v3494, 78
        %v3527 = vpop.permute.xlu0 %3526
        %3528 = vrot.lane.b32.xlu0 %v3495, 78
        %v3529 = vpop.permute.xlu0 %3528
        %3530 = vrot.lane.b32.xlu0 %v3496, 78
        %v3531 = vpop.permute.xlu0 %3530
        %3532 = vrot.lane.b32.xlu0 %v3497, 78
        %v3533 = vpop.permute.xlu0 %3532
        %v3534 = vsel %vm445, %v3511, %v3513
        %v3535 = vsel %vm445, %v3513, %v3515
        %v3536 = vsel %vm445, %v3515, %v3517
        %v3537 = vsel %vm445, %v3517, %v3519
        %v3538 = vsel %vm445, %v3519, %v3521
        %v3539 = vsel %vm445, %v3523, %v3525
        %v3540 = vsel %vm445, %v3525, %v3527
        %v3541 = vsel %vm445, %v3527, %v3529
        %v3542 = vsel %vm445, %v3529, %v3531
        %v3543 = vsel %vm445, %v3531, %v3533
        %3554 = vst [vmem:[#allocation3 + $0x3c0] sm:$0xff] %v3534
        %3555 = vst [vmem:[#allocation3 + $0x3c8] sm:$0xff] %v3535
        %3556 = vst [vmem:[#allocation3 + $0x3d0] sm:$0xff] %v3536
        %3557 = vst [vmem:[#allocation3 + $0x3d8] sm:$0xff] %v3537
        %3558 = vst [vmem:[#allocation3 + $0x3e0] sm:$0xff] %v3538
        %3559 = vst [vmem:[#allocation3 + $0x3e8] sm:$0xff] %v3539
        %3560 = vst [vmem:[#allocation3 + $0x3f0] sm:$0xff] %v3540
        %3561 = vst [vmem:[#allocation3 + $0x3f8] sm:$0xff] %v3541
        %3562 = vst [vmem:[#allocation3 + $0x400] sm:$0xff] %v3542
        %3563 = vst [vmem:[#allocation3 + $0x408] sm:$0xff] %v3543
        %v3564 = vld [vmem:[#allocation2 + $0x8] sm:$0xff]
        %v3565 = vld [vmem:[#allocation2 + $0x10] sm:$0xff]
        %v3566 = vld [vmem:[#allocation2 + $0x18] sm:$0xff]
        %v3567 = vld [vmem:[#allocation2 + $0x20] sm:$0xff]
        %v3568 = vld [vmem:[#allocation2 + $0x28] sm:$0xff]
        %v3569 = vld [vmem:[#allocation2 + $0x30] sm:$0xff]
        %v3570 = vld [vmem:[#allocation2 + $0x40] sm:$0xff]
        %v3571 = vld [vmem:[#allocation2 + $0x48] sm:$0xff]
        %v3572 = vld [vmem:[#allocation2 + $0x50] sm:$0xff]
        %v3573 = vld [vmem:[#allocation2 + $0x58] sm:$0xff]
        %v3574 = vld [vmem:[#allocation2 + $0x60] sm:$0xff]
        %v3575 = vld [vmem:[#allocation2 + $0x68] sm:$0xff]
        %3588 = vrot.lane.b32.xlu0 %v3564, 79
        %v3589 = vpop.permute.xlu0 %3588
        %3590 = vrot.lane.b32.xlu0 %v3565, 79
        %v3591 = vpop.permute.xlu0 %3590
        %3592 = vrot.lane.b32.xlu0 %v3566, 79
        %v3593 = vpop.permute.xlu0 %3592
        %3594 = vrot.lane.b32.xlu0 %v3567, 79
        %v3595 = vpop.permute.xlu0 %3594
        %3596 = vrot.lane.b32.xlu0 %v3568, 79
        %v3597 = vpop.permute.xlu0 %3596
        %3598 = vrot.lane.b32.xlu0 %v3569, 79
        %v3599 = vpop.permute.xlu0 %3598
        %3600 = vrot.lane.b32.xlu0 %v3570, 79
        %v3601 = vpop.permute.xlu0 %3600
        %3602 = vrot.lane.b32.xlu0 %v3571, 79
        %v3603 = vpop.permute.xlu0 %3602
        %3604 = vrot.lane.b32.xlu0 %v3572, 79
        %v3605 = vpop.permute.xlu0 %3604
        %3606 = vrot.lane.b32.xlu0 %v3573, 79
        %v3607 = vpop.permute.xlu0 %3606
        %3608 = vrot.lane.b32.xlu0 %v3574, 79
        %v3609 = vpop.permute.xlu0 %3608
        %3610 = vrot.lane.b32.xlu0 %v3575, 79
        %v3611 = vpop.permute.xlu0 %3610
        %v3612 = vsel %vm435, %v3589, %v3591
        %v3613 = vsel %vm435, %v3591, %v3593
        %v3614 = vsel %vm435, %v3593, %v3595
        %v3615 = vsel %vm435, %v3595, %v3597
        %v3616 = vsel %vm435, %v3597, %v3599
        %v3617 = vsel %vm435, %v3601, %v3603
        %v3618 = vsel %vm435, %v3603, %v3605
        %v3619 = vsel %vm435, %v3605, %v3607
        %v3620 = vsel %vm435, %v3607, %v3609
        %v3621 = vsel %vm435, %v3609, %v3611
        %3632 = vst [vmem:[#allocation3 + $0x410] sm:$0xff] %v3612
        %3633 = vst [vmem:[#allocation3 + $0x418] sm:$0xff] %v3613
        %3634 = vst [vmem:[#allocation3 + $0x420] sm:$0xff] %v3614
        %3635 = vst [vmem:[#allocation3 + $0x428] sm:$0xff] %v3615
        %3636 = vst [vmem:[#allocation3 + $0x430] sm:$0xff] %v3616
        %3637 = vst [vmem:[#allocation3 + $0x438] sm:$0xff] %v3617
        %3638 = vst [vmem:[#allocation3 + $0x440] sm:$0xff] %v3618
        %3639 = vst [vmem:[#allocation3 + $0x448] sm:$0xff] %v3619
        %3640 = vst [vmem:[#allocation3 + $0x450] sm:$0xff] %v3620
        %3641 = vst [vmem:[#allocation3 + $0x458] sm:$0xff] %v3621
        %v3642 = vld [vmem:[#allocation2 + $0x8] sm:$0xff]
        %v3643 = vld [vmem:[#allocation2 + $0x10] sm:$0xff]
        %v3644 = vld [vmem:[#allocation2 + $0x18] sm:$0xff]
        %v3645 = vld [vmem:[#allocation2 + $0x20] sm:$0xff]
        %v3646 = vld [vmem:[#allocation2 + $0x28] sm:$0xff]
        %v3647 = vld [vmem:[#allocation2 + $0x30] sm:$0xff]
        %v3648 = vld [vmem:[#allocation2 + $0x40] sm:$0xff]
        %v3649 = vld [vmem:[#allocation2 + $0x48] sm:$0xff]
        %v3650 = vld [vmem:[#allocation2 + $0x50] sm:$0xff]
        %v3651 = vld [vmem:[#allocation2 + $0x58] sm:$0xff]
        %v3652 = vld [vmem:[#allocation2 + $0x60] sm:$0xff]
        %v3653 = vld [vmem:[#allocation2 + $0x68] sm:$0xff]
        %3666 = vrot.lane.b32.xlu0 %v3642, 80
        %v3667 = vpop.permute.xlu0 %3666
        %3668 = vrot.lane.b32.xlu0 %v3643, 80
        %v3669 = vpop.permute.xlu0 %3668
        %3670 = vrot.lane.b32.xlu0 %v3644, 80
        %v3671 = vpop.permute.xlu0 %3670
        %3672 = vrot.lane.b32.xlu0 %v3645, 80
        %v3673 = vpop.permute.xlu0 %3672
        %3674 = vrot.lane.b32.xlu0 %v3646, 80
        %v3675 = vpop.permute.xlu0 %3674
        %3676 = vrot.lane.b32.xlu0 %v3647, 80
        %v3677 = vpop.permute.xlu0 %3676
        %3678 = vrot.lane.b32.xlu0 %v3648, 80
        %v3679 = vpop.permute.xlu0 %3678
        %3680 = vrot.lane.b32.xlu0 %v3649, 80
        %v3681 = vpop.permute.xlu0 %3680
        %3682 = vrot.lane.b32.xlu0 %v3650, 80
        %v3683 = vpop.permute.xlu0 %3682
        %3684 = vrot.lane.b32.xlu0 %v3651, 80
        %v3685 = vpop.permute.xlu0 %3684
        %3686 = vrot.lane.b32.xlu0 %v3652, 80
        %v3687 = vpop.permute.xlu0 %3686
        %3688 = vrot.lane.b32.xlu0 %v3653, 80
        %v3689 = vpop.permute.xlu0 %3688
        %v3690 = vsel %vm425, %v3667, %v3669
        %v3691 = vsel %vm425, %v3669, %v3671
        %v3692 = vsel %vm425, %v3671, %v3673
        %v3693 = vsel %vm425, %v3673, %v3675
        %v3694 = vsel %vm425, %v3675, %v3677
        %v3695 = vsel %vm425, %v3679, %v3681
        %v3696 = vsel %vm425, %v3681, %v3683
        %v3697 = vsel %vm425, %v3683, %v3685
        %v3698 = vsel %vm425, %v3685, %v3687
        %v3699 = vsel %vm425, %v3687, %v3689
        %3710 = vst [vmem:[#allocation3 + $0x460] sm:$0xff] %v3690
        %3711 = vst [vmem:[#allocation3 + $0x468] sm:$0xff] %v3691
        %3712 = vst [vmem:[#allocation3 + $0x470] sm:$0xff] %v3692
        %3713 = vst [vmem:[#allocation3 + $0x478] sm:$0xff] %v3693
        %3714 = vst [vmem:[#allocation3 + $0x480] sm:$0xff] %v3694
        %3715 = vst [vmem:[#allocation3 + $0x488] sm:$0xff] %v3695
        %3716 = vst [vmem:[#allocation3 + $0x490] sm:$0xff] %v3696
        %3717 = vst [vmem:[#allocation3 + $0x498] sm:$0xff] %v3697
        %3718 = vst [vmem:[#allocation3 + $0x4a0] sm:$0xff] %v3698
        %3719 = vst [vmem:[#allocation3 + $0x4a8] sm:$0xff] %v3699
        %v3720 = vld [vmem:[#allocation2 + $0x8] sm:$0xff]
        %v3721 = vld [vmem:[#allocation2 + $0x10] sm:$0xff]
        %v3722 = vld [vmem:[#allocation2 + $0x18] sm:$0xff]
        %v3723 = vld [vmem:[#allocation2 + $0x20] sm:$0xff]
        %v3724 = vld [vmem:[#allocation2 + $0x28] sm:$0xff]
        %v3725 = vld [vmem:[#allocation2 + $0x30] sm:$0xff]
        %v3726 = vld [vmem:[#allocation2 + $0x40] sm:$0xff]
        %v3727 = vld [vmem:[#allocation2 + $0x48] sm:$0xff]
        %v3728 = vld [vmem:[#allocation2 + $0x50] sm:$0xff]
        %v3729 = vld [vmem:[#allocation2 + $0x58] sm:$0xff]
        %v3730 = vld [vmem:[#allocation2 + $0x60] sm:$0xff]
        %v3731 = vld [vmem:[#allocation2 + $0x68] sm:$0xff]
        %3744 = vrot.lane.b32.xlu0 %v3720, 100
        %v3745 = vpop.permute.xlu0 %3744
        %3746 = vrot.lane.b32.xlu0 %v3721, 100
        %v3747 = vpop.permute.xlu0 %3746
        %3748 = vrot.lane.b32.xlu0 %v3722, 100
        %v3749 = vpop.permute.xlu0 %3748
        %3750 = vrot.lane.b32.xlu0 %v3723, 100
        %v3751 = vpop.permute.xlu0 %3750
        %3752 = vrot.lane.b32.xlu0 %v3724, 100
        %v3753 = vpop.permute.xlu0 %3752
        %3754 = vrot.lane.b32.xlu0 %v3725, 100
        %v3755 = vpop.permute.xlu0 %3754
        %3756 = vrot.lane.b32.xlu0 %v3726, 100
        %v3757 = vpop.permute.xlu0 %3756
        %3758 = vrot.lane.b32.xlu0 %v3727, 100
        %v3759 = vpop.permute.xlu0 %3758
        %3760 = vrot.lane.b32.xlu0 %v3728, 100
        %v3761 = vpop.permute.xlu0 %3760
        %3762 = vrot.lane.b32.xlu0 %v3729, 100
        %v3763 = vpop.permute.xlu0 %3762
        %3764 = vrot.lane.b32.xlu0 %v3730, 100
        %v3765 = vpop.permute.xlu0 %3764
        %3766 = vrot.lane.b32.xlu0 %v3731, 100
        %v3767 = vpop.permute.xlu0 %3766
        %vm3768 = vcmask 818176
        %v3769 = vsel %vm3768, %v3745, %v3747
        %v3770 = vsel %vm3768, %v3747, %v3749
        %v3771 = vsel %vm3768, %v3749, %v3751
        %v3772 = vsel %vm3768, %v3751, %v3753
        %v3773 = vsel %vm3768, %v3753, %v3755
        %v3774 = vsel %vm3768, %v3757, %v3759
        %v3775 = vsel %vm3768, %v3759, %v3761
        %v3776 = vsel %vm3768, %v3761, %v3763
        %v3777 = vsel %vm3768, %v3763, %v3765
        %v3778 = vsel %vm3768, %v3765, %v3767
        %3789 = vst [vmem:[#allocation3 + $0x4b0] sm:$0xff] %v3769
        %3790 = vst [vmem:[#allocation3 + $0x4b8] sm:$0xff] %v3770
        %3791 = vst [vmem:[#allocation3 + $0x4c0] sm:$0xff] %v3771
        %3792 = vst [vmem:[#allocation3 + $0x4c8] sm:$0xff] %v3772
        %3793 = vst [vmem:[#allocation3 + $0x4d0] sm:$0xff] %v3773
        %3794 = vst [vmem:[#allocation3 + $0x4d8] sm:$0xff] %v3774
        %3795 = vst [vmem:[#allocation3 + $0x4e0] sm:$0xff] %v3775
        %3796 = vst [vmem:[#allocation3 + $0x4e8] sm:$0xff] %v3776
        %3797 = vst [vmem:[#allocation3 + $0x4f0] sm:$0xff] %v3777
        %3798 = vst [vmem:[#allocation3 + $0x4f8] sm:$0xff] %v3778
        %v3799 = vld [vmem:[#allocation2 + $0x8] sm:$0xff]
        %v3800 = vld [vmem:[#allocation2 + $0x10] sm:$0xff]
        %v3801 = vld [vmem:[#allocation2 + $0x18] sm:$0xff]
        %v3802 = vld [vmem:[#allocation2 + $0x20] sm:$0xff]
        %v3803 = vld [vmem:[#allocation2 + $0x28] sm:$0xff]
        %v3804 = vld [vmem:[#allocation2 + $0x30] sm:$0xff]
        %v3805 = vld [vmem:[#allocation2 + $0x40] sm:$0xff]
        %v3806 = vld [vmem:[#allocation2 + $0x48] sm:$0xff]
        %v3807 = vld [vmem:[#allocation2 + $0x50] sm:$0xff]
        %v3808 = vld [vmem:[#allocation2 + $0x58] sm:$0xff]
        %v3809 = vld [vmem:[#allocation2 + $0x60] sm:$0xff]
        %v3810 = vld [vmem:[#allocation2 + $0x68] sm:$0xff]
        %3823 = vrot.lane.b32.xlu0 %v3799, 101
        %v3824 = vpop.permute.xlu0 %3823
        %3825 = vrot.lane.b32.xlu0 %v3800, 101
        %v3826 = vpop.permute.xlu0 %3825
        %3827 = vrot.lane.b32.xlu0 %v3801, 101
        %v3828 = vpop.permute.xlu0 %3827
        %3829 = vrot.lane.b32.xlu0 %v3802, 101
        %v3830 = vpop.permute.xlu0 %3829
        %3831 = vrot.lane.b32.xlu0 %v3803, 101
        %v3832 = vpop.permute.xlu0 %3831
        %3833 = vrot.lane.b32.xlu0 %v3804, 101
        %v3834 = vpop.permute.xlu0 %3833
        %3835 = vrot.lane.b32.xlu0 %v3805, 101
        %v3836 = vpop.permute.xlu0 %3835
        %3837 = vrot.lane.b32.xlu0 %v3806, 101
        %v3838 = vpop.permute.xlu0 %3837
        %3839 = vrot.lane.b32.xlu0 %v3807, 101
        %v3840 = vpop.permute.xlu0 %3839
        %3841 = vrot.lane.b32.xlu0 %v3808, 101
        %v3842 = vpop.permute.xlu0 %3841
        %3843 = vrot.lane.b32.xlu0 %v3809, 101
        %v3844 = vpop.permute.xlu0 %3843
        %3845 = vrot.lane.b32.xlu0 %v3810, 101
        %v3846 = vpop.permute.xlu0 %3845
        %vm3847 = vcmask 826368
        %v3848 = vsel %vm3847, %v3824, %v3826
        %v3849 = vsel %vm3847, %v3826, %v3828
        %v3850 = vsel %vm3847, %v3828, %v3830
        %v3851 = vsel %vm3847, %v3830, %v3832
        %v3852 = vsel %vm3847, %v3832, %v3834
        %v3853 = vsel %vm3847, %v3836, %v3838
        %v3854 = vsel %vm3847, %v3838, %v3840
        %v3855 = vsel %vm3847, %v3840, %v3842
        %v3856 = vsel %vm3847, %v3842, %v3844
        %v3857 = vsel %vm3847, %v3844, %v3846
        %3868 = vst [vmem:[#allocation3 + $0x500] sm:$0xff] %v3848
        %3869 = vst [vmem:[#allocation3 + $0x508] sm:$0xff] %v3849
        %3870 = vst [vmem:[#allocation3 + $0x510] sm:$0xff] %v3850
        %3871 = vst [vmem:[#allocation3 + $0x518] sm:$0xff] %v3851
        %3872 = vst [vmem:[#allocation3 + $0x520] sm:$0xff] %v3852
        %3873 = vst [vmem:[#allocation3 + $0x528] sm:$0xff] %v3853
        %3874 = vst [vmem:[#allocation3 + $0x530] sm:$0xff] %v3854
        %3875 = vst [vmem:[#allocation3 + $0x538] sm:$0xff] %v3855
        %3876 = vst [vmem:[#allocation3 + $0x540] sm:$0xff] %v3856
        %3877 = vst [vmem:[#allocation3 + $0x548] sm:$0xff] %v3857
        %v3878 = vld [vmem:[#allocation2 + $0x8] sm:$0xff]
        %v3879 = vld [vmem:[#allocation2 + $0x10] sm:$0xff]
        %v3880 = vld [vmem:[#allocation2 + $0x18] sm:$0xff]
        %v3881 = vld [vmem:[#allocation2 + $0x20] sm:$0xff]
        %v3882 = vld [vmem:[#allocation2 + $0x28] sm:$0xff]
        %v3883 = vld [vmem:[#allocation2 + $0x30] sm:$0xff]
        %v3884 = vld [vmem:[#allocation2 + $0x40] sm:$0xff]
        %v3885 = vld [vmem:[#allocation2 + $0x48] sm:$0xff]
        %v3886 = vld [vmem:[#allocation2 + $0x50] sm:$0xff]
        %v3887 = vld [vmem:[#allocation2 + $0x58] sm:$0xff]
        %v3888 = vld [vmem:[#allocation2 + $0x60] sm:$0xff]
        %v3889 = vld [vmem:[#allocation2 + $0x68] sm:$0xff]
        %3902 = vrot.lane.b32.xlu0 %v3878, 102
        %v3903 = vpop.permute.xlu0 %3902
        %3904 = vrot.lane.b32.xlu0 %v3879, 102
        %v3905 = vpop.permute.xlu0 %3904
        %3906 = vrot.lane.b32.xlu0 %v3880, 102
        %v3907 = vpop.permute.xlu0 %3906
        %3908 = vrot.lane.b32.xlu0 %v3881, 102
        %v3909 = vpop.permute.xlu0 %3908
        %3910 = vrot.lane.b32.xlu0 %v3882, 102
        %v3911 = vpop.permute.xlu0 %3910
        %3912 = vrot.lane.b32.xlu0 %v3883, 102
        %v3913 = vpop.permute.xlu0 %3912
        %3914 = vrot.lane.b32.xlu0 %v3884, 102
        %v3915 = vpop.permute.xlu0 %3914
        %3916 = vrot.lane.b32.xlu0 %v3885, 102
        %v3917 = vpop.permute.xlu0 %3916
        %3918 = vrot.lane.b32.xlu0 %v3886, 102
        %v3919 = vpop.permute.xlu0 %3918
        %3920 = vrot.lane.b32.xlu0 %v3887, 102
        %v3921 = vpop.permute.xlu0 %3920
        %3922 = vrot.lane.b32.xlu0 %v3888, 102
        %v3923 = vpop.permute.xlu0 %3922
        %3924 = vrot.lane.b32.xlu0 %v3889, 102
        %v3925 = vpop.permute.xlu0 %3924
        %v3926 = vsel %vm395, %v3903, %v3905
        %v3927 = vsel %vm395, %v3905, %v3907
        %v3928 = vsel %vm395, %v3907, %v3909
        %v3929 = vsel %vm395, %v3909, %v3911
        %v3930 = vsel %vm395, %v3911, %v3913
        %v3931 = vsel %vm395, %v3915, %v3917
        %v3932 = vsel %vm395, %v3917, %v3919
        %v3933 = vsel %vm395, %v3919, %v3921
        %v3934 = vsel %vm395, %v3921, %v3923
        %v3935 = vsel %vm395, %v3923, %v3925
        %3946 = vst [vmem:[#allocation3 + $0x550] sm:$0xff] %v3926
        %3947 = vst [vmem:[#allocation3 + $0x558] sm:$0xff] %v3927
        %3948 = vst [vmem:[#allocation3 + $0x560] sm:$0xff] %v3928
        %3949 = vst [vmem:[#allocation3 + $0x568] sm:$0xff] %v3929
        %3950 = vst [vmem:[#allocation3 + $0x570] sm:$0xff] %v3930
        %3951 = vst [vmem:[#allocation3 + $0x578] sm:$0xff] %v3931
        %3952 = vst [vmem:[#allocation3 + $0x580] sm:$0xff] %v3932
        %3953 = vst [vmem:[#allocation3 + $0x588] sm:$0xff] %v3933
        %3954 = vst [vmem:[#allocation3 + $0x590] sm:$0xff] %v3934
        %3955 = vst [vmem:[#allocation3 + $0x598] sm:$0xff] %v3935
        %v3956 = vld [vmem:[#allocation2 + $0x8] sm:$0xff]
        %v3957 = vld [vmem:[#allocation2 + $0x10] sm:$0xff]
        %v3958 = vld [vmem:[#allocation2 + $0x18] sm:$0xff]
        %v3959 = vld [vmem:[#allocation2 + $0x20] sm:$0xff]
        %v3960 = vld [vmem:[#allocation2 + $0x28] sm:$0xff]
        %v3961 = vld [vmem:[#allocation2 + $0x30] sm:$0xff]
        %v3962 = vld [vmem:[#allocation2 + $0x40] sm:$0xff]
        %v3963 = vld [vmem:[#allocation2 + $0x48] sm:$0xff]
        %v3964 = vld [vmem:[#allocation2 + $0x50] sm:$0xff]
        %v3965 = vld [vmem:[#allocation2 + $0x58] sm:$0xff]
        %v3966 = vld [vmem:[#allocation2 + $0x60] sm:$0xff]
        %v3967 = vld [vmem:[#allocation2 + $0x68] sm:$0xff]
        %3980 = vrot.lane.b32.xlu0 %v3956, 103
        %v3981 = vpop.permute.xlu0 %3980
        %3982 = vrot.lane.b32.xlu0 %v3957, 103
        %v3983 = vpop.permute.xlu0 %3982
        %3984 = vrot.lane.b32.xlu0 %v3958, 103
        %v3985 = vpop.permute.xlu0 %3984
        %3986 = vrot.lane.b32.xlu0 %v3959, 103
        %v3987 = vpop.permute.xlu0 %3986
        %3988 = vrot.lane.b32.xlu0 %v3960, 103
        %v3989 = vpop.permute.xlu0 %3988
        %3990 = vrot.lane.b32.xlu0 %v3961, 103
        %v3991 = vpop.permute.xlu0 %3990
        %3992 = vrot.lane.b32.xlu0 %v3962, 103
        %v3993 = vpop.permute.xlu0 %3992
        %3994 = vrot.lane.b32.xlu0 %v3963, 103
        %v3995 = vpop.permute.xlu0 %3994
        %3996 = vrot.lane.b32.xlu0 %v3964, 103
        %v3997 = vpop.permute.xlu0 %3996
        %3998 = vrot.lane.b32.xlu0 %v3965, 103
        %v3999 = vpop.permute.xlu0 %3998
        %4000 = vrot.lane.b32.xlu0 %v3966, 103
        %v4001 = vpop.permute.xlu0 %4000
        %4002 = vrot.lane.b32.xlu0 %v3967, 103
        %v4003 = vpop.permute.xlu0 %4002
        %v4004 = vsel %vm385, %v3981, %v3983
        %v4005 = vsel %vm385, %v3983, %v3985
        %v4006 = vsel %vm385, %v3985, %v3987
        %v4007 = vsel %vm385, %v3987, %v3989
        %v4008 = vsel %vm385, %v3989, %v3991
        %v4009 = vsel %vm385, %v3993, %v3995
        %v4010 = vsel %vm385, %v3995, %v3997
        %v4011 = vsel %vm385, %v3997, %v3999
        %v4012 = vsel %vm385, %v3999, %v4001
        %v4013 = vsel %vm385, %v4001, %v4003
        %4024 = vst [vmem:[#allocation3 + $0x5a0] sm:$0xff] %v4004
        %4025 = vst [vmem:[#allocation3 + $0x5a8] sm:$0xff] %v4005
        %4026 = vst [vmem:[#allocation3 + $0x5b0] sm:$0xff] %v4006
        %4027 = vst [vmem:[#allocation3 + $0x5b8] sm:$0xff] %v4007
        %4028 = vst [vmem:[#allocation3 + $0x5c0] sm:$0xff] %v4008
        %4029 = vst [vmem:[#allocation3 + $0x5c8] sm:$0xff] %v4009
        %4030 = vst [vmem:[#allocation3 + $0x5d0] sm:$0xff] %v4010
        %4031 = vst [vmem:[#allocation3 + $0x5d8] sm:$0xff] %v4011
        %4032 = vst [vmem:[#allocation3 + $0x5e0] sm:$0xff] %v4012
        %4033 = vst [vmem:[#allocation3 + $0x5e8] sm:$0xff] %v4013
        %v4034 = vld [vmem:[#allocation2 + $0x8] sm:$0xff]
        %v4035 = vld [vmem:[#allocation2 + $0x10] sm:$0xff]
        %v4036 = vld [vmem:[#allocation2 + $0x18] sm:$0xff]
        %v4037 = vld [vmem:[#allocation2 + $0x20] sm:$0xff]
        %v4038 = vld [vmem:[#allocation2 + $0x28] sm:$0xff]
        %v4039 = vld [vmem:[#allocation2 + $0x30] sm:$0xff]
        %v4040 = vld [vmem:[#allocation2 + $0x40] sm:$0xff]
        %v4041 = vld [vmem:[#allocation2 + $0x48] sm:$0xff]
        %v4042 = vld [vmem:[#allocation2 + $0x50] sm:$0xff]
        %v4043 = vld [vmem:[#allocation2 + $0x58] sm:$0xff]
        %v4044 = vld [vmem:[#allocation2 + $0x60] sm:$0xff]
        %v4045 = vld [vmem:[#allocation2 + $0x68] sm:$0xff]
        %4058 = vrot.lane.b32.xlu0 %v4034, 104
        %v4059 = vpop.permute.xlu0 %4058
        %4060 = vrot.lane.b32.xlu0 %v4035, 104
        %v4061 = vpop.permute.xlu0 %4060
        %4062 = vrot.lane.b32.xlu0 %v4036, 104
        %v4063 = vpop.permute.xlu0 %4062
        %4064 = vrot.lane.b32.xlu0 %v4037, 104
        %v4065 = vpop.permute.xlu0 %4064
        %4066 = vrot.lane.b32.xlu0 %v4038, 104
        %v4067 = vpop.permute.xlu0 %4066
        %4068 = vrot.lane.b32.xlu0 %v4039, 104
        %v4069 = vpop.permute.xlu0 %4068
        %4070 = vrot.lane.b32.xlu0 %v4040, 104
        %v4071 = vpop.permute.xlu0 %4070
        %4072 = vrot.lane.b32.xlu0 %v4041, 104
        %v4073 = vpop.permute.xlu0 %4072
        %4074 = vrot.lane.b32.xlu0 %v4042, 104
        %v4075 = vpop.permute.xlu0 %4074
        %4076 = vrot.lane.b32.xlu0 %v4043, 104
        %v4077 = vpop.permute.xlu0 %4076
        %4078 = vrot.lane.b32.xlu0 %v4044, 104
        %v4079 = vpop.permute.xlu0 %4078
        %4080 = vrot.lane.b32.xlu0 %v4045, 104
        %v4081 = vpop.permute.xlu0 %4080
        %v4082 = vsel %vm375, %v4059, %v4061
        %v4083 = vsel %vm375, %v4061, %v4063
        %v4084 = vsel %vm375, %v4063, %v4065
        %v4085 = vsel %vm375, %v4065, %v4067
        %v4086 = vsel %vm375, %v4067, %v4069
        %v4087 = vsel %vm375, %v4071, %v4073
        %v4088 = vsel %vm375, %v4073, %v4075
        %v4089 = vsel %vm375, %v4075, %v4077
        %v4090 = vsel %vm375, %v4077, %v4079
        %v4091 = vsel %vm375, %v4079, %v4081
        %4102 = vst [vmem:[#allocation3 + $0x5f0] sm:$0xff] %v4082
        %4103 = vst [vmem:[#allocation3 + $0x5f8] sm:$0xff] %v4083
        %4104 = vst [vmem:[#allocation3 + $0x600] sm:$0xff] %v4084
        %4105 = vst [vmem:[#allocation3 + $0x608] sm:$0xff] %v4085
        %4106 = vst [vmem:[#allocation3 + $0x610] sm:$0xff] %v4086
        %4107 = vst [vmem:[#allocation3 + $0x618] sm:$0xff] %v4087
        %4108 = vst [vmem:[#allocation3 + $0x620] sm:$0xff] %v4088
        %4109 = vst [vmem:[#allocation3 + $0x628] sm:$0xff] %v4089
        %4110 = vst [vmem:[#allocation3 + $0x630] sm:$0xff] %v4090
        %4111 = vst [vmem:[#allocation3 + $0x638] sm:$0xff] %v4091
        %v4112 = vld [vmem:[#allocation2 + $0x8] sm:$0xff]
        %v4113 = vld [vmem:[#allocation2 + $0x10] sm:$0xff]
        %v4114 = vld [vmem:[#allocation2 + $0x18] sm:$0xff]
        %v4115 = vld [vmem:[#allocation2 + $0x20] sm:$0xff]
        %v4116 = vld [vmem:[#allocation2 + $0x28] sm:$0xff]
        %v4117 = vld [vmem:[#allocation2 + $0x30] sm:$0xff]
        %v4118 = vld [vmem:[#allocation2 + $0x40] sm:$0xff]
        %v4119 = vld [vmem:[#allocation2 + $0x48] sm:$0xff]
        %v4120 = vld [vmem:[#allocation2 + $0x50] sm:$0xff]
        %v4121 = vld [vmem:[#allocation2 + $0x58] sm:$0xff]
        %v4122 = vld [vmem:[#allocation2 + $0x60] sm:$0xff]
        %v4123 = vld [vmem:[#allocation2 + $0x68] sm:$0xff]
        %4136 = vrot.lane.b32.xlu0 %v4112, 124
        %v4137 = vpop.permute.xlu0 %4136
        %4138 = vrot.lane.b32.xlu0 %v4113, 124
        %v4139 = vpop.permute.xlu0 %4138
        %4140 = vrot.lane.b32.xlu0 %v4114, 124
        %v4141 = vpop.permute.xlu0 %4140
        %4142 = vrot.lane.b32.xlu0 %v4115, 124
        %v4143 = vpop.permute.xlu0 %4142
        %4144 = vrot.lane.b32.xlu0 %v4116, 124
        %v4145 = vpop.permute.xlu0 %4144
        %4146 = vrot.lane.b32.xlu0 %v4117, 124
        %v4147 = vpop.permute.xlu0 %4146
        %4148 = vrot.lane.b32.xlu0 %v4118, 124
        %v4149 = vpop.permute.xlu0 %4148
        %4150 = vrot.lane.b32.xlu0 %v4119, 124
        %v4151 = vpop.permute.xlu0 %4150
        %4152 = vrot.lane.b32.xlu0 %v4120, 124
        %v4153 = vpop.permute.xlu0 %4152
        %4154 = vrot.lane.b32.xlu0 %v4121, 124
        %v4155 = vpop.permute.xlu0 %4154
        %4156 = vrot.lane.b32.xlu0 %v4122, 124
        %v4157 = vpop.permute.xlu0 %4156
        %4158 = vrot.lane.b32.xlu0 %v4123, 124
        %v4159 = vpop.permute.xlu0 %4158
        %vm4160 = vcmask 1014784
        %v4161 = vsel %vm4160, %v4137, %v4139
        %v4162 = vsel %vm4160, %v4139, %v4141
        %v4163 = vsel %vm4160, %v4141, %v4143
        %v4164 = vsel %vm4160, %v4143, %v4145
        %v4165 = vsel %vm4160, %v4145, %v4147
        %v4166 = vsel %vm4160, %v4149, %v4151
        %v4167 = vsel %vm4160, %v4151, %v4153
        %v4168 = vsel %vm4160, %v4153, %v4155
        %v4169 = vsel %vm4160, %v4155, %v4157
        %v4170 = vsel %vm4160, %v4157, %v4159
        %4181 = vst [vmem:[#allocation3 + $0x640] sm:$0xff] %v4161
        %4182 = vst [vmem:[#allocation3 + $0x648] sm:$0xff] %v4162
        %4183 = vst [vmem:[#allocation3 + $0x650] sm:$0xff] %v4163
        %4184 = vst [vmem:[#allocation3 + $0x658] sm:$0xff] %v4164
        %4185 = vst [vmem:[#allocation3 + $0x660] sm:$0xff] %v4165
        %4186 = vst [vmem:[#allocation3 + $0x668] sm:$0xff] %v4166
        %4187 = vst [vmem:[#allocation3 + $0x670] sm:$0xff] %v4167
        %4188 = vst [vmem:[#allocation3 + $0x678] sm:$0xff] %v4168
        %4189 = vst [vmem:[#allocation3 + $0x680] sm:$0xff] %v4169
        %4190 = vst [vmem:[#allocation3 + $0x688] sm:$0xff] %v4170
        %v4191 = vld [vmem:[#allocation2 + $0x8] sm:$0xff]
        %v4192 = vld [vmem:[#allocation2 + $0x10] sm:$0xff]
        %v4193 = vld [vmem:[#allocation2 + $0x18] sm:$0xff]
        %v4194 = vld [vmem:[#allocation2 + $0x20] sm:$0xff]
        %v4195 = vld [vmem:[#allocation2 + $0x28] sm:$0xff]
        %v4196 = vld [vmem:[#allocation2 + $0x30] sm:$0xff]
        %v4197 = vld [vmem:[#allocation2 + $0x40] sm:$0xff]
        %v4198 = vld [vmem:[#allocation2 + $0x48] sm:$0xff]
        %v4199 = vld [vmem:[#allocation2 + $0x50] sm:$0xff]
        %v4200 = vld [vmem:[#allocation2 + $0x58] sm:$0xff]
        %v4201 = vld [vmem:[#allocation2 + $0x60] sm:$0xff]
        %v4202 = vld [vmem:[#allocation2 + $0x68] sm:$0xff]
        %4215 = vrot.lane.b32.xlu0 %v4191, 125
        %v4216 = vpop.permute.xlu0 %4215
        %4217 = vrot.lane.b32.xlu0 %v4192, 125
        %v4218 = vpop.permute.xlu0 %4217
        %4219 = vrot.lane.b32.xlu0 %v4193, 125
        %v4220 = vpop.permute.xlu0 %4219
        %4221 = vrot.lane.b32.xlu0 %v4194, 125
        %v4222 = vpop.permute.xlu0 %4221
        %4223 = vrot.lane.b32.xlu0 %v4195, 125
        %v4224 = vpop.permute.xlu0 %4223
        %4225 = vrot.lane.b32.xlu0 %v4196, 125
        %v4226 = vpop.permute.xlu0 %4225
        %4227 = vrot.lane.b32.xlu0 %v4197, 125
        %v4228 = vpop.permute.xlu0 %4227
        %4229 = vrot.lane.b32.xlu0 %v4198, 125
        %v4230 = vpop.permute.xlu0 %4229
        %4231 = vrot.lane.b32.xlu0 %v4199, 125
        %v4232 = vpop.permute.xlu0 %4231
        %4233 = vrot.lane.b32.xlu0 %v4200, 125
        %v4234 = vpop.permute.xlu0 %4233
        %4235 = vrot.lane.b32.xlu0 %v4201, 125
        %v4236 = vpop.permute.xlu0 %4235
        %4237 = vrot.lane.b32.xlu0 %v4202, 125
        %v4238 = vpop.permute.xlu0 %4237
        %vm4239 = vcmask 1022976
        %v4240 = vsel %vm4239, %v4216, %v4218
        %v4241 = vsel %vm4239, %v4218, %v4220
        %v4242 = vsel %vm4239, %v4220, %v4222
        %v4243 = vsel %vm4239, %v4222, %v4224
        %v4244 = vsel %vm4239, %v4224, %v4226
        %v4245 = vsel %vm4239, %v4228, %v4230
        %v4246 = vsel %vm4239, %v4230, %v4232
        %v4247 = vsel %vm4239, %v4232, %v4234
        %v4248 = vsel %vm4239, %v4234, %v4236
        %v4249 = vsel %vm4239, %v4236, %v4238
        %4260 = vst [vmem:[#allocation3 + $0x690] sm:$0xff] %v4240
        %4261 = vst [vmem:[#allocation3 + $0x698] sm:$0xff] %v4241
        %4262 = vst [vmem:[#allocation3 + $0x6a0] sm:$0xff] %v4242
        %4263 = vst [vmem:[#allocation3 + $0x6a8] sm:$0xff] %v4243
        %4264 = vst [vmem:[#allocation3 + $0x6b0] sm:$0xff] %v4244
        %4265 = vst [vmem:[#allocation3 + $0x6b8] sm:$0xff] %v4245
        %4266 = vst [vmem:[#allocation3 + $0x6c0] sm:$0xff] %v4246
        %4267 = vst [vmem:[#allocation3 + $0x6c8] sm:$0xff] %v4247
        %4268 = vst [vmem:[#allocation3 + $0x6d0] sm:$0xff] %v4248
        %4269 = vst [vmem:[#allocation3 + $0x6d8] sm:$0xff] %v4249
        %v4270 = vld [vmem:[#allocation2 + $0x8] sm:$0xff]
        %v4271 = vld [vmem:[#allocation2 + $0x10] sm:$0xff]
        %v4272 = vld [vmem:[#allocation2 + $0x18] sm:$0xff]
        %v4273 = vld [vmem:[#allocation2 + $0x20] sm:$0xff]
        %v4274 = vld [vmem:[#allocation2 + $0x28] sm:$0xff]
        %v4275 = vld [vmem:[#allocation2 + $0x30] sm:$0xff]
        %v4276 = vld [vmem:[#allocation2 + $0x40] sm:$0xff]
        %v4277 = vld [vmem:[#allocation2 + $0x48] sm:$0xff]
        %v4278 = vld [vmem:[#allocation2 + $0x50] sm:$0xff]
        %v4279 = vld [vmem:[#allocation2 + $0x58] sm:$0xff]
        %v4280 = vld [vmem:[#allocation2 + $0x60] sm:$0xff]
        %v4281 = vld [vmem:[#allocation2 + $0x68] sm:$0xff]
        %4294 = vrot.lane.b32.xlu0 %v4270, 126
        %v4295 = vpop.permute.xlu0 %4294
        %4296 = vrot.lane.b32.xlu0 %v4271, 126
        %v4297 = vpop.permute.xlu0 %4296
        %4298 = vrot.lane.b32.xlu0 %v4272, 126
        %v4299 = vpop.permute.xlu0 %4298
        %4300 = vrot.lane.b32.xlu0 %v4273, 126
        %v4301 = vpop.permute.xlu0 %4300
        %4302 = vrot.lane.b32.xlu0 %v4274, 126
        %v4303 = vpop.permute.xlu0 %4302
        %4304 = vrot.lane.b32.xlu0 %v4275, 126
        %v4305 = vpop.permute.xlu0 %4304
        %4306 = vrot.lane.b32.xlu0 %v4276, 126
        %v4307 = vpop.permute.xlu0 %4306
        %4308 = vrot.lane.b32.xlu0 %v4277, 126
        %v4309 = vpop.permute.xlu0 %4308
        %4310 = vrot.lane.b32.xlu0 %v4278, 126
        %v4311 = vpop.permute.xlu0 %4310
        %4312 = vrot.lane.b32.xlu0 %v4279, 126
        %v4313 = vpop.permute.xlu0 %4312
        %4314 = vrot.lane.b32.xlu0 %v4280, 126
        %v4315 = vpop.permute.xlu0 %4314
        %4316 = vrot.lane.b32.xlu0 %v4281, 126
        %v4317 = vpop.permute.xlu0 %4316
        %v4318 = vsel %vm345, %v4295, %v4297
        %v4319 = vsel %vm345, %v4297, %v4299
        %v4320 = vsel %vm345, %v4299, %v4301
        %v4321 = vsel %vm345, %v4301, %v4303
        %v4322 = vsel %vm345, %v4303, %v4305
        %v4323 = vsel %vm345, %v4307, %v4309
        %v4324 = vsel %vm345, %v4309, %v4311
        %v4325 = vsel %vm345, %v4311, %v4313
        %v4326 = vsel %vm345, %v4313, %v4315
        %v4327 = vsel %vm345, %v4315, %v4317
        %4338 = vst [vmem:[#allocation3 + $0x6e0] sm:$0xff] %v4318
        %4339 = vst [vmem:[#allocation3 + $0x6e8] sm:$0xff] %v4319
        %4340 = vst [vmem:[#allocation3 + $0x6f0] sm:$0xff] %v4320
        %4341 = vst [vmem:[#allocation3 + $0x6f8] sm:$0xff] %v4321
        %4342 = vst [vmem:[#allocation3 + $0x700] sm:$0xff] %v4322
        %4343 = vst [vmem:[#allocation3 + $0x708] sm:$0xff] %v4323
        %4344 = vst [vmem:[#allocation3 + $0x710] sm:$0xff] %v4324
        %4345 = vst [vmem:[#allocation3 + $0x718] sm:$0xff] %v4325
        %4346 = vst [vmem:[#allocation3 + $0x720] sm:$0xff] %v4326
        %4347 = vst [vmem:[#allocation3 + $0x728] sm:$0xff] %v4327
        %v4348 = vld [vmem:[#allocation2 + $0x8] sm:$0xff]
        %v4349 = vld [vmem:[#allocation2 + $0x10] sm:$0xff]
        %v4350 = vld [vmem:[#allocation2 + $0x18] sm:$0xff]
        %v4351 = vld [vmem:[#allocation2 + $0x20] sm:$0xff]
        %v4352 = vld [vmem:[#allocation2 + $0x28] sm:$0xff]
        %v4353 = vld [vmem:[#allocation2 + $0x30] sm:$0xff]
        %v4354 = vld [vmem:[#allocation2 + $0x40] sm:$0xff]
        %v4355 = vld [vmem:[#allocation2 + $0x48] sm:$0xff]
        %v4356 = vld [vmem:[#allocation2 + $0x50] sm:$0xff]
        %v4357 = vld [vmem:[#allocation2 + $0x58] sm:$0xff]
        %v4358 = vld [vmem:[#allocation2 + $0x60] sm:$0xff]
        %v4359 = vld [vmem:[#allocation2 + $0x68] sm:$0xff]
        %4372 = vrot.lane.b32.xlu0 %v4348, 127
        %v4373 = vpop.permute.xlu0 %4372
        %4374 = vrot.lane.b32.xlu0 %v4349, 127
        %v4375 = vpop.permute.xlu0 %4374
        %4376 = vrot.lane.b32.xlu0 %v4350, 127
        %v4377 = vpop.permute.xlu0 %4376
        %4378 = vrot.lane.b32.xlu0 %v4351, 127
        %v4379 = vpop.permute.xlu0 %4378
        %4380 = vrot.lane.b32.xlu0 %v4352, 127
        %v4381 = vpop.permute.xlu0 %4380
        %4382 = vrot.lane.b32.xlu0 %v4353, 127
        %v4383 = vpop.permute.xlu0 %4382
        %4384 = vrot.lane.b32.xlu0 %v4354, 127
        %v4385 = vpop.permute.xlu0 %4384
        %4386 = vrot.lane.b32.xlu0 %v4355, 127
        %v4387 = vpop.permute.xlu0 %4386
        %4388 = vrot.lane.b32.xlu0 %v4356, 127
        %v4389 = vpop.permute.xlu0 %4388
        %4390 = vrot.lane.b32.xlu0 %v4357, 127
        %v4391 = vpop.permute.xlu0 %4390
        %4392 = vrot.lane.b32.xlu0 %v4358, 127
        %v4393 = vpop.permute.xlu0 %4392
        %4394 = vrot.lane.b32.xlu0 %v4359, 127
        %v4395 = vpop.permute.xlu0 %4394
        %v4396 = vsel %vm335, %v4373, %v4375
        %v4397 = vsel %vm335, %v4375, %v4377
        %v4398 = vsel %vm335, %v4377, %v4379
        %v4399 = vsel %vm335, %v4379, %v4381
        %v4400 = vsel %vm335, %v4381, %v4383
        %v4401 = vsel %vm335, %v4385, %v4387
        %v4402 = vsel %vm335, %v4387, %v4389
        %v4403 = vsel %vm335, %v4389, %v4391
        %v4404 = vsel %vm335, %v4391, %v4393
        %v4405 = vsel %vm335, %v4393, %v4395
        %4416 = vst [vmem:[#allocation3 + $0x730] sm:$0xff] %v4396
        %4417 = vst [vmem:[#allocation3 + $0x738] sm:$0xff] %v4397
        %4418 = vst [vmem:[#allocation3 + $0x740] sm:$0xff] %v4398
        %4419 = vst [vmem:[#allocation3 + $0x748] sm:$0xff] %v4399
        %4420 = vst [vmem:[#allocation3 + $0x750] sm:$0xff] %v4400
        %4421 = vst [vmem:[#allocation3 + $0x758] sm:$0xff] %v4401
        %4422 = vst [vmem:[#allocation3 + $0x760] sm:$0xff] %v4402
        %4423 = vst [vmem:[#allocation3 + $0x768] sm:$0xff] %v4403
        %4424 = vst [vmem:[#allocation3 + $0x770] sm:$0xff] %v4404
        %4425 = vst [vmem:[#allocation3 + $0x778] sm:$0xff] %v4405
        %v4426 = vld [vmem:[#allocation2 + $0x8] sm:$0xff]
        %v4427 = vld [vmem:[#allocation2 + $0x10] sm:$0xff]
        %v4428 = vld [vmem:[#allocation2 + $0x18] sm:$0xff]
        %v4429 = vld [vmem:[#allocation2 + $0x20] sm:$0xff]
        %v4430 = vld [vmem:[#allocation2 + $0x28] sm:$0xff]
        %v4431 = vld [vmem:[#allocation2 + $0x40] sm:$0xff]
        %v4432 = vld [vmem:[#allocation2 + $0x48] sm:$0xff]
        %v4433 = vld [vmem:[#allocation2 + $0x50] sm:$0xff]
        %v4434 = vld [vmem:[#allocation2 + $0x58] sm:$0xff]
        %v4435 = vld [vmem:[#allocation2 + $0x60] sm:$0xff]
        %4436 = vst [vmem:[#allocation3 + $0x780] sm:$0xff] %v4426
        %4437 = vst [vmem:[#allocation3 + $0x788] sm:$0xff] %v4427
        %4438 = vst [vmem:[#allocation3 + $0x790] sm:$0xff] %v4428
        %4439 = vst [vmem:[#allocation3 + $0x798] sm:$0xff] %v4429
        %4440 = vst [vmem:[#allocation3 + $0x7a0] sm:$0xff] %v4430
        %4441 = vst [vmem:[#allocation3 + $0x7a8] sm:$0xff] %v4431
        %4442 = vst [vmem:[#allocation3 + $0x7b0] sm:$0xff] %v4432
        %4443 = vst [vmem:[#allocation3 + $0x7b8] sm:$0xff] %v4433
        %4444 = vst [vmem:[#allocation3 + $0x7c0] sm:$0xff] %v4434
        %4445 = vst [vmem:[#allocation3 + $0x7c8] sm:$0xff] %v4435
        %v4446 = vld [vmem:[%s2 + $0xe0] sm:$0xff]
        %v4447 = vld [vmem:[#allocation3] sm:$0xff]
        %v4448 = vld [vmem:[#allocation3 + $0x8] sm:$0xff]
        %v4449 = vld [vmem:[#allocation3 + $0x10] sm:$0xff]
        %v4450 = vld [vmem:[#allocation3 + $0x18] sm:$0xff]
        %v4451 = vld [vmem:[#allocation3 + $0x20] sm:$0xff]
        %v4452 = vld [vmem:[#allocation3 + $0x28] sm:$0xff]
        %v4453 = vld [vmem:[#allocation3 + $0x30] sm:$0xff]
        %v4454 = vld [vmem:[#allocation3 + $0x38] sm:$0xff]
        %v4455 = vld [vmem:[#allocation3 + $0x40] sm:$0xff]
        %v4456 = vld [vmem:[#allocation3 + $0x48] sm:$0xff]
        %v4457 = vld [vmem:[#allocation3 + $0x50] sm:$0xff]
        %v4458 = vld [vmem:[#allocation3 + $0x58] sm:$0xff]
        %v4459 = vld [vmem:[#allocation3 + $0x60] sm:$0xff]
        %v4460 = vld [vmem:[#allocation3 + $0x68] sm:$0xff]
        %v4461 = vld [vmem:[#allocation3 + $0x70] sm:$0xff]
        %v4462 = vld [vmem:[#allocation3 + $0x78] sm:$0xff]
        %v4463 = vld [vmem:[#allocation3 + $0x80] sm:$0xff]
        %v4464 = vld [vmem:[#allocation3 + $0x88] sm:$0xff]
        %v4465 = vld [vmem:[#allocation3 + $0x90] sm:$0xff]
        %v4466 = vld [vmem:[#allocation3 + $0x98] sm:$0xff]
        %v4467 = vld [vmem:[#allocation3 + $0xa0] sm:$0xff]
        %v4468 = vld [vmem:[#allocation3 + $0xa8] sm:$0xff]
        %v4469 = vld [vmem:[#allocation3 + $0xb0] sm:$0xff]
        %v4470 = vld [vmem:[#allocation3 + $0xb8] sm:$0xff]
        %v4471 = vld [vmem:[#allocation3 + $0xc0] sm:$0xff]
        %v4472 = vld [vmem:[#allocation3 + $0xc8] sm:$0xff]
        %v4473 = vld [vmem:[#allocation3 + $0xd0] sm:$0xff]
        %v4474 = vld [vmem:[#allocation3 + $0xd8] sm:$0xff]
        %v4475 = vld [vmem:[#allocation3 + $0xe0] sm:$0xff]
        %v4476 = vld [vmem:[#allocation3 + $0xe8] sm:$0xff]
        %v4477 = vld [vmem:[#allocation3 + $0xf0] sm:$0xff]
        %v4478 = vld [vmem:[#allocation3 + $0xf8] sm:$0xff]
        %v4479 = vld [vmem:[#allocation3 + $0x100] sm:$0xff]
        %v4480 = vld [vmem:[#allocation3 + $0x108] sm:$0xff]
        %v4481 = vld [vmem:[#allocation3 + $0x110] sm:$0xff]
        %v4482 = vld [vmem:[#allocation3 + $0x118] sm:$0xff]
        %v4483 = vld [vmem:[#allocation3 + $0x120] sm:$0xff]
        %v4484 = vld [vmem:[#allocation3 + $0x128] sm:$0xff]
        %v4485 = vld [vmem:[#allocation3 + $0x130] sm:$0xff]
        %v4486 = vld [vmem:[#allocation3 + $0x138] sm:$0xff]
        %v4487 = vld [vmem:[#allocation3 + $0x140] sm:$0xff]
        %v4488 = vld [vmem:[#allocation3 + $0x148] sm:$0xff]
        %v4489 = vld [vmem:[#allocation3 + $0x150] sm:$0xff]
        %v4490 = vld [vmem:[#allocation3 + $0x158] sm:$0xff]
        %v4491 = vld [vmem:[#allocation3 + $0x160] sm:$0xff]
        %v4492 = vld [vmem:[#allocation3 + $0x168] sm:$0xff]
        %v4493 = vld [vmem:[#allocation3 + $0x170] sm:$0xff]
        %v4494 = vld [vmem:[#allocation3 + $0x178] sm:$0xff]
        %v4495 = vld [vmem:[#allocation3 + $0x180] sm:$0xff]
        %v4496 = vld [vmem:[#allocation3 + $0x188] sm:$0xff]
        %v4497 = vld [vmem:[#allocation3 + $0x190] sm:$0xff]
        %v4498 = vld [vmem:[#allocation3 + $0x198] sm:$0xff]
        %v4499 = vld [vmem:[#allocation3 + $0x1a0] sm:$0xff]
        %v4500 = vld [vmem:[#allocation3 + $0x1a8] sm:$0xff]
        %v4501 = vld [vmem:[#allocation3 + $0x1b0] sm:$0xff]
        %v4502 = vld [vmem:[#allocation3 + $0x1b8] sm:$0xff]
        %v4503 = vld [vmem:[#allocation3 + $0x1c0] sm:$0xff]
        %v4504 = vld [vmem:[#allocation3 + $0x1c8] sm:$0xff]
        %v4505 = vld [vmem:[#allocation3 + $0x1d0] sm:$0xff]
        %v4506 = vld [vmem:[#allocation3 + $0x1d8] sm:$0xff]
        %v4507 = vld [vmem:[#allocation3 + $0x1e0] sm:$0xff]
        %v4508 = vld [vmem:[#allocation3 + $0x1e8] sm:$0xff]
        %v4509 = vld [vmem:[#allocation3 + $0x1f0] sm:$0xff]
        %v4510 = vld [vmem:[#allocation3 + $0x1f8] sm:$0xff]
        %v4511 = vld [vmem:[#allocation3 + $0x200] sm:$0xff]
        %v4512 = vld [vmem:[#allocation3 + $0x208] sm:$0xff]
        %v4513 = vld [vmem:[#allocation3 + $0x210] sm:$0xff]
        %v4514 = vld [vmem:[#allocation3 + $0x218] sm:$0xff]
        %v4515 = vld [vmem:[#allocation3 + $0x220] sm:$0xff]
        %v4516 = vld [vmem:[#allocation3 + $0x228] sm:$0xff]
        %v4517 = vld [vmem:[#allocation3 + $0x230] sm:$0xff]
        %v4518 = vld [vmem:[#allocation3 + $0x238] sm:$0xff]
        %v4519 = vld [vmem:[#allocation3 + $0x240] sm:$0xff]
        %v4520 = vld [vmem:[#allocation3 + $0x248] sm:$0xff]
        %v4521 = vld [vmem:[#allocation3 + $0x250] sm:$0xff]
        %v4522 = vld [vmem:[#allocation3 + $0x258] sm:$0xff]
        %v4523 = vld [vmem:[#allocation3 + $0x260] sm:$0xff]
        %v4524 = vld [vmem:[#allocation3 + $0x268] sm:$0xff]
        %v4525 = vld [vmem:[#allocation3 + $0x270] sm:$0xff]
        %v4526 = vld [vmem:[#allocation3 + $0x278] sm:$0xff]
        %v4527 = vld [vmem:[%s2 + $0xe8] sm:$0xff]
        %v4528 = vld [vmem:[#allocation3 + $0x280] sm:$0xff]
        %v4529 = vld [vmem:[#allocation3 + $0x288] sm:$0xff]
        %v4530 = vld [vmem:[#allocation3 + $0x290] sm:$0xff]
        %v4531 = vld [vmem:[#allocation3 + $0x298] sm:$0xff]
        %v4532 = vld [vmem:[#allocation3 + $0x2a0] sm:$0xff]
        %v4533 = vld [vmem:[#allocation3 + $0x2a8] sm:$0xff]
        %v4534 = vld [vmem:[#allocation3 + $0x2b0] sm:$0xff]
        %v4535 = vld [vmem:[#allocation3 + $0x2b8] sm:$0xff]
        %v4536 = vld [vmem:[#allocation3 + $0x2c0] sm:$0xff]
        %v4537 = vld [vmem:[#allocation3 + $0x2c8] sm:$0xff]
        %v4538 = vld [vmem:[#allocation3 + $0x2d0] sm:$0xff]
        %v4539 = vld [vmem:[#allocation3 + $0x2d8] sm:$0xff]
        %v4540 = vld [vmem:[#allocation3 + $0x2e0] sm:$0xff]
        %v4541 = vld [vmem:[#allocation3 + $0x2e8] sm:$0xff]
        %v4542 = vld [vmem:[#allocation3 + $0x2f0] sm:$0xff]
        %v4543 = vld [vmem:[#allocation3 + $0x2f8] sm:$0xff]
        %v4544 = vld [vmem:[#allocation3 + $0x300] sm:$0xff]
        %v4545 = vld [vmem:[#allocation3 + $0x308] sm:$0xff]
        %v4546 = vld [vmem:[#allocation3 + $0x310] sm:$0xff]
        %v4547 = vld [vmem:[#allocation3 + $0x318] sm:$0xff]
        %v4548 = vld [vmem:[#allocation3 + $0x320] sm:$0xff]
        %v4549 = vld [vmem:[#allocation3 + $0x328] sm:$0xff]
        %v4550 = vld [vmem:[#allocation3 + $0x330] sm:$0xff]
        %v4551 = vld [vmem:[#allocation3 + $0x338] sm:$0xff]
        %v4552 = vld [vmem:[#allocation3 + $0x340] sm:$0xff]
        %v4553 = vld [vmem:[#allocation3 + $0x348] sm:$0xff]
        %v4554 = vld [vmem:[#allocation3 + $0x350] sm:$0xff]
        %v4555 = vld [vmem:[#allocation3 + $0x358] sm:$0xff]
        %v4556 = vld [vmem:[#allocation3 + $0x360] sm:$0xff]
        %v4557 = vld [vmem:[#allocation3 + $0x368] sm:$0xff]
        %v4558 = vld [vmem:[#allocation3 + $0x370] sm:$0xff]
        %v4559 = vld [vmem:[#allocation3 + $0x378] sm:$0xff]
        %v4560 = vld [vmem:[#allocation3 + $0x380] sm:$0xff]
        %v4561 = vld [vmem:[#allocation3 + $0x388] sm:$0xff]
        %v4562 = vld [vmem:[#allocation3 + $0x390] sm:$0xff]
        %v4563 = vld [vmem:[#allocation3 + $0x398] sm:$0xff]
        %v4564 = vld [vmem:[#allocation3 + $0x3a0] sm:$0xff]
        %v4565 = vld [vmem:[#allocation3 + $0x3a8] sm:$0xff]
        %v4566 = vld [vmem:[#allocation3 + $0x3b0] sm:$0xff]
        %v4567 = vld [vmem:[#allocation3 + $0x3b8] sm:$0xff]
        %v4568 = vld [vmem:[#allocation3 + $0x3c0] sm:$0xff]
        %v4569 = vld [vmem:[#allocation3 + $0x3c8] sm:$0xff]
        %v4570 = vld [vmem:[#allocation3 + $0x3d0] sm:$0xff]
        %v4571 = vld [vmem:[#allocation3 + $0x3d8] sm:$0xff]
        %v4572 = vld [vmem:[#allocation3 + $0x3e0] sm:$0xff]
        %v4573 = vld [vmem:[#allocation3 + $0x3e8] sm:$0xff]
        %v4574 = vld [vmem:[#allocation3 + $0x3f0] sm:$0xff]
        %v4575 = vld [vmem:[#allocation3 + $0x3f8] sm:$0xff]
        %v4576 = vld [vmem:[#allocation3 + $0x400] sm:$0xff]
        %v4577 = vld [vmem:[#allocation3 + $0x408] sm:$0xff]
        %v4578 = vld [vmem:[#allocation3 + $0x410] sm:$0xff]
        %v4579 = vld [vmem:[#allocation3 + $0x418] sm:$0xff]
        %v4580 = vld [vmem:[#allocation3 + $0x420] sm:$0xff]
        %v4581 = vld [vmem:[#allocation3 + $0x428] sm:$0xff]
        %v4582 = vld [vmem:[#allocation3 + $0x430] sm:$0xff]
        %v4583 = vld [vmem:[#allocation3 + $0x438] sm:$0xff]
        %v4584 = vld [vmem:[#allocation3 + $0x440] sm:$0xff]
        %v4585 = vld [vmem:[#allocation3 + $0x448] sm:$0xff]
        %v4586 = vld [vmem:[#allocation3 + $0x450] sm:$0xff]
        %v4587 = vld [vmem:[#allocation3 + $0x458] sm:$0xff]
        %v4588 = vld [vmem:[#allocation3 + $0x460] sm:$0xff]
        %v4589 = vld [vmem:[#allocation3 + $0x468] sm:$0xff]
        %v4590 = vld [vmem:[#allocation3 + $0x470] sm:$0xff]
        %v4591 = vld [vmem:[#allocation3 + $0x478] sm:$0xff]
        %v4592 = vld [vmem:[#allocation3 + $0x480] sm:$0xff]
        %v4593 = vld [vmem:[#allocation3 + $0x488] sm:$0xff]
        %v4594 = vld [vmem:[#allocation3 + $0x490] sm:$0xff]
        %v4595 = vld [vmem:[#allocation3 + $0x498] sm:$0xff]
        %v4596 = vld [vmem:[#allocation3 + $0x4a0] sm:$0xff]
        %v4597 = vld [vmem:[#allocation3 + $0x4a8] sm:$0xff]
        %v4598 = vld [vmem:[#allocation3 + $0x4b0] sm:$0xff]
        %v4599 = vld [vmem:[#allocation3 + $0x4b8] sm:$0xff]
        %v4600 = vld [vmem:[#allocation3 + $0x4c0] sm:$0xff]
        %v4601 = vld [vmem:[#allocation3 + $0x4c8] sm:$0xff]
        %v4602 = vld [vmem:[#allocation3 + $0x4d0] sm:$0xff]
        %v4603 = vld [vmem:[#allocation3 + $0x4d8] sm:$0xff]
        %v4604 = vld [vmem:[#allocation3 + $0x4e0] sm:$0xff]
        %v4605 = vld [vmem:[#allocation3 + $0x4e8] sm:$0xff]
        %v4606 = vld [vmem:[#allocation3 + $0x4f0] sm:$0xff]
        %v4607 = vld [vmem:[#allocation3 + $0x4f8] sm:$0xff]
        %4608 = vmatprep.subr.mxu0 %v4604
        %4609 = vmatpush1.msra.mxu0 %v4603
        %4610 = vmatprep.subr.mxu0 %v4599
        %4611 = vmatpush1.msra.mxu0 %v4598
        %4612 = vmatprep.subr.mxu0 %v4594
        %4613 = vmatpush1.msra.mxu0 %v4593
        %4614 = vmatprep.subr.mxu0 %v4589
        %4615 = vmatpush1.msra.mxu0 %v4588
        %4616 = vmatprep.subr.mxu0 %v4584
        %4617 = vmatpush1.msra.mxu0 %v4583
        %4618 = vmatprep.subr.mxu0 %v4579
        %4619 = vmatpush1.msra.mxu0 %v4578
        %4620 = vmatprep.subr.mxu0 %v4574
        %4621 = vmatpush1.msra.mxu0 %v4573
        %4622 = vmatprep.subr.mxu0 %v4569
        %4623 = vmatpush1.msra.mxu0 %v4568
        %4624 = vmatprep.subr.mxu0 %v4564
        %4625 = vmatpush1.msra.mxu0 %v4563
        %4626 = vmatprep.subr.mxu0 %v4559
        %4627 = vmatpush1.msra.mxu0 %v4558
        %4628 = vmatprep.subr.mxu0 %v4554
        %4629 = vmatpush1.msra.mxu0 %v4553
        %4630 = vmatprep.subr.mxu0 %v4549
        %4631 = vmatpush1.msra.mxu0 %v4548
        %4632 = vmatprep.subr.mxu0 %v4544
        %4633 = vmatpush1.msra.mxu0 %v4543
        %4634 = vmatprep.subr.mxu0 %v4539
        %4635 = vmatpush1.msra.mxu0 %v4538
        %4636 = vmatprep.subr.mxu0 %v4534
        %4637 = vmatpush1.msra.mxu0 %v4533
        %4638 = vmatprep.subr.mxu0 %v4529
        %4639 = vmatpush1.msra.mxu0 %v4528
        %4640 = vmatprep.subr.mxu0 0.0
        %4641 = vmatpush2.msra.mxu0 0.0
        %4642 = vmatprep.subr.mxu0 0.0
        %4643 = vmatpush2.msra.mxu0 0.0
        %4644 = vmatprep.subr.mxu0 0.0
        %4645 = vmatpush2.msra.mxu0 0.0
        %4646 = vmatprep.subr.mxu0 0.0
        %4647 = vmatpush2.msra.mxu0 0.0
        %4648 = vmatprep.subr.mxu0 0.0
        %4649 = vmatpush2.msra.mxu0 0.0
        %4650 = vmatprep.subr.mxu0 0.0
        %4651 = vmatpush2.msra.mxu0 0.0
        %4652 = vmatprep.subr.mxu0 0.0
        %4653 = vmatpush2.msra.mxu0 0.0
        %4654 = vmatprep.subr.mxu0 0.0
        %4655 = vmatpush2.msra.mxu0 0.0
        %4656 = vmatprep.subr.mxu0 0.0
        %4657 = vmatpush2.msra.mxu0 0.0
        %4658 = vmatprep.subr.mxu0 0.0
        %4659 = vmatpush2.msra.mxu0 0.0
        %4660 = vmatprep.subr.mxu0 0.0
        %4661 = vmatpush2.msra.mxu0 0.0
        %4662 = vmatprep.subr.mxu0 0.0
        %4663 = vmatpush2.msra.mxu0 0.0
        %4664 = vmatprep.subr.mxu0 0.0
        %4665 = vmatpush2.msra.mxu0 0.0
        %4666 = vmatprep.subr.mxu0 0.0
        %4667 = vmatpush2.msra.mxu0 0.0
        %4668 = vmatprep.subr.mxu0 0.0
        %4669 = vmatpush2.msra.mxu0 0.0
        %4670 = vmatprep.subr.mxu0 0.0
        %4671 = vmatpush2.msra.mxu0 0.0
        %4672 = vmatprep.mubr.f32.mxu0 0.0
        %4673 = vmatmul.mubr.f32.gmra.mxu0 %v4527
        %v4674 = vpop.f32.mrf.mxu0
        %v4675 = vadd.f32 0.0, %v4674
        %v4676 = vpop.f32.mrf.mxu0
        %v4677 = vadd.f32 0.0, %v4676
        %4678 = vdwg.mxu0
        %4679 = vmatprep.subr.mxu0 %v4606
        %4680 = vmatpush1.msra.mxu0 %v4605
        %4681 = vmatprep.subr.mxu0 %v4601
        %4682 = vmatpush1.msra.mxu0 %v4600
        %4683 = vmatprep.subr.mxu0 %v4596
        %4684 = vmatpush1.msra.mxu0 %v4595
        %4685 = vmatprep.subr.mxu0 %v4591
        %4686 = vmatpush1.msra.mxu0 %v4590
        %4687 = vmatprep.subr.mxu0 %v4586
        %4688 = vmatpush1.msra.mxu0 %v4585
        %4689 = vmatprep.subr.mxu0 %v4581
        %4690 = vmatpush1.msra.mxu0 %v4580
        %4691 = vmatprep.subr.mxu0 %v4576
        %4692 = vmatpush1.msra.mxu0 %v4575
        %4693 = vmatprep.subr.mxu0 %v4571
        %4694 = vmatpush1.msra.mxu0 %v4570
        %4695 = vmatprep.subr.mxu0 %v4566
        %4696 = vmatpush1.msra.mxu0 %v4565
        %4697 = vmatprep.subr.mxu0 %v4561
        %4698 = vmatpush1.msra.mxu0 %v4560
        %4699 = vmatprep.subr.mxu0 %v4556
        %4700 = vmatpush1.msra.mxu0 %v4555
        %4701 = vmatprep.subr.mxu0 %v4551
        %4702 = vmatpush1.msra.mxu0 %v4550
        %4703 = vmatprep.subr.mxu0 %v4546
        %4704 = vmatpush1.msra.mxu0 %v4545
        %4705 = vmatprep.subr.mxu0 %v4541
        %4706 = vmatpush1.msra.mxu0 %v4540
        %4707 = vmatprep.subr.mxu0 %v4536
        %4708 = vmatpush1.msra.mxu0 %v4535
        %4709 = vmatprep.subr.mxu0 %v4531
        %4710 = vmatpush1.msra.mxu0 %v4530
        %4711 = vmatprep.subr.mxu0 0.0
        %4712 = vmatpush2.msra.mxu0 0.0
        %4713 = vmatprep.subr.mxu0 0.0
        %4714 = vmatpush2.msra.mxu0 0.0
        %4715 = vmatprep.subr.mxu0 0.0
        %4716 = vmatpush2.msra.mxu0 0.0
        %4717 = vmatprep.subr.mxu0 0.0
        %4718 = vmatpush2.msra.mxu0 0.0
        %4719 = vmatprep.subr.mxu0 0.0
        %4720 = vmatpush2.msra.mxu0 0.0
        %4721 = vmatprep.subr.mxu0 0.0
        %4722 = vmatpush2.msra.mxu0 0.0
        %4723 = vmatprep.subr.mxu0 0.0
        %4724 = vmatpush2.msra.mxu0 0.0
        %4725 = vmatprep.subr.mxu0 0.0
        %4726 = vmatpush2.msra.mxu0 0.0
        %4727 = vmatprep.subr.mxu0 0.0
        %4728 = vmatpush2.msra.mxu0 0.0
        %4729 = vmatprep.subr.mxu0 0.0
        %4730 = vmatpush2.msra.mxu0 0.0
        %4731 = vmatprep.subr.mxu0 0.0
        %4732 = vmatpush2.msra.mxu0 0.0
        %4733 = vmatprep.subr.mxu0 0.0
        %4734 = vmatpush2.msra.mxu0 0.0
        %4735 = vmatprep.subr.mxu0 0.0
        %4736 = vmatpush2.msra.mxu0 0.0
        %4737 = vmatprep.subr.mxu0 0.0
        %4738 = vmatpush2.msra.mxu0 0.0
        %4739 = vmatprep.subr.mxu0 0.0
        %4740 = vmatpush2.msra.mxu0 0.0
        %4741 = vmatprep.subr.mxu0 0.0
        %4742 = vmatpush2.msra.mxu0 0.0
        %4743 = vmatprep.mubr.f32.mxu0 0.0
        %4744 = vmatmul.mubr.f32.gmra.mxu0 %v4527
        %v4745 = vpop.f32.mrf.mxu0
        %v4746 = vadd.f32 0.0, %v4745
        %v4747 = vpop.f32.mrf.mxu0
        %v4748 = vadd.f32 0.0, %v4747
        %4749 = vdwg.mxu0
        %4750 = vmatprep.subr.mxu0 0.0
        %4751 = vmatpush1.msra.mxu0 %v4607
        %4752 = vmatprep.subr.mxu0 0.0
        %4753 = vmatpush1.msra.mxu0 %v4602
        %4754 = vmatprep.subr.mxu0 0.0
        %4755 = vmatpush1.msra.mxu0 %v4597
        %4756 = vmatprep.subr.mxu0 0.0
        %4757 = vmatpush1.msra.mxu0 %v4592
        %4758 = vmatprep.subr.mxu0 0.0
        %4759 = vmatpush1.msra.mxu0 %v4587
        %4760 = vmatprep.subr.mxu0 0.0
        %4761 = vmatpush1.msra.mxu0 %v4582
        %4762 = vmatprep.subr.mxu0 0.0
        %4763 = vmatpush1.msra.mxu0 %v4577
        %4764 = vmatprep.subr.mxu0 0.0
        %4765 = vmatpush1.msra.mxu0 %v4572
        %4766 = vmatprep.subr.mxu0 0.0
        %4767 = vmatpush1.msra.mxu0 %v4567
        %4768 = vmatprep.subr.mxu0 0.0
        %4769 = vmatpush1.msra.mxu0 %v4562
        %4770 = vmatprep.subr.mxu0 0.0
        %4771 = vmatpush1.msra.mxu0 %v4557
        %4772 = vmatprep.subr.mxu0 0.0
        %4773 = vmatpush1.msra.mxu0 %v4552
        %4774 = vmatprep.subr.mxu0 0.0
        %4775 = vmatpush1.msra.mxu0 %v4547
        %4776 = vmatprep.subr.mxu0 0.0
        %4777 = vmatpush1.msra.mxu0 %v4542
        %4778 = vmatprep.subr.mxu0 0.0
        %4779 = vmatpush1.msra.mxu0 %v4537
        %4780 = vmatprep.subr.mxu0 0.0
        %4781 = vmatpush1.msra.mxu0 %v4532
        %4782 = vmatprep.subr.mxu0 0.0
        %4783 = vmatpush2.msra.mxu0 0.0
        %4784 = vmatprep.subr.mxu0 0.0
        %4785 = vmatpush2.msra.mxu0 0.0
        %4786 = vmatprep.subr.mxu0 0.0
        %4787 = vmatpush2.msra.mxu0 0.0
        %4788 = vmatprep.subr.mxu0 0.0
        %4789 = vmatpush2.msra.mxu0 0.0
        %4790 = vmatprep.subr.mxu0 0.0
        %4791 = vmatpush2.msra.mxu0 0.0
        %4792 = vmatprep.subr.mxu0 0.0
        %4793 = vmatpush2.msra.mxu0 0.0
        %4794 = vmatprep.subr.mxu0 0.0
        %4795 = vmatpush2.msra.mxu0 0.0
        %4796 = vmatprep.subr.mxu0 0.0
        %4797 = vmatpush2.msra.mxu0 0.0
        %4798 = vmatprep.subr.mxu0 0.0
        %4799 = vmatpush2.msra.mxu0 0.0
        %4800 = vmatprep.subr.mxu0 0.0
        %4801 = vmatpush2.msra.mxu0 0.0
        %4802 = vmatprep.subr.mxu0 0.0
        %4803 = vmatpush2.msra.mxu0 0.0
        %4804 = vmatprep.subr.mxu0 0.0
        %4805 = vmatpush2.msra.mxu0 0.0
        %4806 = vmatprep.subr.mxu0 0.0
        %4807 = vmatpush2.msra.mxu0 0.0
        %4808 = vmatprep.subr.mxu0 0.0
        %4809 = vmatpush2.msra.mxu0 0.0
        %4810 = vmatprep.subr.mxu0 0.0
        %4811 = vmatpush2.msra.mxu0 0.0
        %4812 = vmatprep.subr.mxu0 0.0
        %4813 = vmatpush2.msra.mxu0 0.0
        %4814 = vmatprep.mubr.f32.mxu0 0.0
        %4815 = vmatmul.mubr.f32.gmra.mxu0 %v4527
        %v4816 = vpop.f32.mrf.mxu0
        %v4817 = vadd.f32 0.0, %v4816
        %v4818 = vpop.f32.mrf.mxu0
        %4819 = vdwg.mxu0
        %4820 = vmatprep.subr.mxu0 %v4523
        %4821 = vmatpush1.msra.mxu0 %v4522
        %4822 = vmatprep.subr.mxu0 %v4518
        %4823 = vmatpush1.msra.mxu0 %v4517
        %4824 = vmatprep.subr.mxu0 %v4513
        %4825 = vmatpush1.msra.mxu0 %v4512
        %4826 = vmatprep.subr.mxu0 %v4508
        %4827 = vmatpush1.msra.mxu0 %v4507
        %4828 = vmatprep.subr.mxu0 %v4503
        %4829 = vmatpush1.msra.mxu0 %v4502
        %4830 = vmatprep.subr.mxu0 %v4498
        %4831 = vmatpush1.msra.mxu0 %v4497
        %4832 = vmatprep.subr.mxu0 %v4493
        %4833 = vmatpush1.msra.mxu0 %v4492
        %4834 = vmatprep.subr.mxu0 %v4488
        %4835 = vmatpush1.msra.mxu0 %v4487
        %4836 = vmatprep.subr.mxu0 %v4483
        %4837 = vmatpush1.msra.mxu0 %v4482
        %4838 = vmatprep.subr.mxu0 %v4478
        %4839 = vmatpush1.msra.mxu0 %v4477
        %4840 = vmatprep.subr.mxu0 %v4473
        %4841 = vmatpush1.msra.mxu0 %v4472
        %4842 = vmatprep.subr.mxu0 %v4468
        %4843 = vmatpush1.msra.mxu0 %v4467
        %4844 = vmatprep.subr.mxu0 %v4463
        %4845 = vmatpush1.msra.mxu0 %v4462
        %4846 = vmatprep.subr.mxu0 %v4458
        %4847 = vmatpush1.msra.mxu0 %v4457
        %4848 = vmatprep.subr.mxu0 %v4453
        %4849 = vmatpush1.msra.mxu0 %v4452
        %4850 = vmatprep.subr.mxu0 %v4448
        %4851 = vmatpush1.msra.mxu0 %v4447
        %4852 = vmatprep.subr.mxu0 0.0
        %4853 = vmatpush2.msra.mxu0 0.0
        %4854 = vmatprep.subr.mxu0 0.0
        %4855 = vmatpush2.msra.mxu0 0.0
        %4856 = vmatprep.subr.mxu0 0.0
        %4857 = vmatpush2.msra.mxu0 0.0
        %4858 = vmatprep.subr.mxu0 0.0
        %4859 = vmatpush2.msra.mxu0 0.0
        %4860 = vmatprep.subr.mxu0 0.0
        %4861 = vmatpush2.msra.mxu0 0.0
        %4862 = vmatprep.subr.mxu0 0.0
        %4863 = vmatpush2.msra.mxu0 0.0
        %4864 = vmatprep.subr.mxu0 0.0
        %4865 = vmatpush2.msra.mxu0 0.0
        %4866 = vmatprep.subr.mxu0 0.0
        %4867 = vmatpush2.msra.mxu0 0.0
        %4868 = vmatprep.subr.mxu0 0.0
        %4869 = vmatpush2.msra.mxu0 0.0
        %4870 = vmatprep.subr.mxu0 0.0
        %4871 = vmatpush2.msra.mxu0 0.0
        %4872 = vmatprep.subr.mxu0 0.0
        %4873 = vmatpush2.msra.mxu0 0.0
        %4874 = vmatprep.subr.mxu0 0.0
        %4875 = vmatpush2.msra.mxu0 0.0
        %4876 = vmatprep.subr.mxu0 0.0
        %4877 = vmatpush2.msra.mxu0 0.0
        %4878 = vmatprep.subr.mxu0 0.0
        %4879 = vmatpush2.msra.mxu0 0.0
        %4880 = vmatprep.subr.mxu0 0.0
        %4881 = vmatpush2.msra.mxu0 0.0
        %4882 = vmatprep.subr.mxu0 0.0
        %4883 = vmatpush2.msra.mxu0 0.0
        %4884 = vmatprep.mubr.f32.mxu0 0.0
        %4885 = vmatmul.mubr.f32.gmra.mxu0 %v4446
        %v4886 = vpop.f32.mrf.mxu0
        %v4887 = vadd.f32 %v4675, %v4886
        %v4888 = vpop.f32.mrf.mxu0
        %v4889 = vadd.f32 %v4677, %v4888
        %4890 = vdwg.mxu0
        %4891 = vmatprep.subr.mxu0 %v4525
        %4892 = vmatpush1.msra.mxu0 %v4524
        %4893 = vmatprep.subr.mxu0 %v4520
        %4894 = vmatpush1.msra.mxu0 %v4519
        %4895 = vmatprep.subr.mxu0 %v4515
        %4896 = vmatpush1.msra.mxu0 %v4514
        %4897 = vmatprep.subr.mxu0 %v4510
        %4898 = vmatpush1.msra.mxu0 %v4509
        %4899 = vmatprep.subr.mxu0 %v4505
        %4900 = vmatpush1.msra.mxu0 %v4504
        %4901 = vmatprep.subr.mxu0 %v4500
        %4902 = vmatpush1.msra.mxu0 %v4499
        %4903 = vmatprep.subr.mxu0 %v4495
        %4904 = vmatpush1.msra.mxu0 %v4494
        %4905 = vmatprep.subr.mxu0 %v4490
        %4906 = vmatpush1.msra.mxu0 %v4489
        %4907 = vmatprep.subr.mxu0 %v4485
        %4908 = vmatpush1.msra.mxu0 %v4484
        %4909 = vmatprep.subr.mxu0 %v4480
        %4910 = vmatpush1.msra.mxu0 %v4479
        %4911 = vmatprep.subr.mxu0 %v4475
        %4912 = vmatpush1.msra.mxu0 %v4474
        %4913 = vmatprep.subr.mxu0 %v4470
        %4914 = vmatpush1.msra.mxu0 %v4469
        %4915 = vmatprep.subr.mxu0 %v4465
        %4916 = vmatpush1.msra.mxu0 %v4464
        %4917 = vmatprep.subr.mxu0 %v4460
        %4918 = vmatpush1.msra.mxu0 %v4459
        %4919 = vmatprep.subr.mxu0 %v4455
        %4920 = vmatpush1.msra.mxu0 %v4454
        %4921 = vmatprep.subr.mxu0 %v4450
        %4922 = vmatpush1.msra.mxu0 %v4449
        %4923 = vmatprep.subr.mxu0 0.0
        %4924 = vmatpush2.msra.mxu0 0.0
        %4925 = vmatprep.subr.mxu0 0.0
        %4926 = vmatpush2.msra.mxu0 0.0
        %4927 = vmatprep.subr.mxu0 0.0
        %4928 = vmatpush2.msra.mxu0 0.0
        %4929 = vmatprep.subr.mxu0 0.0
        %4930 = vmatpush2.msra.mxu0 0.0
        %4931 = vmatprep.subr.mxu0 0.0
        %4932 = vmatpush2.msra.mxu0 0.0
        %4933 = vmatprep.subr.mxu0 0.0
        %4934 = vmatpush2.msra.mxu0 0.0
        %4935 = vmatprep.subr.mxu0 0.0
        %4936 = vmatpush2.msra.mxu0 0.0
        %4937 = vmatprep.subr.mxu0 0.0
        %4938 = vmatpush2.msra.mxu0 0.0
        %4939 = vmatprep.subr.mxu0 0.0
        %4940 = vmatpush2.msra.mxu0 0.0
        %4941 = vmatprep.subr.mxu0 0.0
        %4942 = vmatpush2.msra.mxu0 0.0
        %4943 = vmatprep.subr.mxu0 0.0
        %4944 = vmatpush2.msra.mxu0 0.0
        %4945 = vmatprep.subr.mxu0 0.0
        %4946 = vmatpush2.msra.mxu0 0.0
        %4947 = vmatprep.subr.mxu0 0.0
        %4948 = vmatpush2.msra.mxu0 0.0
        %4949 = vmatprep.subr.mxu0 0.0
        %4950 = vmatpush2.msra.mxu0 0.0
        %4951 = vmatprep.subr.mxu0 0.0
        %4952 = vmatpush2.msra.mxu0 0.0
        %4953 = vmatprep.subr.mxu0 0.0
        %4954 = vmatpush2.msra.mxu0 0.0
        %4955 = vmatprep.mubr.f32.mxu0 0.0
        %4956 = vmatmul.mubr.f32.gmra.mxu0 %v4446
        %v4957 = vpop.f32.mrf.mxu0
        %v4958 = vadd.f32 %v4746, %v4957
        %v4959 = vpop.f32.mrf.mxu0
        %v4960 = vadd.f32 %v4748, %v4959
        %4961 = vdwg.mxu0
        %4962 = vmatprep.subr.mxu0 0.0
        %4963 = vmatpush1.msra.mxu0 %v4526
        %4964 = vmatprep.subr.mxu0 0.0
        %4965 = vmatpush1.msra.mxu0 %v4521
        %4966 = vmatprep.subr.mxu0 0.0
        %4967 = vmatpush1.msra.mxu0 %v4516
        %4968 = vmatprep.subr.mxu0 0.0
        %4969 = vmatpush1.msra.mxu0 %v4511
        %4970 = vmatprep.subr.mxu0 0.0
        %4971 = vmatpush1.msra.mxu0 %v4506
        %4972 = vmatprep.subr.mxu0 0.0
        %4973 = vmatpush1.msra.mxu0 %v4501
        %4974 = vmatprep.subr.mxu0 0.0
        %4975 = vmatpush1.msra.mxu0 %v4496
        %4976 = vmatprep.subr.mxu0 0.0
        %4977 = vmatpush1.msra.mxu0 %v4491
        %4978 = vmatprep.subr.mxu0 0.0
        %4979 = vmatpush1.msra.mxu0 %v4486
        %4980 = vmatprep.subr.mxu0 0.0
        %4981 = vmatpush1.msra.mxu0 %v4481
        %4982 = vmatprep.subr.mxu0 0.0
        %4983 = vmatpush1.msra.mxu0 %v4476
        %4984 = vmatprep.subr.mxu0 0.0
        %4985 = vmatpush1.msra.mxu0 %v4471
        %4986 = vmatprep.subr.mxu0 0.0
        %4987 = vmatpush1.msra.mxu0 %v4466
        %4988 = vmatprep.subr.mxu0 0.0
        %4989 = vmatpush1.msra.mxu0 %v4461
        %4990 = vmatprep.subr.mxu0 0.0
        %4991 = vmatpush1.msra.mxu0 %v4456
        %4992 = vmatprep.subr.mxu0 0.0
        %4993 = vmatpush1.msra.mxu0 %v4451
        %4994 = vmatprep.subr.mxu0 0.0
        %4995 = vmatpush2.msra.mxu0 0.0
        %4996 = vmatprep.subr.mxu0 0.0
        %4997 = vmatpush2.msra.mxu0 0.0
        %4998 = vmatprep.subr.mxu0 0.0
        %4999 = vmatpush2.msra.mxu0 0.0
        %5000 = vmatprep.subr.mxu0 0.0
        %5001 = vmatpush2.msra.mxu0 0.0
        %5002 = vmatprep.subr.mxu0 0.0
        %5003 = vmatpush2.msra.mxu0 0.0
        %5004 = vmatprep.subr.mxu0 0.0
        %5005 = vmatpush2.msra.mxu0 0.0
        %5006 = vmatprep.subr.mxu0 0.0
        %5007 = vmatpush2.msra.mxu0 0.0
        %5008 = vmatprep.subr.mxu0 0.0
        %5009 = vmatpush2.msra.mxu0 0.0
        %5010 = vmatprep.subr.mxu0 0.0
        %5011 = vmatpush2.msra.mxu0 0.0
        %5012 = vmatprep.subr.mxu0 0.0
        %5013 = vmatpush2.msra.mxu0 0.0
        %5014 = vmatprep.subr.mxu0 0.0
        %5015 = vmatpush2.msra.mxu0 0.0
        %5016 = vmatprep.subr.mxu0 0.0
        %5017 = vmatpush2.msra.mxu0 0.0
        %5018 = vmatprep.subr.mxu0 0.0
        %5019 = vmatpush2.msra.mxu0 0.0
        %5020 = vmatprep.subr.mxu0 0.0
        %5021 = vmatpush2.msra.mxu0 0.0
        %5022 = vmatprep.subr.mxu0 0.0
        %5023 = vmatpush2.msra.mxu0 0.0
        %5024 = vmatprep.subr.mxu0 0.0
        %5025 = vmatpush2.msra.mxu0 0.0
        %5026 = vmatprep.mubr.f32.mxu0 0.0
        %5027 = vmatmul.mubr.f32.gmra.mxu0 %v4446
        %v5028 = vpop.f32.mrf.mxu0
        %v5029 = vadd.f32 %v4817, %v5028
        %v5030 = vpop.f32.mrf.mxu0
        %5031 = vdwg.mxu0
        %v5032 = vld [vmem:[%s2 + $0xf0] sm:$0xff]
        %v5033 = vld [vmem:[#allocation3 + $0x500] sm:$0xff]
        %v5034 = vld [vmem:[#allocation3 + $0x508] sm:$0xff]
        %v5035 = vld [vmem:[#allocation3 + $0x510] sm:$0xff]
        %v5036 = vld [vmem:[#allocation3 + $0x518] sm:$0xff]
        %v5037 = vld [vmem:[#allocation3 + $0x520] sm:$0xff]
        %v5038 = vld [vmem:[#allocation3 + $0x528] sm:$0xff]
        %v5039 = vld [vmem:[#allocation3 + $0x530] sm:$0xff]
        %v5040 = vld [vmem:[#allocation3 + $0x538] sm:$0xff]
        %v5041 = vld [vmem:[#allocation3 + $0x540] sm:$0xff]
        %v5042 = vld [vmem:[#allocation3 + $0x548] sm:$0xff]
        %v5043 = vld [vmem:[#allocation3 + $0x550] sm:$0xff]
        %v5044 = vld [vmem:[#allocation3 + $0x558] sm:$0xff]
        %v5045 = vld [vmem:[#allocation3 + $0x560] sm:$0xff]
        %v5046 = vld [vmem:[#allocation3 + $0x568] sm:$0xff]
        %v5047 = vld [vmem:[#allocation3 + $0x570] sm:$0xff]
        %v5048 = vld [vmem:[#allocation3 + $0x578] sm:$0xff]
        %v5049 = vld [vmem:[#allocation3 + $0x580] sm:$0xff]
        %v5050 = vld [vmem:[#allocation3 + $0x588] sm:$0xff]
        %v5051 = vld [vmem:[#allocation3 + $0x590] sm:$0xff]
        %v5052 = vld [vmem:[#allocation3 + $0x598] sm:$0xff]
        %v5053 = vld [vmem:[#allocation3 + $0x5a0] sm:$0xff]
        %v5054 = vld [vmem:[#allocation3 + $0x5a8] sm:$0xff]
        %v5055 = vld [vmem:[#allocation3 + $0x5b0] sm:$0xff]
        %v5056 = vld [vmem:[#allocation3 + $0x5b8] sm:$0xff]
        %v5057 = vld [vmem:[#allocation3 + $0x5c0] sm:$0xff]
        %v5058 = vld [vmem:[#allocation3 + $0x5c8] sm:$0xff]
        %v5059 = vld [vmem:[#allocation3 + $0x5d0] sm:$0xff]
        %v5060 = vld [vmem:[#allocation3 + $0x5d8] sm:$0xff]
        %v5061 = vld [vmem:[#allocation3 + $0x5e0] sm:$0xff]
        %v5062 = vld [vmem:[#allocation3 + $0x5e8] sm:$0xff]
        %v5063 = vld [vmem:[#allocation3 + $0x5f0] sm:$0xff]
        %v5064 = vld [vmem:[#allocation3 + $0x5f8] sm:$0xff]
        %v5065 = vld [vmem:[#allocation3 + $0x600] sm:$0xff]
        %v5066 = vld [vmem:[#allocation3 + $0x608] sm:$0xff]
        %v5067 = vld [vmem:[#allocation3 + $0x610] sm:$0xff]
        %v5068 = vld [vmem:[#allocation3 + $0x618] sm:$0xff]
        %v5069 = vld [vmem:[#allocation3 + $0x620] sm:$0xff]
        %v5070 = vld [vmem:[#allocation3 + $0x628] sm:$0xff]
        %v5071 = vld [vmem:[#allocation3 + $0x630] sm:$0xff]
        %v5072 = vld [vmem:[#allocation3 + $0x638] sm:$0xff]
        %v5073 = vld [vmem:[#allocation3 + $0x640] sm:$0xff]
        %v5074 = vld [vmem:[#allocation3 + $0x648] sm:$0xff]
        %v5075 = vld [vmem:[#allocation3 + $0x650] sm:$0xff]
        %v5076 = vld [vmem:[#allocation3 + $0x658] sm:$0xff]
        %v5077 = vld [vmem:[#allocation3 + $0x660] sm:$0xff]
        %v5078 = vld [vmem:[#allocation3 + $0x668] sm:$0xff]
        %v5079 = vld [vmem:[#allocation3 + $0x670] sm:$0xff]
        %v5080 = vld [vmem:[#allocation3 + $0x678] sm:$0xff]
        %v5081 = vld [vmem:[#allocation3 + $0x680] sm:$0xff]
        %v5082 = vld [vmem:[#allocation3 + $0x688] sm:$0xff]
        %v5083 = vld [vmem:[#allocation3 + $0x690] sm:$0xff]
        %v5084 = vld [vmem:[#allocation3 + $0x698] sm:$0xff]
        %v5085 = vld [vmem:[#allocation3 + $0x6a0] sm:$0xff]
        %v5086 = vld [vmem:[#allocation3 + $0x6a8] sm:$0xff]
        %v5087 = vld [vmem:[#allocation3 + $0x6b0] sm:$0xff]
        %v5088 = vld [vmem:[#allocation3 + $0x6b8] sm:$0xff]
        %v5089 = vld [vmem:[#allocation3 + $0x6c0] sm:$0xff]
        %v5090 = vld [vmem:[#allocation3 + $0x6c8] sm:$0xff]
        %v5091 = vld [vmem:[#allocation3 + $0x6d0] sm:$0xff]
        %v5092 = vld [vmem:[#allocation3 + $0x6d8] sm:$0xff]
        %v5093 = vld [vmem:[#allocation3 + $0x6e0] sm:$0xff]
        %v5094 = vld [vmem:[#allocation3 + $0x6e8] sm:$0xff]
        %v5095 = vld [vmem:[#allocation3 + $0x6f0] sm:$0xff]
        %v5096 = vld [vmem:[#allocation3 + $0x6f8] sm:$0xff]
        %v5097 = vld [vmem:[#allocation3 + $0x700] sm:$0xff]
        %v5098 = vld [vmem:[#allocation3 + $0x708] sm:$0xff]
        %v5099 = vld [vmem:[#allocation3 + $0x710] sm:$0xff]
        %v5100 = vld [vmem:[#allocation3 + $0x718] sm:$0xff]
        %v5101 = vld [vmem:[#allocation3 + $0x720] sm:$0xff]
        %v5102 = vld [vmem:[#allocation3 + $0x728] sm:$0xff]
        %v5103 = vld [vmem:[#allocation3 + $0x730] sm:$0xff]
        %v5104 = vld [vmem:[#allocation3 + $0x738] sm:$0xff]
        %v5105 = vld [vmem:[#allocation3 + $0x740] sm:$0xff]
        %v5106 = vld [vmem:[#allocation3 + $0x748] sm:$0xff]
        %v5107 = vld [vmem:[#allocation3 + $0x750] sm:$0xff]
        %v5108 = vld [vmem:[#allocation3 + $0x758] sm:$0xff]
        %v5109 = vld [vmem:[#allocation3 + $0x760] sm:$0xff]
        %v5110 = vld [vmem:[#allocation3 + $0x768] sm:$0xff]
        %v5111 = vld [vmem:[#allocation3 + $0x770] sm:$0xff]
        %v5112 = vld [vmem:[#allocation3 + $0x778] sm:$0xff]
        %5113 = vmatprep.subr.mxu0 %v5109
        %5114 = vmatpush1.msra.mxu0 %v5108
        %5115 = vmatprep.subr.mxu0 %v5104
        %5116 = vmatpush1.msra.mxu0 %v5103
        %5117 = vmatprep.subr.mxu0 %v5099
        %5118 = vmatpush1.msra.mxu0 %v5098
        %5119 = vmatprep.subr.mxu0 %v5094
        %5120 = vmatpush1.msra.mxu0 %v5093
        %5121 = vmatprep.subr.mxu0 %v5089
        %5122 = vmatpush1.msra.mxu0 %v5088
        %5123 = vmatprep.subr.mxu0 %v5084
        %5124 = vmatpush1.msra.mxu0 %v5083
        %5125 = vmatprep.subr.mxu0 %v5079
        %5126 = vmatpush1.msra.mxu0 %v5078
        %5127 = vmatprep.subr.mxu0 %v5074
        %5128 = vmatpush1.msra.mxu0 %v5073
        %5129 = vmatprep.subr.mxu0 %v5069
        %5130 = vmatpush1.msra.mxu0 %v5068
        %5131 = vmatprep.subr.mxu0 %v5064
        %5132 = vmatpush1.msra.mxu0 %v5063
        %5133 = vmatprep.subr.mxu0 %v5059
        %5134 = vmatpush1.msra.mxu0 %v5058
        %5135 = vmatprep.subr.mxu0 %v5054
        %5136 = vmatpush1.msra.mxu0 %v5053
        %5137 = vmatprep.subr.mxu0 %v5049
        %5138 = vmatpush1.msra.mxu0 %v5048
        %5139 = vmatprep.subr.mxu0 %v5044
        %5140 = vmatpush1.msra.mxu0 %v5043
        %5141 = vmatprep.subr.mxu0 %v5039
        %5142 = vmatpush1.msra.mxu0 %v5038
        %5143 = vmatprep.subr.mxu0 %v5034
        %5144 = vmatpush1.msra.mxu0 %v5033
        %5145 = vmatprep.subr.mxu0 0.0
        %5146 = vmatpush2.msra.mxu0 0.0
        %5147 = vmatprep.subr.mxu0 0.0
        %5148 = vmatpush2.msra.mxu0 0.0
        %5149 = vmatprep.subr.mxu0 0.0
        %5150 = vmatpush2.msra.mxu0 0.0
        %5151 = vmatprep.subr.mxu0 0.0
        %5152 = vmatpush2.msra.mxu0 0.0
        %5153 = vmatprep.subr.mxu0 0.0
        %5154 = vmatpush2.msra.mxu0 0.0
        %5155 = vmatprep.subr.mxu0 0.0
        %5156 = vmatpush2.msra.mxu0 0.0
        %5157 = vmatprep.subr.mxu0 0.0
        %5158 = vmatpush2.msra.mxu0 0.0
        %5159 = vmatprep.subr.mxu0 0.0
        %5160 = vmatpush2.msra.mxu0 0.0
        %5161 = vmatprep.subr.mxu0 0.0
        %5162 = vmatpush2.msra.mxu0 0.0
        %5163 = vmatprep.subr.mxu0 0.0
        %5164 = vmatpush2.msra.mxu0 0.0
        %5165 = vmatprep.subr.mxu0 0.0
        %5166 = vmatpush2.msra.mxu0 0.0
        %5167 = vmatprep.subr.mxu0 0.0
        %5168 = vmatpush2.msra.mxu0 0.0
        %5169 = vmatprep.subr.mxu0 0.0
        %5170 = vmatpush2.msra.mxu0 0.0
        %5171 = vmatprep.subr.mxu0 0.0
        %5172 = vmatpush2.msra.mxu0 0.0
        %5173 = vmatprep.subr.mxu0 0.0
        %5174 = vmatpush2.msra.mxu0 0.0
        %5175 = vmatprep.subr.mxu0 0.0
        %5176 = vmatpush2.msra.mxu0 0.0
        %5177 = vmatprep.mubr.f32.mxu0 0.0
        %5178 = vmatmul.mubr.f32.gmra.mxu0 %v5032
        %v5179 = vpop.f32.mrf.mxu0
        %v5180 = vadd.f32 0.0, %v5179
        %v5181 = vpop.f32.mrf.mxu0
        %v5182 = vadd.f32 0.0, %v5181
        %5183 = vdwg.mxu0
        %5184 = vmatprep.subr.mxu0 %v5111
        %5185 = vmatpush1.msra.mxu0 %v5110
        %5186 = vmatprep.subr.mxu0 %v5106
        %5187 = vmatpush1.msra.mxu0 %v5105
        %5188 = vmatprep.subr.mxu0 %v5101
        %5189 = vmatpush1.msra.mxu0 %v5100
        %5190 = vmatprep.subr.mxu0 %v5096
        %5191 = vmatpush1.msra.mxu0 %v5095
        %5192 = vmatprep.subr.mxu0 %v5091
        %5193 = vmatpush1.msra.mxu0 %v5090
        %5194 = vmatprep.subr.mxu0 %v5086
        %5195 = vmatpush1.msra.mxu0 %v5085
        %5196 = vmatprep.subr.mxu0 %v5081
        %5197 = vmatpush1.msra.mxu0 %v5080
        %5198 = vmatprep.subr.mxu0 %v5076
        %5199 = vmatpush1.msra.mxu0 %v5075
        %5200 = vmatprep.subr.mxu0 %v5071
        %5201 = vmatpush1.msra.mxu0 %v5070
        %5202 = vmatprep.subr.mxu0 %v5066
        %5203 = vmatpush1.msra.mxu0 %v5065
        %5204 = vmatprep.subr.mxu0 %v5061
        %5205 = vmatpush1.msra.mxu0 %v5060
        %5206 = vmatprep.subr.mxu0 %v5056
        %5207 = vmatpush1.msra.mxu0 %v5055
        %5208 = vmatprep.subr.mxu0 %v5051
        %5209 = vmatpush1.msra.mxu0 %v5050
        %5210 = vmatprep.subr.mxu0 %v5046
        %5211 = vmatpush1.msra.mxu0 %v5045
        %5212 = vmatprep.subr.mxu0 %v5041
        %5213 = vmatpush1.msra.mxu0 %v5040
        %5214 = vmatprep.subr.mxu0 %v5036
        %5215 = vmatpush1.msra.mxu0 %v5035
        %5216 = vmatprep.subr.mxu0 0.0
        %5217 = vmatpush2.msra.mxu0 0.0
        %5218 = vmatprep.subr.mxu0 0.0
        %5219 = vmatpush2.msra.mxu0 0.0
        %5220 = vmatprep.subr.mxu0 0.0
        %5221 = vmatpush2.msra.mxu0 0.0
        %5222 = vmatprep.subr.mxu0 0.0
        %5223 = vmatpush2.msra.mxu0 0.0
        %5224 = vmatprep.subr.mxu0 0.0
        %5225 = vmatpush2.msra.mxu0 0.0
        %5226 = vmatprep.subr.mxu0 0.0
        %5227 = vmatpush2.msra.mxu0 0.0
        %5228 = vmatprep.subr.mxu0 0.0
        %5229 = vmatpush2.msra.mxu0 0.0
        %5230 = vmatprep.subr.mxu0 0.0
        %5231 = vmatpush2.msra.mxu0 0.0
        %5232 = vmatprep.subr.mxu0 0.0
        %5233 = vmatpush2.msra.mxu0 0.0
        %5234 = vmatprep.subr.mxu0 0.0
        %5235 = vmatpush2.msra.mxu0 0.0
        %5236 = vmatprep.subr.mxu0 0.0
        %5237 = vmatpush2.msra.mxu0 0.0
        %5238 = vmatprep.subr.mxu0 0.0
        %5239 = vmatpush2.msra.mxu0 0.0
        %5240 = vmatprep.subr.mxu0 0.0
        %5241 = vmatpush2.msra.mxu0 0.0
        %5242 = vmatprep.subr.mxu0 0.0
        %5243 = vmatpush2.msra.mxu0 0.0
        %5244 = vmatprep.subr.mxu0 0.0
        %5245 = vmatpush2.msra.mxu0 0.0
        %5246 = vmatprep.subr.mxu0 0.0
        %5247 = vmatpush2.msra.mxu0 0.0
        %5248 = vmatprep.mubr.f32.mxu0 0.0
        %5249 = vmatmul.mubr.f32.gmra.mxu0 %v5032
        %v5250 = vpop.f32.mrf.mxu0
        %v5251 = vadd.f32 0.0, %v5250
        %v5252 = vpop.f32.mrf.mxu0
        %v5253 = vadd.f32 0.0, %v5252
        %5254 = vdwg.mxu0
        %5255 = vmatprep.subr.mxu0 0.0
        %5256 = vmatpush1.msra.mxu0 %v5112
        %5257 = vmatprep.subr.mxu0 0.0
        %5258 = vmatpush1.msra.mxu0 %v5107
        %5259 = vmatprep.subr.mxu0 0.0
        %5260 = vmatpush1.msra.mxu0 %v5102
        %5261 = vmatprep.subr.mxu0 0.0
        %5262 = vmatpush1.msra.mxu0 %v5097
        %5263 = vmatprep.subr.mxu0 0.0
        %5264 = vmatpush1.msra.mxu0 %v5092
        %5265 = vmatprep.subr.mxu0 0.0
        %5266 = vmatpush1.msra.mxu0 %v5087
        %5267 = vmatprep.subr.mxu0 0.0
        %5268 = vmatpush1.msra.mxu0 %v5082
        %5269 = vmatprep.subr.mxu0 0.0
        %5270 = vmatpush1.msra.mxu0 %v5077
        %5271 = vmatprep.subr.mxu0 0.0
        %5272 = vmatpush1.msra.mxu0 %v5072
        %5273 = vmatprep.subr.mxu0 0.0
        %5274 = vmatpush1.msra.mxu0 %v5067
        %5275 = vmatprep.subr.mxu0 0.0
        %5276 = vmatpush1.msra.mxu0 %v5062
        %5277 = vmatprep.subr.mxu0 0.0
        %5278 = vmatpush1.msra.mxu0 %v5057
        %5279 = vmatprep.subr.mxu0 0.0
        %5280 = vmatpush1.msra.mxu0 %v5052
        %5281 = vmatprep.subr.mxu0 0.0
        %5282 = vmatpush1.msra.mxu0 %v5047
        %5283 = vmatprep.subr.mxu0 0.0
        %5284 = vmatpush1.msra.mxu0 %v5042
        %5285 = vmatprep.subr.mxu0 0.0
        %5286 = vmatpush1.msra.mxu0 %v5037
        %5287 = vmatprep.subr.mxu0 0.0
        %5288 = vmatpush2.msra.mxu0 0.0
        %5289 = vmatprep.subr.mxu0 0.0
        %5290 = vmatpush2.msra.mxu0 0.0
        %5291 = vmatprep.subr.mxu0 0.0
        %5292 = vmatpush2.msra.mxu0 0.0
        %5293 = vmatprep.subr.mxu0 0.0
        %5294 = vmatpush2.msra.mxu0 0.0
        %5295 = vmatprep.subr.mxu0 0.0
        %5296 = vmatpush2.msra.mxu0 0.0
        %5297 = vmatprep.subr.mxu0 0.0
        %5298 = vmatpush2.msra.mxu0 0.0
        %5299 = vmatprep.subr.mxu0 0.0
        %5300 = vmatpush2.msra.mxu0 0.0
        %5301 = vmatprep.subr.mxu0 0.0
        %5302 = vmatpush2.msra.mxu0 0.0
        %5303 = vmatprep.subr.mxu0 0.0
        %5304 = vmatpush2.msra.mxu0 0.0
        %5305 = vmatprep.subr.mxu0 0.0
        %5306 = vmatpush2.msra.mxu0 0.0
        %5307 = vmatprep.subr.mxu0 0.0
        %5308 = vmatpush2.msra.mxu0 0.0
        %5309 = vmatprep.subr.mxu0 0.0
        %5310 = vmatpush2.msra.mxu0 0.0
        %5311 = vmatprep.subr.mxu0 0.0
        %5312 = vmatpush2.msra.mxu0 0.0
        %5313 = vmatprep.subr.mxu0 0.0
        %5314 = vmatpush2.msra.mxu0 0.0
        %5315 = vmatprep.subr.mxu0 0.0
        %5316 = vmatpush2.msra.mxu0 0.0
        %5317 = vmatprep.subr.mxu0 0.0
        %5318 = vmatpush2.msra.mxu0 0.0
        %5319 = vmatprep.mubr.f32.mxu0 0.0
        %5320 = vmatmul.mubr.f32.gmra.mxu0 %v5032
        %v5321 = vpop.f32.mrf.mxu0
        %v5322 = vadd.f32 0.0, %v5321
        %v5323 = vpop.f32.mrf.mxu0
        %5324 = vdwg.mxu0
        %v5325 = vadd.f32 %v4887, %v5180
        %v5326 = vadd.f32 %v4889, %v5182
        %v5327 = vadd.f32 %v4958, %v5251
        %v5328 = vadd.f32 %v4960, %v5253
        %v5329 = vadd.f32 %v5029, %v5322
        %v5330 = vld [vmem:[%s2 + $0xf8] sm:$0xff]
        %v5331 = vld [vmem:[#allocation3 + $0x780] sm:$0xff]
        %v5332 = vld [vmem:[#allocation3 + $0x788] sm:$0xff]
        %v5333 = vld [vmem:[#allocation3 + $0x790] sm:$0xff]
        %v5334 = vld [vmem:[#allocation3 + $0x798] sm:$0xff]
        %v5335 = vld [vmem:[#allocation3 + $0x7a0] sm:$0xff]
        %v5336 = vld [vmem:[#allocation3 + $0x7a8] sm:$0xff]
        %v5337 = vld [vmem:[#allocation3 + $0x7b0] sm:$0xff]
        %v5338 = vld [vmem:[#allocation3 + $0x7b8] sm:$0xff]
        %v5339 = vld [vmem:[#allocation3 + $0x7c0] sm:$0xff]
        %v5340 = vld [vmem:[#allocation3 + $0x7c8] sm:$0xff]
        %v5342 = vsel %vm760, %v5330, 0
        %5344 = vmatprep.subr.mxu0 0.0
        %5345 = vmatpush1.msra.mxu0 0.0
        %5346 = vmatprep.subr.mxu0 0.0
        %5347 = vmatpush1.msra.mxu0 0.0
        %5348 = vmatprep.subr.mxu0 0.0
        %5349 = vmatpush1.msra.mxu0 0.0
        %5350 = vmatprep.subr.mxu0 0.0
        %5351 = vmatpush1.msra.mxu0 0.0
        %5352 = vmatprep.subr.mxu0 0.0
        %5353 = vmatpush1.msra.mxu0 0.0
        %5354 = vmatprep.subr.mxu0 0.0
        %5355 = vmatpush1.msra.mxu0 0.0
        %5356 = vmatprep.subr.mxu0 0.0
        %5357 = vmatpush1.msra.mxu0 0.0
        %5358 = vmatprep.subr.mxu0 0.0
        %5359 = vmatpush1.msra.mxu0 0.0
        %5360 = vmatprep.subr.mxu0 0.0
        %5361 = vmatpush1.msra.mxu0 0.0
        %5362 = vmatprep.subr.mxu0 0.0
        %5363 = vmatpush1.msra.mxu0 0.0
        %5364 = vmatprep.subr.mxu0 0.0
        %5365 = vmatpush1.msra.mxu0 0.0
        %5366 = vmatprep.subr.mxu0 0.0
        %5367 = vmatpush1.msra.mxu0 0.0
        %5368 = vmatprep.subr.mxu0 0.0
        %5369 = vmatpush1.msra.mxu0 0.0
        %5370 = vmatprep.subr.mxu0 0.0
        %5371 = vmatpush1.msra.mxu0 0.0
        %5372 = vmatprep.subr.mxu0 %v5337
        %5373 = vmatpush1.msra.mxu0 %v5336
        %5374 = vmatprep.subr.mxu0 %v5332
        %5375 = vmatpush1.msra.mxu0 %v5331
        %5376 = vmatprep.subr.mxu0 0.0
        %5377 = vmatpush2.msra.mxu0 0.0
        %5378 = vmatprep.subr.mxu0 0.0
        %5379 = vmatpush2.msra.mxu0 0.0
        %5380 = vmatprep.subr.mxu0 0.0
        %5381 = vmatpush2.msra.mxu0 0.0
        %5382 = vmatprep.subr.mxu0 0.0
        %5383 = vmatpush2.msra.mxu0 0.0
        %5384 = vmatprep.subr.mxu0 0.0
        %5385 = vmatpush2.msra.mxu0 0.0
        %5386 = vmatprep.subr.mxu0 0.0
        %5387 = vmatpush2.msra.mxu0 0.0
        %5388 = vmatprep.subr.mxu0 0.0
        %5389 = vmatpush2.msra.mxu0 0.0
        %5390 = vmatprep.subr.mxu0 0.0
        %5391 = vmatpush2.msra.mxu0 0.0
        %5392 = vmatprep.subr.mxu0 0.0
        %5393 = vmatpush2.msra.mxu0 0.0
        %5394 = vmatprep.subr.mxu0 0.0
        %5395 = vmatpush2.msra.mxu0 0.0
        %5396 = vmatprep.subr.mxu0 0.0
        %5397 = vmatpush2.msra.mxu0 0.0
        %5398 = vmatprep.subr.mxu0 0.0
        %5399 = vmatpush2.msra.mxu0 0.0
        %5400 = vmatprep.subr.mxu0 0.0
        %5401 = vmatpush2.msra.mxu0 0.0
        %5402 = vmatprep.subr.mxu0 0.0
        %5403 = vmatpush2.msra.mxu0 0.0
        %5404 = vmatprep.subr.mxu0 0.0
        %5405 = vmatpush2.msra.mxu0 0.0
        %5406 = vmatprep.subr.mxu0 0.0
        %5407 = vmatpush2.msra.mxu0 0.0
        %5408 = vmatprep.mubr.f32.mxu0 0.0
        %5409 = vmatmul.mubr.f32.gmra.mxu0 %v5342
        %v5410 = vpop.f32.mrf.mxu0
        %v5411 = vadd.f32 0.0, %v5410
        %v5412 = vpop.f32.mrf.mxu0
        %v5413 = vadd.f32 0.0, %v5412
        %5414 = vdwg.mxu0
        %5415 = vmatprep.subr.mxu0 0.0
        %5416 = vmatpush1.msra.mxu0 0.0
        %5417 = vmatprep.subr.mxu0 0.0
        %5418 = vmatpush1.msra.mxu0 0.0
        %5419 = vmatprep.subr.mxu0 0.0
        %5420 = vmatpush1.msra.mxu0 0.0
        %5421 = vmatprep.subr.mxu0 0.0
        %5422 = vmatpush1.msra.mxu0 0.0
        %5423 = vmatprep.subr.mxu0 0.0
        %5424 = vmatpush1.msra.mxu0 0.0
        %5425 = vmatprep.subr.mxu0 0.0
        %5426 = vmatpush1.msra.mxu0 0.0
        %5427 = vmatprep.subr.mxu0 0.0
        %5428 = vmatpush1.msra.mxu0 0.0
        %5429 = vmatprep.subr.mxu0 0.0
        %5430 = vmatpush1.msra.mxu0 0.0
        %5431 = vmatprep.subr.mxu0 0.0
        %5432 = vmatpush1.msra.mxu0 0.0
        %5433 = vmatprep.subr.mxu0 0.0
        %5434 = vmatpush1.msra.mxu0 0.0
        %5435 = vmatprep.subr.mxu0 0.0
        %5436 = vmatpush1.msra.mxu0 0.0
        %5437 = vmatprep.subr.mxu0 0.0
        %5438 = vmatpush1.msra.mxu0 0.0
        %5439 = vmatprep.subr.mxu0 0.0
        %5440 = vmatpush1.msra.mxu0 0.0
        %5441 = vmatprep.subr.mxu0 0.0
        %5442 = vmatpush1.msra.mxu0 0.0
        %5443 = vmatprep.subr.mxu0 %v5339
        %5444 = vmatpush1.msra.mxu0 %v5338
        %5445 = vmatprep.subr.mxu0 %v5334
        %5446 = vmatpush1.msra.mxu0 %v5333
        %5447 = vmatprep.subr.mxu0 0.0
        %5448 = vmatpush2.msra.mxu0 0.0
        %5449 = vmatprep.subr.mxu0 0.0
        %5450 = vmatpush2.msra.mxu0 0.0
        %5451 = vmatprep.subr.mxu0 0.0
        %5452 = vmatpush2.msra.mxu0 0.0
        %5453 = vmatprep.subr.mxu0 0.0
        %5454 = vmatpush2.msra.mxu0 0.0
        %5455 = vmatprep.subr.mxu0 0.0
        %5456 = vmatpush2.msra.mxu0 0.0
        %5457 = vmatprep.subr.mxu0 0.0
        %5458 = vmatpush2.msra.mxu0 0.0
        %5459 = vmatprep.subr.mxu0 0.0
        %5460 = vmatpush2.msra.mxu0 0.0
        %5461 = vmatprep.subr.mxu0 0.0
        %5462 = vmatpush2.msra.mxu0 0.0
        %5463 = vmatprep.subr.mxu0 0.0
        %5464 = vmatpush2.msra.mxu0 0.0
        %5465 = vmatprep.subr.mxu0 0.0
        %5466 = vmatpush2.msra.mxu0 0.0
        %5467 = vmatprep.subr.mxu0 0.0
        %5468 = vmatpush2.msra.mxu0 0.0
        %5469 = vmatprep.subr.mxu0 0.0
        %5470 = vmatpush2.msra.mxu0 0.0
        %5471 = vmatprep.subr.mxu0 0.0
        %5472 = vmatpush2.msra.mxu0 0.0
        %5473 = vmatprep.subr.mxu0 0.0
        %5474 = vmatpush2.msra.mxu0 0.0
        %5475 = vmatprep.subr.mxu0 0.0
        %5476 = vmatpush2.msra.mxu0 0.0
        %5477 = vmatprep.subr.mxu0 0.0
        %5478 = vmatpush2.msra.mxu0 0.0
        %5479 = vmatprep.mubr.f32.mxu0 0.0
        %5480 = vmatmul.mubr.f32.gmra.mxu0 %v5342
        %v5481 = vpop.f32.mrf.mxu0
        %v5482 = vadd.f32 0.0, %v5481
        %v5483 = vpop.f32.mrf.mxu0
        %v5484 = vadd.f32 0.0, %v5483
        %5485 = vdwg.mxu0
        %5486 = vmatprep.subr.mxu0 0.0
        %5487 = vmatpush1.msra.mxu0 0.0
        %5488 = vmatprep.subr.mxu0 0.0
        %5489 = vmatpush1.msra.mxu0 0.0
        %5490 = vmatprep.subr.mxu0 0.0
        %5491 = vmatpush1.msra.mxu0 0.0
        %5492 = vmatprep.subr.mxu0 0.0
        %5493 = vmatpush1.msra.mxu0 0.0
        %5494 = vmatprep.subr.mxu0 0.0
        %5495 = vmatpush1.msra.mxu0 0.0
        %5496 = vmatprep.subr.mxu0 0.0
        %5497 = vmatpush1.msra.mxu0 0.0
        %5498 = vmatprep.subr.mxu0 0.0
        %5499 = vmatpush1.msra.mxu0 0.0
        %5500 = vmatprep.subr.mxu0 0.0
        %5501 = vmatpush1.msra.mxu0 0.0
        %5502 = vmatprep.subr.mxu0 0.0
        %5503 = vmatpush1.msra.mxu0 0.0
        %5504 = vmatprep.subr.mxu0 0.0
        %5505 = vmatpush1.msra.mxu0 0.0
        %5506 = vmatprep.subr.mxu0 0.0
        %5507 = vmatpush1.msra.mxu0 0.0
        %5508 = vmatprep.subr.mxu0 0.0
        %5509 = vmatpush1.msra.mxu0 0.0
        %5510 = vmatprep.subr.mxu0 0.0
        %5511 = vmatpush1.msra.mxu0 0.0
        %5512 = vmatprep.subr.mxu0 0.0
        %5513 = vmatpush1.msra.mxu0 0.0
        %5514 = vmatprep.subr.mxu0 0.0
        %5515 = vmatpush1.msra.mxu0 %v5340
        %5516 = vmatprep.subr.mxu0 0.0
        %5517 = vmatpush1.msra.mxu0 %v5335
        %5518 = vmatprep.subr.mxu0 0.0
        %5519 = vmatpush2.msra.mxu0 0.0
        %5520 = vmatprep.subr.mxu0 0.0
        %5521 = vmatpush2.msra.mxu0 0.0
        %5522 = vmatprep.subr.mxu0 0.0
        %5523 = vmatpush2.msra.mxu0 0.0
        %5524 = vmatprep.subr.mxu0 0.0
        %5525 = vmatpush2.msra.mxu0 0.0
        %5526 = vmatprep.subr.mxu0 0.0
        %5527 = vmatpush2.msra.mxu0 0.0
        %5528 = vmatprep.subr.mxu0 0.0
        %5529 = vmatpush2.msra.mxu0 0.0
        %5530 = vmatprep.subr.mxu0 0.0
        %5531 = vmatpush2.msra.mxu0 0.0
        %5532 = vmatprep.subr.mxu0 0.0
        %5533 = vmatpush2.msra.mxu0 0.0
        %5534 = vmatprep.subr.mxu0 0.0
        %5535 = vmatpush2.msra.mxu0 0.0
        %5536 = vmatprep.subr.mxu0 0.0
        %5537 = vmatpush2.msra.mxu0 0.0
        %5538 = vmatprep.subr.mxu0 0.0
        %5539 = vmatpush2.msra.mxu0 0.0
        %5540 = vmatprep.subr.mxu0 0.0
        %5541 = vmatpush2.msra.mxu0 0.0
        %5542 = vmatprep.subr.mxu0 0.0
        %5543 = vmatpush2.msra.mxu0 0.0
        %5544 = vmatprep.subr.mxu0 0.0
        %5545 = vmatpush2.msra.mxu0 0.0
        %5546 = vmatprep.subr.mxu0 0.0
        %5547 = vmatpush2.msra.mxu0 0.0
        %5548 = vmatprep.subr.mxu0 0.0
        %5549 = vmatpush2.msra.mxu0 0.0
        %5550 = vmatprep.mubr.f32.mxu0 0.0
        %5551 = vmatmul.mubr.f32.gmra.mxu0 %v5342
        %v5552 = vpop.f32.mrf.mxu0
        %v5553 = vadd.f32 0.0, %v5552
        %v5554 = vpop.f32.mrf.mxu0
        %5555 = vdwg.mxu0
        %v5556 = vadd.f32 %v5325, %v5411
        %v5557 = vadd.f32 %v5326, %v5413
        %v5558 = vadd.f32 %v5327, %v5482
        %v5559 = vadd.f32 %v5328, %v5484
        %v5560 = vadd.f32 %v5329, %v5553
        %5561 = vset.pattern.permute.xlu0 16
        %5562 = vperm.xlu0 %5561, %v5330
        %v5563 = vpop.permute.xlu0 %5562
        %v5565 = vadd.f32 %v5556, %v5563
        %v5566 = vadd.f32 %v5557, %v5563
        %v5567 = vadd.f32 %v5558, %v5563
        %v5568 = vadd.f32 %v5559, %v5563
        %v5569 = vadd.f32 %v5560, %v5563
        %5570 = vst [vmem:[%s208] sm:$0xff] %v5565
        %5571 = vst [vmem:[%s208 + $0x8] sm:$0xff] %v5566
        %5572 = vst [vmem:[%s208 + $0x10] sm:$0xff] %v5567
        %5573 = vst [vmem:[%s208 + $0x18] sm:$0xff] %v5568
        %5574 = vst [vmem:[%s208 + $0x20] sm:$0xff] %v5569
        %p5575 = scmp.lt.s32.totalorder %s16, 1
        %s5576 = scalar_select %p5575, %s16, 1
        %s5577 = smul.addr %s5576, 5
        %s5578 = smul.addr %s5577, 8
        %s5579 = scalar_lea.vmem %s4, %s5578
        // Predicated region
        $region41: #{fsrcnn_forward.1} parent=35 // pred_check
          %p5580 = pneg %p123
        $region42: #{fsrcnn_forward.1} parent=35 // pred_check_branch
          %5582 = sbr.rel (%p5580) target = $region44
        $region43: #{fsrcnn_forward.1} parent=35 // pred_region
          _
        $region44: #{fsrcnn_forward.1} parent=35 // pred_fallthru
          _
      $region36: #{fsrcnn_forward.1} parent=5 // pred_fallthru
        _
      %p5583 = scmp.le.s32.totalorder 2, %s11
      // Predicated region
      $region45: #{fsrcnn_forward.1} parent=5 // pred_check
        %p5584 = pneg %p5583
      $region46: #{fsrcnn_forward.1} parent=5 // pred_check_branch
        %5586 = sbr.rel (%p5584) target = $region48
      $region47: #{fsrcnn_forward.1} parent=5 // pred_region
        %s5587 = ssub.s32 %s11, 2
        // Predicated region
        $region49: #{fsrcnn_forward.1} parent=47 // pred_check
          %p5588 = pneg %p129
        $region50: #{fsrcnn_forward.1} parent=47 // pred_check_branch
          %5590 = sbr.rel (%p5588) target = $region52
        $region51: #{fsrcnn_forward.1} parent=47 // pred_region
          %p5591 = scmp.lt.s32.totalorder %s17, 1
          %s5592 = scalar_select %p5591, %s17, 1
          %s5593 = smul.addr %s5592, 5
          %s5594 = smul.addr %s5593, 8
          %s5595 = scalar_lea.vmem %s4, %s5594
        $region52: #{fsrcnn_forward.1} parent=47 // pred_fallthru
          _
      $region48: #{fsrcnn_forward.1} parent=5 // pred_fallthru
        _
    $region6: #{fsrcnn_forward.1} parent=1 // loop_footer
      %s15 = sadd.s32 1, %s11
    $region7: #{fsrcnn_forward.1} parent=1 // loop_footer_branch
      %10 = sbr.rel target = $region3
    $region8: #{fsrcnn_forward.1} parent=1 // loop_exit
      _
    %5596 = vsyncpa [#allocation5], 1
    %s5597 = scalar_lea.sflag [#allocation5], 1
    %5598 = vsyncpa %s5597, 1

</llo_original>
